<compile_context>
chip_gen: v5e
topology: v5e:2x2
jax: 0.10.0
libtpu: 0.0.40
codegen_flags: <defaults>
</compile_context>

<pallas_src>
import functools

import jax
import jax.numpy as jnp
from jax.experimental import pallas as pl
from jax.experimental.pallas import tpu as pltpu

F32_MIN = float(jnp.finfo(jnp.float32).min)
LN_EPS = 1e-5                      # torch nn.LayerNorm default eps
INV_SQRT2 = 0.7071067811865476

_N_CROSS_PARAMS = 18               # 6 LN + 8 MHA + 4 FFN tensors
_N_SELF_PARAMS = 16                # 4 LN + 8 MHA + 4 FFN tensors


# --------------------------------------------------------------------------
# In-kernel building blocks (operate on plain f32 arrays already in VMEM/vregs)
# --------------------------------------------------------------------------
def _ln(x, g, b):
    mean = jnp.mean(x, axis=-1, keepdims=True)
    xc = x - mean
    var = jnp.mean(xc * xc, axis=-1, keepdims=True)
    return xc * jax.lax.rsqrt(var + LN_EPS) * g + b


def _gelu(x):
    # exact GELU (torch nn.GELU default, approximate='none')
    return 0.5 * x * (1.0 + jax.lax.erf(x * INV_SQRT2))


def _mha(x_kv, x_q, p_refs, num_heads, add_mask=None, mul_mask=None):
    """Multi-head attention on one batch slice.  x_kv: (M, C), x_q: (N, Dq)."""
    wq, bq, wk, bk, wv, bv, wp, bp = [r[...] for r in p_refs]
    q = jnp.dot(x_q, wq, preferred_element_type=jnp.float32) + bq      # (N, QK)
    k = jnp.dot(x_kv, wk, preferred_element_type=jnp.float32) + bk     # (M, QK)
    v = jnp.dot(x_kv, wv, preferred_element_type=jnp.float32) + bv     # (M, V)

    qk_out = wq.shape[1]
    v_out = wv.shape[1]
    hd = qk_out // num_heads
    vd = v_out // num_heads
    scale = float(hd) ** (-0.5)

    outs = []
    for h in range(num_heads):                       # heads in-kernel (static slices)
        qh = q[:, h * hd:(h + 1) * hd]
        kh = k[:, h * hd:(h + 1) * hd]
        vh = v[:, h * vd:(h + 1) * vd]
        s = jax.lax.dot_general(qh, kh, (((1,), (1,)), ((), ())),
                                preferred_element_type=jnp.float32) * scale   # (N, M)
        if add_mask is not None:
            s = s + add_mask                          # additive mask (ref semantics)
        mx = jnp.max(s, axis=-1, keepdims=True)
        e = jnp.exp(s - mx)
        attn = e * pl.reciprocal(jnp.sum(e, axis=-1, keepdims=True), approx=True)
        if mul_mask is not None:
            attn = attn * mul_mask                    # masked_fill(~mask, 0)
        outs.append(jnp.dot(attn, vh, preferred_element_type=jnp.float32))    # (N, vd)
    w = outs[0] if num_heads == 1 else jnp.concatenate(outs, axis=-1)         # (N, V)
    return jnp.dot(w, wp, preferred_element_type=jnp.float32) + bp


def _ffn(x, p_refs):
    w1, b1, w2, b2 = [r[...] for r in p_refs]
    h = jnp.dot(x, w1, preferred_element_type=jnp.float32) + b1
    h = _gelu(h)
    return jnp.dot(h, w2, preferred_element_type=jnp.float32) + b2


def _cross_layer(x_kv, x_q, cp_refs, num_heads, add_mask, mul_mask):
    ln_kv_g, ln_kv_b, ln_q_g, ln_q_b, ln_qkv_g, ln_qkv_b = \
        [r[...] for r in cp_refs[:6]]
    attn = _mha(_ln(x_kv, ln_kv_g, ln_kv_b), _ln(x_q, ln_q_g, ln_q_b),
                cp_refs[6:14], num_heads, add_mask, mul_mask)
    x = x_q + attn                                    # use_query_residual=True
    return x + _ffn(_ln(x, ln_qkv_g, ln_qkv_b), cp_refs[14:18])


def _self_layer(x, sp_refs, num_heads):
    ln_g, ln_b, ln_qkv_g, ln_qkv_b = [r[...] for r in sp_refs[:4]]
    xn = _ln(x, ln_g, ln_b)
    x = x + _mha(xn, xn, sp_refs[4:12], num_heads)
    return x + _ffn(_ln(x, ln_qkv_g, ln_qkv_b), sp_refs[12:16])


# --------------------------------------------------------------------------
# Fused encoder kernel: one grid step processes one batch element end-to-end.
# --------------------------------------------------------------------------
def _encoder_kernel(*refs, num_blocks, num_cross_heads, num_self_heads,
                    num_self_layers):
    rg_ref, mask_ref, lat_ref = refs[:3]
    out_ref = refs[-1]
    w_refs = refs[3:-1]

    cross_refs = w_refs[:_N_CROSS_PARAMS]
    self_refs = [
        w_refs[_N_CROSS_PARAMS + i * _N_SELF_PARAMS:
               _N_CROSS_PARAMS + (i + 1) * _N_SELF_PARAMS]
        for i in range(num_self_layers)
    ]

    kv = rg_ref[0]                                    # (M, ND)
    inv = mask_ref[0]                                 # (1, M), 1.0 == invalid point
    # Reference masking (attention_mask == rg_invalid):
    #   extended_mask = ~attention_mask * finfo.min  -> min added where VALID
    #   attention.masked_fill(~attention_mask, 0)    -> zeroed where VALID
    add_mask = (1.0 - inv) * F32_MIN
    mul_mask = inv

    x = lat_ref[...]                                  # (N, D) shared latent init
    x = _cross_layer(kv, x, cross_refs, num_cross_heads, add_mask, mul_mask)

    def block_body(_, x):
        for sr in self_refs:                          # weights shared across blocks
            x = _self_layer(x, sr, num_self_heads)
        return x

    x = jax.lax.fori_loop(0, num_blocks, block_body, x)
    out_ref[0] = x                                    # single HBM store (final latents)


# --------------------------------------------------------------------------
# Parameter flattening + forward wrapper (single pallas_call)
# --------------------------------------------------------------------------
def _row(v):
    return v.reshape(1, -1)


def _flatten_mha(p):
    return [p['wq'], _row(p['bq']), p['wk'], _row(p['bk']),
            p['wv'], _row(p['bv']), p['wp'], _row(p['bp'])]


def _flatten_ff(p):
    return [p['w1'], _row(p['b1']), p['w2'], _row(p['b2'])]


def _flatten_cross(c):
    return ([_row(c['ln_kv_g']), _row(c['ln_kv_b']),
             _row(c['ln_q_g']), _row(c['ln_q_b']),
             _row(c['ln_qkv_g']), _row(c['ln_qkv_b'])]
            + _flatten_mha(c['mha']) + _flatten_ff(c['ff']))


def _flatten_self(s):
    return ([_row(s['ln_g']), _row(s['ln_b']),
             _row(s['ln_qkv_g']), _row(s['ln_qkv_b'])]
            + _flatten_mha(s['mha']) + _flatten_ff(s['ff']))


def perciever_encoder_forward(params, road_graph, road_graph_validity, cfg):
    """Equivalent of PercieverEncoder.forward — one fused pallas_call."""
    B, NL, NP, ND = road_graph.shape
    M = NL * NP
    rg = road_graph.reshape(B, M, ND).astype(jnp.float32)
    rg_invalid = jnp.all(road_graph_validity == 0.0, axis=-1)          # True = invalid
    rg_invalid = rg_invalid.reshape(B, 1, M).astype(jnp.float32)

    latents = params['latents'].astype(jnp.float32)                    # (N, D)
    N, D = latents.shape

    flat_w = _flatten_cross(params['cross'])
    for sp in params['self_blocks']:
        flat_w += _flatten_self(sp)
    num_self_layers = len(params['self_blocks'])

    kernel = functools.partial(
        _encoder_kernel,
        num_blocks=cfg['num_blocks'],
        num_cross_heads=cfg['num_cross_attn_heads'],
        num_self_heads=cfg['num_self_attn_heads'],
        num_self_layers=num_self_layers,
    )

    in_specs = (
        [pl.BlockSpec((1, M, ND), lambda b: (b, 0, 0)),    # road graph, per batch
         pl.BlockSpec((1, 1, M), lambda b: (b, 0, 0)),     # invalid mask, per batch
         pl.BlockSpec((N, D), lambda b: (0, 0))]           # shared latents (resident)
        + [pl.BlockSpec(tuple(w.shape), lambda b: (0, 0))  # all weights (resident)
           for w in flat_w]
    )

    return pl.pallas_call(
        kernel,
        out_shape=jax.ShapeDtypeStruct((B, N, D), jnp.float32),
        grid=(B,),
        in_specs=in_specs,
        out_specs=pl.BlockSpec((1, N, D), lambda b: (b, 0, 0)),
        compiler_params=pltpu.CompilerParams(
            dimension_semantics=("parallel",)),
    )(rg, rg_invalid, latents, *flat_w)


# --------------------------------------------------------------------------
# Deterministic parameter initialization (shapes follow the module __init__)
# --------------------------------------------------------------------------
def init_linear(key, din, dout):
    k1, k2 = jax.random.split(key)
    bound = 1.0 / (din ** 0.5)
    w = jax.random.uniform(k1, (din, dout), jnp.float32, -bound, bound)
    b = jax.random.uniform(k2, (dout,), jnp.float32, -bound, bound)
    return w, b


def init_mha(key, kv_dim, q_dim, qk_out, v_out, out_dim):
    ks = jax.random.split(key, 4)
    wq, bq = init_linear(ks[0], q_dim, qk_out)
    wk, bk = init_linear(ks[1], kv_dim, qk_out)
    wv, bv = init_linear(ks[2], kv_dim, v_out)
    wp, bp = init_linear(ks[3], v_out, out_dim)
    return dict(wq=wq, bq=bq, wk=wk, bk=bk, wv=wv, bv=bv, wp=wp, bp=bp)


def init_ff(key, dim, widening):
    k1, k2 = jax.random.split(key)
    w1, b1 = init_linear(k1, dim, dim * widening)
    w2, b2 = init_linear(k2, dim * widening, dim)
    return dict(w1=w1, b1=b1, w2=w2, b2=b2)


def init_cross_attn(key, kv_dim, q_dim, qk_out, v_out, widening):
    k1, k2 = jax.random.split(key)
    return dict(
        ln_kv_g=jnp.ones((kv_dim,), jnp.float32), ln_kv_b=jnp.zeros((kv_dim,), jnp.float32),
        ln_q_g=jnp.ones((q_dim,), jnp.float32), ln_q_b=jnp.zeros((q_dim,), jnp.float32),
        ln_qkv_g=jnp.ones((q_dim,), jnp.float32), ln_qkv_b=jnp.zeros((q_dim,), jnp.float32),
        mha=init_mha(k1, kv_dim, q_dim, qk_out, v_out, q_dim),
        ff=init_ff(k2, q_dim, widening),
    )


def init_self_attn(key, hidden_dim, qk_out, v_out, widening):
    k1, k2 = jax.random.split(key)
    return dict(
        ln_g=jnp.ones((hidden_dim,), jnp.float32), ln_b=jnp.zeros((hidden_dim,), jnp.float32),
        ln_qkv_g=jnp.ones((hidden_dim,), jnp.float32), ln_qkv_b=jnp.zeros((hidden_dim,), jnp.float32),
        mha=init_mha(k1, hidden_dim, hidden_dim, qk_out, v_out, hidden_dim),
        ff=init_ff(k2, hidden_dim, widening),
    )


def init_params(key, num_latents, latent_dim, input_dim, cfg):
    keys = jax.random.split(key, 2 + cfg['num_self_attn_per_block'])
    return dict(
        latents=jax.random.normal(keys[0], (num_latents, latent_dim), jnp.float32),
        cross=init_cross_attn(keys[1], kv_dim=input_dim, q_dim=latent_dim,
                              qk_out=latent_dim, v_out=latent_dim,
                              widening=cfg['cross_attn_widening_factor']),
        self_blocks=[init_self_attn(keys[2 + i], hidden_dim=latent_dim,
                                    qk_out=latent_dim, v_out=latent_dim,
                                    widening=cfg['self_attn_widening_factor'])
                     for i in range(cfg['num_self_attn_per_block'])],
    )


# --------------------------------------------------------------------------
if __name__ == "__main__":
    key = jax.random.PRNGKey(0)

    # Small, forward-consistent shapes.
    B, NL, NP, ND = 2, 4, 8, 8          # road_graph: (B, NL, NP, ND), M = 32
    num_latents, latent_dim = 16, 32

    cfg = dict(num_blocks=4,
               num_self_attn_per_block=2,
               num_cross_attn_heads=1,
               num_self_attn_heads=8,
               cross_attn_widening_factor=1,
               self_attn_widening_factor=1)

    k_param, k_rg, k_rgv = jax.random.split(key, 3)
    params = init_params(k_param, num_latents, latent_dim, ND, cfg)

    road_graph = jax.random.normal(k_rg, (B, NL, NP, ND), jnp.float32)
    # validity channels: some points have all-zero validity -> "invalid"
    road_graph_validity = jax.random.bernoulli(
        k_rgv, 0.7, (B, NL, NP, 2)).astype(jnp.float32)

    fwd = jax.jit(functools.partial(perciever_encoder_forward, cfg=cfg))
    latents = fwd(params, road_graph, road_graph_validity)
    jax.block_until_ready(latents)

    assert latents.shape == (B, num_latents, latent_dim)
    assert bool(jnp.all(jnp.isfinite(latents)))
    print("KERNEL_OK")
</pallas_src>

<mosaic_0001>
module attributes {stable_mosaic.version = 11 : i64} {
  func.func @_encoder_kernel(%arg0: i32, %arg1: memref<1x32x8xf32, #tpu.memory_space<vmem>>, %arg2: memref<1x1x32xf32, #tpu.memory_space<vmem>>, %arg3: memref<16x32xf32, #tpu.memory_space<vmem>>, %arg4: memref<1x8xf32, #tpu.memory_space<vmem>>, %arg5: memref<1x8xf32, #tpu.memory_space<vmem>>, %arg6: memref<1x32xf32, #tpu.memory_space<vmem>>, %arg7: memref<1x32xf32, #tpu.memory_space<vmem>>, %arg8: memref<1x32xf32, #tpu.memory_space<vmem>>, %arg9: memref<1x32xf32, #tpu.memory_space<vmem>>, %arg10: memref<32x32xf32, #tpu.memory_space<vmem>>, %arg11: memref<1x32xf32, #tpu.memory_space<vmem>>, %arg12: memref<8x32xf32, #tpu.memory_space<vmem>>, %arg13: memref<1x32xf32, #tpu.memory_space<vmem>>, %arg14: memref<8x32xf32, #tpu.memory_space<vmem>>, %arg15: memref<1x32xf32, #tpu.memory_space<vmem>>, %arg16: memref<32x32xf32, #tpu.memory_space<vmem>>, %arg17: memref<1x32xf32, #tpu.memory_space<vmem>>, %arg18: memref<32x32xf32, #tpu.memory_space<vmem>>, %arg19: memref<1x32xf32, #tpu.memory_space<vmem>>, %arg20: memref<32x32xf32, #tpu.memory_space<vmem>>, %arg21: memref<1x32xf32, #tpu.memory_space<vmem>>, %arg22: memref<1x32xf32, #tpu.memory_space<vmem>>, %arg23: memref<1x32xf32, #tpu.memory_space<vmem>>, %arg24: memref<1x32xf32, #tpu.memory_space<vmem>>, %arg25: memref<1x32xf32, #tpu.memory_space<vmem>>, %arg26: memref<32x32xf32, #tpu.memory_space<vmem>>, %arg27: memref<1x32xf32, #tpu.memory_space<vmem>>, %arg28: memref<32x32xf32, #tpu.memory_space<vmem>>, %arg29: memref<1x32xf32, #tpu.memory_space<vmem>>, %arg30: memref<32x32xf32, #tpu.memory_space<vmem>>, %arg31: memref<1x32xf32, #tpu.memory_space<vmem>>, %arg32: memref<32x32xf32, #tpu.memory_space<vmem>>, %arg33: memref<1x32xf32, #tpu.memory_space<vmem>>, %arg34: memref<32x32xf32, #tpu.memory_space<vmem>>, %arg35: memref<1x32xf32, #tpu.memory_space<vmem>>, %arg36: memref<32x32xf32, #tpu.memory_space<vmem>>, %arg37: memref<1x32xf32, #tpu.memory_space<vmem>>, %arg38: memref<1x32xf32, #tpu.memory_space<vmem>>, %arg39: memref<1x32xf32, #tpu.memory_space<vmem>>, %arg40: memref<1x32xf32, #tpu.memory_space<vmem>>, %arg41: memref<1x32xf32, #tpu.memory_space<vmem>>, %arg42: memref<32x32xf32, #tpu.memory_space<vmem>>, %arg43: memref<1x32xf32, #tpu.memory_space<vmem>>, %arg44: memref<32x32xf32, #tpu.memory_space<vmem>>, %arg45: memref<1x32xf32, #tpu.memory_space<vmem>>, %arg46: memref<32x32xf32, #tpu.memory_space<vmem>>, %arg47: memref<1x32xf32, #tpu.memory_space<vmem>>, %arg48: memref<32x32xf32, #tpu.memory_space<vmem>>, %arg49: memref<1x32xf32, #tpu.memory_space<vmem>>, %arg50: memref<32x32xf32, #tpu.memory_space<vmem>>, %arg51: memref<1x32xf32, #tpu.memory_space<vmem>>, %arg52: memref<32x32xf32, #tpu.memory_space<vmem>>, %arg53: memref<1x32xf32, #tpu.memory_space<vmem>>, %arg54: memref<1x16x32xf32, #tpu.memory_space<vmem>>) attributes {dimension_semantics = [#tpu.dimension_semantics<parallel>], iteration_bounds = array<i64: 2>, scalar_prefetch = 0 : i64, scratch_operands = 0 : i64, tpu.core_type = #tpu.core_type<tc>, window_params = [{transform_indices = @transform_0, window_bounds = array<i64: 1, 32, 8>}, {transform_indices = @transform_1, window_bounds = array<i64: 1, 1, 32>}, {pipeline_mode = #tpu.pipeline_mode<synchronous>, transform_indices = @transform_2, window_bounds = array<i64: 16, 32>}, {pipeline_mode = #tpu.pipeline_mode<synchronous>, transform_indices = @transform_3, window_bounds = array<i64: 1, 8>}, {pipeline_mode = #tpu.pipeline_mode<synchronous>, transform_indices = @transform_4, window_bounds = array<i64: 1, 8>}, {pipeline_mode = #tpu.pipeline_mode<synchronous>, transform_indices = @transform_5, window_bounds = array<i64: 1, 32>}, {pipeline_mode = #tpu.pipeline_mode<synchronous>, transform_indices = @transform_6, window_bounds = array<i64: 1, 32>}, {pipeline_mode = #tpu.pipeline_mode<synchronous>, transform_indices = @transform_7, window_bounds = array<i64: 1, 32>}, {pipeline_mode = #tpu.pipeline_mode<synchronous>, transform_indices = @transform_8, window_bounds = array<i64: 1, 32>}, {pipeline_mode = #tpu.pipeline_mode<synchronous>, transform_indices = @transform_9, window_bounds = array<i64: 32, 32>}, {pipeline_mode = #tpu.pipeline_mode<synchronous>, transform_indices = @transform_10, window_bounds = array<i64: 1, 32>}, {pipeline_mode = #tpu.pipeline_mode<synchronous>, transform_indices = @transform_11, window_bounds = array<i64: 8, 32>}, {pipeline_mode = #tpu.pipeline_mode<synchronous>, transform_indices = @transform_12, window_bounds = array<i64: 1, 32>}, {pipeline_mode = #tpu.pipeline_mode<synchronous>, transform_indices = @transform_13, window_bounds = array<i64: 8, 32>}, {pipeline_mode = #tpu.pipeline_mode<synchronous>, transform_indices = @transform_14, window_bounds = array<i64: 1, 32>}, {pipeline_mode = #tpu.pipeline_mode<synchronous>, transform_indices = @transform_15, window_bounds = array<i64: 32, 32>}, {pipeline_mode = #tpu.pipeline_mode<synchronous>, transform_indices = @transform_16, window_bounds = array<i64: 1, 32>}, {pipeline_mode = #tpu.pipeline_mode<synchronous>, transform_indices = @transform_17, window_bounds = array<i64: 32, 32>}, {pipeline_mode = #tpu.pipeline_mode<synchronous>, transform_indices = @transform_18, window_bounds = array<i64: 1, 32>}, {pipeline_mode = #tpu.pipeline_mode<synchronous>, transform_indices = @transform_19, window_bounds = array<i64: 32, 32>}, {pipeline_mode = #tpu.pipeline_mode<synchronous>, transform_indices = @transform_20, window_bounds = array<i64: 1, 32>}, {pipeline_mode = #tpu.pipeline_mode<synchronous>, transform_indices = @transform_21, window_bounds = array<i64: 1, 32>}, {pipeline_mode = #tpu.pipeline_mode<synchronous>, transform_indices = @transform_22, window_bounds = array<i64: 1, 32>}, {pipeline_mode = #tpu.pipeline_mode<synchronous>, transform_indices = @transform_23, window_bounds = array<i64: 1, 32>}, {pipeline_mode = #tpu.pipeline_mode<synchronous>, transform_indices = @transform_24, window_bounds = array<i64: 1, 32>}, {pipeline_mode = #tpu.pipeline_mode<synchronous>, transform_indices = @transform_25, window_bounds = array<i64: 32, 32>}, {pipeline_mode = #tpu.pipeline_mode<synchronous>, transform_indices = @transform_26, window_bounds = array<i64: 1, 32>}, {pipeline_mode = #tpu.pipeline_mode<synchronous>, transform_indices = @transform_27, window_bounds = array<i64: 32, 32>}, {pipeline_mode = #tpu.pipeline_mode<synchronous>, transform_indices = @transform_28, window_bounds = array<i64: 1, 32>}, {pipeline_mode = #tpu.pipeline_mode<synchronous>, transform_indices = @transform_29, window_bounds = array<i64: 32, 32>}, {pipeline_mode = #tpu.pipeline_mode<synchronous>, transform_indices = @transform_30, window_bounds = array<i64: 1, 32>}, {pipeline_mode = #tpu.pipeline_mode<synchronous>, transform_indices = @transform_31, window_bounds = array<i64: 32, 32>}, {pipeline_mode = #tpu.pipeline_mode<synchronous>, transform_indices = @transform_32, window_bounds = array<i64: 1, 32>}, {pipeline_mode = #tpu.pipeline_mode<synchronous>, transform_indices = @transform_33, window_bounds = array<i64: 32, 32>}, {pipeline_mode = #tpu.pipeline_mode<synchronous>, transform_indices = @transform_34, window_bounds = array<i64: 1, 32>}, {pipeline_mode = #tpu.pipeline_mode<synchronous>, transform_indices = @transform_35, window_bounds = array<i64: 32, 32>}, {pipeline_mode = #tpu.pipeline_mode<synchronous>, transform_indices = @transform_36, window_bounds = array<i64: 1, 32>}, {pipeline_mode = #tpu.pipeline_mode<synchronous>, transform_indices = @transform_37, window_bounds = array<i64: 1, 32>}, {pipeline_mode = #tpu.pipeline_mode<synchronous>, transform_indices = @transform_38, window_bounds = array<i64: 1, 32>}, {pipeline_mode = #tpu.pipeline_mode<synchronous>, transform_indices = @transform_39, window_bounds = array<i64: 1, 32>}, {pipeline_mode = #tpu.pipeline_mode<synchronous>, transform_indices = @transform_40, window_bounds = array<i64: 1, 32>}, {pipeline_mode = #tpu.pipeline_mode<synchronous>, transform_indices = @transform_41, window_bounds = array<i64: 32, 32>}, {pipeline_mode = #tpu.pipeline_mode<synchronous>, transform_indices = @transform_42, window_bounds = array<i64: 1, 32>}, {pipeline_mode = #tpu.pipeline_mode<synchronous>, transform_indices = @transform_43, window_bounds = array<i64: 32, 32>}, {pipeline_mode = #tpu.pipeline_mode<synchronous>, transform_indices = @transform_44, window_bounds = array<i64: 1, 32>}, {pipeline_mode = #tpu.pipeline_mode<synchronous>, transform_indices = @transform_45, window_bounds = array<i64: 32, 32>}, {pipeline_mode = #tpu.pipeline_mode<synchronous>, transform_indices = @transform_46, window_bounds = array<i64: 1, 32>}, {pipeline_mode = #tpu.pipeline_mode<synchronous>, transform_indices = @transform_47, window_bounds = array<i64: 32, 32>}, {pipeline_mode = #tpu.pipeline_mode<synchronous>, transform_indices = @transform_48, window_bounds = array<i64: 1, 32>}, {pipeline_mode = #tpu.pipeline_mode<synchronous>, transform_indices = @transform_49, window_bounds = array<i64: 32, 32>}, {pipeline_mode = #tpu.pipeline_mode<synchronous>, transform_indices = @transform_50, window_bounds = array<i64: 1, 32>}, {pipeline_mode = #tpu.pipeline_mode<synchronous>, transform_indices = @transform_51, window_bounds = array<i64: 32, 32>}, {pipeline_mode = #tpu.pipeline_mode<synchronous>, transform_indices = @transform_52, window_bounds = array<i64: 1, 32>}, {transform_indices = @transform_53, window_bounds = array<i64: 1, 16, 32>}]} {
    %c0 = arith.constant 0 : index
    %c0_0 = arith.constant 0 : index
    %c0_1 = arith.constant 0 : index
    %0 = vector.load %arg1[%c0, %c0_0, %c0_1] : memref<1x32x8xf32, #tpu.memory_space<vmem>>, vector<1x32x8xf32>
    %1 = vector.shape_cast %0 : vector<1x32x8xf32> to vector<32x8xf32>
    %c0_2 = arith.constant 0 : index
    %c0_3 = arith.constant 0 : index
    %c0_4 = arith.constant 0 : index
    %2 = vector.load %arg2[%c0_2, %c0_3, %c0_4] : memref<1x1x32xf32, #tpu.memory_space<vmem>>, vector<1x1x32xf32>
    %3 = vector.shape_cast %2 : vector<1x1x32xf32> to vector<1x32xf32>
    %cst = arith.constant 1.000000e+00 : f32
    %4 = vector.broadcast %cst : f32 to vector<1x32xf32>
    %5 = arith.subf %4, %3 : vector<1x32xf32>
    %cst_5 = arith.constant -3.40282347E+38 : f32
    %6 = vector.broadcast %cst_5 : f32 to vector<1x32xf32>
    %7 = arith.mulf %5, %6 : vector<1x32xf32>
    %c0_6 = arith.constant 0 : index
    %c0_7 = arith.constant 0 : index
    %8 = vector.load %arg3[%c0_6, %c0_7] : memref<16x32xf32, #tpu.memory_space<vmem>>, vector<16x32xf32>
    %c0_8 = arith.constant 0 : index
    %c0_9 = arith.constant 0 : index
    %9 = vector.load %arg4[%c0_8, %c0_9] : memref<1x8xf32, #tpu.memory_space<vmem>>, vector<1x8xf32>
    %c0_10 = arith.constant 0 : index
    %c0_11 = arith.constant 0 : index
    %10 = vector.load %arg5[%c0_10, %c0_11] : memref<1x8xf32, #tpu.memory_space<vmem>>, vector<1x8xf32>
    %c0_12 = arith.constant 0 : index
    %c0_13 = arith.constant 0 : index
    %11 = vector.load %arg6[%c0_12, %c0_13] : memref<1x32xf32, #tpu.memory_space<vmem>>, vector<1x32xf32>
    %c0_14 = arith.constant 0 : index
    %c0_15 = arith.constant 0 : index
    %12 = vector.load %arg7[%c0_14, %c0_15] : memref<1x32xf32, #tpu.memory_space<vmem>>, vector<1x32xf32>
    %c0_16 = arith.constant 0 : index
    %c0_17 = arith.constant 0 : index
    %13 = vector.load %arg8[%c0_16, %c0_17] : memref<1x32xf32, #tpu.memory_space<vmem>>, vector<1x32xf32>
    %c0_18 = arith.constant 0 : index
    %c0_19 = arith.constant 0 : index
    %14 = vector.load %arg9[%c0_18, %c0_19] : memref<1x32xf32, #tpu.memory_space<vmem>>, vector<1x32xf32>
    %cst_20 = arith.constant dense<0.000000e+00> : vector<32xf32>
    %15 = vector.multi_reduction <add>, %1, %cst_20 [1] : vector<32x8xf32> to vector<32xf32>
    %16 = vector.shape_cast %15 : vector<32xf32> to vector<32x1xf32>
    %cst_21 = arith.constant 8.000000e+00 : f32
    %17 = vector.broadcast %cst_21 : f32 to vector<32x1xf32>
    %18 = arith.divf %16, %17 : vector<32x1xf32>
    %19 = vector.broadcast %18 : vector<32x1xf32> to vector<32x8xf32>
    %20 = arith.subf %1, %19 : vector<32x8xf32>
    %21 = arith.mulf %20, %20 : vector<32x8xf32>
    %cst_22 = arith.constant dense<0.000000e+00> : vector<32xf32>
    %22 = vector.multi_reduction <add>, %21, %cst_22 [1] : vector<32x8xf32> to vector<32xf32>
    %23 = vector.shape_cast %22 : vector<32xf32> to vector<32x1xf32>
    %cst_23 = arith.constant 8.000000e+00 : f32
    %24 = vector.broadcast %cst_23 : f32 to vector<32x1xf32>
    %25 = arith.divf %23, %24 : vector<32x1xf32>
    %cst_24 = arith.constant 9.99999974E-6 : f32
    %26 = vector.broadcast %cst_24 : f32 to vector<32x1xf32>
    %27 = arith.addf %25, %26 : vector<32x1xf32>
    %28 = math.rsqrt %27 : vector<32x1xf32>
    %29 = vector.broadcast %28 : vector<32x1xf32> to vector<32x8xf32>
    %30 = arith.mulf %20, %29 : vector<32x8xf32>
    %31 = vector.broadcast %9 : vector<1x8xf32> to vector<32x8xf32>
    %32 = arith.mulf %30, %31 : vector<32x8xf32>
    %33 = vector.broadcast %10 : vector<1x8xf32> to vector<32x8xf32>
    %34 = arith.addf %32, %33 : vector<32x8xf32>
    %cst_25 = arith.constant dense<0.000000e+00> : vector<16xf32>
    %35 = vector.multi_reduction <add>, %8, %cst_25 [1] : vector<16x32xf32> to vector<16xf32>
    %36 = vector.shape_cast %35 : vector<16xf32> to vector<16x1xf32>
    %cst_26 = arith.constant 3.200000e+01 : f32
    %37 = vector.broadcast %cst_26 : f32 to vector<16x1xf32>
    %38 = arith.divf %36, %37 : vector<16x1xf32>
    %39 = vector.broadcast %38 : vector<16x1xf32> to vector<16x32xf32>
    %40 = arith.subf %8, %39 : vector<16x32xf32>
    %41 = arith.mulf %40, %40 : vector<16x32xf32>
    %cst_27 = arith.constant dense<0.000000e+00> : vector<16xf32>
    %42 = vector.multi_reduction <add>, %41, %cst_27 [1] : vector<16x32xf32> to vector<16xf32>
    %43 = vector.shape_cast %42 : vector<16xf32> to vector<16x1xf32>
    %cst_28 = arith.constant 3.200000e+01 : f32
    %44 = vector.broadcast %cst_28 : f32 to vector<16x1xf32>
    %45 = arith.divf %43, %44 : vector<16x1xf32>
    %cst_29 = arith.constant 9.99999974E-6 : f32
    %46 = vector.broadcast %cst_29 : f32 to vector<16x1xf32>
    %47 = arith.addf %45, %46 : vector<16x1xf32>
    %48 = math.rsqrt %47 : vector<16x1xf32>
    %49 = vector.broadcast %48 : vector<16x1xf32> to vector<16x32xf32>
    %50 = arith.mulf %40, %49 : vector<16x32xf32>
    %51 = vector.broadcast %11 : vector<1x32xf32> to vector<16x32xf32>
    %52 = arith.mulf %50, %51 : vector<16x32xf32>
    %53 = vector.broadcast %12 : vector<1x32xf32> to vector<16x32xf32>
    %54 = arith.addf %52, %53 : vector<16x32xf32>
    %c0_30 = arith.constant 0 : index
    %c0_31 = arith.constant 0 : index
    %55 = vector.load %arg10[%c0_30, %c0_31] : memref<32x32xf32, #tpu.memory_space<vmem>>, vector<32x32xf32>
    %c0_32 = arith.constant 0 : index
    %c0_33 = arith.constant 0 : index
    %56 = vector.load %arg11[%c0_32, %c0_33] : memref<1x32xf32, #tpu.memory_space<vmem>>, vector<1x32xf32>
    %c0_34 = arith.constant 0 : index
    %c0_35 = arith.constant 0 : index
    %57 = vector.load %arg12[%c0_34, %c0_35] : memref<8x32xf32, #tpu.memory_space<vmem>>, vector<8x32xf32>
    %c0_36 = arith.constant 0 : index
    %c0_37 = arith.constant 0 : index
    %58 = vector.load %arg13[%c0_36, %c0_37] : memref<1x32xf32, #tpu.memory_space<vmem>>, vector<1x32xf32>
    %c0_38 = arith.constant 0 : index
    %c0_39 = arith.constant 0 : index
    %59 = vector.load %arg14[%c0_38, %c0_39] : memref<8x32xf32, #tpu.memory_space<vmem>>, vector<8x32xf32>
    %c0_40 = arith.constant 0 : index
    %c0_41 = arith.constant 0 : index
    %60 = vector.load %arg15[%c0_40, %c0_41] : memref<1x32xf32, #tpu.memory_space<vmem>>, vector<1x32xf32>
    %c0_42 = arith.constant 0 : index
    %c0_43 = arith.constant 0 : index
    %61 = vector.load %arg16[%c0_42, %c0_43] : memref<32x32xf32, #tpu.memory_space<vmem>>, vector<32x32xf32>
    %c0_44 = arith.constant 0 : index
    %c0_45 = arith.constant 0 : index
    %62 = vector.load %arg17[%c0_44, %c0_45] : memref<1x32xf32, #tpu.memory_space<vmem>>, vector<1x32xf32>
    %cst_46 = arith.constant dense<0.000000e+00> : vector<16x32xf32>
    %63 = tpu.matmul %54, %55, %cst_46 {dimension_numbers = #tpu.dot_dimension_numbers<[1], [0], [0], [1], [0, 0, 1, 1], [], []>} : vector<16x32xf32>, vector<32x32xf32>, vector<16x32xf32> -> vector<16x32xf32>
    %64 = vector.broadcast %56 : vector<1x32xf32> to vector<16x32xf32>
    %65 = arith.addf %63, %64 : vector<16x32xf32>
    %cst_47 = arith.constant dense<0.000000e+00> : vector<32x32xf32>
    %66 = tpu.matmul %34, %57, %cst_47 {dimension_numbers = #tpu.dot_dimension_numbers<[1], [0], [0], [1], [0, 0, 1, 1], [], []>} : vector<32x8xf32>, vector<8x32xf32>, vector<32x32xf32> -> vector<32x32xf32>
    %67 = vector.broadcast %58 : vector<1x32xf32> to vector<32x32xf32>
    %68 = arith.addf %66, %67 : vector<32x32xf32>
    %cst_48 = arith.constant dense<0.000000e+00> : vector<32x32xf32>
    %69 = tpu.matmul %34, %59, %cst_48 {dimension_numbers = #tpu.dot_dimension_numbers<[1], [0], [0], [1], [0, 0, 1, 1], [], []>} : vector<32x8xf32>, vector<8x32xf32>, vector<32x32xf32> -> vector<32x32xf32>
    %70 = vector.broadcast %60 : vector<1x32xf32> to vector<32x32xf32>
    %71 = arith.addf %69, %70 : vector<32x32xf32>
    %cst_49 = arith.constant dense<0.000000e+00> : vector<16x32xf32>
    %72 = tpu.matmul %65, %68, %cst_49 {dimension_numbers = #tpu.dot_dimension_numbers<[1], [1], [0], [0], [0, 0, 1, 0], [], []>} : vector<16x32xf32>, vector<32x32xf32>, vector<16x32xf32> -> vector<16x32xf32>
    %cst_50 = arith.constant 0.176776692 : f32
    %73 = vector.broadcast %cst_50 : f32 to vector<16x32xf32>
    %74 = arith.mulf %72, %73 : vector<16x32xf32>
    %75 = vector.broadcast %7 : vector<1x32xf32> to vector<16x32xf32>
    %76 = arith.addf %74, %75 : vector<16x32xf32>
    %cst_51 = arith.constant dense<0xFF800000> : vector<16xf32>
    %77 = vector.multi_reduction <maximumf>, %76, %cst_51 [1] : vector<16x32xf32> to vector<16xf32>
    %78 = vector.shape_cast %77 : vector<16xf32> to vector<16x1xf32>
    %79 = vector.broadcast %78 : vector<16x1xf32> to vector<16x32xf32>
    %80 = arith.subf %76, %79 : vector<16x32xf32>
    %81 = math.exp %80 : vector<16x32xf32>
    %cst_52 = arith.constant dense<0.000000e+00> : vector<16xf32>
    %82 = vector.multi_reduction <add>, %81, %cst_52 [1] : vector<16x32xf32> to vector<16xf32>
    %83 = vector.shape_cast %82 : vector<16xf32> to vector<16x1xf32>
    %84 = tpu.reciprocal %83 {approx = true} : vector<16x1xf32> -> vector<16x1xf32>
    %85 = vector.broadcast %84 : vector<16x1xf32> to vector<16x32xf32>
    %86 = arith.mulf %81, %85 : vector<16x32xf32>
    %87 = vector.broadcast %3 : vector<1x32xf32> to vector<16x32xf32>
    %88 = arith.mulf %86, %87 : vector<16x32xf32>
    %cst_53 = arith.constant dense<0.000000e+00> : vector<16x32xf32>
    %89 = tpu.matmul %88, %71, %cst_53 {dimension_numbers = #tpu.dot_dimension_numbers<[1], [0], [0], [1], [0, 0, 1, 1], [], []>} : vector<16x32xf32>, vector<32x32xf32>, vector<16x32xf32> -> vector<16x32xf32>
    %cst_54 = arith.constant dense<0.000000e+00> : vector<16x32xf32>
    %90 = tpu.matmul %89, %61, %cst_54 {dimension_numbers = #tpu.dot_dimension_numbers<[1], [0], [0], [1], [0, 0, 1, 1], [], []>} : vector<16x32xf32>, vector<32x32xf32>, vector<16x32xf32> -> vector<16x32xf32>
    %91 = vector.broadcast %62 : vector<1x32xf32> to vector<16x32xf32>
    %92 = arith.addf %90, %91 : vector<16x32xf32>
    %93 = arith.addf %8, %92 : vector<16x32xf32>
    %cst_55 = arith.constant dense<0.000000e+00> : vector<16xf32>
    %94 = vector.multi_reduction <add>, %93, %cst_55 [1] : vector<16x32xf32> to vector<16xf32>
    %95 = vector.shape_cast %94 : vector<16xf32> to vector<16x1xf32>
    %cst_56 = arith.constant 3.200000e+01 : f32
    %96 = vector.broadcast %cst_56 : f32 to vector<16x1xf32>
    %97 = arith.divf %95, %96 : vector<16x1xf32>
    %98 = vector.broadcast %97 : vector<16x1xf32> to vector<16x32xf32>
    %99 = arith.subf %93, %98 : vector<16x32xf32>
    %100 = arith.mulf %99, %99 : vector<16x32xf32>
    %cst_57 = arith.constant dense<0.000000e+00> : vector<16xf32>
    %101 = vector.multi_reduction <add>, %100, %cst_57 [1] : vector<16x32xf32> to vector<16xf32>
    %102 = vector.shape_cast %101 : vector<16xf32> to vector<16x1xf32>
    %cst_58 = arith.constant 3.200000e+01 : f32
    %103 = vector.broadcast %cst_58 : f32 to vector<16x1xf32>
    %104 = arith.divf %102, %103 : vector<16x1xf32>
    %cst_59 = arith.constant 9.99999974E-6 : f32
    %105 = vector.broadcast %cst_59 : f32 to vector<16x1xf32>
    %106 = arith.addf %104, %105 : vector<16x1xf32>
    %107 = math.rsqrt %106 : vector<16x1xf32>
    %108 = vector.broadcast %107 : vector<16x1xf32> to vector<16x32xf32>
    %109 = arith.mulf %99, %108 : vector<16x32xf32>
    %110 = vector.broadcast %13 : vector<1x32xf32> to vector<16x32xf32>
    %111 = arith.mulf %109, %110 : vector<16x32xf32>
    %112 = vector.broadcast %14 : vector<1x32xf32> to vector<16x32xf32>
    %113 = arith.addf %111, %112 : vector<16x32xf32>
    %c0_60 = arith.constant 0 : index
    %c0_61 = arith.constant 0 : index
    %114 = vector.load %arg18[%c0_60, %c0_61] : memref<32x32xf32, #tpu.memory_space<vmem>>, vector<32x32xf32>
    %c0_62 = arith.constant 0 : index
    %c0_63 = arith.constant 0 : index
    %115 = vector.load %arg19[%c0_62, %c0_63] : memref<1x32xf32, #tpu.memory_space<vmem>>, vector<1x32xf32>
    %c0_64 = arith.constant 0 : index
    %c0_65 = arith.constant 0 : index
    %116 = vector.load %arg20[%c0_64, %c0_65] : memref<32x32xf32, #tpu.memory_space<vmem>>, vector<32x32xf32>
    %c0_66 = arith.constant 0 : index
    %c0_67 = arith.constant 0 : index
    %117 = vector.load %arg21[%c0_66, %c0_67] : memref<1x32xf32, #tpu.memory_space<vmem>>, vector<1x32xf32>
    %cst_68 = arith.constant dense<0.000000e+00> : vector<16x32xf32>
    %118 = tpu.matmul %113, %114, %cst_68 {dimension_numbers = #tpu.dot_dimension_numbers<[1], [0], [0], [1], [0, 0, 1, 1], [], []>} : vector<16x32xf32>, vector<32x32xf32>, vector<16x32xf32> -> vector<16x32xf32>
    %119 = vector.broadcast %115 : vector<1x32xf32> to vector<16x32xf32>
    %120 = arith.addf %118, %119 : vector<16x32xf32>
    %cst_69 = arith.constant 5.000000e-01 : f32
    %121 = vector.broadcast %cst_69 : f32 to vector<16x32xf32>
    %122 = arith.mulf %121, %120 : vector<16x32xf32>
    %cst_70 = arith.constant 0.707106769 : f32
    %123 = vector.broadcast %cst_70 : f32 to vector<16x32xf32>
    %124 = arith.mulf %120, %123 : vector<16x32xf32>
    %125 = math.erf %124 : vector<16x32xf32>
    %cst_71 = arith.constant 1.000000e+00 : f32
    %126 = vector.broadcast %cst_71 : f32 to vector<16x32xf32>
    %127 = arith.addf %126, %125 : vector<16x32xf32>
    %128 = arith.mulf %122, %127 : vector<16x32xf32>
    %cst_72 = arith.constant dense<0.000000e+00> : vector<16x32xf32>
    %129 = tpu.matmul %128, %116, %cst_72 {dimension_numbers = #tpu.dot_dimension_numbers<[1], [0], [0], [1], [0, 0, 1, 1], [], []>} : vector<16x32xf32>, vector<32x32xf32>, vector<16x32xf32> -> vector<16x32xf32>
    %130 = vector.broadcast %117 : vector<1x32xf32> to vector<16x32xf32>
    %131 = arith.addf %129, %130 : vector<16x32xf32>
    %132 = arith.addf %93, %131 : vector<16x32xf32>
    %c0_i32 = arith.constant 0 : i32
    %c4_i32 = arith.constant 4 : i32
    %133 = arith.addi %c0_i32, %c4_i32 : i32
    %c1_i32 = arith.constant 1 : i32
    %134 = scf.for %arg55 = %c0_i32 to %133 step %c1_i32 iter_args(%arg56 = %132) -> (vector<16x32xf32>)  : i32 {
      %c0_76 = arith.constant 0 : index
      %c0_77 = arith.constant 0 : index
      %138 = vector.load %arg22[%c0_76, %c0_77] : memref<1x32xf32, #tpu.memory_space<vmem>>, vector<1x32xf32>
      %c0_78 = arith.constant 0 : index
      %c0_79 = arith.constant 0 : index
      %139 = vector.load %arg23[%c0_78, %c0_79] : memref<1x32xf32, #tpu.memory_space<vmem>>, vector<1x32xf32>
      %c0_80 = arith.constant 0 : index
      %c0_81 = arith.constant 0 : index
      %140 = vector.load %arg24[%c0_80, %c0_81] : memref<1x32xf32, #tpu.memory_space<vmem>>, vector<1x32xf32>
      %c0_82 = arith.constant 0 : index
      %c0_83 = arith.constant 0 : index
      %141 = vector.load %arg25[%c0_82, %c0_83] : memref<1x32xf32, #tpu.memory_space<vmem>>, vector<1x32xf32>
      %cst_84 = arith.constant dense<0.000000e+00> : vector<16xf32>
      %142 = vector.multi_reduction <add>, %arg56, %cst_84 [1] : vector<16x32xf32> to vector<16xf32>
      %143 = vector.shape_cast %142 : vector<16xf32> to vector<16x1xf32>
      %cst_85 = arith.constant 3.200000e+01 : f32
      %144 = vector.broadcast %cst_85 : f32 to vector<16x1xf32>
      %145 = arith.divf %143, %144 : vector<16x1xf32>
      %146 = vector.broadcast %145 : vector<16x1xf32> to vector<16x32xf32>
      %147 = arith.subf %arg56, %146 : vector<16x32xf32>
      %148 = arith.mulf %147, %147 : vector<16x32xf32>
      %cst_86 = arith.constant dense<0.000000e+00> : vector<16xf32>
      %149 = vector.multi_reduction <add>, %148, %cst_86 [1] : vector<16x32xf32> to vector<16xf32>
      %150 = vector.shape_cast %149 : vector<16xf32> to vector<16x1xf32>
      %cst_87 = arith.constant 3.200000e+01 : f32
      %151 = vector.broadcast %cst_87 : f32 to vector<16x1xf32>
      %152 = arith.divf %150, %151 : vector<16x1xf32>
      %cst_88 = arith.constant 9.99999974E-6 : f32
      %153 = vector.broadcast %cst_88 : f32 to vector<16x1xf32>
      %154 = arith.addf %152, %153 : vector<16x1xf32>
      %155 = math.rsqrt %154 : vector<16x1xf32>
      %156 = vector.broadcast %155 : vector<16x1xf32> to vector<16x32xf32>
      %157 = arith.mulf %147, %156 : vector<16x32xf32>
      %158 = vector.broadcast %138 : vector<1x32xf32> to vector<16x32xf32>
      %159 = arith.mulf %157, %158 : vector<16x32xf32>
      %160 = vector.broadcast %139 : vector<1x32xf32> to vector<16x32xf32>
      %161 = arith.addf %159, %160 : vector<16x32xf32>
      %c0_89 = arith.constant 0 : index
      %c0_90 = arith.constant 0 : index
      %162 = vector.load %arg26[%c0_89, %c0_90] : memref<32x32xf32, #tpu.memory_space<vmem>>, vector<32x32xf32>
      %c0_91 = arith.constant 0 : index
      %c0_92 = arith.constant 0 : index
      %163 = vector.load %arg27[%c0_91, %c0_92] : memref<1x32xf32, #tpu.memory_space<vmem>>, vector<1x32xf32>
      %c0_93 = arith.constant 0 : index
      %c0_94 = arith.constant 0 : index
      %164 = vector.load %arg28[%c0_93, %c0_94] : memref<32x32xf32, #tpu.memory_space<vmem>>, vector<32x32xf32>
      %c0_95 = arith.constant 0 : index
      %c0_96 = arith.constant 0 : index
      %165 = vector.load %arg29[%c0_95, %c0_96] : memref<1x32xf32, #tpu.memory_space<vmem>>, vector<1x32xf32>
      %c0_97 = arith.constant 0 : index
      %c0_98 = arith.constant 0 : index
      %166 = vector.load %arg30[%c0_97, %c0_98] : memref<32x32xf32, #tpu.memory_space<vmem>>, vector<32x32xf32>
      %c0_99 = arith.constant 0 : index
      %c0_100 = arith.constant 0 : index
      %167 = vector.load %arg31[%c0_99, %c0_100] : memref<1x32xf32, #tpu.memory_space<vmem>>, vector<1x32xf32>
      %c0_101 = arith.constant 0 : index
      %c0_102 = arith.constant 0 : index
      %168 = vector.load %arg32[%c0_101, %c0_102] : memref<32x32xf32, #tpu.memory_space<vmem>>, vector<32x32xf32>
      %c0_103 = arith.constant 0 : index
      %c0_104 = arith.constant 0 : index
      %169 = vector.load %arg33[%c0_103, %c0_104] : memref<1x32xf32, #tpu.memory_space<vmem>>, vector<1x32xf32>
      %cst_105 = arith.constant dense<0.000000e+00> : vector<16x32xf32>
      %170 = tpu.matmul %161, %162, %cst_105 {dimension_numbers = #tpu.dot_dimension_numbers<[1], [0], [0], [1], [0, 0, 1, 1], [], []>} : vector<16x32xf32>, vector<32x32xf32>, vector<16x32xf32> -> vector<16x32xf32>
      %171 = vector.broadcast %163 : vector<1x32xf32> to vector<16x32xf32>
      %172 = arith.addf %170, %171 : vector<16x32xf32>
      %cst_106 = arith.constant dense<0.000000e+00> : vector<16x32xf32>
      %173 = tpu.matmul %161, %164, %cst_106 {dimension_numbers = #tpu.dot_dimension_numbers<[1], [0], [0], [1], [0, 0, 1, 1], [], []>} : vector<16x32xf32>, vector<32x32xf32>, vector<16x32xf32> -> vector<16x32xf32>
      %174 = vector.broadcast %165 : vector<1x32xf32> to vector<16x32xf32>
      %175 = arith.addf %173, %174 : vector<16x32xf32>
      %cst_107 = arith.constant dense<0.000000e+00> : vector<16x32xf32>
      %176 = tpu.matmul %161, %166, %cst_107 {dimension_numbers = #tpu.dot_dimension_numbers<[1], [0], [0], [1], [0, 0, 1, 1], [], []>} : vector<16x32xf32>, vector<32x32xf32>, vector<16x32xf32> -> vector<16x32xf32>
      %177 = vector.broadcast %167 : vector<1x32xf32> to vector<16x32xf32>
      %178 = arith.addf %176, %177 : vector<16x32xf32>
      %179 = vector.extract_strided_slice %172 {offsets = [0, 0], sizes = [16, 4], strides = [1, 1]} : vector<16x32xf32> to vector<16x4xf32>
      %180 = vector.extract_strided_slice %175 {offsets = [0, 0], sizes = [16, 4], strides = [1, 1]} : vector<16x32xf32> to vector<16x4xf32>
      %181 = vector.extract_strided_slice %178 {offsets = [0, 0], sizes = [16, 4], strides = [1, 1]} : vector<16x32xf32> to vector<16x4xf32>
      %cst_108 = arith.constant dense<0.000000e+00> : vector<16x16xf32>
      %182 = tpu.matmul %179, %180, %cst_108 {dimension_numbers = #tpu.dot_dimension_numbers<[1], [1], [0], [0], [0, 0, 1, 0], [], []>} : vector<16x4xf32>, vector<16x4xf32>, vector<16x16xf32> -> vector<16x16xf32>
      %cst_109 = arith.constant 5.000000e-01 : f32
      %183 = vector.broadcast %cst_109 : f32 to vector<16x16xf32>
      %184 = arith.mulf %182, %183 : vector<16x16xf32>
      %cst_110 = arith.constant dense<0xFF800000> : vector<16xf32>
      %185 = vector.multi_reduction <maximumf>, %184, %cst_110 [1] : vector<16x16xf32> to vector<16xf32>
      %186 = vector.shape_cast %185 : vector<16xf32> to vector<16x1xf32>
      %187 = vector.broadcast %186 : vector<16x1xf32> to vector<16x16xf32>
      %188 = arith.subf %184, %187 : vector<16x16xf32>
      %189 = math.exp %188 : vector<16x16xf32>
      %cst_111 = arith.constant dense<0.000000e+00> : vector<16xf32>
      %190 = vector.multi_reduction <add>, %189, %cst_111 [1] : vector<16x16xf32> to vector<16xf32>
      %191 = vector.shape_cast %190 : vector<16xf32> to vector<16x1xf32>
      %192 = tpu.reciprocal %191 {approx = true} : vector<16x1xf32> -> vector<16x1xf32>
      %193 = vector.broadcast %192 : vector<16x1xf32> to vector<16x16xf32>
      %194 = arith.mulf %189, %193 : vector<16x16xf32>
      %cst_112 = arith.constant dense<0.000000e+00> : vector<16x4xf32>
      %195 = tpu.matmul %194, %181, %cst_112 {dimension_numbers = #tpu.dot_dimension_numbers<[1], [0], [0], [1], [0, 0, 1, 1], [], []>} : vector<16x16xf32>, vector<16x4xf32>, vector<16x4xf32> -> vector<16x4xf32>
      %196 = vector.extract_strided_slice %172 {offsets = [0, 4], sizes = [16, 4], strides = [1, 1]} : vector<16x32xf32> to vector<16x4xf32>
      %197 = vector.extract_strided_slice %175 {offsets = [0, 4], sizes = [16, 4], strides = [1, 1]} : vector<16x32xf32> to vector<16x4xf32>
      %198 = vector.extract_strided_slice %178 {offsets = [0, 4], sizes = [16, 4], strides = [1, 1]} : vector<16x32xf32> to vector<16x4xf32>
      %cst_113 = arith.constant dense<0.000000e+00> : vector<16x16xf32>
      %199 = tpu.matmul %196, %197, %cst_113 {dimension_numbers = #tpu.dot_dimension_numbers<[1], [1], [0], [0], [0, 0, 1, 0], [], []>} : vector<16x4xf32>, vector<16x4xf32>, vector<16x16xf32> -> vector<16x16xf32>
      %cst_114 = arith.constant 5.000000e-01 : f32
      %200 = vector.broadcast %cst_114 : f32 to vector<16x16xf32>
      %201 = arith.mulf %199, %200 : vector<16x16xf32>
      %cst_115 = arith.constant dense<0xFF800000> : vector<16xf32>
      %202 = vector.multi_reduction <maximumf>, %201, %cst_115 [1] : vector<16x16xf32> to vector<16xf32>
      %203 = vector.shape_cast %202 : vector<16xf32> to vector<16x1xf32>
      %204 = vector.broadcast %203 : vector<16x1xf32> to vector<16x16xf32>
      %205 = arith.subf %201, %204 : vector<16x16xf32>
      %206 = math.exp %205 : vector<16x16xf32>
      %cst_116 = arith.constant dense<0.000000e+00> : vector<16xf32>
      %207 = vector.multi_reduction <add>, %206, %cst_116 [1] : vector<16x16xf32> to vector<16xf32>
      %208 = vector.shape_cast %207 : vector<16xf32> to vector<16x1xf32>
      %209 = tpu.reciprocal %208 {approx = true} : vector<16x1xf32> -> vector<16x1xf32>
      %210 = vector.broadcast %209 : vector<16x1xf32> to vector<16x16xf32>
      %211 = arith.mulf %206, %210 : vector<16x16xf32>
      %cst_117 = arith.constant dense<0.000000e+00> : vector<16x4xf32>
      %212 = tpu.matmul %211, %198, %cst_117 {dimension_numbers = #tpu.dot_dimension_numbers<[1], [0], [0], [1], [0, 0, 1, 1], [], []>} : vector<16x16xf32>, vector<16x4xf32>, vector<16x4xf32> -> vector<16x4xf32>
      %213 = vector.extract_strided_slice %172 {offsets = [0, 8], sizes = [16, 4], strides = [1, 1]} : vector<16x32xf32> to vector<16x4xf32>
      %214 = vector.extract_strided_slice %175 {offsets = [0, 8], sizes = [16, 4], strides = [1, 1]} : vector<16x32xf32> to vector<16x4xf32>
      %215 = vector.extract_strided_slice %178 {offsets = [0, 8], sizes = [16, 4], strides = [1, 1]} : vector<16x32xf32> to vector<16x4xf32>
      %cst_118 = arith.constant dense<0.000000e+00> : vector<16x16xf32>
      %216 = tpu.matmul %213, %214, %cst_118 {dimension_numbers = #tpu.dot_dimension_numbers<[1], [1], [0], [0], [0, 0, 1, 0], [], []>} : vector<16x4xf32>, vector<16x4xf32>, vector<16x16xf32> -> vector<16x16xf32>
      %cst_119 = arith.constant 5.000000e-01 : f32
      %217 = vector.broadcast %cst_119 : f32 to vector<16x16xf32>
      %218 = arith.mulf %216, %217 : vector<16x16xf32>
      %cst_120 = arith.constant dense<0xFF800000> : vector<16xf32>
      %219 = vector.multi_reduction <maximumf>, %218, %cst_120 [1] : vector<16x16xf32> to vector<16xf32>
      %220 = vector.shape_cast %219 : vector<16xf32> to vector<16x1xf32>
      %221 = vector.broadcast %220 : vector<16x1xf32> to vector<16x16xf32>
      %222 = arith.subf %218, %221 : vector<16x16xf32>
      %223 = math.exp %222 : vector<16x16xf32>
      %cst_121 = arith.constant dense<0.000000e+00> : vector<16xf32>
      %224 = vector.multi_reduction <add>, %223, %cst_121 [1] : vector<16x16xf32> to vector<16xf32>
      %225 = vector.shape_cast %224 : vector<16xf32> to vector<16x1xf32>
      %226 = tpu.reciprocal %225 {approx = true} : vector<16x1xf32> -> vector<16x1xf32>
      %227 = vector.broadcast %226 : vector<16x1xf32> to vector<16x16xf32>
      %228 = arith.mulf %223, %227 : vector<16x16xf32>
      %cst_122 = arith.constant dense<0.000000e+00> : vector<16x4xf32>
      %229 = tpu.matmul %228, %215, %cst_122 {dimension_numbers = #tpu.dot_dimension_numbers<[1], [0], [0], [1], [0, 0, 1, 1], [], []>} : vector<16x16xf32>, vector<16x4xf32>, vector<16x4xf32> -> vector<16x4xf32>
      %230 = vector.extract_strided_slice %172 {offsets = [0, 12], sizes = [16, 4], strides = [1, 1]} : vector<16x32xf32> to vector<16x4xf32>
      %231 = vector.extract_strided_slice %175 {offsets = [0, 12], sizes = [16, 4], strides = [1, 1]} : vector<16x32xf32> to vector<16x4xf32>
      %232 = vector.extract_strided_slice %178 {offsets = [0, 12], sizes = [16, 4], strides = [1, 1]} : vector<16x32xf32> to vector<16x4xf32>
      %cst_123 = arith.constant dense<0.000000e+00> : vector<16x16xf32>
      %233 = tpu.matmul %230, %231, %cst_123 {dimension_numbers = #tpu.dot_dimension_numbers<[1], [1], [0], [0], [0, 0, 1, 0], [], []>} : vector<16x4xf32>, vector<16x4xf32>, vector<16x16xf32> -> vector<16x16xf32>
      %cst_124 = arith.constant 5.000000e-01 : f32
      %234 = vector.broadcast %cst_124 : f32 to vector<16x16xf32>
      %235 = arith.mulf %233, %234 : vector<16x16xf32>
      %cst_125 = arith.constant dense<0xFF800000> : vector<16xf32>
      %236 = vector.multi_reduction <maximumf>, %235, %cst_125 [1] : vector<16x16xf32> to vector<16xf32>
      %237 = vector.shape_cast %236 : vector<16xf32> to vector<16x1xf32>
      %238 = vector.broadcast %237 : vector<16x1xf32> to vector<16x16xf32>
      %239 = arith.subf %235, %238 : vector<16x16xf32>
      %240 = math.exp %239 : vector<16x16xf32>
      %cst_126 = arith.constant dense<0.000000e+00> : vector<16xf32>
      %241 = vector.multi_reduction <add>, %240, %cst_126 [1] : vector<16x16xf32> to vector<16xf32>
      %242 = vector.shape_cast %241 : vector<16xf32> to vector<16x1xf32>
      %243 = tpu.reciprocal %242 {approx = true} : vector<16x1xf32> -> vector<16x1xf32>
      %244 = vector.broadcast %243 : vector<16x1xf32> to vector<16x16xf32>
      %245 = arith.mulf %240, %244 : vector<16x16xf32>
      %cst_127 = arith.constant dense<0.000000e+00> : vector<16x4xf32>
      %246 = tpu.matmul %245, %232, %cst_127 {dimension_numbers = #tpu.dot_dimension_numbers<[1], [0], [0], [1], [0, 0, 1, 1], [], []>} : vector<16x16xf32>, vector<16x4xf32>, vector<16x4xf32> -> vector<16x4xf32>
      %247 = vector.extract_strided_slice %172 {offsets = [0, 16], sizes = [16, 4], strides = [1, 1]} : vector<16x32xf32> to vector<16x4xf32>
      %248 = vector.extract_strided_slice %175 {offsets = [0, 16], sizes = [16, 4], strides = [1, 1]} : vector<16x32xf32> to vector<16x4xf32>
      %249 = vector.extract_strided_slice %178 {offsets = [0, 16], sizes = [16, 4], strides = [1, 1]} : vector<16x32xf32> to vector<16x4xf32>
      %cst_128 = arith.constant dense<0.000000e+00> : vector<16x16xf32>
      %250 = tpu.matmul %247, %248, %cst_128 {dimension_numbers = #tpu.dot_dimension_numbers<[1], [1], [0], [0], [0, 0, 1, 0], [], []>} : vector<16x4xf32>, vector<16x4xf32>, vector<16x16xf32> -> vector<16x16xf32>
      %cst_129 = arith.constant 5.000000e-01 : f32
      %251 = vector.broadcast %cst_129 : f32 to vector<16x16xf32>
      %252 = arith.mulf %250, %251 : vector<16x16xf32>
      %cst_130 = arith.constant dense<0xFF800000> : vector<16xf32>
      %253 = vector.multi_reduction <maximumf>, %252, %cst_130 [1] : vector<16x16xf32> to vector<16xf32>
      %254 = vector.shape_cast %253 : vector<16xf32> to vector<16x1xf32>
      %255 = vector.broadcast %254 : vector<16x1xf32> to vector<16x16xf32>
      %256 = arith.subf %252, %255 : vector<16x16xf32>
      %257 = math.exp %256 : vector<16x16xf32>
      %cst_131 = arith.constant dense<0.000000e+00> : vector<16xf32>
      %258 = vector.multi_reduction <add>, %257, %cst_131 [1] : vector<16x16xf32> to vector<16xf32>
      %259 = vector.shape_cast %258 : vector<16xf32> to vector<16x1xf32>
      %260 = tpu.reciprocal %259 {approx = true} : vector<16x1xf32> -> vector<16x1xf32>
      %261 = vector.broadcast %260 : vector<16x1xf32> to vector<16x16xf32>
      %262 = arith.mulf %257, %261 : vector<16x16xf32>
      %cst_132 = arith.constant dense<0.000000e+00> : vector<16x4xf32>
      %263 = tpu.matmul %262, %249, %cst_132 {dimension_numbers = #tpu.dot_dimension_numbers<[1], [0], [0], [1], [0, 0, 1, 1], [], []>} : vector<16x16xf32>, vector<16x4xf32>, vector<16x4xf32> -> vector<16x4xf32>
      %264 = vector.extract_strided_slice %172 {offsets = [0, 20], sizes = [16, 4], strides = [1, 1]} : vector<16x32xf32> to vector<16x4xf32>
      %265 = vector.extract_strided_slice %175 {offsets = [0, 20], sizes = [16, 4], strides = [1, 1]} : vector<16x32xf32> to vector<16x4xf32>
      %266 = vector.extract_strided_slice %178 {offsets = [0, 20], sizes = [16, 4], strides = [1, 1]} : vector<16x32xf32> to vector<16x4xf32>
      %cst_133 = arith.constant dense<0.000000e+00> : vector<16x16xf32>
      %267 = tpu.matmul %264, %265, %cst_133 {dimension_numbers = #tpu.dot_dimension_numbers<[1], [1], [0], [0], [0, 0, 1, 0], [], []>} : vector<16x4xf32>, vector<16x4xf32>, vector<16x16xf32> -> vector<16x16xf32>
      %cst_134 = arith.constant 5.000000e-01 : f32
      %268 = vector.broadcast %cst_134 : f32 to vector<16x16xf32>
      %269 = arith.mulf %267, %268 : vector<16x16xf32>
      %cst_135 = arith.constant dense<0xFF800000> : vector<16xf32>
      %270 = vector.multi_reduction <maximumf>, %269, %cst_135 [1] : vector<16x16xf32> to vector<16xf32>
      %271 = vector.shape_cast %270 : vector<16xf32> to vector<16x1xf32>
      %272 = vector.broadcast %271 : vector<16x1xf32> to vector<16x16xf32>
      %273 = arith.subf %269, %272 : vector<16x16xf32>
      %274 = math.exp %273 : vector<16x16xf32>
      %cst_136 = arith.constant dense<0.000000e+00> : vector<16xf32>
      %275 = vector.multi_reduction <add>, %274, %cst_136 [1] : vector<16x16xf32> to vector<16xf32>
      %276 = vector.shape_cast %275 : vector<16xf32> to vector<16x1xf32>
      %277 = tpu.reciprocal %276 {approx = true} : vector<16x1xf32> -> vector<16x1xf32>
      %278 = vector.broadcast %277 : vector<16x1xf32> to vector<16x16xf32>
      %279 = arith.mulf %274, %278 : vector<16x16xf32>
      %cst_137 = arith.constant dense<0.000000e+00> : vector<16x4xf32>
      %280 = tpu.matmul %279, %266, %cst_137 {dimension_numbers = #tpu.dot_dimension_numbers<[1], [0], [0], [1], [0, 0, 1, 1], [], []>} : vector<16x16xf32>, vector<16x4xf32>, vector<16x4xf32> -> vector<16x4xf32>
      %281 = vector.extract_strided_slice %172 {offsets = [0, 24], sizes = [16, 4], strides = [1, 1]} : vector<16x32xf32> to vector<16x4xf32>
      %282 = vector.extract_strided_slice %175 {offsets = [0, 24], sizes = [16, 4], strides = [1, 1]} : vector<16x32xf32> to vector<16x4xf32>
      %283 = vector.extract_strided_slice %178 {offsets = [0, 24], sizes = [16, 4], strides = [1, 1]} : vector<16x32xf32> to vector<16x4xf32>
      %cst_138 = arith.constant dense<0.000000e+00> : vector<16x16xf32>
      %284 = tpu.matmul %281, %282, %cst_138 {dimension_numbers = #tpu.dot_dimension_numbers<[1], [1], [0], [0], [0, 0, 1, 0], [], []>} : vector<16x4xf32>, vector<16x4xf32>, vector<16x16xf32> -> vector<16x16xf32>
      %cst_139 = arith.constant 5.000000e-01 : f32
      %285 = vector.broadcast %cst_139 : f32 to vector<16x16xf32>
      %286 = arith.mulf %284, %285 : vector<16x16xf32>
      %cst_140 = arith.constant dense<0xFF800000> : vector<16xf32>
      %287 = vector.multi_reduction <maximumf>, %286, %cst_140 [1] : vector<16x16xf32> to vector<16xf32>
      %288 = vector.shape_cast %287 : vector<16xf32> to vector<16x1xf32>
      %289 = vector.broadcast %288 : vector<16x1xf32> to vector<16x16xf32>
      %290 = arith.subf %286, %289 : vector<16x16xf32>
      %291 = math.exp %290 : vector<16x16xf32>
      %cst_141 = arith.constant dense<0.000000e+00> : vector<16xf32>
      %292 = vector.multi_reduction <add>, %291, %cst_141 [1] : vector<16x16xf32> to vector<16xf32>
      %293 = vector.shape_cast %292 : vector<16xf32> to vector<16x1xf32>
      %294 = tpu.reciprocal %293 {approx = true} : vector<16x1xf32> -> vector<16x1xf32>
      %295 = vector.broadcast %294 : vector<16x1xf32> to vector<16x16xf32>
      %296 = arith.mulf %291, %295 : vector<16x16xf32>
      %cst_142 = arith.constant dense<0.000000e+00> : vector<16x4xf32>
      %297 = tpu.matmul %296, %283, %cst_142 {dimension_numbers = #tpu.dot_dimension_numbers<[1], [0], [0], [1], [0, 0, 1, 1], [], []>} : vector<16x16xf32>, vector<16x4xf32>, vector<16x4xf32> -> vector<16x4xf32>
      %298 = vector.extract_strided_slice %172 {offsets = [0, 28], sizes = [16, 4], strides = [1, 1]} : vector<16x32xf32> to vector<16x4xf32>
      %299 = vector.extract_strided_slice %175 {offsets = [0, 28], sizes = [16, 4], strides = [1, 1]} : vector<16x32xf32> to vector<16x4xf32>
      %300 = vector.extract_strided_slice %178 {offsets = [0, 28], sizes = [16, 4], strides = [1, 1]} : vector<16x32xf32> to vector<16x4xf32>
      %cst_143 = arith.constant dense<0.000000e+00> : vector<16x16xf32>
      %301 = tpu.matmul %298, %299, %cst_143 {dimension_numbers = #tpu.dot_dimension_numbers<[1], [1], [0], [0], [0, 0, 1, 0], [], []>} : vector<16x4xf32>, vector<16x4xf32>, vector<16x16xf32> -> vector<16x16xf32>
      %cst_144 = arith.constant 5.000000e-01 : f32
      %302 = vector.broadcast %cst_144 : f32 to vector<16x16xf32>
      %303 = arith.mulf %301, %302 : vector<16x16xf32>
      %cst_145 = arith.constant dense<0xFF800000> : vector<16xf32>
      %304 = vector.multi_reduction <maximumf>, %303, %cst_145 [1] : vector<16x16xf32> to vector<16xf32>
      %305 = vector.shape_cast %304 : vector<16xf32> to vector<16x1xf32>
      %306 = vector.broadcast %305 : vector<16x1xf32> to vector<16x16xf32>
      %307 = arith.subf %303, %306 : vector<16x16xf32>
      %308 = math.exp %307 : vector<16x16xf32>
      %cst_146 = arith.constant dense<0.000000e+00> : vector<16xf32>
      %309 = vector.multi_reduction <add>, %308, %cst_146 [1] : vector<16x16xf32> to vector<16xf32>
      %310 = vector.shape_cast %309 : vector<16xf32> to vector<16x1xf32>
      %311 = tpu.reciprocal %310 {approx = true} : vector<16x1xf32> -> vector<16x1xf32>
      %312 = vector.broadcast %311 : vector<16x1xf32> to vector<16x16xf32>
      %313 = arith.mulf %308, %312 : vector<16x16xf32>
      %cst_147 = arith.constant dense<0.000000e+00> : vector<16x4xf32>
      %314 = tpu.matmul %313, %300, %cst_147 {dimension_numbers = #tpu.dot_dimension_numbers<[1], [0], [0], [1], [0, 0, 1, 1], [], []>} : vector<16x16xf32>, vector<16x4xf32>, vector<16x4xf32> -> vector<16x4xf32>
      %315 = tpu.concatenate %195, %212, %229, %246, %263, %280, %297, %314 in 1 : vector<16x4xf32>, vector<16x4xf32>, vector<16x4xf32>, vector<16x4xf32>, vector<16x4xf32>, vector<16x4xf32>, vector<16x4xf32>, vector<16x4xf32> -> vector<16x32xf32>
      %cst_148 = arith.constant dense<0.000000e+00> : vector<16x32xf32>
      %316 = tpu.matmul %315, %168, %cst_148 {dimension_numbers = #tpu.dot_dimension_numbers<[1], [0], [0], [1], [0, 0, 1, 1], [], []>} : vector<16x32xf32>, vector<32x32xf32>, vector<16x32xf32> -> vector<16x32xf32>
      %317 = vector.broadcast %169 : vector<1x32xf32> to vector<16x32xf32>
      %318 = arith.addf %316, %317 : vector<16x32xf32>
      %319 = arith.addf %arg56, %318 : vector<16x32xf32>
      %cst_149 = arith.constant dense<0.000000e+00> : vector<16xf32>
      %320 = vector.multi_reduction <add>, %319, %cst_149 [1] : vector<16x32xf32> to vector<16xf32>
      %321 = vector.shape_cast %320 : vector<16xf32> to vector<16x1xf32>
      %cst_150 = arith.constant 3.200000e+01 : f32
      %322 = vector.broadcast %cst_150 : f32 to vector<16x1xf32>
      %323 = arith.divf %321, %322 : vector<16x1xf32>
      %324 = vector.broadcast %323 : vector<16x1xf32> to vector<16x32xf32>
      %325 = arith.subf %319, %324 : vector<16x32xf32>
      %326 = arith.mulf %325, %325 : vector<16x32xf32>
      %cst_151 = arith.constant dense<0.000000e+00> : vector<16xf32>
      %327 = vector.multi_reduction <add>, %326, %cst_151 [1] : vector<16x32xf32> to vector<16xf32>
      %328 = vector.shape_cast %327 : vector<16xf32> to vector<16x1xf32>
      %cst_152 = arith.constant 3.200000e+01 : f32
      %329 = vector.broadcast %cst_152 : f32 to vector<16x1xf32>
      %330 = arith.divf %328, %329 : vector<16x1xf32>
      %cst_153 = arith.constant 9.99999974E-6 : f32
      %331 = vector.broadcast %cst_153 : f32 to vector<16x1xf32>
      %332 = arith.addf %330, %331 : vector<16x1xf32>
      %333 = math.rsqrt %332 : vector<16x1xf32>
      %334 = vector.broadcast %333 : vector<16x1xf32> to vector<16x32xf32>
      %335 = arith.mulf %325, %334 : vector<16x32xf32>
      %336 = vector.broadcast %140 : vector<1x32xf32> to vector<16x32xf32>
      %337 = arith.mulf %335, %336 : vector<16x32xf32>
      %338 = vector.broadcast %141 : vector<1x32xf32> to vector<16x32xf32>
      %339 = arith.addf %337, %338 : vector<16x32xf32>
      %c0_154 = arith.constant 0 : index
      %c0_155 = arith.constant 0 : index
      %340 = vector.load %arg34[%c0_154, %c0_155] : memref<32x32xf32, #tpu.memory_space<vmem>>, vector<32x32xf32>
      %c0_156 = arith.constant 0 : index
      %c0_157 = arith.constant 0 : index
      %341 = vector.load %arg35[%c0_156, %c0_157] : memref<1x32xf32, #tpu.memory_space<vmem>>, vector<1x32xf32>
      %c0_158 = arith.constant 0 : index
      %c0_159 = arith.constant 0 : index
      %342 = vector.load %arg36[%c0_158, %c0_159] : memref<32x32xf32, #tpu.memory_space<vmem>>, vector<32x32xf32>
      %c0_160 = arith.constant 0 : index
      %c0_161 = arith.constant 0 : index
      %343 = vector.load %arg37[%c0_160, %c0_161] : memref<1x32xf32, #tpu.memory_space<vmem>>, vector<1x32xf32>
      %cst_162 = arith.constant dense<0.000000e+00> : vector<16x32xf32>
      %344 = tpu.matmul %339, %340, %cst_162 {dimension_numbers = #tpu.dot_dimension_numbers<[1], [0], [0], [1], [0, 0, 1, 1], [], []>} : vector<16x32xf32>, vector<32x32xf32>, vector<16x32xf32> -> vector<16x32xf32>
      %345 = vector.broadcast %341 : vector<1x32xf32> to vector<16x32xf32>
      %346 = arith.addf %344, %345 : vector<16x32xf32>
      %cst_163 = arith.constant 5.000000e-01 : f32
      %347 = vector.broadcast %cst_163 : f32 to vector<16x32xf32>
      %348 = arith.mulf %347, %346 : vector<16x32xf32>
      %cst_164 = arith.constant 0.707106769 : f32
      %349 = vector.broadcast %cst_164 : f32 to vector<16x32xf32>
      %350 = arith.mulf %346, %349 : vector<16x32xf32>
      %351 = math.erf %350 : vector<16x32xf32>
      %cst_165 = arith.constant 1.000000e+00 : f32
      %352 = vector.broadcast %cst_165 : f32 to vector<16x32xf32>
      %353 = arith.addf %352, %351 : vector<16x32xf32>
      %354 = arith.mulf %348, %353 : vector<16x32xf32>
      %cst_166 = arith.constant dense<0.000000e+00> : vector<16x32xf32>
      %355 = tpu.matmul %354, %342, %cst_166 {dimension_numbers = #tpu.dot_dimension_numbers<[1], [0], [0], [1], [0, 0, 1, 1], [], []>} : vector<16x32xf32>, vector<32x32xf32>, vector<16x32xf32> -> vector<16x32xf32>
      %356 = vector.broadcast %343 : vector<1x32xf32> to vector<16x32xf32>
      %357 = arith.addf %355, %356 : vector<16x32xf32>
      %358 = arith.addf %319, %357 : vector<16x32xf32>
      %c0_167 = arith.constant 0 : index
      %c0_168 = arith.constant 0 : index
      %359 = vector.load %arg38[%c0_167, %c0_168] : memref<1x32xf32, #tpu.memory_space<vmem>>, vector<1x32xf32>
      %c0_169 = arith.constant 0 : index
      %c0_170 = arith.constant 0 : index
      %360 = vector.load %arg39[%c0_169, %c0_170] : memref<1x32xf32, #tpu.memory_space<vmem>>, vector<1x32xf32>
      %c0_171 = arith.constant 0 : index
      %c0_172 = arith.constant 0 : index
      %361 = vector.load %arg40[%c0_171, %c0_172] : memref<1x32xf32, #tpu.memory_space<vmem>>, vector<1x32xf32>
      %c0_173 = arith.constant 0 : index
      %c0_174 = arith.constant 0 : index
      %362 = vector.load %arg41[%c0_173, %c0_174] : memref<1x32xf32, #tpu.memory_space<vmem>>, vector<1x32xf32>
      %cst_175 = arith.constant dense<0.000000e+00> : vector<16xf32>
      %363 = vector.multi_reduction <add>, %358, %cst_175 [1] : vector<16x32xf32> to vector<16xf32>
      %364 = vector.shape_cast %363 : vector<16xf32> to vector<16x1xf32>
      %cst_176 = arith.constant 3.200000e+01 : f32
      %365 = vector.broadcast %cst_176 : f32 to vector<16x1xf32>
      %366 = arith.divf %364, %365 : vector<16x1xf32>
      %367 = vector.broadcast %366 : vector<16x1xf32> to vector<16x32xf32>
      %368 = arith.subf %358, %367 : vector<16x32xf32>
      %369 = arith.mulf %368, %368 : vector<16x32xf32>
      %cst_177 = arith.constant dense<0.000000e+00> : vector<16xf32>
      %370 = vector.multi_reduction <add>, %369, %cst_177 [1] : vector<16x32xf32> to vector<16xf32>
      %371 = vector.shape_cast %370 : vector<16xf32> to vector<16x1xf32>
      %cst_178 = arith.constant 3.200000e+01 : f32
      %372 = vector.broadcast %cst_178 : f32 to vector<16x1xf32>
      %373 = arith.divf %371, %372 : vector<16x1xf32>
      %cst_179 = arith.constant 9.99999974E-6 : f32
      %374 = vector.broadcast %cst_179 : f32 to vector<16x1xf32>
      %375 = arith.addf %373, %374 : vector<16x1xf32>
      %376 = math.rsqrt %375 : vector<16x1xf32>
      %377 = vector.broadcast %376 : vector<16x1xf32> to vector<16x32xf32>
      %378 = arith.mulf %368, %377 : vector<16x32xf32>
      %379 = vector.broadcast %359 : vector<1x32xf32> to vector<16x32xf32>
      %380 = arith.mulf %378, %379 : vector<16x32xf32>
      %381 = vector.broadcast %360 : vector<1x32xf32> to vector<16x32xf32>
      %382 = arith.addf %380, %381 : vector<16x32xf32>
      %c0_180 = arith.constant 0 : index
      %c0_181 = arith.constant 0 : index
      %383 = vector.load %arg42[%c0_180, %c0_181] : memref<32x32xf32, #tpu.memory_space<vmem>>, vector<32x32xf32>
      %c0_182 = arith.constant 0 : index
      %c0_183 = arith.constant 0 : index
      %384 = vector.load %arg43[%c0_182, %c0_183] : memref<1x32xf32, #tpu.memory_space<vmem>>, vector<1x32xf32>
      %c0_184 = arith.constant 0 : index
      %c0_185 = arith.constant 0 : index
      %385 = vector.load %arg44[%c0_184, %c0_185] : memref<32x32xf32, #tpu.memory_space<vmem>>, vector<32x32xf32>
      %c0_186 = arith.constant 0 : index
      %c0_187 = arith.constant 0 : index
      %386 = vector.load %arg45[%c0_186, %c0_187] : memref<1x32xf32, #tpu.memory_space<vmem>>, vector<1x32xf32>
      %c0_188 = arith.constant 0 : index
      %c0_189 = arith.constant 0 : index
      %387 = vector.load %arg46[%c0_188, %c0_189] : memref<32x32xf32, #tpu.memory_space<vmem>>, vector<32x32xf32>
      %c0_190 = arith.constant 0 : index
      %c0_191 = arith.constant 0 : index
      %388 = vector.load %arg47[%c0_190, %c0_191] : memref<1x32xf32, #tpu.memory_space<vmem>>, vector<1x32xf32>
      %c0_192 = arith.constant 0 : index
      %c0_193 = arith.constant 0 : index
      %389 = vector.load %arg48[%c0_192, %c0_193] : memref<32x32xf32, #tpu.memory_space<vmem>>, vector<32x32xf32>
      %c0_194 = arith.constant 0 : index
      %c0_195 = arith.constant 0 : index
      %390 = vector.load %arg49[%c0_194, %c0_195] : memref<1x32xf32, #tpu.memory_space<vmem>>, vector<1x32xf32>
      %cst_196 = arith.constant dense<0.000000e+00> : vector<16x32xf32>
      %391 = tpu.matmul %382, %383, %cst_196 {dimension_numbers = #tpu.dot_dimension_numbers<[1], [0], [0], [1], [0, 0, 1, 1], [], []>} : vector<16x32xf32>, vector<32x32xf32>, vector<16x32xf32> -> vector<16x32xf32>
      %392 = vector.broadcast %384 : vector<1x32xf32> to vector<16x32xf32>
      %393 = arith.addf %391, %392 : vector<16x32xf32>
      %cst_197 = arith.constant dense<0.000000e+00> : vector<16x32xf32>
      %394 = tpu.matmul %382, %385, %cst_197 {dimension_numbers = #tpu.dot_dimension_numbers<[1], [0], [0], [1], [0, 0, 1, 1], [], []>} : vector<16x32xf32>, vector<32x32xf32>, vector<16x32xf32> -> vector<16x32xf32>
      %395 = vector.broadcast %386 : vector<1x32xf32> to vector<16x32xf32>
      %396 = arith.addf %394, %395 : vector<16x32xf32>
      %cst_198 = arith.constant dense<0.000000e+00> : vector<16x32xf32>
      %397 = tpu.matmul %382, %387, %cst_198 {dimension_numbers = #tpu.dot_dimension_numbers<[1], [0], [0], [1], [0, 0, 1, 1], [], []>} : vector<16x32xf32>, vector<32x32xf32>, vector<16x32xf32> -> vector<16x32xf32>
      %398 = vector.broadcast %388 : vector<1x32xf32> to vector<16x32xf32>
      %399 = arith.addf %397, %398 : vector<16x32xf32>
      %400 = vector.extract_strided_slice %393 {offsets = [0, 0], sizes = [16, 4], strides = [1, 1]} : vector<16x32xf32> to vector<16x4xf32>
      %401 = vector.extract_strided_slice %396 {offsets = [0, 0], sizes = [16, 4], strides = [1, 1]} : vector<16x32xf32> to vector<16x4xf32>
      %402 = vector.extract_strided_slice %399 {offsets = [0, 0], sizes = [16, 4], strides = [1, 1]} : vector<16x32xf32> to vector<16x4xf32>
      %cst_199 = arith.constant dense<0.000000e+00> : vector<16x16xf32>
      %403 = tpu.matmul %400, %401, %cst_199 {dimension_numbers = #tpu.dot_dimension_numbers<[1], [1], [0], [0], [0, 0, 1, 0], [], []>} : vector<16x4xf32>, vector<16x4xf32>, vector<16x16xf32> -> vector<16x16xf32>
      %cst_200 = arith.constant 5.000000e-01 : f32
      %404 = vector.broadcast %cst_200 : f32 to vector<16x16xf32>
      %405 = arith.mulf %403, %404 : vector<16x16xf32>
      %cst_201 = arith.constant dense<0xFF800000> : vector<16xf32>
      %406 = vector.multi_reduction <maximumf>, %405, %cst_201 [1] : vector<16x16xf32> to vector<16xf32>
      %407 = vector.shape_cast %406 : vector<16xf32> to vector<16x1xf32>
      %408 = vector.broadcast %407 : vector<16x1xf32> to vector<16x16xf32>
      %409 = arith.subf %405, %408 : vector<16x16xf32>
      %410 = math.exp %409 : vector<16x16xf32>
      %cst_202 = arith.constant dense<0.000000e+00> : vector<16xf32>
      %411 = vector.multi_reduction <add>, %410, %cst_202 [1] : vector<16x16xf32> to vector<16xf32>
      %412 = vector.shape_cast %411 : vector<16xf32> to vector<16x1xf32>
      %413 = tpu.reciprocal %412 {approx = true} : vector<16x1xf32> -> vector<16x1xf32>
      %414 = vector.broadcast %413 : vector<16x1xf32> to vector<16x16xf32>
      %415 = arith.mulf %410, %414 : vector<16x16xf32>
      %cst_203 = arith.constant dense<0.000000e+00> : vector<16x4xf32>
      %416 = tpu.matmul %415, %402, %cst_203 {dimension_numbers = #tpu.dot_dimension_numbers<[1], [0], [0], [1], [0, 0, 1, 1], [], []>} : vector<16x16xf32>, vector<16x4xf32>, vector<16x4xf32> -> vector<16x4xf32>
      %417 = vector.extract_strided_slice %393 {offsets = [0, 4], sizes = [16, 4], strides = [1, 1]} : vector<16x32xf32> to vector<16x4xf32>
      %418 = vector.extract_strided_slice %396 {offsets = [0, 4], sizes = [16, 4], strides = [1, 1]} : vector<16x32xf32> to vector<16x4xf32>
      %419 = vector.extract_strided_slice %399 {offsets = [0, 4], sizes = [16, 4], strides = [1, 1]} : vector<16x32xf32> to vector<16x4xf32>
      %cst_204 = arith.constant dense<0.000000e+00> : vector<16x16xf32>
      %420 = tpu.matmul %417, %418, %cst_204 {dimension_numbers = #tpu.dot_dimension_numbers<[1], [1], [0], [0], [0, 0, 1, 0], [], []>} : vector<16x4xf32>, vector<16x4xf32>, vector<16x16xf32> -> vector<16x16xf32>
      %cst_205 = arith.constant 5.000000e-01 : f32
      %421 = vector.broadcast %cst_205 : f32 to vector<16x16xf32>
      %422 = arith.mulf %420, %421 : vector<16x16xf32>
      %cst_206 = arith.constant dense<0xFF800000> : vector<16xf32>
      %423 = vector.multi_reduction <maximumf>, %422, %cst_206 [1] : vector<16x16xf32> to vector<16xf32>
      %424 = vector.shape_cast %423 : vector<16xf32> to vector<16x1xf32>
      %425 = vector.broadcast %424 : vector<16x1xf32> to vector<16x16xf32>
      %426 = arith.subf %422, %425 : vector<16x16xf32>
      %427 = math.exp %426 : vector<16x16xf32>
      %cst_207 = arith.constant dense<0.000000e+00> : vector<16xf32>
      %428 = vector.multi_reduction <add>, %427, %cst_207 [1] : vector<16x16xf32> to vector<16xf32>
      %429 = vector.shape_cast %428 : vector<16xf32> to vector<16x1xf32>
      %430 = tpu.reciprocal %429 {approx = true} : vector<16x1xf32> -> vector<16x1xf32>
      %431 = vector.broadcast %430 : vector<16x1xf32> to vector<16x16xf32>
      %432 = arith.mulf %427, %431 : vector<16x16xf32>
      %cst_208 = arith.constant dense<0.000000e+00> : vector<16x4xf32>
      %433 = tpu.matmul %432, %419, %cst_208 {dimension_numbers = #tpu.dot_dimension_numbers<[1], [0], [0], [1], [0, 0, 1, 1], [], []>} : vector<16x16xf32>, vector<16x4xf32>, vector<16x4xf32> -> vector<16x4xf32>
      %434 = vector.extract_strided_slice %393 {offsets = [0, 8], sizes = [16, 4], strides = [1, 1]} : vector<16x32xf32> to vector<16x4xf32>
      %435 = vector.extract_strided_slice %396 {offsets = [0, 8], sizes = [16, 4], strides = [1, 1]} : vector<16x32xf32> to vector<16x4xf32>
      %436 = vector.extract_strided_slice %399 {offsets = [0, 8], sizes = [16, 4], strides = [1, 1]} : vector<16x32xf32> to vector<16x4xf32>
      %cst_209 = arith.constant dense<0.000000e+00> : vector<16x16xf32>
      %437 = tpu.matmul %434, %435, %cst_209 {dimension_numbers = #tpu.dot_dimension_numbers<[1], [1], [0], [0], [0, 0, 1, 0], [], []>} : vector<16x4xf32>, vector<16x4xf32>, vector<16x16xf32> -> vector<16x16xf32>
      %cst_210 = arith.constant 5.000000e-01 : f32
      %438 = vector.broadcast %cst_210 : f32 to vector<16x16xf32>
      %439 = arith.mulf %437, %438 : vector<16x16xf32>
      %cst_211 = arith.constant dense<0xFF800000> : vector<16xf32>
      %440 = vector.multi_reduction <maximumf>, %439, %cst_211 [1] : vector<16x16xf32> to vector<16xf32>
      %441 = vector.shape_cast %440 : vector<16xf32> to vector<16x1xf32>
      %442 = vector.broadcast %441 : vector<16x1xf32> to vector<16x16xf32>
      %443 = arith.subf %439, %442 : vector<16x16xf32>
      %444 = math.exp %443 : vector<16x16xf32>
      %cst_212 = arith.constant dense<0.000000e+00> : vector<16xf32>
      %445 = vector.multi_reduction <add>, %444, %cst_212 [1] : vector<16x16xf32> to vector<16xf32>
      %446 = vector.shape_cast %445 : vector<16xf32> to vector<16x1xf32>
      %447 = tpu.reciprocal %446 {approx = true} : vector<16x1xf32> -> vector<16x1xf32>
      %448 = vector.broadcast %447 : vector<16x1xf32> to vector<16x16xf32>
      %449 = arith.mulf %444, %448 : vector<16x16xf32>
      %cst_213 = arith.constant dense<0.000000e+00> : vector<16x4xf32>
      %450 = tpu.matmul %449, %436, %cst_213 {dimension_numbers = #tpu.dot_dimension_numbers<[1], [0], [0], [1], [0, 0, 1, 1], [], []>} : vector<16x16xf32>, vector<16x4xf32>, vector<16x4xf32> -> vector<16x4xf32>
      %451 = vector.extract_strided_slice %393 {offsets = [0, 12], sizes = [16, 4], strides = [1, 1]} : vector<16x32xf32> to vector<16x4xf32>
      %452 = vector.extract_strided_slice %396 {offsets = [0, 12], sizes = [16, 4], strides = [1, 1]} : vector<16x32xf32> to vector<16x4xf32>
      %453 = vector.extract_strided_slice %399 {offsets = [0, 12], sizes = [16, 4], strides = [1, 1]} : vector<16x32xf32> to vector<16x4xf32>
      %cst_214 = arith.constant dense<0.000000e+00> : vector<16x16xf32>
      %454 = tpu.matmul %451, %452, %cst_214 {dimension_numbers = #tpu.dot_dimension_numbers<[1], [1], [0], [0], [0, 0, 1, 0], [], []>} : vector<16x4xf32>, vector<16x4xf32>, vector<16x16xf32> -> vector<16x16xf32>
      %cst_215 = arith.constant 5.000000e-01 : f32
      %455 = vector.broadcast %cst_215 : f32 to vector<16x16xf32>
      %456 = arith.mulf %454, %455 : vector<16x16xf32>
      %cst_216 = arith.constant dense<0xFF800000> : vector<16xf32>
      %457 = vector.multi_reduction <maximumf>, %456, %cst_216 [1] : vector<16x16xf32> to vector<16xf32>
      %458 = vector.shape_cast %457 : vector<16xf32> to vector<16x1xf32>
      %459 = vector.broadcast %458 : vector<16x1xf32> to vector<16x16xf32>
      %460 = arith.subf %456, %459 : vector<16x16xf32>
      %461 = math.exp %460 : vector<16x16xf32>
      %cst_217 = arith.constant dense<0.000000e+00> : vector<16xf32>
      %462 = vector.multi_reduction <add>, %461, %cst_217 [1] : vector<16x16xf32> to vector<16xf32>
      %463 = vector.shape_cast %462 : vector<16xf32> to vector<16x1xf32>
      %464 = tpu.reciprocal %463 {approx = true} : vector<16x1xf32> -> vector<16x1xf32>
      %465 = vector.broadcast %464 : vector<16x1xf32> to vector<16x16xf32>
      %466 = arith.mulf %461, %465 : vector<16x16xf32>
      %cst_218 = arith.constant dense<0.000000e+00> : vector<16x4xf32>
      %467 = tpu.matmul %466, %453, %cst_218 {dimension_numbers = #tpu.dot_dimension_numbers<[1], [0], [0], [1], [0, 0, 1, 1], [], []>} : vector<16x16xf32>, vector<16x4xf32>, vector<16x4xf32> -> vector<16x4xf32>
      %468 = vector.extract_strided_slice %393 {offsets = [0, 16], sizes = [16, 4], strides = [1, 1]} : vector<16x32xf32> to vector<16x4xf32>
      %469 = vector.extract_strided_slice %396 {offsets = [0, 16], sizes = [16, 4], strides = [1, 1]} : vector<16x32xf32> to vector<16x4xf32>
      %470 = vector.extract_strided_slice %399 {offsets = [0, 16], sizes = [16, 4], strides = [1, 1]} : vector<16x32xf32> to vector<16x4xf32>
      %cst_219 = arith.constant dense<0.000000e+00> : vector<16x16xf32>
      %471 = tpu.matmul %468, %469, %cst_219 {dimension_numbers = #tpu.dot_dimension_numbers<[1], [1], [0], [0], [0, 0, 1, 0], [], []>} : vector<16x4xf32>, vector<16x4xf32>, vector<16x16xf32> -> vector<16x16xf32>
      %cst_220 = arith.constant 5.000000e-01 : f32
      %472 = vector.broadcast %cst_220 : f32 to vector<16x16xf32>
      %473 = arith.mulf %471, %472 : vector<16x16xf32>
      %cst_221 = arith.constant dense<0xFF800000> : vector<16xf32>
      %474 = vector.multi_reduction <maximumf>, %473, %cst_221 [1] : vector<16x16xf32> to vector<16xf32>
      %475 = vector.shape_cast %474 : vector<16xf32> to vector<16x1xf32>
      %476 = vector.broadcast %475 : vector<16x1xf32> to vector<16x16xf32>
      %477 = arith.subf %473, %476 : vector<16x16xf32>
      %478 = math.exp %477 : vector<16x16xf32>
      %cst_222 = arith.constant dense<0.000000e+00> : vector<16xf32>
      %479 = vector.multi_reduction <add>, %478, %cst_222 [1] : vector<16x16xf32> to vector<16xf32>
      %480 = vector.shape_cast %479 : vector<16xf32> to vector<16x1xf32>
      %481 = tpu.reciprocal %480 {approx = true} : vector<16x1xf32> -> vector<16x1xf32>
      %482 = vector.broadcast %481 : vector<16x1xf32> to vector<16x16xf32>
      %483 = arith.mulf %478, %482 : vector<16x16xf32>
      %cst_223 = arith.constant dense<0.000000e+00> : vector<16x4xf32>
      %484 = tpu.matmul %483, %470, %cst_223 {dimension_numbers = #tpu.dot_dimension_numbers<[1], [0], [0], [1], [0, 0, 1, 1], [], []>} : vector<16x16xf32>, vector<16x4xf32>, vector<16x4xf32> -> vector<16x4xf32>
      %485 = vector.extract_strided_slice %393 {offsets = [0, 20], sizes = [16, 4], strides = [1, 1]} : vector<16x32xf32> to vector<16x4xf32>
      %486 = vector.extract_strided_slice %396 {offsets = [0, 20], sizes = [16, 4], strides = [1, 1]} : vector<16x32xf32> to vector<16x4xf32>
      %487 = vector.extract_strided_slice %399 {offsets = [0, 20], sizes = [16, 4], strides = [1, 1]} : vector<16x32xf32> to vector<16x4xf32>
      %cst_224 = arith.constant dense<0.000000e+00> : vector<16x16xf32>
      %488 = tpu.matmul %485, %486, %cst_224 {dimension_numbers = #tpu.dot_dimension_numbers<[1], [1], [0], [0], [0, 0, 1, 0], [], []>} : vector<16x4xf32>, vector<16x4xf32>, vector<16x16xf32> -> vector<16x16xf32>
      %cst_225 = arith.constant 5.000000e-01 : f32
      %489 = vector.broadcast %cst_225 : f32 to vector<16x16xf32>
      %490 = arith.mulf %488, %489 : vector<16x16xf32>
      %cst_226 = arith.constant dense<0xFF800000> : vector<16xf32>
      %491 = vector.multi_reduction <maximumf>, %490, %cst_226 [1] : vector<16x16xf32> to vector<16xf32>
      %492 = vector.shape_cast %491 : vector<16xf32> to vector<16x1xf32>
      %493 = vector.broadcast %492 : vector<16x1xf32> to vector<16x16xf32>
      %494 = arith.subf %490, %493 : vector<16x16xf32>
      %495 = math.exp %494 : vector<16x16xf32>
      %cst_227 = arith.constant dense<0.000000e+00> : vector<16xf32>
      %496 = vector.multi_reduction <add>, %495, %cst_227 [1] : vector<16x16xf32> to vector<16xf32>
      %497 = vector.shape_cast %496 : vector<16xf32> to vector<16x1xf32>
      %498 = tpu.reciprocal %497 {approx = true} : vector<16x1xf32> -> vector<16x1xf32>
      %499 = vector.broadcast %498 : vector<16x1xf32> to vector<16x16xf32>
      %500 = arith.mulf %495, %499 : vector<16x16xf32>
      %cst_228 = arith.constant dense<0.000000e+00> : vector<16x4xf32>
      %501 = tpu.matmul %500, %487, %cst_228 {dimension_numbers = #tpu.dot_dimension_numbers<[1], [0], [0], [1], [0, 0, 1, 1], [], []>} : vector<16x16xf32>, vector<16x4xf32>, vector<16x4xf32> -> vector<16x4xf32>
      %502 = vector.extract_strided_slice %393 {offsets = [0, 24], sizes = [16, 4], strides = [1, 1]} : vector<16x32xf32> to vector<16x4xf32>
      %503 = vector.extract_strided_slice %396 {offsets = [0, 24], sizes = [16, 4], strides = [1, 1]} : vector<16x32xf32> to vector<16x4xf32>
      %504 = vector.extract_strided_slice %399 {offsets = [0, 24], sizes = [16, 4], strides = [1, 1]} : vector<16x32xf32> to vector<16x4xf32>
      %cst_229 = arith.constant dense<0.000000e+00> : vector<16x16xf32>
      %505 = tpu.matmul %502, %503, %cst_229 {dimension_numbers = #tpu.dot_dimension_numbers<[1], [1], [0], [0], [0, 0, 1, 0], [], []>} : vector<16x4xf32>, vector<16x4xf32>, vector<16x16xf32> -> vector<16x16xf32>
      %cst_230 = arith.constant 5.000000e-01 : f32
      %506 = vector.broadcast %cst_230 : f32 to vector<16x16xf32>
      %507 = arith.mulf %505, %506 : vector<16x16xf32>
      %cst_231 = arith.constant dense<0xFF800000> : vector<16xf32>
      %508 = vector.multi_reduction <maximumf>, %507, %cst_231 [1] : vector<16x16xf32> to vector<16xf32>
      %509 = vector.shape_cast %508 : vector<16xf32> to vector<16x1xf32>
      %510 = vector.broadcast %509 : vector<16x1xf32> to vector<16x16xf32>
      %511 = arith.subf %507, %510 : vector<16x16xf32>
      %512 = math.exp %511 : vector<16x16xf32>
      %cst_232 = arith.constant dense<0.000000e+00> : vector<16xf32>
      %513 = vector.multi_reduction <add>, %512, %cst_232 [1] : vector<16x16xf32> to vector<16xf32>
      %514 = vector.shape_cast %513 : vector<16xf32> to vector<16x1xf32>
      %515 = tpu.reciprocal %514 {approx = true} : vector<16x1xf32> -> vector<16x1xf32>
      %516 = vector.broadcast %515 : vector<16x1xf32> to vector<16x16xf32>
      %517 = arith.mulf %512, %516 : vector<16x16xf32>
      %cst_233 = arith.constant dense<0.000000e+00> : vector<16x4xf32>
      %518 = tpu.matmul %517, %504, %cst_233 {dimension_numbers = #tpu.dot_dimension_numbers<[1], [0], [0], [1], [0, 0, 1, 1], [], []>} : vector<16x16xf32>, vector<16x4xf32>, vector<16x4xf32> -> vector<16x4xf32>
      %519 = vector.extract_strided_slice %393 {offsets = [0, 28], sizes = [16, 4], strides = [1, 1]} : vector<16x32xf32> to vector<16x4xf32>
      %520 = vector.extract_strided_slice %396 {offsets = [0, 28], sizes = [16, 4], strides = [1, 1]} : vector<16x32xf32> to vector<16x4xf32>
      %521 = vector.extract_strided_slice %399 {offsets = [0, 28], sizes = [16, 4], strides = [1, 1]} : vector<16x32xf32> to vector<16x4xf32>
      %cst_234 = arith.constant dense<0.000000e+00> : vector<16x16xf32>
      %522 = tpu.matmul %519, %520, %cst_234 {dimension_numbers = #tpu.dot_dimension_numbers<[1], [1], [0], [0], [0, 0, 1, 0], [], []>} : vector<16x4xf32>, vector<16x4xf32>, vector<16x16xf32> -> vector<16x16xf32>
      %cst_235 = arith.constant 5.000000e-01 : f32
      %523 = vector.broadcast %cst_235 : f32 to vector<16x16xf32>
      %524 = arith.mulf %522, %523 : vector<16x16xf32>
      %cst_236 = arith.constant dense<0xFF800000> : vector<16xf32>
      %525 = vector.multi_reduction <maximumf>, %524, %cst_236 [1] : vector<16x16xf32> to vector<16xf32>
      %526 = vector.shape_cast %525 : vector<16xf32> to vector<16x1xf32>
      %527 = vector.broadcast %526 : vector<16x1xf32> to vector<16x16xf32>
      %528 = arith.subf %524, %527 : vector<16x16xf32>
      %529 = math.exp %528 : vector<16x16xf32>
      %cst_237 = arith.constant dense<0.000000e+00> : vector<16xf32>
      %530 = vector.multi_reduction <add>, %529, %cst_237 [1] : vector<16x16xf32> to vector<16xf32>
      %531 = vector.shape_cast %530 : vector<16xf32> to vector<16x1xf32>
      %532 = tpu.reciprocal %531 {approx = true} : vector<16x1xf32> -> vector<16x1xf32>
      %533 = vector.broadcast %532 : vector<16x1xf32> to vector<16x16xf32>
      %534 = arith.mulf %529, %533 : vector<16x16xf32>
      %cst_238 = arith.constant dense<0.000000e+00> : vector<16x4xf32>
      %535 = tpu.matmul %534, %521, %cst_238 {dimension_numbers = #tpu.dot_dimension_numbers<[1], [0], [0], [1], [0, 0, 1, 1], [], []>} : vector<16x16xf32>, vector<16x4xf32>, vector<16x4xf32> -> vector<16x4xf32>
      %536 = tpu.concatenate %416, %433, %450, %467, %484, %501, %518, %535 in 1 : vector<16x4xf32>, vector<16x4xf32>, vector<16x4xf32>, vector<16x4xf32>, vector<16x4xf32>, vector<16x4xf32>, vector<16x4xf32>, vector<16x4xf32> -> vector<16x32xf32>
      %cst_239 = arith.constant dense<0.000000e+00> : vector<16x32xf32>
      %537 = tpu.matmul %536, %389, %cst_239 {dimension_numbers = #tpu.dot_dimension_numbers<[1], [0], [0], [1], [0, 0, 1, 1], [], []>} : vector<16x32xf32>, vector<32x32xf32>, vector<16x32xf32> -> vector<16x32xf32>
      %538 = vector.broadcast %390 : vector<1x32xf32> to vector<16x32xf32>
      %539 = arith.addf %537, %538 : vector<16x32xf32>
      %540 = arith.addf %358, %539 : vector<16x32xf32>
      %cst_240 = arith.constant dense<0.000000e+00> : vector<16xf32>
      %541 = vector.multi_reduction <add>, %540, %cst_240 [1] : vector<16x32xf32> to vector<16xf32>
      %542 = vector.shape_cast %541 : vector<16xf32> to vector<16x1xf32>
      %cst_241 = arith.constant 3.200000e+01 : f32
      %543 = vector.broadcast %cst_241 : f32 to vector<16x1xf32>
      %544 = arith.divf %542, %543 : vector<16x1xf32>
      %545 = vector.broadcast %544 : vector<16x1xf32> to vector<16x32xf32>
      %546 = arith.subf %540, %545 : vector<16x32xf32>
      %547 = arith.mulf %546, %546 : vector<16x32xf32>
      %cst_242 = arith.constant dense<0.000000e+00> : vector<16xf32>
      %548 = vector.multi_reduction <add>, %547, %cst_242 [1] : vector<16x32xf32> to vector<16xf32>
      %549 = vector.shape_cast %548 : vector<16xf32> to vector<16x1xf32>
      %cst_243 = arith.constant 3.200000e+01 : f32
      %550 = vector.broadcast %cst_243 : f32 to vector<16x1xf32>
      %551 = arith.divf %549, %550 : vector<16x1xf32>
      %cst_244 = arith.constant 9.99999974E-6 : f32
      %552 = vector.broadcast %cst_244 : f32 to vector<16x1xf32>
      %553 = arith.addf %551, %552 : vector<16x1xf32>
      %554 = math.rsqrt %553 : vector<16x1xf32>
      %555 = vector.broadcast %554 : vector<16x1xf32> to vector<16x32xf32>
      %556 = arith.mulf %546, %555 : vector<16x32xf32>
      %557 = vector.broadcast %361 : vector<1x32xf32> to vector<16x32xf32>
      %558 = arith.mulf %556, %557 : vector<16x32xf32>
      %559 = vector.broadcast %362 : vector<1x32xf32> to vector<16x32xf32>
      %560 = arith.addf %558, %559 : vector<16x32xf32>
      %c0_245 = arith.constant 0 : index
      %c0_246 = arith.constant 0 : index
      %561 = vector.load %arg50[%c0_245, %c0_246] : memref<32x32xf32, #tpu.memory_space<vmem>>, vector<32x32xf32>
      %c0_247 = arith.constant 0 : index
      %c0_248 = arith.constant 0 : index
      %562 = vector.load %arg51[%c0_247, %c0_248] : memref<1x32xf32, #tpu.memory_space<vmem>>, vector<1x32xf32>
      %c0_249 = arith.constant 0 : index
      %c0_250 = arith.constant 0 : index
      %563 = vector.load %arg52[%c0_249, %c0_250] : memref<32x32xf32, #tpu.memory_space<vmem>>, vector<32x32xf32>
      %c0_251 = arith.constant 0 : index
      %c0_252 = arith.constant 0 : index
      %564 = vector.load %arg53[%c0_251, %c0_252] : memref<1x32xf32, #tpu.memory_space<vmem>>, vector<1x32xf32>
      %cst_253 = arith.constant dense<0.000000e+00> : vector<16x32xf32>
      %565 = tpu.matmul %560, %561, %cst_253 {dimension_numbers = #tpu.dot_dimension_numbers<[1], [0], [0], [1], [0, 0, 1, 1], [], []>} : vector<16x32xf32>, vector<32x32xf32>, vector<16x32xf32> -> vector<16x32xf32>
      %566 = vector.broadcast %562 : vector<1x32xf32> to vector<16x32xf32>
      %567 = arith.addf %565, %566 : vector<16x32xf32>
      %cst_254 = arith.constant 5.000000e-01 : f32
      %568 = vector.broadcast %cst_254 : f32 to vector<16x32xf32>
      %569 = arith.mulf %568, %567 : vector<16x32xf32>
      %cst_255 = arith.constant 0.707106769 : f32
      %570 = vector.broadcast %cst_255 : f32 to vector<16x32xf32>
      %571 = arith.mulf %567, %570 : vector<16x32xf32>
      %572 = math.erf %571 : vector<16x32xf32>
      %cst_256 = arith.constant 1.000000e+00 : f32
      %573 = vector.broadcast %cst_256 : f32 to vector<16x32xf32>
      %574 = arith.addf %573, %572 : vector<16x32xf32>
      %575 = arith.mulf %569, %574 : vector<16x32xf32>
      %cst_257 = arith.constant dense<0.000000e+00> : vector<16x32xf32>
      %576 = tpu.matmul %575, %563, %cst_257 {dimension_numbers = #tpu.dot_dimension_numbers<[1], [0], [0], [1], [0, 0, 1, 1], [], []>} : vector<16x32xf32>, vector<32x32xf32>, vector<16x32xf32> -> vector<16x32xf32>
      %577 = vector.broadcast %564 : vector<1x32xf32> to vector<16x32xf32>
      %578 = arith.addf %576, %577 : vector<16x32xf32>
      %579 = arith.addf %540, %578 : vector<16x32xf32>
      scf.yield %579 : vector<16x32xf32>
    }
    %c0_73 = arith.constant 0 : index
    %c0_74 = arith.constant 0 : index
    %c0_75 = arith.constant 0 : index
    %135 = vector.load %arg54[%c0_73, %c0_74, %c0_75] : memref<1x16x32xf32, #tpu.memory_space<vmem>>, vector<1x16x32xf32>
    %136 = vector.shape_cast %135 : vector<1x16x32xf32> to vector<16x32xf32>
    %137 = vector.shape_cast %134 : vector<16x32xf32> to vector<1x16x32xf32>
    tpu.vector_store %arg54[%c0_73, %c0_74, %c0_75], %137 {strides = array<i32>} : memref<1x16x32xf32, #tpu.memory_space<vmem>>, vector<1x16x32xf32>,
    return
  }
  func.func @transform_0(%arg0: i32) -> (i32, i32, i32) {
    %c0_i32 = arith.constant 0 : i32
    %c0_i32_0 = arith.constant 0 : i32
    %c0_i32_1 = arith.constant 0 : i32
    return %arg0, %c0_i32, %c0_i32_0 : i32, i32, i32
  }
  func.func @transform_1(%arg0: i32) -> (i32, i32, i32) {
    %c0_i32 = arith.constant 0 : i32
    %c0_i32_0 = arith.constant 0 : i32
    %c0_i32_1 = arith.constant 0 : i32
    return %arg0, %c0_i32, %c0_i32_0 : i32, i32, i32
  }
  func.func @transform_2(%arg0: i32) -> (i32, i32) {
    %c0_i32 = arith.constant 0 : i32
    %c0_i32_0 = arith.constant 0 : i32
    %c0_i32_1 = arith.constant 0 : i32
    return %c0_i32, %c0_i32_0 : i32, i32
  }
  func.func @transform_3(%arg0: i32) -> (i32, i32) {
    %c0_i32 = arith.constant 0 : i32
    %c0_i32_0 = arith.constant 0 : i32
    %c0_i32_1 = arith.constant 0 : i32
    return %c0_i32, %c0_i32_0 : i32, i32
  }
  func.func @transform_4(%arg0: i32) -> (i32, i32) {
    %c0_i32 = arith.constant 0 : i32
    %c0_i32_0 = arith.constant 0 : i32
    %c0_i32_1 = arith.constant 0 : i32
    return %c0_i32, %c0_i32_0 : i32, i32
  }
  func.func @transform_5(%arg0: i32) -> (i32, i32) {
    %c0_i32 = arith.constant 0 : i32
    %c0_i32_0 = arith.constant 0 : i32
    %c0_i32_1 = arith.constant 0 : i32
    return %c0_i32, %c0_i32_0 : i32, i32
  }
  func.func @transform_6(%arg0: i32) -> (i32, i32) {
    %c0_i32 = arith.constant 0 : i32
    %c0_i32_0 = arith.constant 0 : i32
    %c0_i32_1 = arith.constant 0 : i32
    return %c0_i32, %c0_i32_0 : i32, i32
  }
  func.func @transform_7(%arg0: i32) -> (i32, i32) {
    %c0_i32 = arith.constant 0 : i32
    %c0_i32_0 = arith.constant 0 : i32
    %c0_i32_1 = arith.constant 0 : i32
    return %c0_i32, %c0_i32_0 : i32, i32
  }
  func.func @transform_8(%arg0: i32) -> (i32, i32) {
    %c0_i32 = arith.constant 0 : i32
    %c0_i32_0 = arith.constant 0 : i32
    %c0_i32_1 = arith.constant 0 : i32
    return %c0_i32, %c0_i32_0 : i32, i32
  }
  func.func @transform_9(%arg0: i32) -> (i32, i32) {
    %c0_i32 = arith.constant 0 : i32
    %c0_i32_0 = arith.constant 0 : i32
    %c0_i32_1 = arith.constant 0 : i32
    return %c0_i32, %c0_i32_0 : i32, i32
  }
  func.func @transform_10(%arg0: i32) -> (i32, i32) {
    %c0_i32 = arith.constant 0 : i32
    %c0_i32_0 = arith.constant 0 : i32
    %c0_i32_1 = arith.constant 0 : i32
    return %c0_i32, %c0_i32_0 : i32, i32
  }
  func.func @transform_11(%arg0: i32) -> (i32, i32) {
    %c0_i32 = arith.constant 0 : i32
    %c0_i32_0 = arith.constant 0 : i32
    %c0_i32_1 = arith.constant 0 : i32
    return %c0_i32, %c0_i32_0 : i32, i32
  }
  func.func @transform_12(%arg0: i32) -> (i32, i32) {
    %c0_i32 = arith.constant 0 : i32
    %c0_i32_0 = arith.constant 0 : i32
    %c0_i32_1 = arith.constant 0 : i32
    return %c0_i32, %c0_i32_0 : i32, i32
  }
  func.func @transform_13(%arg0: i32) -> (i32, i32) {
    %c0_i32 = arith.constant 0 : i32
    %c0_i32_0 = arith.constant 0 : i32
    %c0_i32_1 = arith.constant 0 : i32
    return %c0_i32, %c0_i32_0 : i32, i32
  }
  func.func @transform_14(%arg0: i32) -> (i32, i32) {
    %c0_i32 = arith.constant 0 : i32
    %c0_i32_0 = arith.constant 0 : i32
    %c0_i32_1 = arith.constant 0 : i32
    return %c0_i32, %c0_i32_0 : i32, i32
  }
  func.func @transform_15(%arg0: i32) -> (i32, i32) {
    %c0_i32 = arith.constant 0 : i32
    %c0_i32_0 = arith.constant 0 : i32
    %c0_i32_1 = arith.constant 0 : i32
    return %c0_i32, %c0_i32_0 : i32, i32
  }
  func.func @transform_16(%arg0: i32) -> (i32, i32) {
    %c0_i32 = arith.constant 0 : i32
    %c0_i32_0 = arith.constant 0 : i32
    %c0_i32_1 = arith.constant 0 : i32
    return %c0_i32, %c0_i32_0 : i32, i32
  }
  func.func @transform_17(%arg0: i32) -> (i32, i32) {
    %c0_i32 = arith.constant 0 : i32
    %c0_i32_0 = arith.constant 0 : i32
    %c0_i32_1 = arith.constant 0 : i32
    return %c0_i32, %c0_i32_0 : i32, i32
  }
  func.func @transform_18(%arg0: i32) -> (i32, i32) {
    %c0_i32 = arith.constant 0 : i32
    %c0_i32_0 = arith.constant 0 : i32
    %c0_i32_1 = arith.constant 0 : i32
    return %c0_i32, %c0_i32_0 : i32, i32
  }
  func.func @transform_19(%arg0: i32) -> (i32, i32) {
    %c0_i32 = arith.constant 0 : i32
    %c0_i32_0 = arith.constant 0 : i32
    %c0_i32_1 = arith.constant 0 : i32
    return %c0_i32, %c0_i32_0 : i32, i32
  }
  func.func @transform_20(%arg0: i32) -> (i32, i32) {
    %c0_i32 = arith.constant 0 : i32
    %c0_i32_0 = arith.constant 0 : i32
    %c0_i32_1 = arith.constant 0 : i32
    return %c0_i32, %c0_i32_0 : i32, i32
  }
  func.func @transform_21(%arg0: i32) -> (i32, i32) {
    %c0_i32 = arith.constant 0 : i32
    %c0_i32_0 = arith.constant 0 : i32
    %c0_i32_1 = arith.constant 0 : i32
    return %c0_i32, %c0_i32_0 : i32, i32
  }
  func.func @transform_22(%arg0: i32) -> (i32, i32) {
    %c0_i32 = arith.constant 0 : i32
    %c0_i32_0 = arith.constant 0 : i32
    %c0_i32_1 = arith.constant 0 : i32
    return %c0_i32, %c0_i32_0 : i32, i32
  }
  func.func @transform_23(%arg0: i32) -> (i32, i32) {
    %c0_i32 = arith.constant 0 : i32
    %c0_i32_0 = arith.constant 0 : i32
    %c0_i32_1 = arith.constant 0 : i32
    return %c0_i32, %c0_i32_0 : i32, i32
  }
  func.func @transform_24(%arg0: i32) -> (i32, i32) {
    %c0_i32 = arith.constant 0 : i32
    %c0_i32_0 = arith.constant 0 : i32
    %c0_i32_1 = arith.constant 0 : i32
    return %c0_i32, %c0_i32_0 : i32, i32
  }
  func.func @transform_25(%arg0: i32) -> (i32, i32) {
    %c0_i32 = arith.constant 0 : i32
    %c0_i32_0 = arith.constant 0 : i32
    %c0_i32_1 = arith.constant 0 : i32
    return %c0_i32, %c0_i32_0 : i32, i32
  }
  func.func @transform_26(%arg0: i32) -> (i32, i32) {
    %c0_i32 = arith.constant 0 : i32
    %c0_i32_0 = arith.constant 0 : i32
    %c0_i32_1 = arith.constant 0 : i32
    return %c0_i32, %c0_i32_0 : i32, i32
  }
  func.func @transform_27(%arg0: i32) -> (i32, i32) {
    %c0_i32 = arith.constant 0 : i32
    %c0_i32_0 = arith.constant 0 : i32
    %c0_i32_1 = arith.constant 0 : i32
    return %c0_i32, %c0_i32_0 : i32, i32
  }
  func.func @transform_28(%arg0: i32) -> (i32, i32) {
    %c0_i32 = arith.constant 0 : i32
    %c0_i32_0 = arith.constant 0 : i32
    %c0_i32_1 = arith.constant 0 : i32
    return %c0_i32, %c0_i32_0 : i32, i32
  }
  func.func @transform_29(%arg0: i32) -> (i32, i32) {
    %c0_i32 = arith.constant 0 : i32
    %c0_i32_0 = arith.constant 0 : i32
    %c0_i32_1 = arith.constant 0 : i32
    return %c0_i32, %c0_i32_0 : i32, i32
  }
  func.func @transform_30(%arg0: i32) -> (i32, i32) {
    %c0_i32 = arith.constant 0 : i32
    %c0_i32_0 = arith.constant 0 : i32
    %c0_i32_1 = arith.constant 0 : i32
    return %c0_i32, %c0_i32_0 : i32, i32
  }
  func.func @transform_31(%arg0: i32) -> (i32, i32) {
    %c0_i32 = arith.constant 0 : i32
    %c0_i32_0 = arith.constant 0 : i32
    %c0_i32_1 = arith.constant 0 : i32
    return %c0_i32, %c0_i32_0 : i32, i32
  }
  func.func @transform_32(%arg0: i32) -> (i32, i32) {
    %c0_i32 = arith.constant 0 : i32
    %c0_i32_0 = arith.constant 0 : i32
    %c0_i32_1 = arith.constant 0 : i32
    return %c0_i32, %c0_i32_0 : i32, i32
  }
  func.func @transform_33(%arg0: i32) -> (i32, i32) {
    %c0_i32 = arith.constant 0 : i32
    %c0_i32_0 = arith.constant 0 : i32
    %c0_i32_1 = arith.constant 0 : i32
    return %c0_i32, %c0_i32_0 : i32, i32
  }
  func.func @transform_34(%arg0: i32) -> (i32, i32) {
    %c0_i32 = arith.constant 0 : i32
    %c0_i32_0 = arith.constant 0 : i32
    %c0_i32_1 = arith.constant 0 : i32
    return %c0_i32, %c0_i32_0 : i32, i32
  }
  func.func @transform_35(%arg0: i32) -> (i32, i32) {
    %c0_i32 = arith.constant 0 : i32
    %c0_i32_0 = arith.constant 0 : i32
    %c0_i32_1 = arith.constant 0 : i32
    return %c0_i32, %c0_i32_0 : i32, i32
  }
  func.func @transform_36(%arg0: i32) -> (i32, i32) {
    %c0_i32 = arith.constant 0 : i32
    %c0_i32_0 = arith.constant 0 : i32
    %c0_i32_1 = arith.constant 0 : i32
    return %c0_i32, %c0_i32_0 : i32, i32
  }
  func.func @transform_37(%arg0: i32) -> (i32, i32) {
    %c0_i32 = arith.constant 0 : i32
    %c0_i32_0 = arith.constant 0 : i32
    %c0_i32_1 = arith.constant 0 : i32
    return %c0_i32, %c0_i32_0 : i32, i32
  }
  func.func @transform_38(%arg0: i32) -> (i32, i32) {
    %c0_i32 = arith.constant 0 : i32
    %c0_i32_0 = arith.constant 0 : i32
    %c0_i32_1 = arith.constant 0 : i32
    return %c0_i32, %c0_i32_0 : i32, i32
  }
  func.func @transform_39(%arg0: i32) -> (i32, i32) {
    %c0_i32 = arith.constant 0 : i32
    %c0_i32_0 = arith.constant 0 : i32
    %c0_i32_1 = arith.constant 0 : i32
    return %c0_i32, %c0_i32_0 : i32, i32
  }
  func.func @transform_40(%arg0: i32) -> (i32, i32) {
    %c0_i32 = arith.constant 0 : i32
    %c0_i32_0 = arith.constant 0 : i32
    %c0_i32_1 = arith.constant 0 : i32
    return %c0_i32, %c0_i32_0 : i32, i32
  }
  func.func @transform_41(%arg0: i32) -> (i32, i32) {
    %c0_i32 = arith.constant 0 : i32
    %c0_i32_0 = arith.constant 0 : i32
    %c0_i32_1 = arith.constant 0 : i32
    return %c0_i32, %c0_i32_0 : i32, i32
  }
  func.func @transform_42(%arg0: i32) -> (i32, i32) {
    %c0_i32 = arith.constant 0 : i32
    %c0_i32_0 = arith.constant 0 : i32
    %c0_i32_1 = arith.constant 0 : i32
    return %c0_i32, %c0_i32_0 : i32, i32
  }
  func.func @transform_43(%arg0: i32) -> (i32, i32) {
    %c0_i32 = arith.constant 0 : i32
    %c0_i32_0 = arith.constant 0 : i32
    %c0_i32_1 = arith.constant 0 : i32
    return %c0_i32, %c0_i32_0 : i32, i32
  }
  func.func @transform_44(%arg0: i32) -> (i32, i32) {
    %c0_i32 = arith.constant 0 : i32
    %c0_i32_0 = arith.constant 0 : i32
    %c0_i32_1 = arith.constant 0 : i32
    return %c0_i32, %c0_i32_0 : i32, i32
  }
  func.func @transform_45(%arg0: i32) -> (i32, i32) {
    %c0_i32 = arith.constant 0 : i32
    %c0_i32_0 = arith.constant 0 : i32
    %c0_i32_1 = arith.constant 0 : i32
    return %c0_i32, %c0_i32_0 : i32, i32
  }
  func.func @transform_46(%arg0: i32) -> (i32, i32) {
    %c0_i32 = arith.constant 0 : i32
    %c0_i32_0 = arith.constant 0 : i32
    %c0_i32_1 = arith.constant 0 : i32
    return %c0_i32, %c0_i32_0 : i32, i32
  }
  func.func @transform_47(%arg0: i32) -> (i32, i32) {
    %c0_i32 = arith.constant 0 : i32
    %c0_i32_0 = arith.constant 0 : i32
    %c0_i32_1 = arith.constant 0 : i32
    return %c0_i32, %c0_i32_0 : i32, i32
  }
  func.func @transform_48(%arg0: i32) -> (i32, i32) {
    %c0_i32 = arith.constant 0 : i32
    %c0_i32_0 = arith.constant 0 : i32
    %c0_i32_1 = arith.constant 0 : i32
    return %c0_i32, %c0_i32_0 : i32, i32
  }
  func.func @transform_49(%arg0: i32) -> (i32, i32) {
    %c0_i32 = arith.constant 0 : i32
    %c0_i32_0 = arith.constant 0 : i32
    %c0_i32_1 = arith.constant 0 : i32
    return %c0_i32, %c0_i32_0 : i32, i32
  }
  func.func @transform_50(%arg0: i32) -> (i32, i32) {
    %c0_i32 = arith.constant 0 : i32
    %c0_i32_0 = arith.constant 0 : i32
    %c0_i32_1 = arith.constant 0 : i32
    return %c0_i32, %c0_i32_0 : i32, i32
  }
  func.func @transform_51(%arg0: i32) -> (i32, i32) {
    %c0_i32 = arith.constant 0 : i32
    %c0_i32_0 = arith.constant 0 : i32
    %c0_i32_1 = arith.constant 0 : i32
    return %c0_i32, %c0_i32_0 : i32, i32
  }
  func.func @transform_52(%arg0: i32) -> (i32, i32) {
    %c0_i32 = arith.constant 0 : i32
    %c0_i32_0 = arith.constant 0 : i32
    %c0_i32_1 = arith.constant 0 : i32
    return %c0_i32, %c0_i32_0 : i32, i32
  }
  func.func @transform_53(%arg0: i32) -> (i32, i32, i32) {
    %c0_i32 = arith.constant 0 : i32
    %c0_i32_0 = arith.constant 0 : i32
    %c0_i32_1 = arith.constant 0 : i32
    return %arg0, %c0_i32, %c0_i32_0 : i32, i32, i32
  }
}

</mosaic_0001>

<llo_original>
// kernel: perciever_encoder_forward.1
$region0: #{perciever_encoder_forward.1}
  #allocation0 [shape = 'u32[]', space=smem, size = 0x4, offset = 0x4, fixed_abs, tag = 'smem constant byte address 0x4 - core index']
  #allocation1 [shape = 'u32[72,128]{1,0:T(1,128)}', space=vmem, size = 0x9000, scoped, tag = 'internal scratch']
  %s0 = inlined_call_operand.smem [shape: u32[54], index: -1, kind: input, shape index: {}]
  %s1 = sld [smem:[%s0]]
  %s2 = scalar_lea.smem %s0, 1
  %s3 = sld [smem:[%s2]]
  %s4 = scalar_lea.smem %s0, 2
  %s5 = sld [smem:[%s4]]
  %s6 = scalar_lea.smem %s0, 3
  %s7 = sld [smem:[%s6]]
  %s8 = scalar_lea.smem %s0, 4
  %s9 = sld [smem:[%s8]]
  %s10 = scalar_lea.smem %s0, 5
  %s11 = sld [smem:[%s10]]
  %s12 = scalar_lea.smem %s0, 6
  %s13 = sld [smem:[%s12]]
  %s14 = scalar_lea.smem %s0, 7
  %s15 = sld [smem:[%s14]]
  %s16 = scalar_lea.smem %s0, 8
  %s17 = sld [smem:[%s16]]
  %s18 = scalar_lea.smem %s0, 9
  %s19 = sld [smem:[%s18]]
  %s20 = scalar_lea.smem %s0, 10
  %s21 = sld [smem:[%s20]]
  %s22 = scalar_lea.smem %s0, 11
  %s23 = sld [smem:[%s22]]
  %s24 = scalar_lea.smem %s0, 12
  %s25 = sld [smem:[%s24]]
  %s26 = scalar_lea.smem %s0, 13
  %s27 = sld [smem:[%s26]]
  %s28 = scalar_lea.smem %s0, 14
  %s29 = sld [smem:[%s28]]
  %s30 = scalar_lea.smem %s0, 15
  %s31 = sld [smem:[%s30]]
  %s32 = scalar_lea.smem %s0, 16
  %s33 = sld [smem:[%s32]]
  %s34 = scalar_lea.smem %s0, 17
  %s35 = sld [smem:[%s34]]
  %s36 = scalar_lea.smem %s0, 18
  %s37 = sld [smem:[%s36]]
  %s38 = scalar_lea.smem %s0, 19
  %s39 = sld [smem:[%s38]]
  %s40 = scalar_lea.smem %s0, 20
  %s41 = sld [smem:[%s40]]
  %s42 = scalar_lea.smem %s0, 21
  %s43 = sld [smem:[%s42]]
  %s44 = scalar_lea.smem %s0, 22
  %s45 = sld [smem:[%s44]]
  %s46 = scalar_lea.smem %s0, 23
  %s47 = sld [smem:[%s46]]
  %s48 = scalar_lea.smem %s0, 24
  %s49 = sld [smem:[%s48]]
  %s50 = scalar_lea.smem %s0, 25
  %s51 = sld [smem:[%s50]]
  %s52 = scalar_lea.smem %s0, 26
  %s53 = sld [smem:[%s52]]
  %s54 = scalar_lea.smem %s0, 27
  %s55 = sld [smem:[%s54]]
  %s56 = scalar_lea.smem %s0, 28
  %s57 = sld [smem:[%s56]]
  %s58 = scalar_lea.smem %s0, 29
  %s59 = sld [smem:[%s58]]
  %s60 = scalar_lea.smem %s0, 30
  %s61 = sld [smem:[%s60]]
  %s62 = scalar_lea.smem %s0, 31
  %s63 = sld [smem:[%s62]]
  %s64 = scalar_lea.smem %s0, 32
  %s65 = sld [smem:[%s64]]
  %s66 = scalar_lea.smem %s0, 33
  %s67 = sld [smem:[%s66]]
  %s68 = scalar_lea.smem %s0, 34
  %s69 = sld [smem:[%s68]]
  %s70 = scalar_lea.smem %s0, 35
  %s71 = sld [smem:[%s70]]
  %s72 = scalar_lea.smem %s0, 36
  %s73 = sld [smem:[%s72]]
  %s74 = scalar_lea.smem %s0, 37
  %s75 = sld [smem:[%s74]]
  %s76 = scalar_lea.smem %s0, 38
  %s77 = sld [smem:[%s76]]
  %s78 = scalar_lea.smem %s0, 39
  %s79 = sld [smem:[%s78]]
  %s80 = scalar_lea.smem %s0, 40
  %s81 = sld [smem:[%s80]]
  %s82 = scalar_lea.smem %s0, 41
  %s83 = sld [smem:[%s82]]
  %s84 = scalar_lea.smem %s0, 42
  %s85 = sld [smem:[%s84]]
  %s86 = scalar_lea.smem %s0, 43
  %s87 = sld [smem:[%s86]]
  %s88 = scalar_lea.smem %s0, 44
  %s89 = sld [smem:[%s88]]
  %s90 = scalar_lea.smem %s0, 45
  %s91 = sld [smem:[%s90]]
  %s92 = scalar_lea.smem %s0, 46
  %s93 = sld [smem:[%s92]]
  %s94 = scalar_lea.smem %s0, 47
  %s95 = sld [smem:[%s94]]
  %s96 = scalar_lea.smem %s0, 48
  %s97 = sld [smem:[%s96]]
  %s98 = scalar_lea.smem %s0, 49
  %s99 = sld [smem:[%s98]]
  %s100 = scalar_lea.smem %s0, 50
  %s101 = sld [smem:[%s100]]
  %s102 = scalar_lea.smem %s0, 51
  %s103 = sld [smem:[%s102]]
  %s104 = scalar_lea.smem %s0, 52
  %s105 = sld [smem:[%s104]]
  %s106 = scalar_lea.smem %s0, 53
  %s107 = sld [smem:[%s106]]
  %s108 = sld [smem:[#allocation0]]
  $region424: #{perciever_encoder_forward.1} parent=0
    _
  %s110 = ssub.s32 1, %s108
  %s111 = scalar_select 0, %s110, %s108
  $region1: #{perciever_encoder_forward.1} parent=0
    #allocation2 [shape = 'u8[8192]{0}', space=vmem, size = 0x2000, scoped, tag = 'input window, operand 2, single buffered']
    #allocation3 [shape = 's32[2]{0}', space=sflag, size = 0x8, scoped, tag = 'scoped memory for perciever_encoder_forward.1']
    #allocation4 [shape = 's32[2]{0}', space=sflag, size = 0x8, scoped, tag = 'scoped memory for perciever_encoder_forward.1']
    #allocation5 [shape = 'u8[4096]{0}', space=vmem, size = 0x1000, scoped, tag = 'input window, operand 11, single buffered']
    #allocation6 [shape = 's32[1]{0}', space=sflag, size = 0x4, scoped, tag = 'scoped memory for perciever_encoder_forward.1']
    #allocation7 [shape = 'u8[512]{0}', space=vmem, size = 0x400, scoped, tag = 'input window, operand 12, single buffered']
    #allocation8 [shape = 'u8[4096]{0}', space=vmem, size = 0x1000, scoped, tag = 'input window, operand 13, single buffered']
    #allocation9 [shape = 's32[1]{0}', space=sflag, size = 0x4, scoped, tag = 'scoped memory for perciever_encoder_forward.1']
    #allocation10 [shape = 'u8[512]{0}', space=vmem, size = 0x400, scoped, tag = 'input window, operand 14, single buffered']
    #allocation11 [shape = 'u8[16384]{0}', space=vmem, size = 0x4000, scoped, tag = 'input window, operand 15, single buffered']
    #allocation12 [shape = 's32[1]{0}', space=sflag, size = 0x4, scoped, tag = 'scoped memory for perciever_encoder_forward.1']
    #allocation13 [shape = 'u8[512]{0}', space=vmem, size = 0x400, scoped, tag = 'input window, operand 16, single buffered']
    #allocation14 [shape = 'u8[16384]{0}', space=vmem, size = 0x4000, scoped, tag = 'input window, operand 17, single buffered']
    #allocation15 [shape = 's32[1]{0}', space=sflag, size = 0x4, scoped, tag = 'scoped memory for perciever_encoder_forward.1']
    #allocation16 [shape = 'u8[512]{0}', space=vmem, size = 0x400, scoped, tag = 'input window, operand 18, single buffered']
    #allocation17 [shape = 'u8[16384]{0}', space=vmem, size = 0x4000, scoped, tag = 'input window, operand 19, single buffered']
    #allocation18 [shape = 's32[1]{0}', space=sflag, size = 0x4, scoped, tag = 'scoped memory for perciever_encoder_forward.1']
    #allocation19 [shape = 'u8[512]{0}', space=vmem, size = 0x400, scoped, tag = 'input window, operand 20, single buffered']
    #allocation20 [shape = 'u8[512]{0}', space=vmem, size = 0x400, scoped, tag = 'input window, operand 21, single buffered']
    #allocation21 [shape = 's32[1]{0}', space=sflag, size = 0x4, scoped, tag = 'scoped memory for perciever_encoder_forward.1']
    #allocation22 [shape = 'u8[512]{0}', space=vmem, size = 0x400, scoped, tag = 'input window, operand 22, single buffered']
    #allocation23 [shape = 'u8[512]{0}', space=vmem, size = 0x400, scoped, tag = 'input window, operand 23, single buffered']
    #allocation24 [shape = 's32[1]{0}', space=sflag, size = 0x4, scoped, tag = 'scoped memory for perciever_encoder_forward.1']
    #allocation25 [shape = 'u8[512]{0}', space=vmem, size = 0x400, scoped, tag = 'input window, operand 24, single buffered']
    #allocation26 [shape = 'u8[16384]{0}', space=vmem, size = 0x4000, scoped, tag = 'input window, operand 25, single buffered']
    #allocation27 [shape = 's32[1]{0}', space=sflag, size = 0x4, scoped, tag = 'scoped memory for perciever_encoder_forward.1']
    #allocation28 [shape = 'u8[512]{0}', space=vmem, size = 0x400, scoped, tag = 'input window, operand 26, single buffered']
    #allocation29 [shape = 'u8[16384]{0}', space=vmem, size = 0x4000, scoped, tag = 'input window, operand 27, single buffered']
    #allocation30 [shape = 's32[1]{0}', space=sflag, size = 0x4, scoped, tag = 'scoped memory for perciever_encoder_forward.1']
    #allocation31 [shape = 'u8[512]{0}', space=vmem, size = 0x400, scoped, tag = 'input window, operand 28, single buffered']
    #allocation32 [shape = 'u8[16384]{0}', space=vmem, size = 0x4000, scoped, tag = 'input window, operand 29, single buffered']
    #allocation33 [shape = 's32[1]{0}', space=sflag, size = 0x4, scoped, tag = 'scoped memory for perciever_encoder_forward.1']
    #allocation34 [shape = 'u8[512]{0}', space=vmem, size = 0x400, scoped, tag = 'input window, operand 30, single buffered']
    #allocation35 [shape = 'u8[16384]{0}', space=vmem, size = 0x4000, scoped, tag = 'input window, operand 31, single buffered']
    #allocation36 [shape = 's32[1]{0}', space=sflag, size = 0x4, scoped, tag = 'scoped memory for perciever_encoder_forward.1']
    #allocation37 [shape = 'u8[512]{0}', space=vmem, size = 0x400, scoped, tag = 'input window, operand 32, single buffered']
    #allocation38 [shape = 'u8[16384]{0}', space=vmem, size = 0x4000, scoped, tag = 'input window, operand 33, single buffered']
    #allocation39 [shape = 's32[1]{0}', space=sflag, size = 0x4, scoped, tag = 'scoped memory for perciever_encoder_forward.1']
    #allocation40 [shape = 'u8[512]{0}', space=vmem, size = 0x400, scoped, tag = 'input window, operand 34, single buffered']
    #allocation41 [shape = 'u8[16384]{0}', space=vmem, size = 0x4000, scoped, tag = 'input window, operand 35, single buffered']
    #allocation42 [shape = 's32[1]{0}', space=sflag, size = 0x4, scoped, tag = 'scoped memory for perciever_encoder_forward.1']
    #allocation43 [shape = 'u8[512]{0}', space=vmem, size = 0x400, scoped, tag = 'input window, operand 36, single buffered']
    #allocation44 [shape = 'u8[512]{0}', space=vmem, size = 0x400, scoped, tag = 'input window, operand 37, single buffered']
    #allocation45 [shape = 's32[1]{0}', space=sflag, size = 0x4, scoped, tag = 'scoped memory for perciever_encoder_forward.1']
    #allocation46 [shape = 'u8[512]{0}', space=vmem, size = 0x400, scoped, tag = 'input window, operand 38, single buffered']
    #allocation47 [shape = 'u8[512]{0}', space=vmem, size = 0x400, scoped, tag = 'input window, operand 39, single buffered']
    #allocation48 [shape = 's32[1]{0}', space=sflag, size = 0x4, scoped, tag = 'scoped memory for perciever_encoder_forward.1']
    #allocation49 [shape = 'u8[512]{0}', space=vmem, size = 0x400, scoped, tag = 'input window, operand 40, single buffered']
    #allocation50 [shape = 'u8[16384]{0}', space=vmem, size = 0x4000, scoped, tag = 'input window, operand 41, single buffered']
    #allocation51 [shape = 's32[1]{0}', space=sflag, size = 0x4, scoped, tag = 'scoped memory for perciever_encoder_forward.1']
    #allocation52 [shape = 'u8[512]{0}', space=vmem, size = 0x400, scoped, tag = 'input window, operand 42, single buffered']
    #allocation53 [shape = 'u8[16384]{0}', space=vmem, size = 0x4000, scoped, tag = 'input window, operand 43, single buffered']
    #allocation54 [shape = 's32[1]{0}', space=sflag, size = 0x4, scoped, tag = 'scoped memory for perciever_encoder_forward.1']
    #allocation55 [shape = 'u8[512]{0}', space=vmem, size = 0x400, scoped, tag = 'input window, operand 44, single buffered']
    #allocation56 [shape = 'u8[16384]{0}', space=vmem, size = 0x4000, scoped, tag = 'input window, operand 45, single buffered']
    #allocation57 [shape = 's32[1]{0}', space=sflag, size = 0x4, scoped, tag = 'scoped memory for perciever_encoder_forward.1']
    #allocation58 [shape = 'u8[512]{0}', space=vmem, size = 0x400, scoped, tag = 'input window, operand 46, single buffered']
    #allocation59 [shape = 'u8[16384]{0}', space=vmem, size = 0x4000, scoped, tag = 'input window, operand 47, single buffered']
    #allocation60 [shape = 's32[1]{0}', space=sflag, size = 0x4, scoped, tag = 'scoped memory for perciever_encoder_forward.1']
    #allocation61 [shape = 'u8[512]{0}', space=vmem, size = 0x400, scoped, tag = 'input window, operand 48, single buffered']
    #allocation62 [shape = 'u8[16384]{0}', space=vmem, size = 0x4000, scoped, tag = 'input window, operand 49, single buffered']
    #allocation63 [shape = 's32[1]{0}', space=sflag, size = 0x4, scoped, tag = 'scoped memory for perciever_encoder_forward.1']
    #allocation64 [shape = 'u8[512]{0}', space=vmem, size = 0x400, scoped, tag = 'input window, operand 50, single buffered']
    #allocation65 [shape = 'u8[16384]{0}', space=vmem, size = 0x4000, scoped, tag = 'input window, operand 51, single buffered']
    #allocation66 [shape = 's32[1]{0}', space=sflag, size = 0x4, scoped, tag = 'scoped memory for perciever_encoder_forward.1']
    #allocation67 [shape = 'u8[512]{0}', space=vmem, size = 0x400, scoped, tag = 'input window, operand 52, single buffered']
    #allocation68 [shape = 'u8[16384]{0}', space=vmem, size = 0x4000, scoped, tag = 'output window, operand 0']
    %112 = vsyncpa [#allocation3], 0
    %113 = vsyncpa [#allocation6], 0
    %114 = vsyncpa [#allocation9], 0
    %115 = vsyncpa [#allocation12], 0
    %116 = vsyncpa [#allocation15], 0
    %117 = vsyncpa [#allocation18], 0
    %118 = vsyncpa [#allocation21], 0
    %119 = vsyncpa [#allocation24], 0
    %120 = vsyncpa [#allocation27], 0
    %121 = vsyncpa [#allocation30], 0
    %122 = vsyncpa [#allocation33], 0
    %123 = vsyncpa [#allocation36], 0
    %124 = vsyncpa [#allocation39], 0
    %125 = vsyncpa [#allocation42], 0
    %126 = vsyncpa [#allocation45], 0
    %127 = vsyncpa [#allocation48], 0
    %128 = vsyncpa [#allocation51], 0
    %129 = vsyncpa [#allocation54], 0
    %130 = vsyncpa [#allocation57], 0
    %131 = vsyncpa [#allocation60], 0
    %132 = vsyncpa [#allocation63], 0
    %133 = vsyncpa [#allocation66], 0
    %134 = vsyncpa [#allocation4], 0
    %s135 = scalar_lea.sflag [#allocation4], 1
    %136 = vsyncpa %s135, 0
    loop: start=0, step=1, limit=4
    $region2: #{perciever_encoder_forward.1} parent=1 // loop_pre_header
      _
    $region3: #{perciever_encoder_forward.1} parent=1 // loop_header
      %s138 = sphi 0, %s142
      %p139 = scmp.ge.s32.totalorder %s138, 4
      %s148 = sphi 0, %s150
      %s151 = sphi 0, %s148
      %s152 = sphi 0, %s151
      %s168 = sphi 0, %s152
      %s174 = sphi 0, %s176
      %s177 = sphi 0, %s174
      %s178 = sphi 0, %s177
      %s194 = sphi 0, %s178
      %s198 = sphi 0, %s198
      %s200 = sphi 0, %s198
      %s201 = sphi 0, %s200
      %s215 = sphi 0, %s201
      %s219 = sphi 0, %s219
      %s221 = sphi 0, %s219
      %s222 = sphi 0, %s221
      %s236 = sphi 0, %s222
      %s240 = sphi 0, %s240
      %s242 = sphi 0, %s240
      %s243 = sphi 0, %s242
      %s257 = sphi 0, %s243
      %s261 = sphi 0, %s261
      %s263 = sphi 0, %s261
      %s264 = sphi 0, %s263
      %s278 = sphi 0, %s264
      %s282 = sphi 0, %s282
      %s284 = sphi 0, %s282
      %s285 = sphi 0, %s284
      %s299 = sphi 0, %s285
      %s303 = sphi 0, %s303
      %s305 = sphi 0, %s303
      %s306 = sphi 0, %s305
      %s320 = sphi 0, %s306
      %s324 = sphi 0, %s324
      %s326 = sphi 0, %s324
      %s327 = sphi 0, %s326
      %s341 = sphi 0, %s327
      %s345 = sphi 0, %s345
      %s347 = sphi 0, %s345
      %s348 = sphi 0, %s347
      %s362 = sphi 0, %s348
      %s366 = sphi 0, %s366
      %s368 = sphi 0, %s366
      %s369 = sphi 0, %s368
      %s383 = sphi 0, %s369
      %s387 = sphi 0, %s387
      %s389 = sphi 0, %s387
      %s390 = sphi 0, %s389
      %s404 = sphi 0, %s390
      %s408 = sphi 0, %s408
      %s410 = sphi 0, %s408
      %s411 = sphi 0, %s410
      %s425 = sphi 0, %s411
      %s429 = sphi 0, %s429
      %s431 = sphi 0, %s429
      %s432 = sphi 0, %s431
      %s446 = sphi 0, %s432
      %s450 = sphi 0, %s450
      %s452 = sphi 0, %s450
      %s453 = sphi 0, %s452
      %s467 = sphi 0, %s453
      %s471 = sphi 0, %s471
      %s473 = sphi 0, %s471
      %s474 = sphi 0, %s473
      %s488 = sphi 0, %s474
      %s492 = sphi 0, %s492
      %s494 = sphi 0, %s492
      %s495 = sphi 0, %s494
      %s509 = sphi 0, %s495
      %s513 = sphi 0, %s513
      %s515 = sphi 0, %s513
      %s516 = sphi 0, %s515
      %s530 = sphi 0, %s516
      %s534 = sphi 0, %s534
      %s536 = sphi 0, %s534
      %s537 = sphi 0, %s536
      %s551 = sphi 0, %s537
      %s555 = sphi 0, %s555
      %s557 = sphi 0, %s555
      %s558 = sphi 0, %s557
      %s572 = sphi 0, %s558
      %s576 = sphi 0, %s576
      %s578 = sphi 0, %s576
      %s579 = sphi 0, %s578
      %s593 = sphi 0, %s579
      %s597 = sphi 0, %s597
      %s599 = sphi 0, %s597
      %s600 = sphi 0, %s599
      %s614 = sphi 0, %s600
      %s618 = sphi 0, %s618
      %s620 = sphi 0, %s618
      %s621 = sphi 0, %s620
      %s635 = sphi 0, %s621
      %s639 = sphi 0, %s639
      %s641 = sphi 0, %s639
      %s642 = sphi 0, %s641
      %s656 = sphi 0, %s642
      %s660 = sphi 0, %s660
      %s662 = sphi 0, %s660
      %s663 = sphi 0, %s662
      %s677 = sphi 0, %s663
      %s681 = sphi 0, %s681
      %s683 = sphi 0, %s681
      %s684 = sphi 0, %s683
      %s698 = sphi 0, %s684
      %s702 = sphi 0, %s702
      %s704 = sphi 0, %s702
      %s705 = sphi 0, %s704
      %s719 = sphi 0, %s705
      %s723 = sphi 0, %s723
      %s725 = sphi 0, %s723
      %s726 = sphi 0, %s725
      %s740 = sphi 0, %s726
      %s744 = sphi 0, %s744
      %s746 = sphi 0, %s744
      %s747 = sphi 0, %s746
      %s761 = sphi 0, %s747
      %s765 = sphi 0, %s765
      %s767 = sphi 0, %s765
      %s768 = sphi 0, %s767
      %s782 = sphi 0, %s768
      %s786 = sphi 0, %s786
      %s788 = sphi 0, %s786
      %s789 = sphi 0, %s788
      %s803 = sphi 0, %s789
      %s807 = sphi 0, %s807
      %s809 = sphi 0, %s807
      %s810 = sphi 0, %s809
      %s824 = sphi 0, %s810
      %s828 = sphi 0, %s828
      %s830 = sphi 0, %s828
      %s831 = sphi 0, %s830
      %s845 = sphi 0, %s831
      %s849 = sphi 0, %s849
      %s851 = sphi 0, %s849
      %s852 = sphi 0, %s851
      %s866 = sphi 0, %s852
      %s870 = sphi 0, %s870
      %s872 = sphi 0, %s870
      %s873 = sphi 0, %s872
      %s887 = sphi 0, %s873
      %s891 = sphi 0, %s891
      %s893 = sphi 0, %s891
      %s894 = sphi 0, %s893
      %s908 = sphi 0, %s894
      %s912 = sphi 0, %s912
      %s914 = sphi 0, %s912
      %s915 = sphi 0, %s914
      %s929 = sphi 0, %s915
      %s933 = sphi 0, %s933
      %s935 = sphi 0, %s933
      %s936 = sphi 0, %s935
      %s950 = sphi 0, %s936
      %s954 = sphi 0, %s954
      %s956 = sphi 0, %s954
      %s957 = sphi 0, %s956
      %s971 = sphi 0, %s957
      %s975 = sphi 0, %s975
      %s977 = sphi 0, %s975
      %s978 = sphi 0, %s977
      %s992 = sphi 0, %s978
      %s996 = sphi 0, %s996
      %s998 = sphi 0, %s996
      %s999 = sphi 0, %s998
      %s1013 = sphi 0, %s999
      %s1017 = sphi 0, %s1017
      %s1019 = sphi 0, %s1017
      %s1020 = sphi 0, %s1019
      %s1034 = sphi 0, %s1020
      %s1038 = sphi 0, %s1038
      %s1040 = sphi 0, %s1038
      %s1041 = sphi 0, %s1040
      %s1055 = sphi 0, %s1041
      %s1059 = sphi 0, %s1059
      %s1061 = sphi 0, %s1059
      %s1062 = sphi 0, %s1061
      %s1076 = sphi 0, %s1062
      %s1080 = sphi 0, %s1080
      %s1082 = sphi 0, %s1080
      %s1083 = sphi 0, %s1082
      %s1097 = sphi 0, %s1083
      %s1101 = sphi 0, %s1101
      %s1103 = sphi 0, %s1101
      %s1104 = sphi 0, %s1103
      %s1118 = sphi 0, %s1104
      %s1122 = sphi 0, %s1122
      %s1124 = sphi 0, %s1122
      %s1125 = sphi 0, %s1124
      %s1139 = sphi 0, %s1125
      %s1143 = sphi 0, %s1143
      %s1145 = sphi 0, %s1143
      %s1146 = sphi 0, %s1145
      %s1160 = sphi 0, %s1146
      %s1164 = sphi 0, %s1164
      %s1166 = sphi 0, %s1164
      %s1167 = sphi 0, %s1166
      %s1181 = sphi 0, %s1167
      %s1185 = sphi 0, %s1185
      %s1187 = sphi 0, %s1185
      %s1188 = sphi 0, %s1187
      %s1202 = sphi 0, %s1188
      %s1206 = sphi 0, %s1206
      %s1208 = sphi 0, %s1206
      %s1209 = sphi 0, %s1208
      %s1223 = sphi 0, %s1209
      %s1227 = sphi 0, %s1227
      %s1229 = sphi 0, %s1227
      %s1230 = sphi 0, %s1229
      %s1244 = sphi 0, %s1230
      %s1248 = sphi 0, %s1248
      %s1250 = sphi 0, %s1248
      %s1251 = sphi 0, %s1250
      %s1265 = sphi 0, %s1251
      %s1271 = sphi 0, %s1273
      %s1274 = sphi 0, %s1271
      %s1275 = sphi 0, %s1274
      %s1291 = sphi 0, %s1275
    $region4: #{perciever_encoder_forward.1} parent=1 // loop_header_branch
      %141 = sbr.rel (%p139) target = $region8
    $region5: #{perciever_encoder_forward.1} parent=1 // loop_body
      %s143 = ssub.s32 %s138, 1
      %s144 = ssub.s32 %s138, 2
      %s145 = sadd.s32 %s138, 1
      %s146 = ssub.s32 %s138, %s145
      %p147 = scmp.eq.s32.totalorder %s146, 0
      %s149 = sadd.s32 %s148, 1
      %s150 = scalar_select %p147, %s148, %s149
      %p153 = pneg %p147
      %p154 = scmp.eq.s32.totalorder %s138, 1
      %p155 = por %p153, %p154
      %p156 = scmp.ne.s32.totalorder %s148, %s151
      %p157 = scmp.eq.s32.totalorder %s138, 0
      %p158 = por %p156, %p157
      %p159 = scmp.ne.s32.totalorder %s148, %s151
      %p160 = scmp.eq.s32.totalorder %s143, 1
      %p161 = por %p159, %p160
      %p162 = scmp.ne.s32.totalorder %s151, %s152
      %p163 = scmp.eq.s32.totalorder %s143, 0
      %p164 = por %p162, %p163
      %p165 = scmp.ne.s32.totalorder %s151, %s152
      %p166 = scmp.eq.s32.totalorder %s144, 1
      %p167 = por %p165, %p166
      %p169 = scmp.ne.s32.totalorder %s152, %s168
      %p170 = scmp.eq.s32.totalorder %s144, 0
      %p171 = por %p169, %p170
      %s172 = ssub.s32 %s138, %s145
      %p173 = scmp.eq.s32.totalorder %s172, 0
      %s175 = sadd.s32 %s174, 1
      %s176 = scalar_select %p173, %s174, %s175
      %p179 = pneg %p173
      %p180 = scmp.eq.s32.totalorder %s138, 1
      %p181 = por %p179, %p180
      %p182 = scmp.ne.s32.totalorder %s174, %s177
      %p183 = scmp.eq.s32.totalorder %s138, 0
      %p184 = por %p182, %p183
      %p185 = scmp.ne.s32.totalorder %s174, %s177
      %p186 = scmp.eq.s32.totalorder %s143, 1
      %p187 = por %p185, %p186
      %p188 = scmp.ne.s32.totalorder %s177, %s178
      %p189 = scmp.eq.s32.totalorder %s143, 0
      %p190 = por %p188, %p189
      %p191 = scmp.ne.s32.totalorder %s177, %s178
      %p192 = scmp.eq.s32.totalorder %s144, 1
      %p193 = por %p191, %p192
      %p195 = scmp.ne.s32.totalorder %s178, %s194
      %p196 = scmp.eq.s32.totalorder %s144, 0
      %p197 = por %p195, %p196
      %s199 = sadd.s32 %s198, 1
      %p202 = scmp.eq.s32.totalorder %s138, 1
      %p203 = scmp.ne.s32.totalorder %s198, %s200
      %p204 = scmp.eq.s32.totalorder %s138, 0
      %p205 = por %p203, %p204
      %p206 = scmp.ne.s32.totalorder %s198, %s200
      %p207 = scmp.eq.s32.totalorder %s143, 1
      %p208 = por %p206, %p207
      %p209 = scmp.ne.s32.totalorder %s200, %s201
      %p210 = scmp.eq.s32.totalorder %s143, 0
      %p211 = por %p209, %p210
      %p212 = scmp.ne.s32.totalorder %s200, %s201
      %p213 = scmp.eq.s32.totalorder %s144, 1
      %p214 = por %p212, %p213
      %p216 = scmp.ne.s32.totalorder %s201, %s215
      %p217 = scmp.eq.s32.totalorder %s144, 0
      %p218 = por %p216, %p217
      %s220 = sadd.s32 %s219, 1
      %p223 = scmp.eq.s32.totalorder %s138, 1
      %p224 = scmp.ne.s32.totalorder %s219, %s221
      %p225 = scmp.eq.s32.totalorder %s138, 0
      %p226 = por %p224, %p225
      %p227 = scmp.ne.s32.totalorder %s219, %s221
      %p228 = scmp.eq.s32.totalorder %s143, 1
      %p229 = por %p227, %p228
      %p230 = scmp.ne.s32.totalorder %s221, %s222
      %p231 = scmp.eq.s32.totalorder %s143, 0
      %p232 = por %p230, %p231
      %p233 = scmp.ne.s32.totalorder %s221, %s222
      %p234 = scmp.eq.s32.totalorder %s144, 1
      %p235 = por %p233, %p234
      %p237 = scmp.ne.s32.totalorder %s222, %s236
      %p238 = scmp.eq.s32.totalorder %s144, 0
      %p239 = por %p237, %p238
      %s241 = sadd.s32 %s240, 1
      %p244 = scmp.eq.s32.totalorder %s138, 1
      %p245 = scmp.ne.s32.totalorder %s240, %s242
      %p246 = scmp.eq.s32.totalorder %s138, 0
      %p247 = por %p245, %p246
      %p248 = scmp.ne.s32.totalorder %s240, %s242
      %p249 = scmp.eq.s32.totalorder %s143, 1
      %p250 = por %p248, %p249
      %p251 = scmp.ne.s32.totalorder %s242, %s243
      %p252 = scmp.eq.s32.totalorder %s143, 0
      %p253 = por %p251, %p252
      %p254 = scmp.ne.s32.totalorder %s242, %s243
      %p255 = scmp.eq.s32.totalorder %s144, 1
      %p256 = por %p254, %p255
      %p258 = scmp.ne.s32.totalorder %s243, %s257
      %p259 = scmp.eq.s32.totalorder %s144, 0
      %p260 = por %p258, %p259
      %s262 = sadd.s32 %s261, 1
      %p265 = scmp.eq.s32.totalorder %s138, 1
      %p266 = scmp.ne.s32.totalorder %s261, %s263
      %p267 = scmp.eq.s32.totalorder %s138, 0
      %p268 = por %p266, %p267
      %p269 = scmp.ne.s32.totalorder %s261, %s263
      %p270 = scmp.eq.s32.totalorder %s143, 1
      %p271 = por %p269, %p270
      %p272 = scmp.ne.s32.totalorder %s263, %s264
      %p273 = scmp.eq.s32.totalorder %s143, 0
      %p274 = por %p272, %p273
      %p275 = scmp.ne.s32.totalorder %s263, %s264
      %p276 = scmp.eq.s32.totalorder %s144, 1
      %p277 = por %p275, %p276
      %p279 = scmp.ne.s32.totalorder %s264, %s278
      %p280 = scmp.eq.s32.totalorder %s144, 0
      %p281 = por %p279, %p280
      %s283 = sadd.s32 %s282, 1
      %p286 = scmp.eq.s32.totalorder %s138, 1
      %p287 = scmp.ne.s32.totalorder %s282, %s284
      %p288 = scmp.eq.s32.totalorder %s138, 0
      %p289 = por %p287, %p288
      %p290 = scmp.ne.s32.totalorder %s282, %s284
      %p291 = scmp.eq.s32.totalorder %s143, 1
      %p292 = por %p290, %p291
      %p293 = scmp.ne.s32.totalorder %s284, %s285
      %p294 = scmp.eq.s32.totalorder %s143, 0
      %p295 = por %p293, %p294
      %p296 = scmp.ne.s32.totalorder %s284, %s285
      %p297 = scmp.eq.s32.totalorder %s144, 1
      %p298 = por %p296, %p297
      %p300 = scmp.ne.s32.totalorder %s285, %s299
      %p301 = scmp.eq.s32.totalorder %s144, 0
      %p302 = por %p300, %p301
      %s304 = sadd.s32 %s303, 1
      %p307 = scmp.eq.s32.totalorder %s138, 1
      %p308 = scmp.ne.s32.totalorder %s303, %s305
      %p309 = scmp.eq.s32.totalorder %s138, 0
      %p310 = por %p308, %p309
      %p311 = scmp.ne.s32.totalorder %s303, %s305
      %p312 = scmp.eq.s32.totalorder %s143, 1
      %p313 = por %p311, %p312
      %p314 = scmp.ne.s32.totalorder %s305, %s306
      %p315 = scmp.eq.s32.totalorder %s143, 0
      %p316 = por %p314, %p315
      %p317 = scmp.ne.s32.totalorder %s305, %s306
      %p318 = scmp.eq.s32.totalorder %s144, 1
      %p319 = por %p317, %p318
      %p321 = scmp.ne.s32.totalorder %s306, %s320
      %p322 = scmp.eq.s32.totalorder %s144, 0
      %p323 = por %p321, %p322
      %s325 = sadd.s32 %s324, 1
      %p328 = scmp.eq.s32.totalorder %s138, 1
      %p329 = scmp.ne.s32.totalorder %s324, %s326
      %p330 = scmp.eq.s32.totalorder %s138, 0
      %p331 = por %p329, %p330
      %p332 = scmp.ne.s32.totalorder %s324, %s326
      %p333 = scmp.eq.s32.totalorder %s143, 1
      %p334 = por %p332, %p333
      %p335 = scmp.ne.s32.totalorder %s326, %s327
      %p336 = scmp.eq.s32.totalorder %s143, 0
      %p337 = por %p335, %p336
      %p338 = scmp.ne.s32.totalorder %s326, %s327
      %p339 = scmp.eq.s32.totalorder %s144, 1
      %p340 = por %p338, %p339
      %p342 = scmp.ne.s32.totalorder %s327, %s341
      %p343 = scmp.eq.s32.totalorder %s144, 0
      %p344 = por %p342, %p343
      %s346 = sadd.s32 %s345, 1
      %p349 = scmp.eq.s32.totalorder %s138, 1
      %p350 = scmp.ne.s32.totalorder %s345, %s347
      %p351 = scmp.eq.s32.totalorder %s138, 0
      %p352 = por %p350, %p351
      %p353 = scmp.ne.s32.totalorder %s345, %s347
      %p354 = scmp.eq.s32.totalorder %s143, 1
      %p355 = por %p353, %p354
      %p356 = scmp.ne.s32.totalorder %s347, %s348
      %p357 = scmp.eq.s32.totalorder %s143, 0
      %p358 = por %p356, %p357
      %p359 = scmp.ne.s32.totalorder %s347, %s348
      %p360 = scmp.eq.s32.totalorder %s144, 1
      %p361 = por %p359, %p360
      %p363 = scmp.ne.s32.totalorder %s348, %s362
      %p364 = scmp.eq.s32.totalorder %s144, 0
      %p365 = por %p363, %p364
      %s367 = sadd.s32 %s366, 1
      %p370 = scmp.eq.s32.totalorder %s138, 1
      %p371 = scmp.ne.s32.totalorder %s366, %s368
      %p372 = scmp.eq.s32.totalorder %s138, 0
      %p373 = por %p371, %p372
      %p374 = scmp.ne.s32.totalorder %s366, %s368
      %p375 = scmp.eq.s32.totalorder %s143, 1
      %p376 = por %p374, %p375
      %p377 = scmp.ne.s32.totalorder %s368, %s369
      %p378 = scmp.eq.s32.totalorder %s143, 0
      %p379 = por %p377, %p378
      %p380 = scmp.ne.s32.totalorder %s368, %s369
      %p381 = scmp.eq.s32.totalorder %s144, 1
      %p382 = por %p380, %p381
      %p384 = scmp.ne.s32.totalorder %s369, %s383
      %p385 = scmp.eq.s32.totalorder %s144, 0
      %p386 = por %p384, %p385
      %s388 = sadd.s32 %s387, 1
      %p391 = scmp.eq.s32.totalorder %s138, 1
      %p392 = scmp.ne.s32.totalorder %s387, %s389
      %p393 = scmp.eq.s32.totalorder %s138, 0
      %p394 = por %p392, %p393
      %p395 = scmp.ne.s32.totalorder %s387, %s389
      %p396 = scmp.eq.s32.totalorder %s143, 1
      %p397 = por %p395, %p396
      %p398 = scmp.ne.s32.totalorder %s389, %s390
      %p399 = scmp.eq.s32.totalorder %s143, 0
      %p400 = por %p398, %p399
      %p401 = scmp.ne.s32.totalorder %s389, %s390
      %p402 = scmp.eq.s32.totalorder %s144, 1
      %p403 = por %p401, %p402
      %p405 = scmp.ne.s32.totalorder %s390, %s404
      %p406 = scmp.eq.s32.totalorder %s144, 0
      %p407 = por %p405, %p406
      %s409 = sadd.s32 %s408, 1
      %p412 = scmp.eq.s32.totalorder %s138, 1
      %p413 = scmp.ne.s32.totalorder %s408, %s410
      %p414 = scmp.eq.s32.totalorder %s138, 0
      %p415 = por %p413, %p414
      %p416 = scmp.ne.s32.totalorder %s408, %s410
      %p417 = scmp.eq.s32.totalorder %s143, 1
      %p418 = por %p416, %p417
      %p419 = scmp.ne.s32.totalorder %s410, %s411
      %p420 = scmp.eq.s32.totalorder %s143, 0
      %p421 = por %p419, %p420
      %p422 = scmp.ne.s32.totalorder %s410, %s411
      %p423 = scmp.eq.s32.totalorder %s144, 1
      %p424 = por %p422, %p423
      %p426 = scmp.ne.s32.totalorder %s411, %s425
      %p427 = scmp.eq.s32.totalorder %s144, 0
      %p428 = por %p426, %p427
      %s430 = sadd.s32 %s429, 1
      %p433 = scmp.eq.s32.totalorder %s138, 1
      %p434 = scmp.ne.s32.totalorder %s429, %s431
      %p435 = scmp.eq.s32.totalorder %s138, 0
      %p436 = por %p434, %p435
      %p437 = scmp.ne.s32.totalorder %s429, %s431
      %p438 = scmp.eq.s32.totalorder %s143, 1
      %p439 = por %p437, %p438
      %p440 = scmp.ne.s32.totalorder %s431, %s432
      %p441 = scmp.eq.s32.totalorder %s143, 0
      %p442 = por %p440, %p441
      %p443 = scmp.ne.s32.totalorder %s431, %s432
      %p444 = scmp.eq.s32.totalorder %s144, 1
      %p445 = por %p443, %p444
      %p447 = scmp.ne.s32.totalorder %s432, %s446
      %p448 = scmp.eq.s32.totalorder %s144, 0
      %p449 = por %p447, %p448
      %s451 = sadd.s32 %s450, 1
      %p454 = scmp.eq.s32.totalorder %s138, 1
      %p455 = scmp.ne.s32.totalorder %s450, %s452
      %p456 = scmp.eq.s32.totalorder %s138, 0
      %p457 = por %p455, %p456
      %p458 = scmp.ne.s32.totalorder %s450, %s452
      %p459 = scmp.eq.s32.totalorder %s143, 1
      %p460 = por %p458, %p459
      %p461 = scmp.ne.s32.totalorder %s452, %s453
      %p462 = scmp.eq.s32.totalorder %s143, 0
      %p463 = por %p461, %p462
      %p464 = scmp.ne.s32.totalorder %s452, %s453
      %p465 = scmp.eq.s32.totalorder %s144, 1
      %p466 = por %p464, %p465
      %p468 = scmp.ne.s32.totalorder %s453, %s467
      %p469 = scmp.eq.s32.totalorder %s144, 0
      %p470 = por %p468, %p469
      %s472 = sadd.s32 %s471, 1
      %p475 = scmp.eq.s32.totalorder %s138, 1
      %p476 = scmp.ne.s32.totalorder %s471, %s473
      %p477 = scmp.eq.s32.totalorder %s138, 0
      %p478 = por %p476, %p477
      %p479 = scmp.ne.s32.totalorder %s471, %s473
      %p480 = scmp.eq.s32.totalorder %s143, 1
      %p481 = por %p479, %p480
      %p482 = scmp.ne.s32.totalorder %s473, %s474
      %p483 = scmp.eq.s32.totalorder %s143, 0
      %p484 = por %p482, %p483
      %p485 = scmp.ne.s32.totalorder %s473, %s474
      %p486 = scmp.eq.s32.totalorder %s144, 1
      %p487 = por %p485, %p486
      %p489 = scmp.ne.s32.totalorder %s474, %s488
      %p490 = scmp.eq.s32.totalorder %s144, 0
      %p491 = por %p489, %p490
      %s493 = sadd.s32 %s492, 1
      %p496 = scmp.eq.s32.totalorder %s138, 1
      %p497 = scmp.ne.s32.totalorder %s492, %s494
      %p498 = scmp.eq.s32.totalorder %s138, 0
      %p499 = por %p497, %p498
      %p500 = scmp.ne.s32.totalorder %s492, %s494
      %p501 = scmp.eq.s32.totalorder %s143, 1
      %p502 = por %p500, %p501
      %p503 = scmp.ne.s32.totalorder %s494, %s495
      %p504 = scmp.eq.s32.totalorder %s143, 0
      %p505 = por %p503, %p504
      %p506 = scmp.ne.s32.totalorder %s494, %s495
      %p507 = scmp.eq.s32.totalorder %s144, 1
      %p508 = por %p506, %p507
      %p510 = scmp.ne.s32.totalorder %s495, %s509
      %p511 = scmp.eq.s32.totalorder %s144, 0
      %p512 = por %p510, %p511
      %s514 = sadd.s32 %s513, 1
      %p517 = scmp.eq.s32.totalorder %s138, 1
      %p518 = scmp.ne.s32.totalorder %s513, %s515
      %p519 = scmp.eq.s32.totalorder %s138, 0
      %p520 = por %p518, %p519
      %p521 = scmp.ne.s32.totalorder %s513, %s515
      %p522 = scmp.eq.s32.totalorder %s143, 1
      %p523 = por %p521, %p522
      %p524 = scmp.ne.s32.totalorder %s515, %s516
      %p525 = scmp.eq.s32.totalorder %s143, 0
      %p526 = por %p524, %p525
      %p527 = scmp.ne.s32.totalorder %s515, %s516
      %p528 = scmp.eq.s32.totalorder %s144, 1
      %p529 = por %p527, %p528
      %p531 = scmp.ne.s32.totalorder %s516, %s530
      %p532 = scmp.eq.s32.totalorder %s144, 0
      %p533 = por %p531, %p532
      %s535 = sadd.s32 %s534, 1
      %p538 = scmp.eq.s32.totalorder %s138, 1
      %p539 = scmp.ne.s32.totalorder %s534, %s536
      %p540 = scmp.eq.s32.totalorder %s138, 0
      %p541 = por %p539, %p540
      %p542 = scmp.ne.s32.totalorder %s534, %s536
      %p543 = scmp.eq.s32.totalorder %s143, 1
      %p544 = por %p542, %p543
      %p545 = scmp.ne.s32.totalorder %s536, %s537
      %p546 = scmp.eq.s32.totalorder %s143, 0
      %p547 = por %p545, %p546
      %p548 = scmp.ne.s32.totalorder %s536, %s537
      %p549 = scmp.eq.s32.totalorder %s144, 1
      %p550 = por %p548, %p549
      %p552 = scmp.ne.s32.totalorder %s537, %s551
      %p553 = scmp.eq.s32.totalorder %s144, 0
      %p554 = por %p552, %p553
      %s556 = sadd.s32 %s555, 1
      %p559 = scmp.eq.s32.totalorder %s138, 1
      %p560 = scmp.ne.s32.totalorder %s555, %s557
      %p561 = scmp.eq.s32.totalorder %s138, 0
      %p562 = por %p560, %p561
      %p563 = scmp.ne.s32.totalorder %s555, %s557
      %p564 = scmp.eq.s32.totalorder %s143, 1
      %p565 = por %p563, %p564
      %p566 = scmp.ne.s32.totalorder %s557, %s558
      %p567 = scmp.eq.s32.totalorder %s143, 0
      %p568 = por %p566, %p567
      %p569 = scmp.ne.s32.totalorder %s557, %s558
      %p570 = scmp.eq.s32.totalorder %s144, 1
      %p571 = por %p569, %p570
      %p573 = scmp.ne.s32.totalorder %s558, %s572
      %p574 = scmp.eq.s32.totalorder %s144, 0
      %p575 = por %p573, %p574
      %s577 = sadd.s32 %s576, 1
      %p580 = scmp.eq.s32.totalorder %s138, 1
      %p581 = scmp.ne.s32.totalorder %s576, %s578
      %p582 = scmp.eq.s32.totalorder %s138, 0
      %p583 = por %p581, %p582
      %p584 = scmp.ne.s32.totalorder %s576, %s578
      %p585 = scmp.eq.s32.totalorder %s143, 1
      %p586 = por %p584, %p585
      %p587 = scmp.ne.s32.totalorder %s578, %s579
      %p588 = scmp.eq.s32.totalorder %s143, 0
      %p589 = por %p587, %p588
      %p590 = scmp.ne.s32.totalorder %s578, %s579
      %p591 = scmp.eq.s32.totalorder %s144, 1
      %p592 = por %p590, %p591
      %p594 = scmp.ne.s32.totalorder %s579, %s593
      %p595 = scmp.eq.s32.totalorder %s144, 0
      %p596 = por %p594, %p595
      %s598 = sadd.s32 %s597, 1
      %p601 = scmp.eq.s32.totalorder %s138, 1
      %p602 = scmp.ne.s32.totalorder %s597, %s599
      %p603 = scmp.eq.s32.totalorder %s138, 0
      %p604 = por %p602, %p603
      %p605 = scmp.ne.s32.totalorder %s597, %s599
      %p606 = scmp.eq.s32.totalorder %s143, 1
      %p607 = por %p605, %p606
      %p608 = scmp.ne.s32.totalorder %s599, %s600
      %p609 = scmp.eq.s32.totalorder %s143, 0
      %p610 = por %p608, %p609
      %p611 = scmp.ne.s32.totalorder %s599, %s600
      %p612 = scmp.eq.s32.totalorder %s144, 1
      %p613 = por %p611, %p612
      %p615 = scmp.ne.s32.totalorder %s600, %s614
      %p616 = scmp.eq.s32.totalorder %s144, 0
      %p617 = por %p615, %p616
      %s619 = sadd.s32 %s618, 1
      %p622 = scmp.eq.s32.totalorder %s138, 1
      %p623 = scmp.ne.s32.totalorder %s618, %s620
      %p624 = scmp.eq.s32.totalorder %s138, 0
      %p625 = por %p623, %p624
      %p626 = scmp.ne.s32.totalorder %s618, %s620
      %p627 = scmp.eq.s32.totalorder %s143, 1
      %p628 = por %p626, %p627
      %p629 = scmp.ne.s32.totalorder %s620, %s621
      %p630 = scmp.eq.s32.totalorder %s143, 0
      %p631 = por %p629, %p630
      %p632 = scmp.ne.s32.totalorder %s620, %s621
      %p633 = scmp.eq.s32.totalorder %s144, 1
      %p634 = por %p632, %p633
      %p636 = scmp.ne.s32.totalorder %s621, %s635
      %p637 = scmp.eq.s32.totalorder %s144, 0
      %p638 = por %p636, %p637
      %s640 = sadd.s32 %s639, 1
      %p643 = scmp.eq.s32.totalorder %s138, 1
      %p644 = scmp.ne.s32.totalorder %s639, %s641
      %p645 = scmp.eq.s32.totalorder %s138, 0
      %p646 = por %p644, %p645
      %p647 = scmp.ne.s32.totalorder %s639, %s641
      %p648 = scmp.eq.s32.totalorder %s143, 1
      %p649 = por %p647, %p648
      %p650 = scmp.ne.s32.totalorder %s641, %s642
      %p651 = scmp.eq.s32.totalorder %s143, 0
      %p652 = por %p650, %p651
      %p653 = scmp.ne.s32.totalorder %s641, %s642
      %p654 = scmp.eq.s32.totalorder %s144, 1
      %p655 = por %p653, %p654
      %p657 = scmp.ne.s32.totalorder %s642, %s656
      %p658 = scmp.eq.s32.totalorder %s144, 0
      %p659 = por %p657, %p658
      %s661 = sadd.s32 %s660, 1
      %p664 = scmp.eq.s32.totalorder %s138, 1
      %p665 = scmp.ne.s32.totalorder %s660, %s662
      %p666 = scmp.eq.s32.totalorder %s138, 0
      %p667 = por %p665, %p666
      %p668 = scmp.ne.s32.totalorder %s660, %s662
      %p669 = scmp.eq.s32.totalorder %s143, 1
      %p670 = por %p668, %p669
      %p671 = scmp.ne.s32.totalorder %s662, %s663
      %p672 = scmp.eq.s32.totalorder %s143, 0
      %p673 = por %p671, %p672
      %p674 = scmp.ne.s32.totalorder %s662, %s663
      %p675 = scmp.eq.s32.totalorder %s144, 1
      %p676 = por %p674, %p675
      %p678 = scmp.ne.s32.totalorder %s663, %s677
      %p679 = scmp.eq.s32.totalorder %s144, 0
      %p680 = por %p678, %p679
      %s682 = sadd.s32 %s681, 1
      %p685 = scmp.eq.s32.totalorder %s138, 1
      %p686 = scmp.ne.s32.totalorder %s681, %s683
      %p687 = scmp.eq.s32.totalorder %s138, 0
      %p688 = por %p686, %p687
      %p689 = scmp.ne.s32.totalorder %s681, %s683
      %p690 = scmp.eq.s32.totalorder %s143, 1
      %p691 = por %p689, %p690
      %p692 = scmp.ne.s32.totalorder %s683, %s684
      %p693 = scmp.eq.s32.totalorder %s143, 0
      %p694 = por %p692, %p693
      %p695 = scmp.ne.s32.totalorder %s683, %s684
      %p696 = scmp.eq.s32.totalorder %s144, 1
      %p697 = por %p695, %p696
      %p699 = scmp.ne.s32.totalorder %s684, %s698
      %p700 = scmp.eq.s32.totalorder %s144, 0
      %p701 = por %p699, %p700
      %s703 = sadd.s32 %s702, 1
      %p706 = scmp.eq.s32.totalorder %s138, 1
      %p707 = scmp.ne.s32.totalorder %s702, %s704
      %p708 = scmp.eq.s32.totalorder %s138, 0
      %p709 = por %p707, %p708
      %p710 = scmp.ne.s32.totalorder %s702, %s704
      %p711 = scmp.eq.s32.totalorder %s143, 1
      %p712 = por %p710, %p711
      %p713 = scmp.ne.s32.totalorder %s704, %s705
      %p714 = scmp.eq.s32.totalorder %s143, 0
      %p715 = por %p713, %p714
      %p716 = scmp.ne.s32.totalorder %s704, %s705
      %p717 = scmp.eq.s32.totalorder %s144, 1
      %p718 = por %p716, %p717
      %p720 = scmp.ne.s32.totalorder %s705, %s719
      %p721 = scmp.eq.s32.totalorder %s144, 0
      %p722 = por %p720, %p721
      %s724 = sadd.s32 %s723, 1
      %p727 = scmp.eq.s32.totalorder %s138, 1
      %p728 = scmp.ne.s32.totalorder %s723, %s725
      %p729 = scmp.eq.s32.totalorder %s138, 0
      %p730 = por %p728, %p729
      %p731 = scmp.ne.s32.totalorder %s723, %s725
      %p732 = scmp.eq.s32.totalorder %s143, 1
      %p733 = por %p731, %p732
      %p734 = scmp.ne.s32.totalorder %s725, %s726
      %p735 = scmp.eq.s32.totalorder %s143, 0
      %p736 = por %p734, %p735
      %p737 = scmp.ne.s32.totalorder %s725, %s726
      %p738 = scmp.eq.s32.totalorder %s144, 1
      %p739 = por %p737, %p738
      %p741 = scmp.ne.s32.totalorder %s726, %s740
      %p742 = scmp.eq.s32.totalorder %s144, 0
      %p743 = por %p741, %p742
      %s745 = sadd.s32 %s744, 1
      %p748 = scmp.eq.s32.totalorder %s138, 1
      %p749 = scmp.ne.s32.totalorder %s744, %s746
      %p750 = scmp.eq.s32.totalorder %s138, 0
      %p751 = por %p749, %p750
      %p752 = scmp.ne.s32.totalorder %s744, %s746
      %p753 = scmp.eq.s32.totalorder %s143, 1
      %p754 = por %p752, %p753
      %p755 = scmp.ne.s32.totalorder %s746, %s747
      %p756 = scmp.eq.s32.totalorder %s143, 0
      %p757 = por %p755, %p756
      %p758 = scmp.ne.s32.totalorder %s746, %s747
      %p759 = scmp.eq.s32.totalorder %s144, 1
      %p760 = por %p758, %p759
      %p762 = scmp.ne.s32.totalorder %s747, %s761
      %p763 = scmp.eq.s32.totalorder %s144, 0
      %p764 = por %p762, %p763
      %s766 = sadd.s32 %s765, 1
      %p769 = scmp.eq.s32.totalorder %s138, 1
      %p770 = scmp.ne.s32.totalorder %s765, %s767
      %p771 = scmp.eq.s32.totalorder %s138, 0
      %p772 = por %p770, %p771
      %p773 = scmp.ne.s32.totalorder %s765, %s767
      %p774 = scmp.eq.s32.totalorder %s143, 1
      %p775 = por %p773, %p774
      %p776 = scmp.ne.s32.totalorder %s767, %s768
      %p777 = scmp.eq.s32.totalorder %s143, 0
      %p778 = por %p776, %p777
      %p779 = scmp.ne.s32.totalorder %s767, %s768
      %p780 = scmp.eq.s32.totalorder %s144, 1
      %p781 = por %p779, %p780
      %p783 = scmp.ne.s32.totalorder %s768, %s782
      %p784 = scmp.eq.s32.totalorder %s144, 0
      %p785 = por %p783, %p784
      %s787 = sadd.s32 %s786, 1
      %p790 = scmp.eq.s32.totalorder %s138, 1
      %p791 = scmp.ne.s32.totalorder %s786, %s788
      %p792 = scmp.eq.s32.totalorder %s138, 0
      %p793 = por %p791, %p792
      %p794 = scmp.ne.s32.totalorder %s786, %s788
      %p795 = scmp.eq.s32.totalorder %s143, 1
      %p796 = por %p794, %p795
      %p797 = scmp.ne.s32.totalorder %s788, %s789
      %p798 = scmp.eq.s32.totalorder %s143, 0
      %p799 = por %p797, %p798
      %p800 = scmp.ne.s32.totalorder %s788, %s789
      %p801 = scmp.eq.s32.totalorder %s144, 1
      %p802 = por %p800, %p801
      %p804 = scmp.ne.s32.totalorder %s789, %s803
      %p805 = scmp.eq.s32.totalorder %s144, 0
      %p806 = por %p804, %p805
      %s808 = sadd.s32 %s807, 1
      %p811 = scmp.eq.s32.totalorder %s138, 1
      %p812 = scmp.ne.s32.totalorder %s807, %s809
      %p813 = scmp.eq.s32.totalorder %s138, 0
      %p814 = por %p812, %p813
      %p815 = scmp.ne.s32.totalorder %s807, %s809
      %p816 = scmp.eq.s32.totalorder %s143, 1
      %p817 = por %p815, %p816
      %p818 = scmp.ne.s32.totalorder %s809, %s810
      %p819 = scmp.eq.s32.totalorder %s143, 0
      %p820 = por %p818, %p819
      %p821 = scmp.ne.s32.totalorder %s809, %s810
      %p822 = scmp.eq.s32.totalorder %s144, 1
      %p823 = por %p821, %p822
      %p825 = scmp.ne.s32.totalorder %s810, %s824
      %p826 = scmp.eq.s32.totalorder %s144, 0
      %p827 = por %p825, %p826
      %s829 = sadd.s32 %s828, 1
      %p832 = scmp.eq.s32.totalorder %s138, 1
      %p833 = scmp.ne.s32.totalorder %s828, %s830
      %p834 = scmp.eq.s32.totalorder %s138, 0
      %p835 = por %p833, %p834
      %p836 = scmp.ne.s32.totalorder %s828, %s830
      %p837 = scmp.eq.s32.totalorder %s143, 1
      %p838 = por %p836, %p837
      %p839 = scmp.ne.s32.totalorder %s830, %s831
      %p840 = scmp.eq.s32.totalorder %s143, 0
      %p841 = por %p839, %p840
      %p842 = scmp.ne.s32.totalorder %s830, %s831
      %p843 = scmp.eq.s32.totalorder %s144, 1
      %p844 = por %p842, %p843
      %p846 = scmp.ne.s32.totalorder %s831, %s845
      %p847 = scmp.eq.s32.totalorder %s144, 0
      %p848 = por %p846, %p847
      %s850 = sadd.s32 %s849, 1
      %p853 = scmp.eq.s32.totalorder %s138, 1
      %p854 = scmp.ne.s32.totalorder %s849, %s851
      %p855 = scmp.eq.s32.totalorder %s138, 0
      %p856 = por %p854, %p855
      %p857 = scmp.ne.s32.totalorder %s849, %s851
      %p858 = scmp.eq.s32.totalorder %s143, 1
      %p859 = por %p857, %p858
      %p860 = scmp.ne.s32.totalorder %s851, %s852
      %p861 = scmp.eq.s32.totalorder %s143, 0
      %p862 = por %p860, %p861
      %p863 = scmp.ne.s32.totalorder %s851, %s852
      %p864 = scmp.eq.s32.totalorder %s144, 1
      %p865 = por %p863, %p864
      %p867 = scmp.ne.s32.totalorder %s852, %s866
      %p868 = scmp.eq.s32.totalorder %s144, 0
      %p869 = por %p867, %p868
      %s871 = sadd.s32 %s870, 1
      %p874 = scmp.eq.s32.totalorder %s138, 1
      %p875 = scmp.ne.s32.totalorder %s870, %s872
      %p876 = scmp.eq.s32.totalorder %s138, 0
      %p877 = por %p875, %p876
      %p878 = scmp.ne.s32.totalorder %s870, %s872
      %p879 = scmp.eq.s32.totalorder %s143, 1
      %p880 = por %p878, %p879
      %p881 = scmp.ne.s32.totalorder %s872, %s873
      %p882 = scmp.eq.s32.totalorder %s143, 0
      %p883 = por %p881, %p882
      %p884 = scmp.ne.s32.totalorder %s872, %s873
      %p885 = scmp.eq.s32.totalorder %s144, 1
      %p886 = por %p884, %p885
      %p888 = scmp.ne.s32.totalorder %s873, %s887
      %p889 = scmp.eq.s32.totalorder %s144, 0
      %p890 = por %p888, %p889
      %s892 = sadd.s32 %s891, 1
      %p895 = scmp.eq.s32.totalorder %s138, 1
      %p896 = scmp.ne.s32.totalorder %s891, %s893
      %p897 = scmp.eq.s32.totalorder %s138, 0
      %p898 = por %p896, %p897
      %p899 = scmp.ne.s32.totalorder %s891, %s893
      %p900 = scmp.eq.s32.totalorder %s143, 1
      %p901 = por %p899, %p900
      %p902 = scmp.ne.s32.totalorder %s893, %s894
      %p903 = scmp.eq.s32.totalorder %s143, 0
      %p904 = por %p902, %p903
      %p905 = scmp.ne.s32.totalorder %s893, %s894
      %p906 = scmp.eq.s32.totalorder %s144, 1
      %p907 = por %p905, %p906
      %p909 = scmp.ne.s32.totalorder %s894, %s908
      %p910 = scmp.eq.s32.totalorder %s144, 0
      %p911 = por %p909, %p910
      %s913 = sadd.s32 %s912, 1
      %p916 = scmp.eq.s32.totalorder %s138, 1
      %p917 = scmp.ne.s32.totalorder %s912, %s914
      %p918 = scmp.eq.s32.totalorder %s138, 0
      %p919 = por %p917, %p918
      %p920 = scmp.ne.s32.totalorder %s912, %s914
      %p921 = scmp.eq.s32.totalorder %s143, 1
      %p922 = por %p920, %p921
      %p923 = scmp.ne.s32.totalorder %s914, %s915
      %p924 = scmp.eq.s32.totalorder %s143, 0
      %p925 = por %p923, %p924
      %p926 = scmp.ne.s32.totalorder %s914, %s915
      %p927 = scmp.eq.s32.totalorder %s144, 1
      %p928 = por %p926, %p927
      %p930 = scmp.ne.s32.totalorder %s915, %s929
      %p931 = scmp.eq.s32.totalorder %s144, 0
      %p932 = por %p930, %p931
      %s934 = sadd.s32 %s933, 1
      %p937 = scmp.eq.s32.totalorder %s138, 1
      %p938 = scmp.ne.s32.totalorder %s933, %s935
      %p939 = scmp.eq.s32.totalorder %s138, 0
      %p940 = por %p938, %p939
      %p941 = scmp.ne.s32.totalorder %s933, %s935
      %p942 = scmp.eq.s32.totalorder %s143, 1
      %p943 = por %p941, %p942
      %p944 = scmp.ne.s32.totalorder %s935, %s936
      %p945 = scmp.eq.s32.totalorder %s143, 0
      %p946 = por %p944, %p945
      %p947 = scmp.ne.s32.totalorder %s935, %s936
      %p948 = scmp.eq.s32.totalorder %s144, 1
      %p949 = por %p947, %p948
      %p951 = scmp.ne.s32.totalorder %s936, %s950
      %p952 = scmp.eq.s32.totalorder %s144, 0
      %p953 = por %p951, %p952
      %s955 = sadd.s32 %s954, 1
      %p958 = scmp.eq.s32.totalorder %s138, 1
      %p959 = scmp.ne.s32.totalorder %s954, %s956
      %p960 = scmp.eq.s32.totalorder %s138, 0
      %p961 = por %p959, %p960
      %p962 = scmp.ne.s32.totalorder %s954, %s956
      %p963 = scmp.eq.s32.totalorder %s143, 1
      %p964 = por %p962, %p963
      %p965 = scmp.ne.s32.totalorder %s956, %s957
      %p966 = scmp.eq.s32.totalorder %s143, 0
      %p967 = por %p965, %p966
      %p968 = scmp.ne.s32.totalorder %s956, %s957
      %p969 = scmp.eq.s32.totalorder %s144, 1
      %p970 = por %p968, %p969
      %p972 = scmp.ne.s32.totalorder %s957, %s971
      %p973 = scmp.eq.s32.totalorder %s144, 0
      %p974 = por %p972, %p973
      %s976 = sadd.s32 %s975, 1
      %p979 = scmp.eq.s32.totalorder %s138, 1
      %p980 = scmp.ne.s32.totalorder %s975, %s977
      %p981 = scmp.eq.s32.totalorder %s138, 0
      %p982 = por %p980, %p981
      %p983 = scmp.ne.s32.totalorder %s975, %s977
      %p984 = scmp.eq.s32.totalorder %s143, 1
      %p985 = por %p983, %p984
      %p986 = scmp.ne.s32.totalorder %s977, %s978
      %p987 = scmp.eq.s32.totalorder %s143, 0
      %p988 = por %p986, %p987
      %p989 = scmp.ne.s32.totalorder %s977, %s978
      %p990 = scmp.eq.s32.totalorder %s144, 1
      %p991 = por %p989, %p990
      %p993 = scmp.ne.s32.totalorder %s978, %s992
      %p994 = scmp.eq.s32.totalorder %s144, 0
      %p995 = por %p993, %p994
      %s997 = sadd.s32 %s996, 1
      %p1000 = scmp.eq.s32.totalorder %s138, 1
      %p1001 = scmp.ne.s32.totalorder %s996, %s998
      %p1002 = scmp.eq.s32.totalorder %s138, 0
      %p1003 = por %p1001, %p1002
      %p1004 = scmp.ne.s32.totalorder %s996, %s998
      %p1005 = scmp.eq.s32.totalorder %s143, 1
      %p1006 = por %p1004, %p1005
      %p1007 = scmp.ne.s32.totalorder %s998, %s999
      %p1008 = scmp.eq.s32.totalorder %s143, 0
      %p1009 = por %p1007, %p1008
      %p1010 = scmp.ne.s32.totalorder %s998, %s999
      %p1011 = scmp.eq.s32.totalorder %s144, 1
      %p1012 = por %p1010, %p1011
      %p1014 = scmp.ne.s32.totalorder %s999, %s1013
      %p1015 = scmp.eq.s32.totalorder %s144, 0
      %p1016 = por %p1014, %p1015
      %s1018 = sadd.s32 %s1017, 1
      %p1021 = scmp.eq.s32.totalorder %s138, 1
      %p1022 = scmp.ne.s32.totalorder %s1017, %s1019
      %p1023 = scmp.eq.s32.totalorder %s138, 0
      %p1024 = por %p1022, %p1023
      %p1025 = scmp.ne.s32.totalorder %s1017, %s1019
      %p1026 = scmp.eq.s32.totalorder %s143, 1
      %p1027 = por %p1025, %p1026
      %p1028 = scmp.ne.s32.totalorder %s1019, %s1020
      %p1029 = scmp.eq.s32.totalorder %s143, 0
      %p1030 = por %p1028, %p1029
      %p1031 = scmp.ne.s32.totalorder %s1019, %s1020
      %p1032 = scmp.eq.s32.totalorder %s144, 1
      %p1033 = por %p1031, %p1032
      %p1035 = scmp.ne.s32.totalorder %s1020, %s1034
      %p1036 = scmp.eq.s32.totalorder %s144, 0
      %p1037 = por %p1035, %p1036
      %s1039 = sadd.s32 %s1038, 1
      %p1042 = scmp.eq.s32.totalorder %s138, 1
      %p1043 = scmp.ne.s32.totalorder %s1038, %s1040
      %p1044 = scmp.eq.s32.totalorder %s138, 0
      %p1045 = por %p1043, %p1044
      %p1046 = scmp.ne.s32.totalorder %s1038, %s1040
      %p1047 = scmp.eq.s32.totalorder %s143, 1
      %p1048 = por %p1046, %p1047
      %p1049 = scmp.ne.s32.totalorder %s1040, %s1041
      %p1050 = scmp.eq.s32.totalorder %s143, 0
      %p1051 = por %p1049, %p1050
      %p1052 = scmp.ne.s32.totalorder %s1040, %s1041
      %p1053 = scmp.eq.s32.totalorder %s144, 1
      %p1054 = por %p1052, %p1053
      %p1056 = scmp.ne.s32.totalorder %s1041, %s1055
      %p1057 = scmp.eq.s32.totalorder %s144, 0
      %p1058 = por %p1056, %p1057
      %s1060 = sadd.s32 %s1059, 1
      %p1063 = scmp.eq.s32.totalorder %s138, 1
      %p1064 = scmp.ne.s32.totalorder %s1059, %s1061
      %p1065 = scmp.eq.s32.totalorder %s138, 0
      %p1066 = por %p1064, %p1065
      %p1067 = scmp.ne.s32.totalorder %s1059, %s1061
      %p1068 = scmp.eq.s32.totalorder %s143, 1
      %p1069 = por %p1067, %p1068
      %p1070 = scmp.ne.s32.totalorder %s1061, %s1062
      %p1071 = scmp.eq.s32.totalorder %s143, 0
      %p1072 = por %p1070, %p1071
      %p1073 = scmp.ne.s32.totalorder %s1061, %s1062
      %p1074 = scmp.eq.s32.totalorder %s144, 1
      %p1075 = por %p1073, %p1074
      %p1077 = scmp.ne.s32.totalorder %s1062, %s1076
      %p1078 = scmp.eq.s32.totalorder %s144, 0
      %p1079 = por %p1077, %p1078
      %s1081 = sadd.s32 %s1080, 1
      %p1084 = scmp.eq.s32.totalorder %s138, 1
      %p1085 = scmp.ne.s32.totalorder %s1080, %s1082
      %p1086 = scmp.eq.s32.totalorder %s138, 0
      %p1087 = por %p1085, %p1086
      %p1088 = scmp.ne.s32.totalorder %s1080, %s1082
      %p1089 = scmp.eq.s32.totalorder %s143, 1
      %p1090 = por %p1088, %p1089
      %p1091 = scmp.ne.s32.totalorder %s1082, %s1083
      %p1092 = scmp.eq.s32.totalorder %s143, 0
      %p1093 = por %p1091, %p1092
      %p1094 = scmp.ne.s32.totalorder %s1082, %s1083
      %p1095 = scmp.eq.s32.totalorder %s144, 1
      %p1096 = por %p1094, %p1095
      %p1098 = scmp.ne.s32.totalorder %s1083, %s1097
      %p1099 = scmp.eq.s32.totalorder %s144, 0
      %p1100 = por %p1098, %p1099
      %s1102 = sadd.s32 %s1101, 1
      %p1105 = scmp.eq.s32.totalorder %s138, 1
      %p1106 = scmp.ne.s32.totalorder %s1101, %s1103
      %p1107 = scmp.eq.s32.totalorder %s138, 0
      %p1108 = por %p1106, %p1107
      %p1109 = scmp.ne.s32.totalorder %s1101, %s1103
      %p1110 = scmp.eq.s32.totalorder %s143, 1
      %p1111 = por %p1109, %p1110
      %p1112 = scmp.ne.s32.totalorder %s1103, %s1104
      %p1113 = scmp.eq.s32.totalorder %s143, 0
      %p1114 = por %p1112, %p1113
      %p1115 = scmp.ne.s32.totalorder %s1103, %s1104
      %p1116 = scmp.eq.s32.totalorder %s144, 1
      %p1117 = por %p1115, %p1116
      %p1119 = scmp.ne.s32.totalorder %s1104, %s1118
      %p1120 = scmp.eq.s32.totalorder %s144, 0
      %p1121 = por %p1119, %p1120
      %s1123 = sadd.s32 %s1122, 1
      %p1126 = scmp.eq.s32.totalorder %s138, 1
      %p1127 = scmp.ne.s32.totalorder %s1122, %s1124
      %p1128 = scmp.eq.s32.totalorder %s138, 0
      %p1129 = por %p1127, %p1128
      %p1130 = scmp.ne.s32.totalorder %s1122, %s1124
      %p1131 = scmp.eq.s32.totalorder %s143, 1
      %p1132 = por %p1130, %p1131
      %p1133 = scmp.ne.s32.totalorder %s1124, %s1125
      %p1134 = scmp.eq.s32.totalorder %s143, 0
      %p1135 = por %p1133, %p1134
      %p1136 = scmp.ne.s32.totalorder %s1124, %s1125
      %p1137 = scmp.eq.s32.totalorder %s144, 1
      %p1138 = por %p1136, %p1137
      %p1140 = scmp.ne.s32.totalorder %s1125, %s1139
      %p1141 = scmp.eq.s32.totalorder %s144, 0
      %p1142 = por %p1140, %p1141
      %s1144 = sadd.s32 %s1143, 1
      %p1147 = scmp.eq.s32.totalorder %s138, 1
      %p1148 = scmp.ne.s32.totalorder %s1143, %s1145
      %p1149 = scmp.eq.s32.totalorder %s138, 0
      %p1150 = por %p1148, %p1149
      %p1151 = scmp.ne.s32.totalorder %s1143, %s1145
      %p1152 = scmp.eq.s32.totalorder %s143, 1
      %p1153 = por %p1151, %p1152
      %p1154 = scmp.ne.s32.totalorder %s1145, %s1146
      %p1155 = scmp.eq.s32.totalorder %s143, 0
      %p1156 = por %p1154, %p1155
      %p1157 = scmp.ne.s32.totalorder %s1145, %s1146
      %p1158 = scmp.eq.s32.totalorder %s144, 1
      %p1159 = por %p1157, %p1158
      %p1161 = scmp.ne.s32.totalorder %s1146, %s1160
      %p1162 = scmp.eq.s32.totalorder %s144, 0
      %p1163 = por %p1161, %p1162
      %s1165 = sadd.s32 %s1164, 1
      %p1168 = scmp.eq.s32.totalorder %s138, 1
      %p1169 = scmp.ne.s32.totalorder %s1164, %s1166
      %p1170 = scmp.eq.s32.totalorder %s138, 0
      %p1171 = por %p1169, %p1170
      %p1172 = scmp.ne.s32.totalorder %s1164, %s1166
      %p1173 = scmp.eq.s32.totalorder %s143, 1
      %p1174 = por %p1172, %p1173
      %p1175 = scmp.ne.s32.totalorder %s1166, %s1167
      %p1176 = scmp.eq.s32.totalorder %s143, 0
      %p1177 = por %p1175, %p1176
      %p1178 = scmp.ne.s32.totalorder %s1166, %s1167
      %p1179 = scmp.eq.s32.totalorder %s144, 1
      %p1180 = por %p1178, %p1179
      %p1182 = scmp.ne.s32.totalorder %s1167, %s1181
      %p1183 = scmp.eq.s32.totalorder %s144, 0
      %p1184 = por %p1182, %p1183
      %s1186 = sadd.s32 %s1185, 1
      %p1189 = scmp.eq.s32.totalorder %s138, 1
      %p1190 = scmp.ne.s32.totalorder %s1185, %s1187
      %p1191 = scmp.eq.s32.totalorder %s138, 0
      %p1192 = por %p1190, %p1191
      %p1193 = scmp.ne.s32.totalorder %s1185, %s1187
      %p1194 = scmp.eq.s32.totalorder %s143, 1
      %p1195 = por %p1193, %p1194
      %p1196 = scmp.ne.s32.totalorder %s1187, %s1188
      %p1197 = scmp.eq.s32.totalorder %s143, 0
      %p1198 = por %p1196, %p1197
      %p1199 = scmp.ne.s32.totalorder %s1187, %s1188
      %p1200 = scmp.eq.s32.totalorder %s144, 1
      %p1201 = por %p1199, %p1200
      %p1203 = scmp.ne.s32.totalorder %s1188, %s1202
      %p1204 = scmp.eq.s32.totalorder %s144, 0
      %p1205 = por %p1203, %p1204
      %s1207 = sadd.s32 %s1206, 1
      %p1210 = scmp.eq.s32.totalorder %s138, 1
      %p1211 = scmp.ne.s32.totalorder %s1206, %s1208
      %p1212 = scmp.eq.s32.totalorder %s138, 0
      %p1213 = por %p1211, %p1212
      %p1214 = scmp.ne.s32.totalorder %s1206, %s1208
      %p1215 = scmp.eq.s32.totalorder %s143, 1
      %p1216 = por %p1214, %p1215
      %p1217 = scmp.ne.s32.totalorder %s1208, %s1209
      %p1218 = scmp.eq.s32.totalorder %s143, 0
      %p1219 = por %p1217, %p1218
      %p1220 = scmp.ne.s32.totalorder %s1208, %s1209
      %p1221 = scmp.eq.s32.totalorder %s144, 1
      %p1222 = por %p1220, %p1221
      %p1224 = scmp.ne.s32.totalorder %s1209, %s1223
      %p1225 = scmp.eq.s32.totalorder %s144, 0
      %p1226 = por %p1224, %p1225
      %s1228 = sadd.s32 %s1227, 1
      %p1231 = scmp.eq.s32.totalorder %s138, 1
      %p1232 = scmp.ne.s32.totalorder %s1227, %s1229
      %p1233 = scmp.eq.s32.totalorder %s138, 0
      %p1234 = por %p1232, %p1233
      %p1235 = scmp.ne.s32.totalorder %s1227, %s1229
      %p1236 = scmp.eq.s32.totalorder %s143, 1
      %p1237 = por %p1235, %p1236
      %p1238 = scmp.ne.s32.totalorder %s1229, %s1230
      %p1239 = scmp.eq.s32.totalorder %s143, 0
      %p1240 = por %p1238, %p1239
      %p1241 = scmp.ne.s32.totalorder %s1229, %s1230
      %p1242 = scmp.eq.s32.totalorder %s144, 1
      %p1243 = por %p1241, %p1242
      %p1245 = scmp.ne.s32.totalorder %s1230, %s1244
      %p1246 = scmp.eq.s32.totalorder %s144, 0
      %p1247 = por %p1245, %p1246
      %s1249 = sadd.s32 %s1248, 1
      %p1252 = scmp.eq.s32.totalorder %s138, 1
      %p1253 = scmp.ne.s32.totalorder %s1248, %s1250
      %p1254 = scmp.eq.s32.totalorder %s138, 0
      %p1255 = por %p1253, %p1254
      %p1256 = scmp.ne.s32.totalorder %s1248, %s1250
      %p1257 = scmp.eq.s32.totalorder %s143, 1
      %p1258 = por %p1256, %p1257
      %p1259 = scmp.ne.s32.totalorder %s1250, %s1251
      %p1260 = scmp.eq.s32.totalorder %s143, 0
      %p1261 = por %p1259, %p1260
      %p1262 = scmp.ne.s32.totalorder %s1250, %s1251
      %p1263 = scmp.eq.s32.totalorder %s144, 1
      %p1264 = por %p1262, %p1263
      %p1266 = scmp.ne.s32.totalorder %s1251, %s1265
      %p1267 = scmp.eq.s32.totalorder %s144, 0
      %p1268 = por %p1266, %p1267
      %s1269 = ssub.s32 %s138, %s145
      %p1270 = scmp.eq.s32.totalorder %s1269, 0
      %s1272 = sadd.s32 %s1271, 1
      %s1273 = scalar_select %p1270, %s1271, %s1272
      %p1276 = pneg %p1270
      %p1277 = scmp.eq.s32.totalorder %s138, 1
      %p1278 = por %p1276, %p1277
      %p1279 = scmp.ne.s32.totalorder %s1271, %s1274
      %p1280 = scmp.eq.s32.totalorder %s138, 0
      %p1281 = por %p1279, %p1280
      %p1282 = scmp.ne.s32.totalorder %s1271, %s1274
      %p1283 = scmp.eq.s32.totalorder %s143, 1
      %p1284 = por %p1282, %p1283
      %p1285 = scmp.ne.s32.totalorder %s1274, %s1275
      %p1286 = scmp.eq.s32.totalorder %s143, 0
      %p1287 = por %p1285, %p1286
      %p1288 = scmp.ne.s32.totalorder %s1274, %s1275
      %p1289 = scmp.eq.s32.totalorder %s144, 1
      %p1290 = por %p1288, %p1289
      %p1292 = scmp.ne.s32.totalorder %s1275, %s1291
      %p1293 = scmp.eq.s32.totalorder %s144, 0
      %p1294 = por %p1292, %p1293
      %p1295 = scmp.le.s32.totalorder 1, %s138
      %p1296 = scmp.lt.s32.totalorder %s138, 3
      %p1297 = pnand %p1295, %p1296
      %p1298 = pneg %p1297
      // Predicated region
      $region9: #{perciever_encoder_forward.1} parent=5 // pred_check
        _
      $region10: #{perciever_encoder_forward.1} parent=5 // pred_check_branch
        %1300 = sbr.rel (%p1297) target = $region12
      $region11: #{perciever_encoder_forward.1} parent=5 // pred_region
        %s1301 = ssub.s32 %s138, 1
        // Predicated region
        $region13: #{perciever_encoder_forward.1} parent=11 // pred_check
          %p1302 = pneg %p211
        $region14: #{perciever_encoder_forward.1} parent=11 // pred_check_branch
          %1304 = sbr.rel (%p1302) target = $region16
        $region15: #{perciever_encoder_forward.1} parent=11 // pred_region
          %1306 = vsyncadd [#allocation3], 0
          %s1307 = sshll.u32 %s5, 4
          %s1308 = int_to_ptr.hbm [resolvable:$true] %s1307
          %s1309 = sshll.u32 [#allocation2], 4
          %s1310 = int_to_ptr.vmem [resolvable:$true] %s1309
          %1315 = dma.hbm_to_vmem [thread:$0]  %s1308, 256, %s1310, [#allocation3], 128, 128, 8
        $region16: #{perciever_encoder_forward.1} parent=11 // pred_fallthru
          _
        // Predicated region
        $region17: #{perciever_encoder_forward.1} parent=11 // pred_check
          %p1316 = pneg %p232
        $region18: #{perciever_encoder_forward.1} parent=11 // pred_check_branch
          %1318 = sbr.rel (%p1316) target = $region20
        $region19: #{perciever_encoder_forward.1} parent=11 // pred_region
          _
        $region20: #{perciever_encoder_forward.1} parent=11 // pred_fallthru
          _
        // Predicated region
        $region21: #{perciever_encoder_forward.1} parent=11 // pred_check
          %p1319 = pneg %p253
        $region22: #{perciever_encoder_forward.1} parent=11 // pred_check_branch
          %1321 = sbr.rel (%p1319) target = $region24
        $region23: #{perciever_encoder_forward.1} parent=11 // pred_region
          _
        $region24: #{perciever_encoder_forward.1} parent=11 // pred_fallthru
          _
        // Predicated region
        $region25: #{perciever_encoder_forward.1} parent=11 // pred_check
          %p1322 = pneg %p274
        $region26: #{perciever_encoder_forward.1} parent=11 // pred_check_branch
          %1324 = sbr.rel (%p1322) target = $region28
        $region27: #{perciever_encoder_forward.1} parent=11 // pred_region
          _
        $region28: #{perciever_encoder_forward.1} parent=11 // pred_fallthru
          _
        // Predicated region
        $region29: #{perciever_encoder_forward.1} parent=11 // pred_check
          %p1325 = pneg %p295
        $region30: #{perciever_encoder_forward.1} parent=11 // pred_check_branch
          %1327 = sbr.rel (%p1325) target = $region32
        $region31: #{perciever_encoder_forward.1} parent=11 // pred_region
          _
        $region32: #{perciever_encoder_forward.1} parent=11 // pred_fallthru
          _
        // Predicated region
        $region33: #{perciever_encoder_forward.1} parent=11 // pred_check
          %p1328 = pneg %p316
        $region34: #{perciever_encoder_forward.1} parent=11 // pred_check_branch
          %1330 = sbr.rel (%p1328) target = $region36
        $region35: #{perciever_encoder_forward.1} parent=11 // pred_region
          _
        $region36: #{perciever_encoder_forward.1} parent=11 // pred_fallthru
          _
        // Predicated region
        $region37: #{perciever_encoder_forward.1} parent=11 // pred_check
          %p1331 = pneg %p337
        $region38: #{perciever_encoder_forward.1} parent=11 // pred_check_branch
          %1333 = sbr.rel (%p1331) target = $region40
        $region39: #{perciever_encoder_forward.1} parent=11 // pred_region
          _
        $region40: #{perciever_encoder_forward.1} parent=11 // pred_fallthru
          _
        // Predicated region
        $region41: #{perciever_encoder_forward.1} parent=11 // pred_check
          %p1334 = pneg %p358
        $region42: #{perciever_encoder_forward.1} parent=11 // pred_check_branch
          %1336 = sbr.rel (%p1334) target = $region44
        $region43: #{perciever_encoder_forward.1} parent=11 // pred_region
          _
        $region44: #{perciever_encoder_forward.1} parent=11 // pred_fallthru
          _
        // Predicated region
        $region45: #{perciever_encoder_forward.1} parent=11 // pred_check
          %p1337 = pneg %p379
        $region46: #{perciever_encoder_forward.1} parent=11 // pred_check_branch
          %1339 = sbr.rel (%p1337) target = $region48
        $region47: #{perciever_encoder_forward.1} parent=11 // pred_region
          _
        $region48: #{perciever_encoder_forward.1} parent=11 // pred_fallthru
          _
        // Predicated region
        $region49: #{perciever_encoder_forward.1} parent=11 // pred_check
          %p1340 = pneg %p400
        $region50: #{perciever_encoder_forward.1} parent=11 // pred_check_branch
          %1342 = sbr.rel (%p1340) target = $region52
        $region51: #{perciever_encoder_forward.1} parent=11 // pred_region
          %1344 = vsyncadd [#allocation6], 0
          %s1346 = sshll.u32 %s23, 4
          %s1347 = int_to_ptr.hbm [resolvable:$true] %s1346
          %s1348 = sshll.u32 [#allocation5], 4
          %s1349 = int_to_ptr.vmem [resolvable:$true] %s1348
          %1351 = dma.hbm_to_vmem [thread:$0]  %s1347, 128, %s1349, [#allocation6]
        $region52: #{perciever_encoder_forward.1} parent=11 // pred_fallthru
          _
        // Predicated region
        $region53: #{perciever_encoder_forward.1} parent=11 // pred_check
          %p1352 = pneg %p421
        $region54: #{perciever_encoder_forward.1} parent=11 // pred_check_branch
          %1354 = sbr.rel (%p1352) target = $region56
        $region55: #{perciever_encoder_forward.1} parent=11 // pred_region
          %1356 = vsyncadd [#allocation6], 0
          %s1358 = sshll.u32 %s25, 4
          %s1359 = int_to_ptr.hbm [resolvable:$true] %s1358
          %s1360 = sshll.u32 [#allocation7], 4
          %s1361 = int_to_ptr.vmem [resolvable:$true] %s1360
          %1363 = dma.hbm_to_vmem [thread:$0]  %s1359, 16, %s1361, [#allocation6]
        $region56: #{perciever_encoder_forward.1} parent=11 // pred_fallthru
          _
        // Predicated region
        $region57: #{perciever_encoder_forward.1} parent=11 // pred_check
          %p1364 = pneg %p442
        $region58: #{perciever_encoder_forward.1} parent=11 // pred_check_branch
          %1366 = sbr.rel (%p1364) target = $region60
        $region59: #{perciever_encoder_forward.1} parent=11 // pred_region
          %1368 = vsyncadd [#allocation9], 0
          %s1370 = sshll.u32 %s27, 4
          %s1371 = int_to_ptr.hbm [resolvable:$true] %s1370
          %s1372 = sshll.u32 [#allocation8], 4
          %s1373 = int_to_ptr.vmem [resolvable:$true] %s1372
          %1375 = dma.hbm_to_vmem [thread:$0]  %s1371, 128, %s1373, [#allocation9]
        $region60: #{perciever_encoder_forward.1} parent=11 // pred_fallthru
          _
        // Predicated region
        $region61: #{perciever_encoder_forward.1} parent=11 // pred_check
          %p1376 = pneg %p463
        $region62: #{perciever_encoder_forward.1} parent=11 // pred_check_branch
          %1378 = sbr.rel (%p1376) target = $region64
        $region63: #{perciever_encoder_forward.1} parent=11 // pred_region
          %1380 = vsyncadd [#allocation9], 0
          %s1382 = sshll.u32 %s29, 4
          %s1383 = int_to_ptr.hbm [resolvable:$true] %s1382
          %s1384 = sshll.u32 [#allocation10], 4
          %s1385 = int_to_ptr.vmem [resolvable:$true] %s1384
          %1387 = dma.hbm_to_vmem [thread:$0]  %s1383, 16, %s1385, [#allocation9]
        $region64: #{perciever_encoder_forward.1} parent=11 // pred_fallthru
          _
        // Predicated region
        $region65: #{perciever_encoder_forward.1} parent=11 // pred_check
          %p1388 = pneg %p484
        $region66: #{perciever_encoder_forward.1} parent=11 // pred_check_branch
          %1390 = sbr.rel (%p1388) target = $region68
        $region67: #{perciever_encoder_forward.1} parent=11 // pred_region
          %1392 = vsyncadd [#allocation12], 0
          %s1393 = sshll.u32 %s31, 4
          %s1394 = int_to_ptr.hbm [resolvable:$true] %s1393
          %s1395 = sshll.u32 [#allocation11], 4
          %s1396 = int_to_ptr.vmem [resolvable:$true] %s1395
          %1401 = dma.hbm_to_vmem [thread:$0]  %s1394, 512, %s1396, [#allocation12], 128, 128, 8
        $region68: #{perciever_encoder_forward.1} parent=11 // pred_fallthru
          _
        // Predicated region
        $region69: #{perciever_encoder_forward.1} parent=11 // pred_check
          %p1402 = pneg %p505
        $region70: #{perciever_encoder_forward.1} parent=11 // pred_check_branch
          %1404 = sbr.rel (%p1402) target = $region72
        $region71: #{perciever_encoder_forward.1} parent=11 // pred_region
          %1406 = vsyncadd [#allocation12], 0
          %s1408 = sshll.u32 %s33, 4
          %s1409 = int_to_ptr.hbm [resolvable:$true] %s1408
          %s1410 = sshll.u32 [#allocation13], 4
          %s1411 = int_to_ptr.vmem [resolvable:$true] %s1410
          %1413 = dma.hbm_to_vmem [thread:$0]  %s1409, 16, %s1411, [#allocation12]
        $region72: #{perciever_encoder_forward.1} parent=11 // pred_fallthru
          _
        // Predicated region
        $region73: #{perciever_encoder_forward.1} parent=11 // pred_check
          %p1414 = pneg %p526
        $region74: #{perciever_encoder_forward.1} parent=11 // pred_check_branch
          %1416 = sbr.rel (%p1414) target = $region76
        $region75: #{perciever_encoder_forward.1} parent=11 // pred_region
          %1418 = vsyncadd [#allocation15], 0
          %s1419 = sshll.u32 %s35, 4
          %s1420 = int_to_ptr.hbm [resolvable:$true] %s1419
          %s1421 = sshll.u32 [#allocation14], 4
          %s1422 = int_to_ptr.vmem [resolvable:$true] %s1421
          %1427 = dma.hbm_to_vmem [thread:$0]  %s1420, 512, %s1422, [#allocation15], 128, 128, 8
        $region76: #{perciever_encoder_forward.1} parent=11 // pred_fallthru
          _
        // Predicated region
        $region77: #{perciever_encoder_forward.1} parent=11 // pred_check
          %p1428 = pneg %p547
        $region78: #{perciever_encoder_forward.1} parent=11 // pred_check_branch
          %1430 = sbr.rel (%p1428) target = $region80
        $region79: #{perciever_encoder_forward.1} parent=11 // pred_region
          %1432 = vsyncadd [#allocation15], 0
          %s1434 = sshll.u32 %s37, 4
          %s1435 = int_to_ptr.hbm [resolvable:$true] %s1434
          %s1436 = sshll.u32 [#allocation16], 4
          %s1437 = int_to_ptr.vmem [resolvable:$true] %s1436
          %1439 = dma.hbm_to_vmem [thread:$0]  %s1435, 16, %s1437, [#allocation15]
        $region80: #{perciever_encoder_forward.1} parent=11 // pred_fallthru
          _
        // Predicated region
        $region81: #{perciever_encoder_forward.1} parent=11 // pred_check
          %p1440 = pneg %p568
        $region82: #{perciever_encoder_forward.1} parent=11 // pred_check_branch
          %1442 = sbr.rel (%p1440) target = $region84
        $region83: #{perciever_encoder_forward.1} parent=11 // pred_region
          %1444 = vsyncadd [#allocation18], 0
          %s1445 = sshll.u32 %s39, 4
          %s1446 = int_to_ptr.hbm [resolvable:$true] %s1445
          %s1447 = sshll.u32 [#allocation17], 4
          %s1448 = int_to_ptr.vmem [resolvable:$true] %s1447
          %1453 = dma.hbm_to_vmem [thread:$0]  %s1446, 512, %s1448, [#allocation18], 128, 128, 8
        $region84: #{perciever_encoder_forward.1} parent=11 // pred_fallthru
          _
        // Predicated region
        $region85: #{perciever_encoder_forward.1} parent=11 // pred_check
          %p1454 = pneg %p589
        $region86: #{perciever_encoder_forward.1} parent=11 // pred_check_branch
          %1456 = sbr.rel (%p1454) target = $region88
        $region87: #{perciever_encoder_forward.1} parent=11 // pred_region
          %1458 = vsyncadd [#allocation18], 0
          %s1460 = sshll.u32 %s41, 4
          %s1461 = int_to_ptr.hbm [resolvable:$true] %s1460
          %s1462 = sshll.u32 [#allocation19], 4
          %s1463 = int_to_ptr.vmem [resolvable:$true] %s1462
          %1465 = dma.hbm_to_vmem [thread:$0]  %s1461, 16, %s1463, [#allocation18]
        $region88: #{perciever_encoder_forward.1} parent=11 // pred_fallthru
          _
        // Predicated region
        $region89: #{perciever_encoder_forward.1} parent=11 // pred_check
          %p1466 = pneg %p610
        $region90: #{perciever_encoder_forward.1} parent=11 // pred_check_branch
          %1468 = sbr.rel (%p1466) target = $region92
        $region91: #{perciever_encoder_forward.1} parent=11 // pred_region
          %1470 = vsyncadd [#allocation21], 0
          %s1472 = sshll.u32 %s43, 4
          %s1473 = int_to_ptr.hbm [resolvable:$true] %s1472
          %s1474 = sshll.u32 [#allocation20], 4
          %s1475 = int_to_ptr.vmem [resolvable:$true] %s1474
          %1477 = dma.hbm_to_vmem [thread:$0]  %s1473, 16, %s1475, [#allocation21]
        $region92: #{perciever_encoder_forward.1} parent=11 // pred_fallthru
          _
        // Predicated region
        $region93: #{perciever_encoder_forward.1} parent=11 // pred_check
          %p1478 = pneg %p631
        $region94: #{perciever_encoder_forward.1} parent=11 // pred_check_branch
          %1480 = sbr.rel (%p1478) target = $region96
        $region95: #{perciever_encoder_forward.1} parent=11 // pred_region
          %1482 = vsyncadd [#allocation21], 0
          %s1484 = sshll.u32 %s45, 4
          %s1485 = int_to_ptr.hbm [resolvable:$true] %s1484
          %s1486 = sshll.u32 [#allocation22], 4
          %s1487 = int_to_ptr.vmem [resolvable:$true] %s1486
          %1489 = dma.hbm_to_vmem [thread:$0]  %s1485, 16, %s1487, [#allocation21]
        $region96: #{perciever_encoder_forward.1} parent=11 // pred_fallthru
          _
        // Predicated region
        $region97: #{perciever_encoder_forward.1} parent=11 // pred_check
          %p1490 = pneg %p652
        $region98: #{perciever_encoder_forward.1} parent=11 // pred_check_branch
          %1492 = sbr.rel (%p1490) target = $region100
        $region99: #{perciever_encoder_forward.1} parent=11 // pred_region
          %1494 = vsyncadd [#allocation24], 0
          %s1496 = sshll.u32 %s47, 4
          %s1497 = int_to_ptr.hbm [resolvable:$true] %s1496
          %s1498 = sshll.u32 [#allocation23], 4
          %s1499 = int_to_ptr.vmem [resolvable:$true] %s1498
          %1501 = dma.hbm_to_vmem [thread:$0]  %s1497, 16, %s1499, [#allocation24]
        $region100: #{perciever_encoder_forward.1} parent=11 // pred_fallthru
          _
        // Predicated region
        $region101: #{perciever_encoder_forward.1} parent=11 // pred_check
          %p1502 = pneg %p673
        $region102: #{perciever_encoder_forward.1} parent=11 // pred_check_branch
          %1504 = sbr.rel (%p1502) target = $region104
        $region103: #{perciever_encoder_forward.1} parent=11 // pred_region
          %1506 = vsyncadd [#allocation24], 0
          %s1508 = sshll.u32 %s49, 4
          %s1509 = int_to_ptr.hbm [resolvable:$true] %s1508
          %s1510 = sshll.u32 [#allocation25], 4
          %s1511 = int_to_ptr.vmem [resolvable:$true] %s1510
          %1513 = dma.hbm_to_vmem [thread:$0]  %s1509, 16, %s1511, [#allocation24]
        $region104: #{perciever_encoder_forward.1} parent=11 // pred_fallthru
          _
        // Predicated region
        $region105: #{perciever_encoder_forward.1} parent=11 // pred_check
          %p1514 = pneg %p694
        $region106: #{perciever_encoder_forward.1} parent=11 // pred_check_branch
          %1516 = sbr.rel (%p1514) target = $region108
        $region107: #{perciever_encoder_forward.1} parent=11 // pred_region
          %1518 = vsyncadd [#allocation27], 0
          %s1519 = sshll.u32 %s51, 4
          %s1520 = int_to_ptr.hbm [resolvable:$true] %s1519
          %s1521 = sshll.u32 [#allocation26], 4
          %s1522 = int_to_ptr.vmem [resolvable:$true] %s1521
          %1527 = dma.hbm_to_vmem [thread:$0]  %s1520, 512, %s1522, [#allocation27], 128, 128, 8
        $region108: #{perciever_encoder_forward.1} parent=11 // pred_fallthru
          _
        // Predicated region
        $region109: #{perciever_encoder_forward.1} parent=11 // pred_check
          %p1528 = pneg %p715
        $region110: #{perciever_encoder_forward.1} parent=11 // pred_check_branch
          %1530 = sbr.rel (%p1528) target = $region112
        $region111: #{perciever_encoder_forward.1} parent=11 // pred_region
          %1532 = vsyncadd [#allocation27], 0
          %s1534 = sshll.u32 %s53, 4
          %s1535 = int_to_ptr.hbm [resolvable:$true] %s1534
          %s1536 = sshll.u32 [#allocation28], 4
          %s1537 = int_to_ptr.vmem [resolvable:$true] %s1536
          %1539 = dma.hbm_to_vmem [thread:$0]  %s1535, 16, %s1537, [#allocation27]
        $region112: #{perciever_encoder_forward.1} parent=11 // pred_fallthru
          _
        // Predicated region
        $region113: #{perciever_encoder_forward.1} parent=11 // pred_check
          %p1540 = pneg %p736
        $region114: #{perciever_encoder_forward.1} parent=11 // pred_check_branch
          %1542 = sbr.rel (%p1540) target = $region116
        $region115: #{perciever_encoder_forward.1} parent=11 // pred_region
          %1544 = vsyncadd [#allocation30], 0
          %s1545 = sshll.u32 %s55, 4
          %s1546 = int_to_ptr.hbm [resolvable:$true] %s1545
          %s1547 = sshll.u32 [#allocation29], 4
          %s1548 = int_to_ptr.vmem [resolvable:$true] %s1547
          %1553 = dma.hbm_to_vmem [thread:$0]  %s1546, 512, %s1548, [#allocation30], 128, 128, 8
        $region116: #{perciever_encoder_forward.1} parent=11 // pred_fallthru
          _
        // Predicated region
        $region117: #{perciever_encoder_forward.1} parent=11 // pred_check
          %p1554 = pneg %p757
        $region118: #{perciever_encoder_forward.1} parent=11 // pred_check_branch
          %1556 = sbr.rel (%p1554) target = $region120
        $region119: #{perciever_encoder_forward.1} parent=11 // pred_region
          %1558 = vsyncadd [#allocation30], 0
          %s1560 = sshll.u32 %s57, 4
          %s1561 = int_to_ptr.hbm [resolvable:$true] %s1560
          %s1562 = sshll.u32 [#allocation31], 4
          %s1563 = int_to_ptr.vmem [resolvable:$true] %s1562
          %1565 = dma.hbm_to_vmem [thread:$0]  %s1561, 16, %s1563, [#allocation30]
        $region120: #{perciever_encoder_forward.1} parent=11 // pred_fallthru
          _
        // Predicated region
        $region121: #{perciever_encoder_forward.1} parent=11 // pred_check
          %p1566 = pneg %p778
        $region122: #{perciever_encoder_forward.1} parent=11 // pred_check_branch
          %1568 = sbr.rel (%p1566) target = $region124
        $region123: #{perciever_encoder_forward.1} parent=11 // pred_region
          %1570 = vsyncadd [#allocation33], 0
          %s1571 = sshll.u32 %s59, 4
          %s1572 = int_to_ptr.hbm [resolvable:$true] %s1571
          %s1573 = sshll.u32 [#allocation32], 4
          %s1574 = int_to_ptr.vmem [resolvable:$true] %s1573
          %1579 = dma.hbm_to_vmem [thread:$0]  %s1572, 512, %s1574, [#allocation33], 128, 128, 8
        $region124: #{perciever_encoder_forward.1} parent=11 // pred_fallthru
          _
        // Predicated region
        $region125: #{perciever_encoder_forward.1} parent=11 // pred_check
          %p1580 = pneg %p799
        $region126: #{perciever_encoder_forward.1} parent=11 // pred_check_branch
          %1582 = sbr.rel (%p1580) target = $region128
        $region127: #{perciever_encoder_forward.1} parent=11 // pred_region
          %1584 = vsyncadd [#allocation33], 0
          %s1586 = sshll.u32 %s61, 4
          %s1587 = int_to_ptr.hbm [resolvable:$true] %s1586
          %s1588 = sshll.u32 [#allocation34], 4
          %s1589 = int_to_ptr.vmem [resolvable:$true] %s1588
          %1591 = dma.hbm_to_vmem [thread:$0]  %s1587, 16, %s1589, [#allocation33]
        $region128: #{perciever_encoder_forward.1} parent=11 // pred_fallthru
          _
        // Predicated region
        $region129: #{perciever_encoder_forward.1} parent=11 // pred_check
          %p1592 = pneg %p820
        $region130: #{perciever_encoder_forward.1} parent=11 // pred_check_branch
          %1594 = sbr.rel (%p1592) target = $region132
        $region131: #{perciever_encoder_forward.1} parent=11 // pred_region
          %1596 = vsyncadd [#allocation36], 0
          %s1597 = sshll.u32 %s63, 4
          %s1598 = int_to_ptr.hbm [resolvable:$true] %s1597
          %s1599 = sshll.u32 [#allocation35], 4
          %s1600 = int_to_ptr.vmem [resolvable:$true] %s1599
          %1605 = dma.hbm_to_vmem [thread:$0]  %s1598, 512, %s1600, [#allocation36], 128, 128, 8
        $region132: #{perciever_encoder_forward.1} parent=11 // pred_fallthru
          _
        // Predicated region
        $region133: #{perciever_encoder_forward.1} parent=11 // pred_check
          %p1606 = pneg %p841
        $region134: #{perciever_encoder_forward.1} parent=11 // pred_check_branch
          %1608 = sbr.rel (%p1606) target = $region136
        $region135: #{perciever_encoder_forward.1} parent=11 // pred_region
          %1610 = vsyncadd [#allocation36], 0
          %s1612 = sshll.u32 %s65, 4
          %s1613 = int_to_ptr.hbm [resolvable:$true] %s1612
          %s1614 = sshll.u32 [#allocation37], 4
          %s1615 = int_to_ptr.vmem [resolvable:$true] %s1614
          %1617 = dma.hbm_to_vmem [thread:$0]  %s1613, 16, %s1615, [#allocation36]
        $region136: #{perciever_encoder_forward.1} parent=11 // pred_fallthru
          _
        // Predicated region
        $region137: #{perciever_encoder_forward.1} parent=11 // pred_check
          %p1618 = pneg %p862
        $region138: #{perciever_encoder_forward.1} parent=11 // pred_check_branch
          %1620 = sbr.rel (%p1618) target = $region140
        $region139: #{perciever_encoder_forward.1} parent=11 // pred_region
          %1622 = vsyncadd [#allocation39], 0
          %s1623 = sshll.u32 %s67, 4
          %s1624 = int_to_ptr.hbm [resolvable:$true] %s1623
          %s1625 = sshll.u32 [#allocation38], 4
          %s1626 = int_to_ptr.vmem [resolvable:$true] %s1625
          %1631 = dma.hbm_to_vmem [thread:$0]  %s1624, 512, %s1626, [#allocation39], 128, 128, 8
        $region140: #{perciever_encoder_forward.1} parent=11 // pred_fallthru
          _
        // Predicated region
        $region141: #{perciever_encoder_forward.1} parent=11 // pred_check
          %p1632 = pneg %p883
        $region142: #{perciever_encoder_forward.1} parent=11 // pred_check_branch
          %1634 = sbr.rel (%p1632) target = $region144
        $region143: #{perciever_encoder_forward.1} parent=11 // pred_region
          %1636 = vsyncadd [#allocation39], 0
          %s1638 = sshll.u32 %s69, 4
          %s1639 = int_to_ptr.hbm [resolvable:$true] %s1638
          %s1640 = sshll.u32 [#allocation40], 4
          %s1641 = int_to_ptr.vmem [resolvable:$true] %s1640
          %1643 = dma.hbm_to_vmem [thread:$0]  %s1639, 16, %s1641, [#allocation39]
        $region144: #{perciever_encoder_forward.1} parent=11 // pred_fallthru
          _
        // Predicated region
        $region145: #{perciever_encoder_forward.1} parent=11 // pred_check
          %p1644 = pneg %p904
        $region146: #{perciever_encoder_forward.1} parent=11 // pred_check_branch
          %1646 = sbr.rel (%p1644) target = $region148
        $region147: #{perciever_encoder_forward.1} parent=11 // pred_region
          %1648 = vsyncadd [#allocation42], 0
          %s1649 = sshll.u32 %s71, 4
          %s1650 = int_to_ptr.hbm [resolvable:$true] %s1649
          %s1651 = sshll.u32 [#allocation41], 4
          %s1652 = int_to_ptr.vmem [resolvable:$true] %s1651
          %1657 = dma.hbm_to_vmem [thread:$0]  %s1650, 512, %s1652, [#allocation42], 128, 128, 8
        $region148: #{perciever_encoder_forward.1} parent=11 // pred_fallthru
          _
        // Predicated region
        $region149: #{perciever_encoder_forward.1} parent=11 // pred_check
          %p1658 = pneg %p925
        $region150: #{perciever_encoder_forward.1} parent=11 // pred_check_branch
          %1660 = sbr.rel (%p1658) target = $region152
        $region151: #{perciever_encoder_forward.1} parent=11 // pred_region
          %1662 = vsyncadd [#allocation42], 0
          %s1664 = sshll.u32 %s73, 4
          %s1665 = int_to_ptr.hbm [resolvable:$true] %s1664
          %s1666 = sshll.u32 [#allocation43], 4
          %s1667 = int_to_ptr.vmem [resolvable:$true] %s1666
          %1669 = dma.hbm_to_vmem [thread:$0]  %s1665, 16, %s1667, [#allocation42]
        $region152: #{perciever_encoder_forward.1} parent=11 // pred_fallthru
          _
        // Predicated region
        $region153: #{perciever_encoder_forward.1} parent=11 // pred_check
          %p1670 = pneg %p946
        $region154: #{perciever_encoder_forward.1} parent=11 // pred_check_branch
          %1672 = sbr.rel (%p1670) target = $region156
        $region155: #{perciever_encoder_forward.1} parent=11 // pred_region
          %1674 = vsyncadd [#allocation45], 0
          %s1676 = sshll.u32 %s75, 4
          %s1677 = int_to_ptr.hbm [resolvable:$true] %s1676
          %s1678 = sshll.u32 [#allocation44], 4
          %s1679 = int_to_ptr.vmem [resolvable:$true] %s1678
          %1681 = dma.hbm_to_vmem [thread:$0]  %s1677, 16, %s1679, [#allocation45]
        $region156: #{perciever_encoder_forward.1} parent=11 // pred_fallthru
          _
        // Predicated region
        $region157: #{perciever_encoder_forward.1} parent=11 // pred_check
          %p1682 = pneg %p967
        $region158: #{perciever_encoder_forward.1} parent=11 // pred_check_branch
          %1684 = sbr.rel (%p1682) target = $region160
        $region159: #{perciever_encoder_forward.1} parent=11 // pred_region
          %1686 = vsyncadd [#allocation45], 0
          %s1688 = sshll.u32 %s77, 4
          %s1689 = int_to_ptr.hbm [resolvable:$true] %s1688
          %s1690 = sshll.u32 [#allocation46], 4
          %s1691 = int_to_ptr.vmem [resolvable:$true] %s1690
          %1693 = dma.hbm_to_vmem [thread:$0]  %s1689, 16, %s1691, [#allocation45]
        $region160: #{perciever_encoder_forward.1} parent=11 // pred_fallthru
          _
        // Predicated region
        $region161: #{perciever_encoder_forward.1} parent=11 // pred_check
          %p1694 = pneg %p988
        $region162: #{perciever_encoder_forward.1} parent=11 // pred_check_branch
          %1696 = sbr.rel (%p1694) target = $region164
        $region163: #{perciever_encoder_forward.1} parent=11 // pred_region
          %1698 = vsyncadd [#allocation48], 0
          %s1700 = sshll.u32 %s79, 4
          %s1701 = int_to_ptr.hbm [resolvable:$true] %s1700
          %s1702 = sshll.u32 [#allocation47], 4
          %s1703 = int_to_ptr.vmem [resolvable:$true] %s1702
          %1705 = dma.hbm_to_vmem [thread:$0]  %s1701, 16, %s1703, [#allocation48]
        $region164: #{perciever_encoder_forward.1} parent=11 // pred_fallthru
          _
        // Predicated region
        $region165: #{perciever_encoder_forward.1} parent=11 // pred_check
          %p1706 = pneg %p1009
        $region166: #{perciever_encoder_forward.1} parent=11 // pred_check_branch
          %1708 = sbr.rel (%p1706) target = $region168
        $region167: #{perciever_encoder_forward.1} parent=11 // pred_region
          %1710 = vsyncadd [#allocation48], 0
          %s1712 = sshll.u32 %s81, 4
          %s1713 = int_to_ptr.hbm [resolvable:$true] %s1712
          %s1714 = sshll.u32 [#allocation49], 4
          %s1715 = int_to_ptr.vmem [resolvable:$true] %s1714
          %1717 = dma.hbm_to_vmem [thread:$0]  %s1713, 16, %s1715, [#allocation48]
        $region168: #{perciever_encoder_forward.1} parent=11 // pred_fallthru
          _
        // Predicated region
        $region169: #{perciever_encoder_forward.1} parent=11 // pred_check
          %p1718 = pneg %p1030
        $region170: #{perciever_encoder_forward.1} parent=11 // pred_check_branch
          %1720 = sbr.rel (%p1718) target = $region172
        $region171: #{perciever_encoder_forward.1} parent=11 // pred_region
          %1722 = vsyncadd [#allocation51], 0
          %s1723 = sshll.u32 %s83, 4
          %s1724 = int_to_ptr.hbm [resolvable:$true] %s1723
          %s1725 = sshll.u32 [#allocation50], 4
          %s1726 = int_to_ptr.vmem [resolvable:$true] %s1725
          %1731 = dma.hbm_to_vmem [thread:$0]  %s1724, 512, %s1726, [#allocation51], 128, 128, 8
        $region172: #{perciever_encoder_forward.1} parent=11 // pred_fallthru
          _
        // Predicated region
        $region173: #{perciever_encoder_forward.1} parent=11 // pred_check
          %p1732 = pneg %p1051
        $region174: #{perciever_encoder_forward.1} parent=11 // pred_check_branch
          %1734 = sbr.rel (%p1732) target = $region176
        $region175: #{perciever_encoder_forward.1} parent=11 // pred_region
          %1736 = vsyncadd [#allocation51], 0
          %s1738 = sshll.u32 %s85, 4
          %s1739 = int_to_ptr.hbm [resolvable:$true] %s1738
          %s1740 = sshll.u32 [#allocation52], 4
          %s1741 = int_to_ptr.vmem [resolvable:$true] %s1740
          %1743 = dma.hbm_to_vmem [thread:$0]  %s1739, 16, %s1741, [#allocation51]
        $region176: #{perciever_encoder_forward.1} parent=11 // pred_fallthru
          _
        // Predicated region
        $region177: #{perciever_encoder_forward.1} parent=11 // pred_check
          %p1744 = pneg %p1072
        $region178: #{perciever_encoder_forward.1} parent=11 // pred_check_branch
          %1746 = sbr.rel (%p1744) target = $region180
        $region179: #{perciever_encoder_forward.1} parent=11 // pred_region
          %1748 = vsyncadd [#allocation54], 0
          %s1749 = sshll.u32 %s87, 4
          %s1750 = int_to_ptr.hbm [resolvable:$true] %s1749
          %s1751 = sshll.u32 [#allocation53], 4
          %s1752 = int_to_ptr.vmem [resolvable:$true] %s1751
          %1757 = dma.hbm_to_vmem [thread:$0]  %s1750, 512, %s1752, [#allocation54], 128, 128, 8
        $region180: #{perciever_encoder_forward.1} parent=11 // pred_fallthru
          _
        // Predicated region
        $region181: #{perciever_encoder_forward.1} parent=11 // pred_check
          %p1758 = pneg %p1093
        $region182: #{perciever_encoder_forward.1} parent=11 // pred_check_branch
          %1760 = sbr.rel (%p1758) target = $region184
        $region183: #{perciever_encoder_forward.1} parent=11 // pred_region
          %1762 = vsyncadd [#allocation54], 0
          %s1764 = sshll.u32 %s89, 4
          %s1765 = int_to_ptr.hbm [resolvable:$true] %s1764
          %s1766 = sshll.u32 [#allocation55], 4
          %s1767 = int_to_ptr.vmem [resolvable:$true] %s1766
          %1769 = dma.hbm_to_vmem [thread:$0]  %s1765, 16, %s1767, [#allocation54]
        $region184: #{perciever_encoder_forward.1} parent=11 // pred_fallthru
          _
        // Predicated region
        $region185: #{perciever_encoder_forward.1} parent=11 // pred_check
          %p1770 = pneg %p1114
        $region186: #{perciever_encoder_forward.1} parent=11 // pred_check_branch
          %1772 = sbr.rel (%p1770) target = $region188
        $region187: #{perciever_encoder_forward.1} parent=11 // pred_region
          %1774 = vsyncadd [#allocation57], 0
          %s1775 = sshll.u32 %s91, 4
          %s1776 = int_to_ptr.hbm [resolvable:$true] %s1775
          %s1777 = sshll.u32 [#allocation56], 4
          %s1778 = int_to_ptr.vmem [resolvable:$true] %s1777
          %1783 = dma.hbm_to_vmem [thread:$0]  %s1776, 512, %s1778, [#allocation57], 128, 128, 8
        $region188: #{perciever_encoder_forward.1} parent=11 // pred_fallthru
          _
        // Predicated region
        $region189: #{perciever_encoder_forward.1} parent=11 // pred_check
          %p1784 = pneg %p1135
        $region190: #{perciever_encoder_forward.1} parent=11 // pred_check_branch
          %1786 = sbr.rel (%p1784) target = $region192
        $region191: #{perciever_encoder_forward.1} parent=11 // pred_region
          %1788 = vsyncadd [#allocation57], 0
          %s1790 = sshll.u32 %s93, 4
          %s1791 = int_to_ptr.hbm [resolvable:$true] %s1790
          %s1792 = sshll.u32 [#allocation58], 4
          %s1793 = int_to_ptr.vmem [resolvable:$true] %s1792
          %1795 = dma.hbm_to_vmem [thread:$0]  %s1791, 16, %s1793, [#allocation57]
        $region192: #{perciever_encoder_forward.1} parent=11 // pred_fallthru
          _
        // Predicated region
        $region193: #{perciever_encoder_forward.1} parent=11 // pred_check
          %p1796 = pneg %p1156
        $region194: #{perciever_encoder_forward.1} parent=11 // pred_check_branch
          %1798 = sbr.rel (%p1796) target = $region196
        $region195: #{perciever_encoder_forward.1} parent=11 // pred_region
          %1800 = vsyncadd [#allocation60], 0
          %s1801 = sshll.u32 %s95, 4
          %s1802 = int_to_ptr.hbm [resolvable:$true] %s1801
          %s1803 = sshll.u32 [#allocation59], 4
          %s1804 = int_to_ptr.vmem [resolvable:$true] %s1803
          %1809 = dma.hbm_to_vmem [thread:$0]  %s1802, 512, %s1804, [#allocation60], 128, 128, 8
        $region196: #{perciever_encoder_forward.1} parent=11 // pred_fallthru
          _
        // Predicated region
        $region197: #{perciever_encoder_forward.1} parent=11 // pred_check
          %p1810 = pneg %p1177
        $region198: #{perciever_encoder_forward.1} parent=11 // pred_check_branch
          %1812 = sbr.rel (%p1810) target = $region200
        $region199: #{perciever_encoder_forward.1} parent=11 // pred_region
          %1814 = vsyncadd [#allocation60], 0
          %s1816 = sshll.u32 %s97, 4
          %s1817 = int_to_ptr.hbm [resolvable:$true] %s1816
          %s1818 = sshll.u32 [#allocation61], 4
          %s1819 = int_to_ptr.vmem [resolvable:$true] %s1818
          %1821 = dma.hbm_to_vmem [thread:$0]  %s1817, 16, %s1819, [#allocation60]
        $region200: #{perciever_encoder_forward.1} parent=11 // pred_fallthru
          _
        // Predicated region
        $region201: #{perciever_encoder_forward.1} parent=11 // pred_check
          %p1822 = pneg %p1198
        $region202: #{perciever_encoder_forward.1} parent=11 // pred_check_branch
          %1824 = sbr.rel (%p1822) target = $region204
        $region203: #{perciever_encoder_forward.1} parent=11 // pred_region
          %1826 = vsyncadd [#allocation63], 0
          %s1827 = sshll.u32 %s99, 4
          %s1828 = int_to_ptr.hbm [resolvable:$true] %s1827
          %s1829 = sshll.u32 [#allocation62], 4
          %s1830 = int_to_ptr.vmem [resolvable:$true] %s1829
          %1835 = dma.hbm_to_vmem [thread:$0]  %s1828, 512, %s1830, [#allocation63], 128, 128, 8
        $region204: #{perciever_encoder_forward.1} parent=11 // pred_fallthru
          _
        // Predicated region
        $region205: #{perciever_encoder_forward.1} parent=11 // pred_check
          %p1836 = pneg %p1219
        $region206: #{perciever_encoder_forward.1} parent=11 // pred_check_branch
          %1838 = sbr.rel (%p1836) target = $region208
        $region207: #{perciever_encoder_forward.1} parent=11 // pred_region
          %1840 = vsyncadd [#allocation63], 0
          %s1842 = sshll.u32 %s101, 4
          %s1843 = int_to_ptr.hbm [resolvable:$true] %s1842
          %s1844 = sshll.u32 [#allocation64], 4
          %s1845 = int_to_ptr.vmem [resolvable:$true] %s1844
          %1847 = dma.hbm_to_vmem [thread:$0]  %s1843, 16, %s1845, [#allocation63]
        $region208: #{perciever_encoder_forward.1} parent=11 // pred_fallthru
          _
        // Predicated region
        $region209: #{perciever_encoder_forward.1} parent=11 // pred_check
          %p1848 = pneg %p1240
        $region210: #{perciever_encoder_forward.1} parent=11 // pred_check_branch
          %1850 = sbr.rel (%p1848) target = $region212
        $region211: #{perciever_encoder_forward.1} parent=11 // pred_region
          %1852 = vsyncadd [#allocation66], 0
          %s1853 = sshll.u32 %s103, 4
          %s1854 = int_to_ptr.hbm [resolvable:$true] %s1853
          %s1855 = sshll.u32 [#allocation65], 4
          %s1856 = int_to_ptr.vmem [resolvable:$true] %s1855
          %1861 = dma.hbm_to_vmem [thread:$0]  %s1854, 512, %s1856, [#allocation66], 128, 128, 8
        $region212: #{perciever_encoder_forward.1} parent=11 // pred_fallthru
          _
        // Predicated region
        $region213: #{perciever_encoder_forward.1} parent=11 // pred_check
          %p1862 = pneg %p1261
        $region214: #{perciever_encoder_forward.1} parent=11 // pred_check_branch
          %1864 = sbr.rel (%p1862) target = $region216
        $region215: #{perciever_encoder_forward.1} parent=11 // pred_region
          %1866 = vsyncadd [#allocation66], 0
          %s1868 = sshll.u32 %s105, 4
          %s1869 = int_to_ptr.hbm [resolvable:$true] %s1868
          %s1870 = sshll.u32 [#allocation67], 4
          %s1871 = int_to_ptr.vmem [resolvable:$true] %s1870
          %1873 = dma.hbm_to_vmem [thread:$0]  %s1869, 16, %s1871, [#allocation66]
        $region216: #{perciever_encoder_forward.1} parent=11 // pred_fallthru
          _
      $region12: #{perciever_encoder_forward.1} parent=5 // pred_fallthru
        _
      %p1874 = scmp.lt.s32.totalorder %s138, 2
      // Predicated region
      $region217: #{perciever_encoder_forward.1} parent=5 // pred_check
        %p1875 = pneg %p1874
      $region218: #{perciever_encoder_forward.1} parent=5 // pred_check_branch
        %1877 = sbr.rel (%p1875) target = $region220
      $region219: #{perciever_encoder_forward.1} parent=5 // pred_region
        // Predicated region
        $region221: #{perciever_encoder_forward.1} parent=219 // pred_check
          %p1878 = pneg %p158
        $region222: #{perciever_encoder_forward.1} parent=219 // pred_check_branch
          %1880 = sbr.rel (%p1878) target = $region224
        $region223: #{perciever_encoder_forward.1} parent=219 // pred_region
          %p1881 = scmp.lt.s32.totalorder %s138, 1
          %s1882 = scalar_select %p1881, %s138, 1
          %s1883 = smul.addr %s1882, 4
          %s1884 = smul.addr %s1883, 8
          %s1885 = scalar_lea.vmem %s1, %s1884
        $region224: #{perciever_encoder_forward.1} parent=219 // pred_fallthru
          _
        // Predicated region
        $region225: #{perciever_encoder_forward.1} parent=219 // pred_check
          %p1886 = pneg %p184
        $region226: #{perciever_encoder_forward.1} parent=219 // pred_check_branch
          %1888 = sbr.rel (%p1886) target = $region228
        $region227: #{perciever_encoder_forward.1} parent=219 // pred_region
          %p1889 = scmp.lt.s32.totalorder %s138, 1
          %s1890 = scalar_select %p1889, %s138, 1
          %s1891 = scalar_lea.vmem %s3, %s1890
        $region228: #{perciever_encoder_forward.1} parent=219 // pred_fallthru
          _
      $region220: #{perciever_encoder_forward.1} parent=5 // pred_fallthru
        _
      %p1892 = scmp.le.s32.totalorder 1, %s138
      %p1893 = scmp.lt.s32.totalorder %s138, 3
      %p1894 = pnand %p1892, %p1893
      %p1895 = pneg %p1894
      // Predicated region
      $region229: #{perciever_encoder_forward.1} parent=5 // pred_check
        _
      $region230: #{perciever_encoder_forward.1} parent=5 // pred_check_branch
        %1897 = sbr.rel (%p1894) target = $region232
      $region231: #{perciever_encoder_forward.1} parent=5 // pred_region
        %s1898 = ssub.s32 %s138, 1
        // Predicated region
        $region233: #{perciever_encoder_forward.1} parent=231 // pred_check
          %p1899 = pneg %p211
        $region234: #{perciever_encoder_forward.1} parent=231 // pred_check_branch
          %1901 = sbr.rel (%p1899) target = $region236
        $region235: #{perciever_encoder_forward.1} parent=231 // pred_region
          %1903 = dma.done [#allocation3], 256
        $region236: #{perciever_encoder_forward.1} parent=231 // pred_fallthru
          _
        // Predicated region
        $region237: #{perciever_encoder_forward.1} parent=231 // pred_check
          %p1904 = pneg %p400
        $region238: #{perciever_encoder_forward.1} parent=231 // pred_check_branch
          %1906 = sbr.rel (%p1904) target = $region240
        $region239: #{perciever_encoder_forward.1} parent=231 // pred_region
          %1908 = dma.done [#allocation6], 128
        $region240: #{perciever_encoder_forward.1} parent=231 // pred_fallthru
          _
        // Predicated region
        $region241: #{perciever_encoder_forward.1} parent=231 // pred_check
          %p1909 = pneg %p421
        $region242: #{perciever_encoder_forward.1} parent=231 // pred_check_branch
          %1911 = sbr.rel (%p1909) target = $region244
        $region243: #{perciever_encoder_forward.1} parent=231 // pred_region
          %1913 = dma.done [#allocation6], 16
        $region244: #{perciever_encoder_forward.1} parent=231 // pred_fallthru
          _
        // Predicated region
        $region245: #{perciever_encoder_forward.1} parent=231 // pred_check
          %p1914 = pneg %p442
        $region246: #{perciever_encoder_forward.1} parent=231 // pred_check_branch
          %1916 = sbr.rel (%p1914) target = $region248
        $region247: #{perciever_encoder_forward.1} parent=231 // pred_region
          %1918 = dma.done [#allocation9], 128
        $region248: #{perciever_encoder_forward.1} parent=231 // pred_fallthru
          _
        // Predicated region
        $region249: #{perciever_encoder_forward.1} parent=231 // pred_check
          %p1919 = pneg %p463
        $region250: #{perciever_encoder_forward.1} parent=231 // pred_check_branch
          %1921 = sbr.rel (%p1919) target = $region252
        $region251: #{perciever_encoder_forward.1} parent=231 // pred_region
          %1923 = dma.done [#allocation9], 16
        $region252: #{perciever_encoder_forward.1} parent=231 // pred_fallthru
          _
        // Predicated region
        $region253: #{perciever_encoder_forward.1} parent=231 // pred_check
          %p1924 = pneg %p484
        $region254: #{perciever_encoder_forward.1} parent=231 // pred_check_branch
          %1926 = sbr.rel (%p1924) target = $region256
        $region255: #{perciever_encoder_forward.1} parent=231 // pred_region
          %1928 = dma.done [#allocation12], 512
        $region256: #{perciever_encoder_forward.1} parent=231 // pred_fallthru
          _
        // Predicated region
        $region257: #{perciever_encoder_forward.1} parent=231 // pred_check
          %p1929 = pneg %p505
        $region258: #{perciever_encoder_forward.1} parent=231 // pred_check_branch
          %1931 = sbr.rel (%p1929) target = $region260
        $region259: #{perciever_encoder_forward.1} parent=231 // pred_region
          %1933 = dma.done [#allocation12], 16
        $region260: #{perciever_encoder_forward.1} parent=231 // pred_fallthru
          _
        // Predicated region
        $region261: #{perciever_encoder_forward.1} parent=231 // pred_check
          %p1934 = pneg %p526
        $region262: #{perciever_encoder_forward.1} parent=231 // pred_check_branch
          %1936 = sbr.rel (%p1934) target = $region264
        $region263: #{perciever_encoder_forward.1} parent=231 // pred_region
          %1938 = dma.done [#allocation15], 512
        $region264: #{perciever_encoder_forward.1} parent=231 // pred_fallthru
          _
        // Predicated region
        $region265: #{perciever_encoder_forward.1} parent=231 // pred_check
          %p1939 = pneg %p547
        $region266: #{perciever_encoder_forward.1} parent=231 // pred_check_branch
          %1941 = sbr.rel (%p1939) target = $region268
        $region267: #{perciever_encoder_forward.1} parent=231 // pred_region
          %1943 = dma.done [#allocation15], 16
        $region268: #{perciever_encoder_forward.1} parent=231 // pred_fallthru
          _
        // Predicated region
        $region269: #{perciever_encoder_forward.1} parent=231 // pred_check
          %p1944 = pneg %p568
        $region270: #{perciever_encoder_forward.1} parent=231 // pred_check_branch
          %1946 = sbr.rel (%p1944) target = $region272
        $region271: #{perciever_encoder_forward.1} parent=231 // pred_region
          %1948 = dma.done [#allocation18], 512
        $region272: #{perciever_encoder_forward.1} parent=231 // pred_fallthru
          _
        // Predicated region
        $region273: #{perciever_encoder_forward.1} parent=231 // pred_check
          %p1949 = pneg %p589
        $region274: #{perciever_encoder_forward.1} parent=231 // pred_check_branch
          %1951 = sbr.rel (%p1949) target = $region276
        $region275: #{perciever_encoder_forward.1} parent=231 // pred_region
          %1953 = dma.done [#allocation18], 16
        $region276: #{perciever_encoder_forward.1} parent=231 // pred_fallthru
          _
        // Predicated region
        $region277: #{perciever_encoder_forward.1} parent=231 // pred_check
          %p1954 = pneg %p610
        $region278: #{perciever_encoder_forward.1} parent=231 // pred_check_branch
          %1956 = sbr.rel (%p1954) target = $region280
        $region279: #{perciever_encoder_forward.1} parent=231 // pred_region
          %1958 = dma.done [#allocation21], 16
        $region280: #{perciever_encoder_forward.1} parent=231 // pred_fallthru
          _
        // Predicated region
        $region281: #{perciever_encoder_forward.1} parent=231 // pred_check
          %p1959 = pneg %p631
        $region282: #{perciever_encoder_forward.1} parent=231 // pred_check_branch
          %1961 = sbr.rel (%p1959) target = $region284
        $region283: #{perciever_encoder_forward.1} parent=231 // pred_region
          %1963 = dma.done [#allocation21], 16
        $region284: #{perciever_encoder_forward.1} parent=231 // pred_fallthru
          _
        // Predicated region
        $region285: #{perciever_encoder_forward.1} parent=231 // pred_check
          %p1964 = pneg %p652
        $region286: #{perciever_encoder_forward.1} parent=231 // pred_check_branch
          %1966 = sbr.rel (%p1964) target = $region288
        $region287: #{perciever_encoder_forward.1} parent=231 // pred_region
          %1968 = dma.done [#allocation24], 16
        $region288: #{perciever_encoder_forward.1} parent=231 // pred_fallthru
          _
        // Predicated region
        $region289: #{perciever_encoder_forward.1} parent=231 // pred_check
          %p1969 = pneg %p673
        $region290: #{perciever_encoder_forward.1} parent=231 // pred_check_branch
          %1971 = sbr.rel (%p1969) target = $region292
        $region291: #{perciever_encoder_forward.1} parent=231 // pred_region
          %1973 = dma.done [#allocation24], 16
        $region292: #{perciever_encoder_forward.1} parent=231 // pred_fallthru
          _
        // Predicated region
        $region293: #{perciever_encoder_forward.1} parent=231 // pred_check
          %p1974 = pneg %p694
        $region294: #{perciever_encoder_forward.1} parent=231 // pred_check_branch
          %1976 = sbr.rel (%p1974) target = $region296
        $region295: #{perciever_encoder_forward.1} parent=231 // pred_region
          %1978 = dma.done [#allocation27], 512
        $region296: #{perciever_encoder_forward.1} parent=231 // pred_fallthru
          _
        // Predicated region
        $region297: #{perciever_encoder_forward.1} parent=231 // pred_check
          %p1979 = pneg %p715
        $region298: #{perciever_encoder_forward.1} parent=231 // pred_check_branch
          %1981 = sbr.rel (%p1979) target = $region300
        $region299: #{perciever_encoder_forward.1} parent=231 // pred_region
          %1983 = dma.done [#allocation27], 16
        $region300: #{perciever_encoder_forward.1} parent=231 // pred_fallthru
          _
        // Predicated region
        $region301: #{perciever_encoder_forward.1} parent=231 // pred_check
          %p1984 = pneg %p736
        $region302: #{perciever_encoder_forward.1} parent=231 // pred_check_branch
          %1986 = sbr.rel (%p1984) target = $region304
        $region303: #{perciever_encoder_forward.1} parent=231 // pred_region
          %1988 = dma.done [#allocation30], 512
        $region304: #{perciever_encoder_forward.1} parent=231 // pred_fallthru
          _
        // Predicated region
        $region305: #{perciever_encoder_forward.1} parent=231 // pred_check
          %p1989 = pneg %p757
        $region306: #{perciever_encoder_forward.1} parent=231 // pred_check_branch
          %1991 = sbr.rel (%p1989) target = $region308
        $region307: #{perciever_encoder_forward.1} parent=231 // pred_region
          %1993 = dma.done [#allocation30], 16
        $region308: #{perciever_encoder_forward.1} parent=231 // pred_fallthru
          _
        // Predicated region
        $region309: #{perciever_encoder_forward.1} parent=231 // pred_check
          %p1994 = pneg %p778
        $region310: #{perciever_encoder_forward.1} parent=231 // pred_check_branch
          %1996 = sbr.rel (%p1994) target = $region312
        $region311: #{perciever_encoder_forward.1} parent=231 // pred_region
          %1998 = dma.done [#allocation33], 512
        $region312: #{perciever_encoder_forward.1} parent=231 // pred_fallthru
          _
        // Predicated region
        $region313: #{perciever_encoder_forward.1} parent=231 // pred_check
          %p1999 = pneg %p799
        $region314: #{perciever_encoder_forward.1} parent=231 // pred_check_branch
          %2001 = sbr.rel (%p1999) target = $region316
        $region315: #{perciever_encoder_forward.1} parent=231 // pred_region
          %2003 = dma.done [#allocation33], 16
        $region316: #{perciever_encoder_forward.1} parent=231 // pred_fallthru
          _
        // Predicated region
        $region317: #{perciever_encoder_forward.1} parent=231 // pred_check
          %p2004 = pneg %p820
        $region318: #{perciever_encoder_forward.1} parent=231 // pred_check_branch
          %2006 = sbr.rel (%p2004) target = $region320
        $region319: #{perciever_encoder_forward.1} parent=231 // pred_region
          %2008 = dma.done [#allocation36], 512
        $region320: #{perciever_encoder_forward.1} parent=231 // pred_fallthru
          _
        // Predicated region
        $region321: #{perciever_encoder_forward.1} parent=231 // pred_check
          %p2009 = pneg %p841
        $region322: #{perciever_encoder_forward.1} parent=231 // pred_check_branch
          %2011 = sbr.rel (%p2009) target = $region324
        $region323: #{perciever_encoder_forward.1} parent=231 // pred_region
          %2013 = dma.done [#allocation36], 16
        $region324: #{perciever_encoder_forward.1} parent=231 // pred_fallthru
          _
        // Predicated region
        $region325: #{perciever_encoder_forward.1} parent=231 // pred_check
          %p2014 = pneg %p862
        $region326: #{perciever_encoder_forward.1} parent=231 // pred_check_branch
          %2016 = sbr.rel (%p2014) target = $region328
        $region327: #{perciever_encoder_forward.1} parent=231 // pred_region
          %2018 = dma.done [#allocation39], 512
        $region328: #{perciever_encoder_forward.1} parent=231 // pred_fallthru
          _
        // Predicated region
        $region329: #{perciever_encoder_forward.1} parent=231 // pred_check
          %p2019 = pneg %p883
        $region330: #{perciever_encoder_forward.1} parent=231 // pred_check_branch
          %2021 = sbr.rel (%p2019) target = $region332
        $region331: #{perciever_encoder_forward.1} parent=231 // pred_region
          %2023 = dma.done [#allocation39], 16
        $region332: #{perciever_encoder_forward.1} parent=231 // pred_fallthru
          _
        // Predicated region
        $region333: #{perciever_encoder_forward.1} parent=231 // pred_check
          %p2024 = pneg %p904
        $region334: #{perciever_encoder_forward.1} parent=231 // pred_check_branch
          %2026 = sbr.rel (%p2024) target = $region336
        $region335: #{perciever_encoder_forward.1} parent=231 // pred_region
          %2028 = dma.done [#allocation42], 512
        $region336: #{perciever_encoder_forward.1} parent=231 // pred_fallthru
          _
        // Predicated region
        $region337: #{perciever_encoder_forward.1} parent=231 // pred_check
          %p2029 = pneg %p925
        $region338: #{perciever_encoder_forward.1} parent=231 // pred_check_branch
          %2031 = sbr.rel (%p2029) target = $region340
        $region339: #{perciever_encoder_forward.1} parent=231 // pred_region
          %2033 = dma.done [#allocation42], 16
        $region340: #{perciever_encoder_forward.1} parent=231 // pred_fallthru
          _
        // Predicated region
        $region341: #{perciever_encoder_forward.1} parent=231 // pred_check
          %p2034 = pneg %p946
        $region342: #{perciever_encoder_forward.1} parent=231 // pred_check_branch
          %2036 = sbr.rel (%p2034) target = $region344
        $region343: #{perciever_encoder_forward.1} parent=231 // pred_region
          %2038 = dma.done [#allocation45], 16
        $region344: #{perciever_encoder_forward.1} parent=231 // pred_fallthru
          _
        // Predicated region
        $region345: #{perciever_encoder_forward.1} parent=231 // pred_check
          %p2039 = pneg %p967
        $region346: #{perciever_encoder_forward.1} parent=231 // pred_check_branch
          %2041 = sbr.rel (%p2039) target = $region348
        $region347: #{perciever_encoder_forward.1} parent=231 // pred_region
          %2043 = dma.done [#allocation45], 16
        $region348: #{perciever_encoder_forward.1} parent=231 // pred_fallthru
          _
        // Predicated region
        $region349: #{perciever_encoder_forward.1} parent=231 // pred_check
          %p2044 = pneg %p988
        $region350: #{perciever_encoder_forward.1} parent=231 // pred_check_branch
          %2046 = sbr.rel (%p2044) target = $region352
        $region351: #{perciever_encoder_forward.1} parent=231 // pred_region
          %2048 = dma.done [#allocation48], 16
        $region352: #{perciever_encoder_forward.1} parent=231 // pred_fallthru
          _
        // Predicated region
        $region353: #{perciever_encoder_forward.1} parent=231 // pred_check
          %p2049 = pneg %p1009
        $region354: #{perciever_encoder_forward.1} parent=231 // pred_check_branch
          %2051 = sbr.rel (%p2049) target = $region356
        $region355: #{perciever_encoder_forward.1} parent=231 // pred_region
          %2053 = dma.done [#allocation48], 16
        $region356: #{perciever_encoder_forward.1} parent=231 // pred_fallthru
          _
        // Predicated region
        $region357: #{perciever_encoder_forward.1} parent=231 // pred_check
          %p2054 = pneg %p1030
        $region358: #{perciever_encoder_forward.1} parent=231 // pred_check_branch
          %2056 = sbr.rel (%p2054) target = $region360
        $region359: #{perciever_encoder_forward.1} parent=231 // pred_region
          %2058 = dma.done [#allocation51], 512
        $region360: #{perciever_encoder_forward.1} parent=231 // pred_fallthru
          _
        // Predicated region
        $region361: #{perciever_encoder_forward.1} parent=231 // pred_check
          %p2059 = pneg %p1051
        $region362: #{perciever_encoder_forward.1} parent=231 // pred_check_branch
          %2061 = sbr.rel (%p2059) target = $region364
        $region363: #{perciever_encoder_forward.1} parent=231 // pred_region
          %2063 = dma.done [#allocation51], 16
        $region364: #{perciever_encoder_forward.1} parent=231 // pred_fallthru
          _
        // Predicated region
        $region365: #{perciever_encoder_forward.1} parent=231 // pred_check
          %p2064 = pneg %p1072
        $region366: #{perciever_encoder_forward.1} parent=231 // pred_check_branch
          %2066 = sbr.rel (%p2064) target = $region368
        $region367: #{perciever_encoder_forward.1} parent=231 // pred_region
          %2068 = dma.done [#allocation54], 512
        $region368: #{perciever_encoder_forward.1} parent=231 // pred_fallthru
          _
        // Predicated region
        $region369: #{perciever_encoder_forward.1} parent=231 // pred_check
          %p2069 = pneg %p1093
        $region370: #{perciever_encoder_forward.1} parent=231 // pred_check_branch
          %2071 = sbr.rel (%p2069) target = $region372
        $region371: #{perciever_encoder_forward.1} parent=231 // pred_region
          %2073 = dma.done [#allocation54], 16
        $region372: #{perciever_encoder_forward.1} parent=231 // pred_fallthru
          _
        // Predicated region
        $region373: #{perciever_encoder_forward.1} parent=231 // pred_check
          %p2074 = pneg %p1114
        $region374: #{perciever_encoder_forward.1} parent=231 // pred_check_branch
          %2076 = sbr.rel (%p2074) target = $region376
        $region375: #{perciever_encoder_forward.1} parent=231 // pred_region
          %2078 = dma.done [#allocation57], 512
        $region376: #{perciever_encoder_forward.1} parent=231 // pred_fallthru
          _
        // Predicated region
        $region377: #{perciever_encoder_forward.1} parent=231 // pred_check
          %p2079 = pneg %p1135
        $region378: #{perciever_encoder_forward.1} parent=231 // pred_check_branch
          %2081 = sbr.rel (%p2079) target = $region380
        $region379: #{perciever_encoder_forward.1} parent=231 // pred_region
          %2083 = dma.done [#allocation57], 16
        $region380: #{perciever_encoder_forward.1} parent=231 // pred_fallthru
          _
        // Predicated region
        $region381: #{perciever_encoder_forward.1} parent=231 // pred_check
          %p2084 = pneg %p1156
        $region382: #{perciever_encoder_forward.1} parent=231 // pred_check_branch
          %2086 = sbr.rel (%p2084) target = $region384
        $region383: #{perciever_encoder_forward.1} parent=231 // pred_region
          %2088 = dma.done [#allocation60], 512
        $region384: #{perciever_encoder_forward.1} parent=231 // pred_fallthru
          _
        // Predicated region
        $region385: #{perciever_encoder_forward.1} parent=231 // pred_check
          %p2089 = pneg %p1177
        $region386: #{perciever_encoder_forward.1} parent=231 // pred_check_branch
          %2091 = sbr.rel (%p2089) target = $region388
        $region387: #{perciever_encoder_forward.1} parent=231 // pred_region
          %2093 = dma.done [#allocation60], 16
        $region388: #{perciever_encoder_forward.1} parent=231 // pred_fallthru
          _
        // Predicated region
        $region389: #{perciever_encoder_forward.1} parent=231 // pred_check
          %p2094 = pneg %p1198
        $region390: #{perciever_encoder_forward.1} parent=231 // pred_check_branch
          %2096 = sbr.rel (%p2094) target = $region392
        $region391: #{perciever_encoder_forward.1} parent=231 // pred_region
          %2098 = dma.done [#allocation63], 512
        $region392: #{perciever_encoder_forward.1} parent=231 // pred_fallthru
          _
        // Predicated region
        $region393: #{perciever_encoder_forward.1} parent=231 // pred_check
          %p2099 = pneg %p1219
        $region394: #{perciever_encoder_forward.1} parent=231 // pred_check_branch
          %2101 = sbr.rel (%p2099) target = $region396
        $region395: #{perciever_encoder_forward.1} parent=231 // pred_region
          %2103 = dma.done [#allocation63], 16
        $region396: #{perciever_encoder_forward.1} parent=231 // pred_fallthru
          _
        // Predicated region
        $region397: #{perciever_encoder_forward.1} parent=231 // pred_check
          %p2104 = pneg %p1240
        $region398: #{perciever_encoder_forward.1} parent=231 // pred_check_branch
          %2106 = sbr.rel (%p2104) target = $region400
        $region399: #{perciever_encoder_forward.1} parent=231 // pred_region
          %2108 = dma.done [#allocation66], 512
        $region400: #{perciever_encoder_forward.1} parent=231 // pred_fallthru
          _
        // Predicated region
        $region401: #{perciever_encoder_forward.1} parent=231 // pred_check
          %p2109 = pneg %p1261
        $region402: #{perciever_encoder_forward.1} parent=231 // pred_check_branch
          %2111 = sbr.rel (%p2109) target = $region404
        $region403: #{perciever_encoder_forward.1} parent=231 // pred_region
          %2113 = dma.done [#allocation66], 16
        $region404: #{perciever_encoder_forward.1} parent=231 // pred_fallthru
          _
        %p2114 = scmp.lt.s32.totalorder %s143, 1
        %s2115 = scalar_select %p2114, %s143, 1
        %s2116 = smul.addr %s2115, 4
        %s2117 = smul.addr %s2116, 8
        %s2118 = scalar_lea.vmem %s1, %s2117
        %p2119 = pneg %p164
        %p2120 = pneg %p161
        %p2121 = scmp.lt.s32.totalorder %s143, 1
        %s2122 = scalar_select %p2121, %s143, 1
        %s2123 = scalar_lea.vmem %s3, %s2122
        %p2124 = pneg %p190
        %p2125 = pneg %p187
        %p2126 = pneg %p211
        %p2127 = pneg %p208
        %p2128 = pneg %p232
        %p2129 = pneg %p229
        %p2130 = pneg %p253
        %p2131 = pneg %p250
        %p2132 = pneg %p274
        %p2133 = pneg %p271
        %p2134 = pneg %p295
        %p2135 = pneg %p292
        %p2136 = pneg %p316
        %p2137 = pneg %p313
        %p2138 = pneg %p337
        %p2139 = pneg %p334
        %p2140 = pneg %p358
        %p2141 = pneg %p355
        %p2142 = pneg %p379
        %p2143 = pneg %p376
        %p2144 = pneg %p400
        %p2145 = pneg %p397
        %p2146 = pneg %p421
        %p2147 = pneg %p418
        %p2148 = pneg %p442
        %p2149 = pneg %p439
        %p2150 = pneg %p463
        %p2151 = pneg %p460
        %p2152 = pneg %p484
        %p2153 = pneg %p481
        %p2154 = pneg %p505
        %p2155 = pneg %p502
        %p2156 = pneg %p526
        %p2157 = pneg %p523
        %p2158 = pneg %p547
        %p2159 = pneg %p544
        %p2160 = pneg %p568
        %p2161 = pneg %p565
        %p2162 = pneg %p589
        %p2163 = pneg %p586
        %p2164 = pneg %p610
        %p2165 = pneg %p607
        %p2166 = pneg %p631
        %p2167 = pneg %p628
        %p2168 = pneg %p652
        %p2169 = pneg %p649
        %p2170 = pneg %p673
        %p2171 = pneg %p670
        %p2172 = pneg %p694
        %p2173 = pneg %p691
        %p2174 = pneg %p715
        %p2175 = pneg %p712
        %p2176 = pneg %p736
        %p2177 = pneg %p733
        %p2178 = pneg %p757
        %p2179 = pneg %p754
        %p2180 = pneg %p778
        %p2181 = pneg %p775
        %p2182 = pneg %p799
        %p2183 = pneg %p796
        %p2184 = pneg %p820
        %p2185 = pneg %p817
        %p2186 = pneg %p841
        %p2187 = pneg %p838
        %p2188 = pneg %p862
        %p2189 = pneg %p859
        %p2190 = pneg %p883
        %p2191 = pneg %p880
        %p2192 = pneg %p904
        %p2193 = pneg %p901
        %p2194 = pneg %p925
        %p2195 = pneg %p922
        %p2196 = pneg %p946
        %p2197 = pneg %p943
        %p2198 = pneg %p967
        %p2199 = pneg %p964
        %p2200 = pneg %p988
        %p2201 = pneg %p985
        %p2202 = pneg %p1009
        %p2203 = pneg %p1006
        %p2204 = pneg %p1030
        %p2205 = pneg %p1027
        %p2206 = pneg %p1051
        %p2207 = pneg %p1048
        %p2208 = pneg %p1072
        %p2209 = pneg %p1069
        %p2210 = pneg %p1093
        %p2211 = pneg %p1090
        %p2212 = pneg %p1114
        %p2213 = pneg %p1111
        %p2214 = pneg %p1135
        %p2215 = pneg %p1132
        %p2216 = pneg %p1156
        %p2217 = pneg %p1153
        %p2218 = pneg %p1177
        %p2219 = pneg %p1174
        %p2220 = pneg %p1198
        %p2221 = pneg %p1195
        %p2222 = pneg %p1219
        %p2223 = pneg %p1216
        %p2224 = pneg %p1240
        %p2225 = pneg %p1237
        %p2226 = pneg %p1261
        %p2227 = pneg %p1258
        %p2228 = pneg %p1287
        %p2229 = pneg %p1284
        %s2230 = sand.u32 %s1274, 1
        %s2231 = scalar_lea.sflag [#allocation4], %s2230
        %s2232 = sand.u32 %s1274, 1
        %s2233 = smul.addr %s2232, 16
        %s2234 = scalar_lea.vmem [#allocation68], %s2233
        %p2235 = scmp.lt.s32.totalorder %s143, 1
        %s2236 = scalar_select %p2235, %s143, 1
        %s2237 = smul.addr %s2236, 4
        %s2238 = smul.addr %s2237, 8
        %s2239 = scalar_lea.vmem %s1, %s2238
        %p2240 = scmp.lt.s32.totalorder %s143, 1
        %s2241 = scalar_select %p2240, %s143, 1
        %s2242 = scalar_lea.vmem %s3, %s2241
        %v2243 = vld [vmem:[%s2239] sm:$0xff]
        %v2244 = vld [vmem:[%s2239 + $0x8] sm:$0xff]
        %v2245 = vld [vmem:[%s2239 + $0x10] sm:$0xff]
        %v2246 = vld [vmem:[%s2239 + $0x18] sm:$0xff]
        %v2247 = vld [vmem:[%s2242] sm:$0x1]
        %v2248 = vsub.f32 1.0, %v2247
        %v2249 = vmul.f32 %v2248, -3.4028235e+38
        %v2250 = vld [vmem:[#allocation2] sm:$0xff]
        %v2251 = vld [vmem:[#allocation2 + $0x8] sm:$0xff]
        %v2252 = vld [vmem:[%s7] sm:$0x1]
        %v2253 = vld [vmem:[%s9] sm:$0x1]
        %v2254 = vld [vmem:[%s11] sm:$0x1]
        %v2255 = vld [vmem:[%s13] sm:$0x1]
        %v2256 = vld [vmem:[%s15] sm:$0x1]
        %v2257 = vld [vmem:[%s17] sm:$0x1]
        %vm2258 = vcmask 64512
        %v2259 = vsel %vm2258, %v2243, 0.0
        %2260 = vadd.xlane.f32.xlu0 %v2259
        %v2261 = vpop.xlane.xlu0 %2260
        %v2262 = vsel %vm2258, %v2244, 0.0
        %2263 = vadd.xlane.f32.xlu0 %v2262
        %v2264 = vpop.xlane.xlu0 %2263
        %v2265 = vsel %vm2258, %v2245, 0.0
        %2266 = vadd.xlane.f32.xlu0 %v2265
        %v2267 = vpop.xlane.xlu0 %2266
        %v2268 = vsel %vm2258, %v2246, 0.0
        %2269 = vadd.xlane.f32.xlu0 %v2268
        %v2270 = vpop.xlane.xlu0 %2269
        %v2271 = vrcp.pop 8.0
        %v2272 = vmul.f32 8.0, %v2271
        %v2273 = vsub.f32 1.0, %v2272
        %v2274 = vmul.f32 %v2271, %v2273
        %v2275 = vadd.f32 %v2271, %v2274
        %vm2276 = vweird.f32 %v2271
        %v2277 = vsel %vm2276, %v2271, %v2275
        %v2278 = vmul.f32 %v2261, %v2277
        %v2279 = vmul.f32 %v2264, %v2277
        %v2280 = vmul.f32 %v2267, %v2277
        %v2281 = vmul.f32 %v2270, %v2277
        %v2282 = vsub.f32 %v2243, %v2278
        %v2283 = vsub.f32 %v2244, %v2279
        %v2284 = vsub.f32 %v2245, %v2280
        %v2285 = vsub.f32 %v2246, %v2281
        %v2286 = vmul.f32 %v2282, %v2282
        %v2287 = vmul.f32 %v2283, %v2283
        %v2288 = vmul.f32 %v2284, %v2284
        %v2289 = vmul.f32 %v2285, %v2285
        %v2290 = vsel %vm2258, %v2286, 0.0
        %2291 = vadd.xlane.f32.xlu0 %v2290
        %v2292 = vpop.xlane.xlu0 %2291
        %v2293 = vsel %vm2258, %v2287, 0.0
        %2294 = vadd.xlane.f32.xlu0 %v2293
        %v2295 = vpop.xlane.xlu0 %2294
        %v2296 = vsel %vm2258, %v2288, 0.0
        %2297 = vadd.xlane.f32.xlu0 %v2296
        %v2298 = vpop.xlane.xlu0 %2297
        %v2299 = vsel %vm2258, %v2289, 0.0
        %2300 = vadd.xlane.f32.xlu0 %v2299
        %v2301 = vpop.xlane.xlu0 %2300
        %v2302 = vmul.f32 %v2292, %v2277
        %v2303 = vmul.f32 %v2295, %v2277
        %v2304 = vmul.f32 %v2298, %v2277
        %v2305 = vmul.f32 %v2301, %v2277
        %v2306 = vadd.f32 %v2302, 1e-05
        %v2307 = vadd.f32 %v2303, 1e-05
        %v2308 = vadd.f32 %v2304, 1e-05
        %v2309 = vadd.f32 %v2305, 1e-05
        %v2310 = vrsqrt.pop %v2306
        %v2311 = vmul.f32 %v2310, %v2306
        %v2312 = vmul.f32 %v2311, %v2310
        %v2313 = vmul.f32 0.5, %v2312
        %v2314 = vsub.f32 1.5, %v2313
        %v2315 = vmul.f32 %v2310, %v2314
        %vm2316 = vweird.f32 %v2306
        %vm2317 = vweird.f32 %v2310
        %vm2318 = vmor %vm2316, %vm2317
        %v2319 = vsel %vm2318, %v2310, %v2315
        %v2320 = vrsqrt.pop %v2307
        %v2321 = vmul.f32 %v2320, %v2307
        %v2322 = vmul.f32 %v2321, %v2320
        %v2323 = vmul.f32 0.5, %v2322
        %v2324 = vsub.f32 1.5, %v2323
        %v2325 = vmul.f32 %v2320, %v2324
        %vm2326 = vweird.f32 %v2307
        %vm2327 = vweird.f32 %v2320
        %vm2328 = vmor %vm2326, %vm2327
        %v2329 = vsel %vm2328, %v2320, %v2325
        %v2330 = vrsqrt.pop %v2308
        %v2331 = vmul.f32 %v2330, %v2308
        %v2332 = vmul.f32 %v2331, %v2330
        %v2333 = vmul.f32 0.5, %v2332
        %v2334 = vsub.f32 1.5, %v2333
        %v2335 = vmul.f32 %v2330, %v2334
        %vm2336 = vweird.f32 %v2308
        %vm2337 = vweird.f32 %v2330
        %vm2338 = vmor %vm2336, %vm2337
        %v2339 = vsel %vm2338, %v2330, %v2335
        %v2340 = vrsqrt.pop %v2309
        %v2341 = vmul.f32 %v2340, %v2309
        %v2342 = vmul.f32 %v2341, %v2340
        %v2343 = vmul.f32 0.5, %v2342
        %v2344 = vsub.f32 1.5, %v2343
        %v2345 = vmul.f32 %v2340, %v2344
        %vm2346 = vweird.f32 %v2309
        %vm2347 = vweird.f32 %v2340
        %vm2348 = vmor %vm2346, %vm2347
        %v2349 = vsel %vm2348, %v2340, %v2345
        %v2350 = vmul.f32 %v2282, %v2319
        %v2351 = vmul.f32 %v2283, %v2329
        %v2352 = vmul.f32 %v2284, %v2339
        %v2353 = vmul.f32 %v2285, %v2349
        %v2355 = vperm.slane %v2252, 0
        %v2357 = vmul.f32 %v2350, %v2355
        %v2358 = vmul.f32 %v2351, %v2355
        %v2359 = vmul.f32 %v2352, %v2355
        %v2360 = vmul.f32 %v2353, %v2355
        %v2362 = vperm.slane %v2253, 0
        %v2364 = vadd.f32 %v2357, %v2362
        %v2365 = vadd.f32 %v2358, %v2362
        %v2366 = vadd.f32 %v2359, %v2362
        %v2367 = vadd.f32 %v2360, %v2362
        %vm2368 = vcmask 261120
        %v2369 = vsel %vm2368, %v2250, 0.0
        %2370 = vadd.xlane.f32.xlu0 %v2369
        %v2371 = vpop.xlane.xlu0 %2370
        %v2372 = vsel %vm2368, %v2251, 0.0
        %2373 = vadd.xlane.f32.xlu0 %v2372
        %v2374 = vpop.xlane.xlu0 %2373
        %v2375 = vrcp.pop 32.0
        %v2376 = vmul.f32 32.0, %v2375
        %v2377 = vsub.f32 1.0, %v2376
        %v2378 = vmul.f32 %v2375, %v2377
        %v2379 = vadd.f32 %v2375, %v2378
        %vm2380 = vweird.f32 %v2375
        %v2381 = vsel %vm2380, %v2375, %v2379
        %v2382 = vmul.f32 %v2371, %v2381
        %v2383 = vmul.f32 %v2374, %v2381
        %v2384 = vsub.f32 %v2250, %v2382
        %v2385 = vsub.f32 %v2251, %v2383
        %v2386 = vmul.f32 %v2384, %v2384
        %v2387 = vmul.f32 %v2385, %v2385
        %v2388 = vsel %vm2368, %v2386, 0.0
        %2389 = vadd.xlane.f32.xlu0 %v2388
        %v2390 = vpop.xlane.xlu0 %2389
        %v2391 = vsel %vm2368, %v2387, 0.0
        %2392 = vadd.xlane.f32.xlu0 %v2391
        %v2393 = vpop.xlane.xlu0 %2392
        %v2394 = vmul.f32 %v2390, %v2381
        %v2395 = vmul.f32 %v2393, %v2381
        %v2396 = vadd.f32 %v2394, 1e-05
        %v2397 = vadd.f32 %v2395, 1e-05
        %v2398 = vrsqrt.pop %v2396
        %v2399 = vmul.f32 %v2398, %v2396
        %v2400 = vmul.f32 %v2399, %v2398
        %v2401 = vmul.f32 0.5, %v2400
        %v2402 = vsub.f32 1.5, %v2401
        %v2403 = vmul.f32 %v2398, %v2402
        %vm2404 = vweird.f32 %v2396
        %vm2405 = vweird.f32 %v2398
        %vm2406 = vmor %vm2404, %vm2405
        %v2407 = vsel %vm2406, %v2398, %v2403
        %v2408 = vrsqrt.pop %v2397
        %v2409 = vmul.f32 %v2408, %v2397
        %v2410 = vmul.f32 %v2409, %v2408
        %v2411 = vmul.f32 0.5, %v2410
        %v2412 = vsub.f32 1.5, %v2411
        %v2413 = vmul.f32 %v2408, %v2412
        %vm2414 = vweird.f32 %v2397
        %vm2415 = vweird.f32 %v2408
        %vm2416 = vmor %vm2414, %vm2415
        %v2417 = vsel %vm2416, %v2408, %v2413
        %v2418 = vmul.f32 %v2384, %v2407
        %v2419 = vmul.f32 %v2385, %v2417
        %v2421 = vperm.slane %v2254, 0
        %v2423 = vmul.f32 %v2418, %v2421
        %v2424 = vmul.f32 %v2419, %v2421
        %v2426 = vperm.slane %v2255, 0
        %v2428 = vadd.f32 %v2423, %v2426
        %v2429 = vadd.f32 %v2424, %v2426
        %v2430 = vld [vmem:[%s19] sm:$0xff]
        %v2431 = vld [vmem:[%s19 + $0x8] sm:$0xff]
        %v2432 = vld [vmem:[%s19 + $0x10] sm:$0xff]
        %v2433 = vld [vmem:[%s19 + $0x18] sm:$0xff]
        %v2434 = vld [vmem:[%s21] sm:$0x1]
        %v2435 = vld [vmem:[#allocation5] sm:$0xff]
        %v2436 = vld [vmem:[#allocation7] sm:$0x1]
        %v2437 = vld [vmem:[#allocation8] sm:$0xff]
        %v2438 = vld [vmem:[#allocation10] sm:$0x1]
        %v2439 = vld [vmem:[#allocation11] sm:$0xff]
        %v2440 = vld [vmem:[#allocation11 + $0x8] sm:$0xff]
        %v2441 = vld [vmem:[#allocation11 + $0x10] sm:$0xff]
        %v2442 = vld [vmem:[#allocation11 + $0x18] sm:$0xff]
        %v2443 = vld [vmem:[#allocation13] sm:$0x1]
        %v2445 = vperm.slane %v2434, 0
        %v2448 = vsel %vm2368, %v2428, 0
        %v2451 = vsel %vm2368, %v2429, 0
        %2453 = vmatpush.msra.mxu0 0.0
        %2454 = vmatpush.msra.mxu0 0.0
        %2455 = vmatpush.msra.mxu0 0.0
        %2456 = vmatpush.msra.mxu0 0.0
        %2457 = vmatpush.msra.mxu0 0.0
        %2458 = vmatpush.msra.mxu0 0.0
        %2459 = vmatpush.msra.mxu0 0.0
        %2460 = vmatpush.msra.mxu0 0.0
        %2461 = vmatpush.msra.mxu0 0.0
        %2462 = vmatpush.msra.mxu0 0.0
        %2463 = vmatpush.msra.mxu0 0.0
        %2464 = vmatpush.msra.mxu0 0.0
        %2465 = vmatpush.msra.mxu0 %v2433
        %2466 = vmatpush.msra.mxu0 %v2432
        %2467 = vmatpush.msra.mxu0 %v2431
        %2468 = vmatpush.msra.mxu0 %v2430
        %2469 = vmatmul.f32.gmra.mxu0 %v2448
        %v2470 = vpop.f32.mrf.mxu0
        %v2471 = vadd.f32 %v2445, %v2470
        %2472 = vmatmul.f32.gmra.mxu0 %v2451
        %v2473 = vpop.f32.mrf.mxu0
        %v2474 = vadd.f32 %v2445, %v2473
        %2475 = vdwg.mxu0
        %v2477 = vperm.slane %v2436, 0
        %v2480 = vsel %vm2258, %v2364, 0
        %v2483 = vsel %vm2258, %v2365, 0
        %v2486 = vsel %vm2258, %v2366, 0
        %v2489 = vsel %vm2258, %v2367, 0
        %2491 = vmatpush.msra.mxu0 0.0
        %2492 = vmatpush.msra.mxu0 0.0
        %2493 = vmatpush.msra.mxu0 0.0
        %2494 = vmatpush.msra.mxu0 0.0
        %2495 = vmatpush.msra.mxu0 0.0
        %2496 = vmatpush.msra.mxu0 0.0
        %2497 = vmatpush.msra.mxu0 0.0
        %2498 = vmatpush.msra.mxu0 0.0
        %2499 = vmatpush.msra.mxu0 0.0
        %2500 = vmatpush.msra.mxu0 0.0
        %2501 = vmatpush.msra.mxu0 0.0
        %2502 = vmatpush.msra.mxu0 0.0
        %2503 = vmatpush.msra.mxu0 0.0
        %2504 = vmatpush.msra.mxu0 0.0
        %2505 = vmatpush.msra.mxu0 0.0
        %2506 = vmatpush.msra.mxu0 %v2435
        %2507 = vmatmul.f32.gmra.mxu0 %v2480
        %v2508 = vpop.f32.mrf.mxu0
        %v2509 = vadd.f32 %v2477, %v2508
        %2510 = vmatmul.f32.gmra.mxu0 %v2483
        %v2511 = vpop.f32.mrf.mxu0
        %v2512 = vadd.f32 %v2477, %v2511
        %2513 = vmatmul.f32.gmra.mxu0 %v2486
        %v2514 = vpop.f32.mrf.mxu0
        %v2515 = vadd.f32 %v2477, %v2514
        %2516 = vmatmul.f32.gmra.mxu0 %v2489
        %v2517 = vpop.f32.mrf.mxu0
        %v2518 = vadd.f32 %v2477, %v2517
        %2519 = vdwg.mxu0
        %v2521 = vperm.slane %v2438, 0
        %2523 = vmatpush.msra.mxu0 0.0
        %2524 = vmatpush.msra.mxu0 0.0
        %2525 = vmatpush.msra.mxu0 0.0
        %2526 = vmatpush.msra.mxu0 0.0
        %2527 = vmatpush.msra.mxu0 0.0
        %2528 = vmatpush.msra.mxu0 0.0
        %2529 = vmatpush.msra.mxu0 0.0
        %2530 = vmatpush.msra.mxu0 0.0
        %2531 = vmatpush.msra.mxu0 0.0
        %2532 = vmatpush.msra.mxu0 0.0
        %2533 = vmatpush.msra.mxu0 0.0
        %2534 = vmatpush.msra.mxu0 0.0
        %2535 = vmatpush.msra.mxu0 0.0
        %2536 = vmatpush.msra.mxu0 0.0
        %2537 = vmatpush.msra.mxu0 0.0
        %2538 = vmatpush.msra.mxu0 %v2437
        %2539 = vmatmul.f32.gmra.mxu0 %v2480
        %v2540 = vpop.f32.mrf.mxu0
        %v2541 = vadd.f32 %v2521, %v2540
        %2542 = vmatmul.f32.gmra.mxu0 %v2483
        %v2543 = vpop.f32.mrf.mxu0
        %v2544 = vadd.f32 %v2521, %v2543
        %2545 = vmatmul.f32.gmra.mxu0 %v2486
        %v2546 = vpop.f32.mrf.mxu0
        %v2547 = vadd.f32 %v2521, %v2546
        %2548 = vmatmul.f32.gmra.mxu0 %v2489
        %v2549 = vpop.f32.mrf.mxu0
        %v2550 = vadd.f32 %v2521, %v2549
        %2551 = vdwg.mxu0
        %v2553 = vsel %vm2368, %v2471, 0
        %v2556 = vsel %vm2368, %v2474, 0
        %v2559 = vsel %vm2368, %v2509, 0
        %v2562 = vsel %vm2368, %v2512, 0
        %v2565 = vsel %vm2368, %v2515, 0
        %v2568 = vsel %vm2368, %v2518, 0
        %2570 = vmatpush.xpose.msra.mxu0 0.0
        %2571 = vmatpush.xpose.msra.mxu0 0.0
        %2572 = vmatpush.xpose.msra.mxu0 0.0
        %2573 = vmatpush.xpose.msra.mxu0 0.0
        %2574 = vmatpush.xpose.msra.mxu0 0.0
        %2575 = vmatpush.xpose.msra.mxu0 0.0
        %2576 = vmatpush.xpose.msra.mxu0 0.0
        %2577 = vmatpush.xpose.msra.mxu0 0.0
        %2578 = vmatpush.xpose.msra.mxu0 0.0
        %2579 = vmatpush.xpose.msra.mxu0 0.0
        %2580 = vmatpush.xpose.msra.mxu0 0.0
        %2581 = vmatpush.xpose.msra.mxu0 0.0
        %2582 = vmatpush.xpose.msra.mxu0 %v2568
        %2583 = vmatpush.xpose.msra.mxu0 %v2565
        %2584 = vmatpush.xpose.msra.mxu0 %v2562
        %2585 = vmatpush.xpose.msra.mxu0 %v2559
        %2586 = vmatmul.f32.gmra.mxu0 %v2553
        %v2587 = vpop.f32.mrf.mxu0
        %v2588 = vadd.f32 0.0, %v2587
        %2589 = vmatmul.f32.gmra.mxu0 %v2556
        %v2590 = vpop.f32.mrf.mxu0
        %v2591 = vadd.f32 0.0, %v2590
        %2592 = vdwg.mxu0
        %v2593 = vmul.f32 %v2588, 0.17677669
        %v2594 = vmul.f32 %v2591, 0.17677669
        %v2596 = vperm.slane %v2249, 0
        %v2598 = vadd.f32 %v2593, %v2596
        %v2599 = vadd.f32 %v2594, %v2596
        %v2600 = vsel %vm2368, %v2598, -inf
        %2601 = vmax.xlane.f32.xlu0 %v2600
        %v2602 = vpop.xlane.xlu0 %2601
        %v2603 = vsel %vm2368, %v2599, -inf
        %2604 = vmax.xlane.f32.xlu0 %v2603
        %v2605 = vpop.xlane.xlu0 %2604
        %v2606 = vsub.f32 %v2598, %v2602
        %v2607 = vsub.f32 %v2599, %v2605
        %v2608 = vmul.f32 %v2606, 1.442695
        %v2609 = vpow.pop %v2608
        %v2610 = vmul.f32 %v2607, 1.442695
        %v2611 = vpow.pop %v2610
        %v2612 = vsel %vm2368, %v2609, 0.0
        %2613 = vadd.xlane.f32.xlu0 %v2612
        %v2614 = vpop.xlane.xlu0 %2613
        %v2615 = vsel %vm2368, %v2611, 0.0
        %2616 = vadd.xlane.f32.xlu0 %v2615
        %v2617 = vpop.xlane.xlu0 %2616
        %v2618 = vrcp.pop %v2614
        %v2619 = vrcp.pop %v2617
        %v2620 = vmul.f32 %v2609, %v2618
        %v2621 = vmul.f32 %v2611, %v2619
        %v2623 = vperm.slane %v2247, 0
        %v2625 = vmul.f32 %v2620, %v2623
        %v2626 = vmul.f32 %v2621, %v2623
        %v2628 = vsel %vm2368, %v2625, 0
        %v2631 = vsel %vm2368, %v2626, 0
        %2633 = vmatpush.msra.mxu0 0.0
        %2634 = vmatpush.msra.mxu0 0.0
        %2635 = vmatpush.msra.mxu0 0.0
        %2636 = vmatpush.msra.mxu0 0.0
        %2637 = vmatpush.msra.mxu0 0.0
        %2638 = vmatpush.msra.mxu0 0.0
        %2639 = vmatpush.msra.mxu0 0.0
        %2640 = vmatpush.msra.mxu0 0.0
        %2641 = vmatpush.msra.mxu0 0.0
        %2642 = vmatpush.msra.mxu0 0.0
        %2643 = vmatpush.msra.mxu0 0.0
        %2644 = vmatpush.msra.mxu0 0.0
        %2645 = vmatpush.msra.mxu0 %v2550
        %2646 = vmatpush.msra.mxu0 %v2547
        %2647 = vmatpush.msra.mxu0 %v2544
        %2648 = vmatpush.msra.mxu0 %v2541
        %2649 = vmatmul.f32.gmra.mxu0 %v2628
        %v2650 = vpop.f32.mrf.mxu0
        %v2651 = vadd.f32 0.0, %v2650
        %2652 = vmatmul.f32.gmra.mxu0 %v2631
        %v2653 = vpop.f32.mrf.mxu0
        %v2654 = vadd.f32 0.0, %v2653
        %2655 = vdwg.mxu0
        %v2657 = vperm.slane %v2443, 0
        %v2660 = vsel %vm2368, %v2651, 0
        %v2663 = vsel %vm2368, %v2654, 0
        %2665 = vmatpush.msra.mxu0 0.0
        %2666 = vmatpush.msra.mxu0 0.0
        %2667 = vmatpush.msra.mxu0 0.0
        %2668 = vmatpush.msra.mxu0 0.0
        %2669 = vmatpush.msra.mxu0 0.0
        %2670 = vmatpush.msra.mxu0 0.0
        %2671 = vmatpush.msra.mxu0 0.0
        %2672 = vmatpush.msra.mxu0 0.0
        %2673 = vmatpush.msra.mxu0 0.0
        %2674 = vmatpush.msra.mxu0 0.0
        %2675 = vmatpush.msra.mxu0 0.0
        %2676 = vmatpush.msra.mxu0 0.0
        %2677 = vmatpush.msra.mxu0 %v2442
        %2678 = vmatpush.msra.mxu0 %v2441
        %2679 = vmatpush.msra.mxu0 %v2440
        %2680 = vmatpush.msra.mxu0 %v2439
        %2681 = vmatmul.f32.gmra.mxu0 %v2660
        %v2682 = vpop.f32.mrf.mxu0
        %v2683 = vadd.f32 %v2657, %v2682
        %2684 = vmatmul.f32.gmra.mxu0 %v2663
        %v2685 = vpop.f32.mrf.mxu0
        %v2686 = vadd.f32 %v2657, %v2685
        %2687 = vdwg.mxu0
        %v2688 = vadd.f32 %v2250, %v2683
        %v2689 = vadd.f32 %v2251, %v2686
        %v2690 = vsel %vm2368, %v2688, 0.0
        %2691 = vadd.xlane.f32.xlu0 %v2690
        %v2692 = vpop.xlane.xlu0 %2691
        %v2693 = vsel %vm2368, %v2689, 0.0
        %2694 = vadd.xlane.f32.xlu0 %v2693
        %v2695 = vpop.xlane.xlu0 %2694
        %v2696 = vmul.f32 %v2692, %v2381
        %v2697 = vmul.f32 %v2695, %v2381
        %v2698 = vsub.f32 %v2688, %v2696
        %v2699 = vsub.f32 %v2689, %v2697
        %v2700 = vmul.f32 %v2698, %v2698
        %v2701 = vmul.f32 %v2699, %v2699
        %v2702 = vsel %vm2368, %v2700, 0.0
        %2703 = vadd.xlane.f32.xlu0 %v2702
        %v2704 = vpop.xlane.xlu0 %2703
        %v2705 = vsel %vm2368, %v2701, 0.0
        %2706 = vadd.xlane.f32.xlu0 %v2705
        %v2707 = vpop.xlane.xlu0 %2706
        %v2708 = vmul.f32 %v2704, %v2381
        %v2709 = vmul.f32 %v2707, %v2381
        %v2710 = vadd.f32 %v2708, 1e-05
        %v2711 = vadd.f32 %v2709, 1e-05
        %v2712 = vrsqrt.pop %v2710
        %v2713 = vmul.f32 %v2712, %v2710
        %v2714 = vmul.f32 %v2713, %v2712
        %v2715 = vmul.f32 0.5, %v2714
        %v2716 = vsub.f32 1.5, %v2715
        %v2717 = vmul.f32 %v2712, %v2716
        %vm2718 = vweird.f32 %v2710
        %vm2719 = vweird.f32 %v2712
        %vm2720 = vmor %vm2718, %vm2719
        %v2721 = vsel %vm2720, %v2712, %v2717
        %v2722 = vrsqrt.pop %v2711
        %v2723 = vmul.f32 %v2722, %v2711
        %v2724 = vmul.f32 %v2723, %v2722
        %v2725 = vmul.f32 0.5, %v2724
        %v2726 = vsub.f32 1.5, %v2725
        %v2727 = vmul.f32 %v2722, %v2726
        %vm2728 = vweird.f32 %v2711
        %vm2729 = vweird.f32 %v2722
        %vm2730 = vmor %vm2728, %vm2729
        %v2731 = vsel %vm2730, %v2722, %v2727
        %v2732 = vmul.f32 %v2698, %v2721
        %v2733 = vmul.f32 %v2699, %v2731
        %v2735 = vperm.slane %v2256, 0
        %v2737 = vmul.f32 %v2732, %v2735
        %v2738 = vmul.f32 %v2733, %v2735
        %v2740 = vperm.slane %v2257, 0
        %v2742 = vadd.f32 %v2737, %v2740
        %v2743 = vadd.f32 %v2738, %v2740
        %v2744 = vld [vmem:[#allocation14] sm:$0xff]
        %v2745 = vld [vmem:[#allocation14 + $0x8] sm:$0xff]
        %v2746 = vld [vmem:[#allocation14 + $0x10] sm:$0xff]
        %v2747 = vld [vmem:[#allocation14 + $0x18] sm:$0xff]
        %v2748 = vld [vmem:[#allocation16] sm:$0x1]
        %v2749 = vld [vmem:[#allocation17] sm:$0xff]
        %v2750 = vld [vmem:[#allocation17 + $0x8] sm:$0xff]
        %v2751 = vld [vmem:[#allocation17 + $0x10] sm:$0xff]
        %v2752 = vld [vmem:[#allocation17 + $0x18] sm:$0xff]
        %v2753 = vld [vmem:[#allocation19] sm:$0x1]
        %v2755 = vperm.slane %v2748, 0
        %v2758 = vsel %vm2368, %v2742, 0
        %v2761 = vsel %vm2368, %v2743, 0
        %2763 = vmatpush.msra.mxu0 0.0
        %2764 = vmatpush.msra.mxu0 0.0
        %2765 = vmatpush.msra.mxu0 0.0
        %2766 = vmatpush.msra.mxu0 0.0
        %2767 = vmatpush.msra.mxu0 0.0
        %2768 = vmatpush.msra.mxu0 0.0
        %2769 = vmatpush.msra.mxu0 0.0
        %2770 = vmatpush.msra.mxu0 0.0
        %2771 = vmatpush.msra.mxu0 0.0
        %2772 = vmatpush.msra.mxu0 0.0
        %2773 = vmatpush.msra.mxu0 0.0
        %2774 = vmatpush.msra.mxu0 0.0
        %2775 = vmatpush.msra.mxu0 %v2747
        %2776 = vmatpush.msra.mxu0 %v2746
        %2777 = vmatpush.msra.mxu0 %v2745
        %2778 = vmatpush.msra.mxu0 %v2744
        %2779 = vmatmul.f32.gmra.mxu0 %v2758
        %v2780 = vpop.f32.mrf.mxu0
        %v2781 = vadd.f32 %v2755, %v2780
        %2782 = vmatmul.f32.gmra.mxu0 %v2761
        %v2783 = vpop.f32.mrf.mxu0
        %v2784 = vadd.f32 %v2755, %v2783
        %2785 = vdwg.mxu0
        %v2786 = vmul.f32 %v2781, 0.5
        %v2787 = vmul.f32 %v2784, 0.5
        %v2788 = vmul.f32 %v2781, 0.70710677
        %v2789 = vmul.f32 %v2784, 0.70710677
        %v2790 = vmul.f32 %v2788, %v2788
        %v2791 = vmin.f32 16.0, %v2790
        %v2792 = vmul.f32 %v2791, 2.1237322e-06
        %v2793 = vadd.f32 %v2792, 0.00028619796
        %v2794 = vmul.f32 %v2791, %v2793
        %v2795 = vadd.f32 %v2794, 0.0036580483
        %v2796 = vmul.f32 %v2791, %v2795
        %v2797 = vadd.f32 %v2796, 0.05243302
        %v2798 = vmul.f32 %v2791, %v2797
        %v2799 = vadd.f32 %v2798, 0.18741608
        %v2800 = vmul.f32 %v2791, %v2799
        %v2801 = vadd.f32 %v2800, 1.1283791
        %v2802 = vmul.f32 %v2788, %v2801
        %v2803 = vmul.f32 %v2791, 3.8918573e-05
        %v2804 = vadd.f32 %v2803, 0.001143296
        %v2805 = vmul.f32 %v2791, %v2804
        %v2806 = vadd.f32 %v2805, 0.014752088
        %v2807 = vmul.f32 %v2791, %v2806
        %v2808 = vadd.f32 %v2807, 0.112945676
        %v2809 = vmul.f32 %v2791, %v2808
        %v2810 = vadd.f32 %v2809, 0.4994258
        %v2811 = vmul.f32 %v2791, %v2810
        %v2812 = vadd.f32 %v2811, 1.0
        %v2813 = vrcp.pop %v2812
        %v2814 = vmul.f32 %v2812, %v2813
        %v2815 = vsub.f32 1.0, %v2814
        %v2816 = vmul.f32 %v2813, %v2815
        %v2817 = vadd.f32 %v2813, %v2816
        %vm2818 = vweird.f32 %v2812
        %vm2819 = vweird.f32 %v2813
        %vm2820 = vmor %vm2818, %vm2819
        %v2821 = vsel %vm2820, %v2813, %v2817
        %v2822 = vand.u32 2147483647, %v2812
        %vm2823 = vcmp.eq.f32.partialorder %v2822, 8.507059e+37
        %v2824 = vand.u32 %v2812, 2147483648
        %v2825 = vor.u32 1.1754944e-38, %v2824
        %v2826 = vsel %vm2823, %v2825, %v2821
        %v2827 = vmul.f32 %v2802, %v2826
        %v2828 = vmin.f32 %v2827, 1.0
        %v2829 = vmax.f32 %v2828, -1.0
        %v2830 = vmul.f32 %v2789, %v2789
        %v2831 = vmin.f32 16.0, %v2830
        %v2832 = vmul.f32 %v2831, 2.1237322e-06
        %v2833 = vadd.f32 %v2832, 0.00028619796
        %v2834 = vmul.f32 %v2831, %v2833
        %v2835 = vadd.f32 %v2834, 0.0036580483
        %v2836 = vmul.f32 %v2831, %v2835
        %v2837 = vadd.f32 %v2836, 0.05243302
        %v2838 = vmul.f32 %v2831, %v2837
        %v2839 = vadd.f32 %v2838, 0.18741608
        %v2840 = vmul.f32 %v2831, %v2839
        %v2841 = vadd.f32 %v2840, 1.1283791
        %v2842 = vmul.f32 %v2789, %v2841
        %v2843 = vmul.f32 %v2831, 3.8918573e-05
        %v2844 = vadd.f32 %v2843, 0.001143296
        %v2845 = vmul.f32 %v2831, %v2844
        %v2846 = vadd.f32 %v2845, 0.014752088
        %v2847 = vmul.f32 %v2831, %v2846
        %v2848 = vadd.f32 %v2847, 0.112945676
        %v2849 = vmul.f32 %v2831, %v2848
        %v2850 = vadd.f32 %v2849, 0.4994258
        %v2851 = vmul.f32 %v2831, %v2850
        %v2852 = vadd.f32 %v2851, 1.0
        %v2853 = vrcp.pop %v2852
        %v2854 = vmul.f32 %v2852, %v2853
        %v2855 = vsub.f32 1.0, %v2854
        %v2856 = vmul.f32 %v2853, %v2855
        %v2857 = vadd.f32 %v2853, %v2856
        %vm2858 = vweird.f32 %v2852
        %vm2859 = vweird.f32 %v2853
        %vm2860 = vmor %vm2858, %vm2859
        %v2861 = vsel %vm2860, %v2853, %v2857
        %v2862 = vand.u32 2147483647, %v2852
        %vm2863 = vcmp.eq.f32.partialorder %v2862, 8.507059e+37
        %v2864 = vand.u32 %v2852, 2147483648
        %v2865 = vor.u32 1.1754944e-38, %v2864
        %v2866 = vsel %vm2863, %v2865, %v2861
        %v2867 = vmul.f32 %v2842, %v2866
        %v2868 = vmin.f32 %v2867, 1.0
        %v2869 = vmax.f32 %v2868, -1.0
        %v2870 = vadd.f32 %v2829, 1.0
        %v2871 = vadd.f32 %v2869, 1.0
        %v2872 = vmul.f32 %v2786, %v2870
        %v2873 = vmul.f32 %v2787, %v2871
        %v2875 = vperm.slane %v2753, 0
        %v2878 = vsel %vm2368, %v2872, 0
        %v2881 = vsel %vm2368, %v2873, 0
        %2883 = vmatpush.msra.mxu0 0.0
        %2884 = vmatpush.msra.mxu0 0.0
        %2885 = vmatpush.msra.mxu0 0.0
        %2886 = vmatpush.msra.mxu0 0.0
        %2887 = vmatpush.msra.mxu0 0.0
        %2888 = vmatpush.msra.mxu0 0.0
        %2889 = vmatpush.msra.mxu0 0.0
        %2890 = vmatpush.msra.mxu0 0.0
        %2891 = vmatpush.msra.mxu0 0.0
        %2892 = vmatpush.msra.mxu0 0.0
        %2893 = vmatpush.msra.mxu0 0.0
        %2894 = vmatpush.msra.mxu0 0.0
        %2895 = vmatpush.msra.mxu0 %v2752
        %2896 = vmatpush.msra.mxu0 %v2751
        %2897 = vmatpush.msra.mxu0 %v2750
        %2898 = vmatpush.msra.mxu0 %v2749
        %2899 = vmatmul.f32.gmra.mxu0 %v2878
        %v2900 = vpop.f32.mrf.mxu0
        %v2901 = vadd.f32 %v2875, %v2900
        %2902 = vmatmul.f32.gmra.mxu0 %v2881
        %v2903 = vpop.f32.mrf.mxu0
        %v2904 = vadd.f32 %v2875, %v2903
        %2905 = vdwg.mxu0
        %v2906 = vadd.f32 %v2688, %v2901
        %v2907 = vadd.f32 %v2689, %v2904
        loop: start=0, step=1, limit=4
        $region405: #{perciever_encoder_forward.1} parent=231 // loop_pre_header
          _
        $region406: #{perciever_encoder_forward.1} parent=231 // loop_header
          %s2909 = sphi 0, %s2913
          %p2910 = scmp.ge.s32.totalorder %s2909, 4
          %v2914 = vphi %v2906, %v5440
          %v2915 = vphi %v2907, %v5441
        $region407: #{perciever_encoder_forward.1} parent=231 // loop_header_branch
          %2912 = sbr.rel (%p2910) target = $region411
        $region408: #{perciever_encoder_forward.1} parent=231 // loop_body
          %v2916 = vld [vmem:[#allocation20] sm:$0x1]
          %v2917 = vld [vmem:[#allocation22] sm:$0x1]
          %v2918 = vld [vmem:[#allocation23] sm:$0x1]
          %v2919 = vld [vmem:[#allocation25] sm:$0x1]
          %v2920 = vsel %vm2368, %v2914, 0.0
          %2921 = vadd.xlane.f32.xlu0 %v2920
          %v2922 = vpop.xlane.xlu0 %2921
          %v2923 = vsel %vm2368, %v2915, 0.0
          %2924 = vadd.xlane.f32.xlu0 %v2923
          %v2925 = vpop.xlane.xlu0 %2924
          %v2926 = vmul.f32 %v2922, %v2381
          %v2927 = vmul.f32 %v2925, %v2381
          %v2928 = vsub.f32 %v2914, %v2926
          %v2929 = vsub.f32 %v2915, %v2927
          %v2930 = vmul.f32 %v2928, %v2928
          %v2931 = vmul.f32 %v2929, %v2929
          %v2932 = vsel %vm2368, %v2930, 0.0
          %2933 = vadd.xlane.f32.xlu0 %v2932
          %v2934 = vpop.xlane.xlu0 %2933
          %v2935 = vsel %vm2368, %v2931, 0.0
          %2936 = vadd.xlane.f32.xlu0 %v2935
          %v2937 = vpop.xlane.xlu0 %2936
          %v2938 = vmul.f32 %v2934, %v2381
          %v2939 = vmul.f32 %v2937, %v2381
          %v2940 = vadd.f32 %v2938, 1e-05
          %v2941 = vadd.f32 %v2939, 1e-05
          %v2942 = vrsqrt.pop %v2940
          %v2943 = vmul.f32 %v2942, %v2940
          %v2944 = vmul.f32 %v2943, %v2942
          %v2945 = vmul.f32 0.5, %v2944
          %v2946 = vsub.f32 1.5, %v2945
          %v2947 = vmul.f32 %v2942, %v2946
          %vm2948 = vweird.f32 %v2940
          %vm2949 = vweird.f32 %v2942
          %vm2950 = vmor %vm2948, %vm2949
          %v2951 = vsel %vm2950, %v2942, %v2947
          %v2952 = vrsqrt.pop %v2941
          %v2953 = vmul.f32 %v2952, %v2941
          %v2954 = vmul.f32 %v2953, %v2952
          %v2955 = vmul.f32 0.5, %v2954
          %v2956 = vsub.f32 1.5, %v2955
          %v2957 = vmul.f32 %v2952, %v2956
          %vm2958 = vweird.f32 %v2941
          %vm2959 = vweird.f32 %v2952
          %vm2960 = vmor %vm2958, %vm2959
          %v2961 = vsel %vm2960, %v2952, %v2957
          %v2962 = vmul.f32 %v2928, %v2951
          %v2963 = vmul.f32 %v2929, %v2961
          %v2965 = vperm.slane %v2916, 0
          %v2967 = vmul.f32 %v2962, %v2965
          %v2968 = vmul.f32 %v2963, %v2965
          %v2970 = vperm.slane %v2917, 0
          %v2972 = vadd.f32 %v2967, %v2970
          %v2973 = vadd.f32 %v2968, %v2970
          %v2974 = vld [vmem:[#allocation26] sm:$0xff]
          %v2975 = vld [vmem:[#allocation26 + $0x8] sm:$0xff]
          %v2976 = vld [vmem:[#allocation26 + $0x10] sm:$0xff]
          %v2977 = vld [vmem:[#allocation26 + $0x18] sm:$0xff]
          %v2978 = vld [vmem:[#allocation28] sm:$0x1]
          %v2979 = vld [vmem:[#allocation29] sm:$0xff]
          %v2980 = vld [vmem:[#allocation29 + $0x8] sm:$0xff]
          %v2981 = vld [vmem:[#allocation29 + $0x10] sm:$0xff]
          %v2982 = vld [vmem:[#allocation29 + $0x18] sm:$0xff]
          %v2983 = vld [vmem:[#allocation31] sm:$0x1]
          %v2984 = vld [vmem:[#allocation32] sm:$0xff]
          %v2985 = vld [vmem:[#allocation32 + $0x8] sm:$0xff]
          %v2986 = vld [vmem:[#allocation32 + $0x10] sm:$0xff]
          %v2987 = vld [vmem:[#allocation32 + $0x18] sm:$0xff]
          %v2988 = vld [vmem:[#allocation34] sm:$0x1]
          %v2989 = vld [vmem:[#allocation35] sm:$0xff]
          %v2990 = vld [vmem:[#allocation35 + $0x8] sm:$0xff]
          %v2991 = vld [vmem:[#allocation35 + $0x10] sm:$0xff]
          %v2992 = vld [vmem:[#allocation35 + $0x18] sm:$0xff]
          %v2993 = vld [vmem:[#allocation37] sm:$0x1]
          %v2995 = vperm.slane %v2978, 0
          %v2998 = vsel %vm2368, %v2972, 0
          %v3001 = vsel %vm2368, %v2973, 0
          %3003 = vmatpush.msra.mxu0 0.0
          %3004 = vmatpush.msra.mxu0 0.0
          %3005 = vmatpush.msra.mxu0 0.0
          %3006 = vmatpush.msra.mxu0 0.0
          %3007 = vmatpush.msra.mxu0 0.0
          %3008 = vmatpush.msra.mxu0 0.0
          %3009 = vmatpush.msra.mxu0 0.0
          %3010 = vmatpush.msra.mxu0 0.0
          %3011 = vmatpush.msra.mxu0 0.0
          %3012 = vmatpush.msra.mxu0 0.0
          %3013 = vmatpush.msra.mxu0 0.0
          %3014 = vmatpush.msra.mxu0 0.0
          %3015 = vmatpush.msra.mxu0 %v2977
          %3016 = vmatpush.msra.mxu0 %v2976
          %3017 = vmatpush.msra.mxu0 %v2975
          %3018 = vmatpush.msra.mxu0 %v2974
          %3019 = vmatmul.f32.gmra.mxu0 %v2998
          %v3020 = vpop.f32.mrf.mxu0
          %v3021 = vadd.f32 %v2995, %v3020
          %3022 = vmatmul.f32.gmra.mxu0 %v3001
          %v3023 = vpop.f32.mrf.mxu0
          %v3024 = vadd.f32 %v2995, %v3023
          %3025 = vdwg.mxu0
          %v3027 = vperm.slane %v2983, 0
          %3029 = vmatpush.msra.mxu0 0.0
          %3030 = vmatpush.msra.mxu0 0.0
          %3031 = vmatpush.msra.mxu0 0.0
          %3032 = vmatpush.msra.mxu0 0.0
          %3033 = vmatpush.msra.mxu0 0.0
          %3034 = vmatpush.msra.mxu0 0.0
          %3035 = vmatpush.msra.mxu0 0.0
          %3036 = vmatpush.msra.mxu0 0.0
          %3037 = vmatpush.msra.mxu0 0.0
          %3038 = vmatpush.msra.mxu0 0.0
          %3039 = vmatpush.msra.mxu0 0.0
          %3040 = vmatpush.msra.mxu0 0.0
          %3041 = vmatpush.msra.mxu0 %v2982
          %3042 = vmatpush.msra.mxu0 %v2981
          %3043 = vmatpush.msra.mxu0 %v2980
          %3044 = vmatpush.msra.mxu0 %v2979
          %3045 = vmatmul.f32.gmra.mxu0 %v2998
          %v3046 = vpop.f32.mrf.mxu0
          %v3047 = vadd.f32 %v3027, %v3046
          %3048 = vmatmul.f32.gmra.mxu0 %v3001
          %v3049 = vpop.f32.mrf.mxu0
          %v3050 = vadd.f32 %v3027, %v3049
          %3051 = vdwg.mxu0
          %v3053 = vperm.slane %v2988, 0
          %3055 = vmatpush.msra.mxu0 0.0
          %3056 = vmatpush.msra.mxu0 0.0
          %3057 = vmatpush.msra.mxu0 0.0
          %3058 = vmatpush.msra.mxu0 0.0
          %3059 = vmatpush.msra.mxu0 0.0
          %3060 = vmatpush.msra.mxu0 0.0
          %3061 = vmatpush.msra.mxu0 0.0
          %3062 = vmatpush.msra.mxu0 0.0
          %3063 = vmatpush.msra.mxu0 0.0
          %3064 = vmatpush.msra.mxu0 0.0
          %3065 = vmatpush.msra.mxu0 0.0
          %3066 = vmatpush.msra.mxu0 0.0
          %3067 = vmatpush.msra.mxu0 %v2987
          %3068 = vmatpush.msra.mxu0 %v2986
          %3069 = vmatpush.msra.mxu0 %v2985
          %3070 = vmatpush.msra.mxu0 %v2984
          %3071 = vmatmul.f32.gmra.mxu0 %v2998
          %v3072 = vpop.f32.mrf.mxu0
          %v3073 = vadd.f32 %v3053, %v3072
          %3074 = vmatmul.f32.gmra.mxu0 %v3001
          %v3075 = vpop.f32.mrf.mxu0
          %v3076 = vadd.f32 %v3053, %v3075
          %3077 = vdwg.mxu0
          %vm3078 = vcmask 31744
          %v3080 = vsel %vm3078, %v3021, 0
          %v3083 = vsel %vm3078, %v3024, 0
          %v3086 = vsel %vm3078, %v3047, 0
          %v3089 = vsel %vm3078, %v3050, 0
          %3091 = vmatpush.xpose.msra.mxu0 0.0
          %3092 = vmatpush.xpose.msra.mxu0 0.0
          %3093 = vmatpush.xpose.msra.mxu0 0.0
          %3094 = vmatpush.xpose.msra.mxu0 0.0
          %3095 = vmatpush.xpose.msra.mxu0 0.0
          %3096 = vmatpush.xpose.msra.mxu0 0.0
          %3097 = vmatpush.xpose.msra.mxu0 0.0
          %3098 = vmatpush.xpose.msra.mxu0 0.0
          %3099 = vmatpush.xpose.msra.mxu0 0.0
          %3100 = vmatpush.xpose.msra.mxu0 0.0
          %3101 = vmatpush.xpose.msra.mxu0 0.0
          %3102 = vmatpush.xpose.msra.mxu0 0.0
          %3103 = vmatpush.xpose.msra.mxu0 0.0
          %3104 = vmatpush.xpose.msra.mxu0 0.0
          %3105 = vmatpush.xpose.msra.mxu0 %v3089
          %3106 = vmatpush.xpose.msra.mxu0 %v3086
          %3107 = vmatmul.f32.gmra.mxu0 %v3080
          %v3108 = vpop.f32.mrf.mxu0
          %v3109 = vadd.f32 0.0, %v3108
          %3110 = vmatmul.f32.gmra.mxu0 %v3083
          %v3111 = vpop.f32.mrf.mxu0
          %v3112 = vadd.f32 0.0, %v3111
          %3113 = vdwg.mxu0
          %v3114 = vmul.f32 %v3109, 0.5
          %v3115 = vmul.f32 %v3112, 0.5
          %vm3116 = vcmask 130048
          %v3117 = vsel %vm3116, %v3114, -inf
          %3118 = vmax.xlane.f32.xlu0 %v3117
          %v3119 = vpop.xlane.xlu0 %3118
          %v3120 = vsel %vm3116, %v3115, -inf
          %3121 = vmax.xlane.f32.xlu0 %v3120
          %v3122 = vpop.xlane.xlu0 %3121
          %v3123 = vsub.f32 %v3114, %v3119
          %v3124 = vsub.f32 %v3115, %v3122
          %v3125 = vmul.f32 %v3123, 1.442695
          %v3126 = vpow.pop %v3125
          %v3127 = vmul.f32 %v3124, 1.442695
          %v3128 = vpow.pop %v3127
          %v3129 = vsel %vm3116, %v3126, 0.0
          %3130 = vadd.xlane.f32.xlu0 %v3129
          %v3131 = vpop.xlane.xlu0 %3130
          %v3132 = vsel %vm3116, %v3128, 0.0
          %3133 = vadd.xlane.f32.xlu0 %v3132
          %v3134 = vpop.xlane.xlu0 %3133
          %v3135 = vrcp.pop %v3131
          %v3136 = vrcp.pop %v3134
          %v3137 = vmul.f32 %v3126, %v3135
          %v3138 = vmul.f32 %v3128, %v3136
          %v3140 = vsel %vm3116, %v3137, 0
          %v3143 = vsel %vm3116, %v3138, 0
          %3145 = vmatpush.msra.mxu0 0.0
          %3146 = vmatpush.msra.mxu0 0.0
          %3147 = vmatpush.msra.mxu0 0.0
          %3148 = vmatpush.msra.mxu0 0.0
          %3149 = vmatpush.msra.mxu0 0.0
          %3150 = vmatpush.msra.mxu0 0.0
          %3151 = vmatpush.msra.mxu0 0.0
          %3152 = vmatpush.msra.mxu0 0.0
          %3153 = vmatpush.msra.mxu0 0.0
          %3154 = vmatpush.msra.mxu0 0.0
          %3155 = vmatpush.msra.mxu0 0.0
          %3156 = vmatpush.msra.mxu0 0.0
          %3157 = vmatpush.msra.mxu0 0.0
          %3158 = vmatpush.msra.mxu0 0.0
          %3159 = vmatpush.msra.mxu0 %v3076
          %3160 = vmatpush.msra.mxu0 %v3073
          %3161 = vmatmul.f32.gmra.mxu0 %v3140
          %v3162 = vpop.f32.mrf.mxu0
          %v3163 = vadd.f32 0.0, %v3162
          %3164 = vmatmul.f32.gmra.mxu0 %v3143
          %v3165 = vpop.f32.mrf.mxu0
          %v3166 = vadd.f32 0.0, %v3165
          %3167 = vdwg.mxu0
          %3168 = vrot.lane.b32.xlu0 %v3021, 124
          %v3169 = vpop.permute.xlu0 %3168
          %3170 = vrot.lane.b32.xlu0 %v3024, 124
          %v3171 = vpop.permute.xlu0 %3170
          %3172 = vrot.lane.b32.xlu0 %v3047, 124
          %v3173 = vpop.permute.xlu0 %3172
          %3174 = vrot.lane.b32.xlu0 %v3050, 124
          %v3175 = vpop.permute.xlu0 %3174
          %v3176 = vsel %vm3078, %v3169, 0
          %v3178 = vsel %vm3078, %v3171, 0
          %v3180 = vsel %vm3078, %v3173, 0
          %v3182 = vsel %vm3078, %v3175, 0
          %3184 = vmatpush.xpose.msra.mxu0 0.0
          %3185 = vmatpush.xpose.msra.mxu0 0.0
          %3186 = vmatpush.xpose.msra.mxu0 0.0
          %3187 = vmatpush.xpose.msra.mxu0 0.0
          %3188 = vmatpush.xpose.msra.mxu0 0.0
          %3189 = vmatpush.xpose.msra.mxu0 0.0
          %3190 = vmatpush.xpose.msra.mxu0 0.0
          %3191 = vmatpush.xpose.msra.mxu0 0.0
          %3192 = vmatpush.xpose.msra.mxu0 0.0
          %3193 = vmatpush.xpose.msra.mxu0 0.0
          %3194 = vmatpush.xpose.msra.mxu0 0.0
          %3195 = vmatpush.xpose.msra.mxu0 0.0
          %3196 = vmatpush.xpose.msra.mxu0 0.0
          %3197 = vmatpush.xpose.msra.mxu0 0.0
          %3198 = vmatpush.xpose.msra.mxu0 %v3182
          %3199 = vmatpush.xpose.msra.mxu0 %v3180
          %3200 = vmatmul.f32.gmra.mxu0 %v3176
          %v3201 = vpop.f32.mrf.mxu0
          %v3202 = vadd.f32 0.0, %v3201
          %3203 = vmatmul.f32.gmra.mxu0 %v3178
          %v3204 = vpop.f32.mrf.mxu0
          %v3205 = vadd.f32 0.0, %v3204
          %3206 = vdwg.mxu0
          %v3207 = vmul.f32 %v3202, 0.5
          %v3208 = vmul.f32 %v3205, 0.5
          %v3209 = vsel %vm3116, %v3207, -inf
          %3210 = vmax.xlane.f32.xlu0 %v3209
          %v3211 = vpop.xlane.xlu0 %3210
          %v3212 = vsel %vm3116, %v3208, -inf
          %3213 = vmax.xlane.f32.xlu0 %v3212
          %v3214 = vpop.xlane.xlu0 %3213
          %v3215 = vsub.f32 %v3207, %v3211
          %v3216 = vsub.f32 %v3208, %v3214
          %v3217 = vmul.f32 %v3215, 1.442695
          %v3218 = vpow.pop %v3217
          %v3219 = vmul.f32 %v3216, 1.442695
          %v3220 = vpow.pop %v3219
          %v3221 = vsel %vm3116, %v3218, 0.0
          %3222 = vadd.xlane.f32.xlu0 %v3221
          %v3223 = vpop.xlane.xlu0 %3222
          %v3224 = vsel %vm3116, %v3220, 0.0
          %3225 = vadd.xlane.f32.xlu0 %v3224
          %v3226 = vpop.xlane.xlu0 %3225
          %v3227 = vrcp.pop %v3223
          %v3228 = vrcp.pop %v3226
          %v3229 = vmul.f32 %v3218, %v3227
          %v3230 = vmul.f32 %v3220, %v3228
          %3233 = vrot.lane.b32.xlu0 %v3073, 124
          %v3234 = vpop.permute.xlu0 %3233
          %3235 = vrot.lane.b32.xlu0 %v3076, 124
          %v3236 = vpop.permute.xlu0 %3235
          %v3240 = vsel %vm3116, %v3229, 0
          %v3243 = vsel %vm3116, %v3230, 0
          %3245 = vmatpush.msra.mxu0 0.0
          %3246 = vmatpush.msra.mxu0 0.0
          %3247 = vmatpush.msra.mxu0 0.0
          %3248 = vmatpush.msra.mxu0 0.0
          %3249 = vmatpush.msra.mxu0 0.0
          %3250 = vmatpush.msra.mxu0 0.0
          %3251 = vmatpush.msra.mxu0 0.0
          %3252 = vmatpush.msra.mxu0 0.0
          %3253 = vmatpush.msra.mxu0 0.0
          %3254 = vmatpush.msra.mxu0 0.0
          %3255 = vmatpush.msra.mxu0 0.0
          %3256 = vmatpush.msra.mxu0 0.0
          %3257 = vmatpush.msra.mxu0 0.0
          %3258 = vmatpush.msra.mxu0 0.0
          %3259 = vmatpush.msra.mxu0 %v3236
          %3260 = vmatpush.msra.mxu0 %v3234
          %3261 = vmatmul.f32.gmra.mxu0 %v3240
          %v3262 = vpop.f32.mrf.mxu0
          %v3263 = vadd.f32 0.0, %v3262
          %3264 = vmatmul.f32.gmra.mxu0 %v3243
          %v3265 = vpop.f32.mrf.mxu0
          %v3266 = vadd.f32 0.0, %v3265
          %3267 = vdwg.mxu0
          %3268 = vrot.lane.b32.xlu0 %v3021, 120
          %v3269 = vpop.permute.xlu0 %3268
          %3270 = vrot.lane.b32.xlu0 %v3024, 120
          %v3271 = vpop.permute.xlu0 %3270
          %3272 = vrot.lane.b32.xlu0 %v3047, 120
          %v3273 = vpop.permute.xlu0 %3272
          %3274 = vrot.lane.b32.xlu0 %v3050, 120
          %v3275 = vpop.permute.xlu0 %3274
          %v3276 = vsel %vm3078, %v3269, 0
          %v3278 = vsel %vm3078, %v3271, 0
          %v3280 = vsel %vm3078, %v3273, 0
          %v3282 = vsel %vm3078, %v3275, 0
          %3284 = vmatpush.xpose.msra.mxu0 0.0
          %3285 = vmatpush.xpose.msra.mxu0 0.0
          %3286 = vmatpush.xpose.msra.mxu0 0.0
          %3287 = vmatpush.xpose.msra.mxu0 0.0
          %3288 = vmatpush.xpose.msra.mxu0 0.0
          %3289 = vmatpush.xpose.msra.mxu0 0.0
          %3290 = vmatpush.xpose.msra.mxu0 0.0
          %3291 = vmatpush.xpose.msra.mxu0 0.0
          %3292 = vmatpush.xpose.msra.mxu0 0.0
          %3293 = vmatpush.xpose.msra.mxu0 0.0
          %3294 = vmatpush.xpose.msra.mxu0 0.0
          %3295 = vmatpush.xpose.msra.mxu0 0.0
          %3296 = vmatpush.xpose.msra.mxu0 0.0
          %3297 = vmatpush.xpose.msra.mxu0 0.0
          %3298 = vmatpush.xpose.msra.mxu0 %v3282
          %3299 = vmatpush.xpose.msra.mxu0 %v3280
          %3300 = vmatmul.f32.gmra.mxu0 %v3276
          %v3301 = vpop.f32.mrf.mxu0
          %v3302 = vadd.f32 0.0, %v3301
          %3303 = vmatmul.f32.gmra.mxu0 %v3278
          %v3304 = vpop.f32.mrf.mxu0
          %v3305 = vadd.f32 0.0, %v3304
          %3306 = vdwg.mxu0
          %v3307 = vmul.f32 %v3302, 0.5
          %v3308 = vmul.f32 %v3305, 0.5
          %v3309 = vsel %vm3116, %v3307, -inf
          %3310 = vmax.xlane.f32.xlu0 %v3309
          %v3311 = vpop.xlane.xlu0 %3310
          %v3312 = vsel %vm3116, %v3308, -inf
          %3313 = vmax.xlane.f32.xlu0 %v3312
          %v3314 = vpop.xlane.xlu0 %3313
          %v3315 = vsub.f32 %v3307, %v3311
          %v3316 = vsub.f32 %v3308, %v3314
          %v3317 = vmul.f32 %v3315, 1.442695
          %v3318 = vpow.pop %v3317
          %v3319 = vmul.f32 %v3316, 1.442695
          %v3320 = vpow.pop %v3319
          %v3321 = vsel %vm3116, %v3318, 0.0
          %3322 = vadd.xlane.f32.xlu0 %v3321
          %v3323 = vpop.xlane.xlu0 %3322
          %v3324 = vsel %vm3116, %v3320, 0.0
          %3325 = vadd.xlane.f32.xlu0 %v3324
          %v3326 = vpop.xlane.xlu0 %3325
          %v3327 = vrcp.pop %v3323
          %v3328 = vrcp.pop %v3326
          %v3329 = vmul.f32 %v3318, %v3327
          %v3330 = vmul.f32 %v3320, %v3328
          %3331 = vrot.lane.b32.xlu0 %v3073, 120
          %v3332 = vpop.permute.xlu0 %3331
          %3333 = vrot.lane.b32.xlu0 %v3076, 120
          %v3334 = vpop.permute.xlu0 %3333
          %v3338 = vsel %vm3116, %v3329, 0
          %v3341 = vsel %vm3116, %v3330, 0
          %3343 = vmatpush.msra.mxu0 0.0
          %3344 = vmatpush.msra.mxu0 0.0
          %3345 = vmatpush.msra.mxu0 0.0
          %3346 = vmatpush.msra.mxu0 0.0
          %3347 = vmatpush.msra.mxu0 0.0
          %3348 = vmatpush.msra.mxu0 0.0
          %3349 = vmatpush.msra.mxu0 0.0
          %3350 = vmatpush.msra.mxu0 0.0
          %3351 = vmatpush.msra.mxu0 0.0
          %3352 = vmatpush.msra.mxu0 0.0
          %3353 = vmatpush.msra.mxu0 0.0
          %3354 = vmatpush.msra.mxu0 0.0
          %3355 = vmatpush.msra.mxu0 0.0
          %3356 = vmatpush.msra.mxu0 0.0
          %3357 = vmatpush.msra.mxu0 %v3334
          %3358 = vmatpush.msra.mxu0 %v3332
          %3359 = vmatmul.f32.gmra.mxu0 %v3338
          %v3360 = vpop.f32.mrf.mxu0
          %v3361 = vadd.f32 0.0, %v3360
          %3362 = vmatmul.f32.gmra.mxu0 %v3341
          %v3363 = vpop.f32.mrf.mxu0
          %v3364 = vadd.f32 0.0, %v3363
          %3365 = vdwg.mxu0
          %3366 = vrot.lane.b32.xlu0 %v3021, 116
          %v3367 = vpop.permute.xlu0 %3366
          %3368 = vrot.lane.b32.xlu0 %v3024, 116
          %v3369 = vpop.permute.xlu0 %3368
          %3370 = vrot.lane.b32.xlu0 %v3047, 116
          %v3371 = vpop.permute.xlu0 %3370
          %3372 = vrot.lane.b32.xlu0 %v3050, 116
          %v3373 = vpop.permute.xlu0 %3372
          %v3374 = vsel %vm3078, %v3367, 0
          %v3376 = vsel %vm3078, %v3369, 0
          %v3378 = vsel %vm3078, %v3371, 0
          %v3380 = vsel %vm3078, %v3373, 0
          %3382 = vmatpush.xpose.msra.mxu0 0.0
          %3383 = vmatpush.xpose.msra.mxu0 0.0
          %3384 = vmatpush.xpose.msra.mxu0 0.0
          %3385 = vmatpush.xpose.msra.mxu0 0.0
          %3386 = vmatpush.xpose.msra.mxu0 0.0
          %3387 = vmatpush.xpose.msra.mxu0 0.0
          %3388 = vmatpush.xpose.msra.mxu0 0.0
          %3389 = vmatpush.xpose.msra.mxu0 0.0
          %3390 = vmatpush.xpose.msra.mxu0 0.0
          %3391 = vmatpush.xpose.msra.mxu0 0.0
          %3392 = vmatpush.xpose.msra.mxu0 0.0
          %3393 = vmatpush.xpose.msra.mxu0 0.0
          %3394 = vmatpush.xpose.msra.mxu0 0.0
          %3395 = vmatpush.xpose.msra.mxu0 0.0
          %3396 = vmatpush.xpose.msra.mxu0 %v3380
          %3397 = vmatpush.xpose.msra.mxu0 %v3378
          %3398 = vmatmul.f32.gmra.mxu0 %v3374
          %v3399 = vpop.f32.mrf.mxu0
          %v3400 = vadd.f32 0.0, %v3399
          %3401 = vmatmul.f32.gmra.mxu0 %v3376
          %v3402 = vpop.f32.mrf.mxu0
          %v3403 = vadd.f32 0.0, %v3402
          %3404 = vdwg.mxu0
          %v3405 = vmul.f32 %v3400, 0.5
          %v3406 = vmul.f32 %v3403, 0.5
          %v3407 = vsel %vm3116, %v3405, -inf
          %3408 = vmax.xlane.f32.xlu0 %v3407
          %v3409 = vpop.xlane.xlu0 %3408
          %v3410 = vsel %vm3116, %v3406, -inf
          %3411 = vmax.xlane.f32.xlu0 %v3410
          %v3412 = vpop.xlane.xlu0 %3411
          %v3413 = vsub.f32 %v3405, %v3409
          %v3414 = vsub.f32 %v3406, %v3412
          %v3415 = vmul.f32 %v3413, 1.442695
          %v3416 = vpow.pop %v3415
          %v3417 = vmul.f32 %v3414, 1.442695
          %v3418 = vpow.pop %v3417
          %v3419 = vsel %vm3116, %v3416, 0.0
          %3420 = vadd.xlane.f32.xlu0 %v3419
          %v3421 = vpop.xlane.xlu0 %3420
          %v3422 = vsel %vm3116, %v3418, 0.0
          %3423 = vadd.xlane.f32.xlu0 %v3422
          %v3424 = vpop.xlane.xlu0 %3423
          %v3425 = vrcp.pop %v3421
          %v3426 = vrcp.pop %v3424
          %v3427 = vmul.f32 %v3416, %v3425
          %v3428 = vmul.f32 %v3418, %v3426
          %3429 = vrot.lane.b32.xlu0 %v3073, 116
          %v3430 = vpop.permute.xlu0 %3429
          %3431 = vrot.lane.b32.xlu0 %v3076, 116
          %v3432 = vpop.permute.xlu0 %3431
          %v3436 = vsel %vm3116, %v3427, 0
          %v3439 = vsel %vm3116, %v3428, 0
          %3441 = vmatpush.msra.mxu0 0.0
          %3442 = vmatpush.msra.mxu0 0.0
          %3443 = vmatpush.msra.mxu0 0.0
          %3444 = vmatpush.msra.mxu0 0.0
          %3445 = vmatpush.msra.mxu0 0.0
          %3446 = vmatpush.msra.mxu0 0.0
          %3447 = vmatpush.msra.mxu0 0.0
          %3448 = vmatpush.msra.mxu0 0.0
          %3449 = vmatpush.msra.mxu0 0.0
          %3450 = vmatpush.msra.mxu0 0.0
          %3451 = vmatpush.msra.mxu0 0.0
          %3452 = vmatpush.msra.mxu0 0.0
          %3453 = vmatpush.msra.mxu0 0.0
          %3454 = vmatpush.msra.mxu0 0.0
          %3455 = vmatpush.msra.mxu0 %v3432
          %3456 = vmatpush.msra.mxu0 %v3430
          %3457 = vmatmul.f32.gmra.mxu0 %v3436
          %v3458 = vpop.f32.mrf.mxu0
          %v3459 = vadd.f32 0.0, %v3458
          %3460 = vmatmul.f32.gmra.mxu0 %v3439
          %v3461 = vpop.f32.mrf.mxu0
          %v3462 = vadd.f32 0.0, %v3461
          %3463 = vdwg.mxu0
          %3464 = vrot.lane.b32.xlu0 %v3021, 112
          %v3465 = vpop.permute.xlu0 %3464
          %3466 = vrot.lane.b32.xlu0 %v3024, 112
          %v3467 = vpop.permute.xlu0 %3466
          %3468 = vrot.lane.b32.xlu0 %v3047, 112
          %v3469 = vpop.permute.xlu0 %3468
          %3470 = vrot.lane.b32.xlu0 %v3050, 112
          %v3471 = vpop.permute.xlu0 %3470
          %v3472 = vsel %vm3078, %v3465, 0
          %v3474 = vsel %vm3078, %v3467, 0
          %v3476 = vsel %vm3078, %v3469, 0
          %v3478 = vsel %vm3078, %v3471, 0
          %3480 = vmatpush.xpose.msra.mxu0 0.0
          %3481 = vmatpush.xpose.msra.mxu0 0.0
          %3482 = vmatpush.xpose.msra.mxu0 0.0
          %3483 = vmatpush.xpose.msra.mxu0 0.0
          %3484 = vmatpush.xpose.msra.mxu0 0.0
          %3485 = vmatpush.xpose.msra.mxu0 0.0
          %3486 = vmatpush.xpose.msra.mxu0 0.0
          %3487 = vmatpush.xpose.msra.mxu0 0.0
          %3488 = vmatpush.xpose.msra.mxu0 0.0
          %3489 = vmatpush.xpose.msra.mxu0 0.0
          %3490 = vmatpush.xpose.msra.mxu0 0.0
          %3491 = vmatpush.xpose.msra.mxu0 0.0
          %3492 = vmatpush.xpose.msra.mxu0 0.0
          %3493 = vmatpush.xpose.msra.mxu0 0.0
          %3494 = vmatpush.xpose.msra.mxu0 %v3478
          %3495 = vmatpush.xpose.msra.mxu0 %v3476
          %3496 = vmatmul.f32.gmra.mxu0 %v3472
          %v3497 = vpop.f32.mrf.mxu0
          %v3498 = vadd.f32 0.0, %v3497
          %3499 = vmatmul.f32.gmra.mxu0 %v3474
          %v3500 = vpop.f32.mrf.mxu0
          %v3501 = vadd.f32 0.0, %v3500
          %3502 = vdwg.mxu0
          %v3503 = vmul.f32 %v3498, 0.5
          %v3504 = vmul.f32 %v3501, 0.5
          %v3505 = vsel %vm3116, %v3503, -inf
          %3506 = vmax.xlane.f32.xlu0 %v3505
          %v3507 = vpop.xlane.xlu0 %3506
          %v3508 = vsel %vm3116, %v3504, -inf
          %3509 = vmax.xlane.f32.xlu0 %v3508
          %v3510 = vpop.xlane.xlu0 %3509
          %v3511 = vsub.f32 %v3503, %v3507
          %v3512 = vsub.f32 %v3504, %v3510
          %v3513 = vmul.f32 %v3511, 1.442695
          %v3514 = vpow.pop %v3513
          %v3515 = vmul.f32 %v3512, 1.442695
          %v3516 = vpow.pop %v3515
          %v3517 = vsel %vm3116, %v3514, 0.0
          %3518 = vadd.xlane.f32.xlu0 %v3517
          %v3519 = vpop.xlane.xlu0 %3518
          %v3520 = vsel %vm3116, %v3516, 0.0
          %3521 = vadd.xlane.f32.xlu0 %v3520
          %v3522 = vpop.xlane.xlu0 %3521
          %v3523 = vrcp.pop %v3519
          %v3524 = vrcp.pop %v3522
          %v3525 = vmul.f32 %v3514, %v3523
          %v3526 = vmul.f32 %v3516, %v3524
          %3527 = vrot.lane.b32.xlu0 %v3073, 112
          %v3528 = vpop.permute.xlu0 %3527
          %3529 = vrot.lane.b32.xlu0 %v3076, 112
          %v3530 = vpop.permute.xlu0 %3529
          %v3534 = vsel %vm3116, %v3525, 0
          %v3537 = vsel %vm3116, %v3526, 0
          %3539 = vmatpush.msra.mxu0 0.0
          %3540 = vmatpush.msra.mxu0 0.0
          %3541 = vmatpush.msra.mxu0 0.0
          %3542 = vmatpush.msra.mxu0 0.0
          %3543 = vmatpush.msra.mxu0 0.0
          %3544 = vmatpush.msra.mxu0 0.0
          %3545 = vmatpush.msra.mxu0 0.0
          %3546 = vmatpush.msra.mxu0 0.0
          %3547 = vmatpush.msra.mxu0 0.0
          %3548 = vmatpush.msra.mxu0 0.0
          %3549 = vmatpush.msra.mxu0 0.0
          %3550 = vmatpush.msra.mxu0 0.0
          %3551 = vmatpush.msra.mxu0 0.0
          %3552 = vmatpush.msra.mxu0 0.0
          %3553 = vmatpush.msra.mxu0 %v3530
          %3554 = vmatpush.msra.mxu0 %v3528
          %3555 = vmatmul.f32.gmra.mxu0 %v3534
          %v3556 = vpop.f32.mrf.mxu0
          %v3557 = vadd.f32 0.0, %v3556
          %3558 = vmatmul.f32.gmra.mxu0 %v3537
          %v3559 = vpop.f32.mrf.mxu0
          %v3560 = vadd.f32 0.0, %v3559
          %3561 = vdwg.mxu0
          %3562 = vrot.lane.b32.xlu0 %v3021, 108
          %v3563 = vpop.permute.xlu0 %3562
          %3564 = vrot.lane.b32.xlu0 %v3024, 108
          %v3565 = vpop.permute.xlu0 %3564
          %3566 = vrot.lane.b32.xlu0 %v3047, 108
          %v3567 = vpop.permute.xlu0 %3566
          %3568 = vrot.lane.b32.xlu0 %v3050, 108
          %v3569 = vpop.permute.xlu0 %3568
          %v3570 = vsel %vm3078, %v3563, 0
          %v3572 = vsel %vm3078, %v3565, 0
          %v3574 = vsel %vm3078, %v3567, 0
          %v3576 = vsel %vm3078, %v3569, 0
          %3578 = vmatpush.xpose.msra.mxu0 0.0
          %3579 = vmatpush.xpose.msra.mxu0 0.0
          %3580 = vmatpush.xpose.msra.mxu0 0.0
          %3581 = vmatpush.xpose.msra.mxu0 0.0
          %3582 = vmatpush.xpose.msra.mxu0 0.0
          %3583 = vmatpush.xpose.msra.mxu0 0.0
          %3584 = vmatpush.xpose.msra.mxu0 0.0
          %3585 = vmatpush.xpose.msra.mxu0 0.0
          %3586 = vmatpush.xpose.msra.mxu0 0.0
          %3587 = vmatpush.xpose.msra.mxu0 0.0
          %3588 = vmatpush.xpose.msra.mxu0 0.0
          %3589 = vmatpush.xpose.msra.mxu0 0.0
          %3590 = vmatpush.xpose.msra.mxu0 0.0
          %3591 = vmatpush.xpose.msra.mxu0 0.0
          %3592 = vmatpush.xpose.msra.mxu0 %v3576
          %3593 = vmatpush.xpose.msra.mxu0 %v3574
          %3594 = vmatmul.f32.gmra.mxu0 %v3570
          %v3595 = vpop.f32.mrf.mxu0
          %v3596 = vadd.f32 0.0, %v3595
          %3597 = vmatmul.f32.gmra.mxu0 %v3572
          %v3598 = vpop.f32.mrf.mxu0
          %v3599 = vadd.f32 0.0, %v3598
          %3600 = vdwg.mxu0
          %v3601 = vmul.f32 %v3596, 0.5
          %v3602 = vmul.f32 %v3599, 0.5
          %v3603 = vsel %vm3116, %v3601, -inf
          %3604 = vmax.xlane.f32.xlu0 %v3603
          %v3605 = vpop.xlane.xlu0 %3604
          %v3606 = vsel %vm3116, %v3602, -inf
          %3607 = vmax.xlane.f32.xlu0 %v3606
          %v3608 = vpop.xlane.xlu0 %3607
          %v3609 = vsub.f32 %v3601, %v3605
          %v3610 = vsub.f32 %v3602, %v3608
          %v3611 = vmul.f32 %v3609, 1.442695
          %v3612 = vpow.pop %v3611
          %v3613 = vmul.f32 %v3610, 1.442695
          %v3614 = vpow.pop %v3613
          %v3615 = vsel %vm3116, %v3612, 0.0
          %3616 = vadd.xlane.f32.xlu0 %v3615
          %v3617 = vpop.xlane.xlu0 %3616
          %v3618 = vsel %vm3116, %v3614, 0.0
          %3619 = vadd.xlane.f32.xlu0 %v3618
          %v3620 = vpop.xlane.xlu0 %3619
          %v3621 = vrcp.pop %v3617
          %v3622 = vrcp.pop %v3620
          %v3623 = vmul.f32 %v3612, %v3621
          %v3624 = vmul.f32 %v3614, %v3622
          %3625 = vrot.lane.b32.xlu0 %v3073, 108
          %v3626 = vpop.permute.xlu0 %3625
          %3627 = vrot.lane.b32.xlu0 %v3076, 108
          %v3628 = vpop.permute.xlu0 %3627
          %v3632 = vsel %vm3116, %v3623, 0
          %v3635 = vsel %vm3116, %v3624, 0
          %3637 = vmatpush.msra.mxu0 0.0
          %3638 = vmatpush.msra.mxu0 0.0
          %3639 = vmatpush.msra.mxu0 0.0
          %3640 = vmatpush.msra.mxu0 0.0
          %3641 = vmatpush.msra.mxu0 0.0
          %3642 = vmatpush.msra.mxu0 0.0
          %3643 = vmatpush.msra.mxu0 0.0
          %3644 = vmatpush.msra.mxu0 0.0
          %3645 = vmatpush.msra.mxu0 0.0
          %3646 = vmatpush.msra.mxu0 0.0
          %3647 = vmatpush.msra.mxu0 0.0
          %3648 = vmatpush.msra.mxu0 0.0
          %3649 = vmatpush.msra.mxu0 0.0
          %3650 = vmatpush.msra.mxu0 0.0
          %3651 = vmatpush.msra.mxu0 %v3628
          %3652 = vmatpush.msra.mxu0 %v3626
          %3653 = vmatmul.f32.gmra.mxu0 %v3632
          %v3654 = vpop.f32.mrf.mxu0
          %v3655 = vadd.f32 0.0, %v3654
          %3656 = vmatmul.f32.gmra.mxu0 %v3635
          %v3657 = vpop.f32.mrf.mxu0
          %v3658 = vadd.f32 0.0, %v3657
          %3659 = vdwg.mxu0
          %3660 = vrot.lane.b32.xlu0 %v3021, 104
          %v3661 = vpop.permute.xlu0 %3660
          %3662 = vrot.lane.b32.xlu0 %v3024, 104
          %v3663 = vpop.permute.xlu0 %3662
          %3664 = vrot.lane.b32.xlu0 %v3047, 104
          %v3665 = vpop.permute.xlu0 %3664
          %3666 = vrot.lane.b32.xlu0 %v3050, 104
          %v3667 = vpop.permute.xlu0 %3666
          %v3668 = vsel %vm3078, %v3661, 0
          %v3670 = vsel %vm3078, %v3663, 0
          %v3672 = vsel %vm3078, %v3665, 0
          %v3674 = vsel %vm3078, %v3667, 0
          %3676 = vmatpush.xpose.msra.mxu0 0.0
          %3677 = vmatpush.xpose.msra.mxu0 0.0
          %3678 = vmatpush.xpose.msra.mxu0 0.0
          %3679 = vmatpush.xpose.msra.mxu0 0.0
          %3680 = vmatpush.xpose.msra.mxu0 0.0
          %3681 = vmatpush.xpose.msra.mxu0 0.0
          %3682 = vmatpush.xpose.msra.mxu0 0.0
          %3683 = vmatpush.xpose.msra.mxu0 0.0
          %3684 = vmatpush.xpose.msra.mxu0 0.0
          %3685 = vmatpush.xpose.msra.mxu0 0.0
          %3686 = vmatpush.xpose.msra.mxu0 0.0
          %3687 = vmatpush.xpose.msra.mxu0 0.0
          %3688 = vmatpush.xpose.msra.mxu0 0.0
          %3689 = vmatpush.xpose.msra.mxu0 0.0
          %3690 = vmatpush.xpose.msra.mxu0 %v3674
          %3691 = vmatpush.xpose.msra.mxu0 %v3672
          %3692 = vmatmul.f32.gmra.mxu0 %v3668
          %v3693 = vpop.f32.mrf.mxu0
          %v3694 = vadd.f32 0.0, %v3693
          %3695 = vmatmul.f32.gmra.mxu0 %v3670
          %v3696 = vpop.f32.mrf.mxu0
          %v3697 = vadd.f32 0.0, %v3696
          %3698 = vdwg.mxu0
          %v3699 = vmul.f32 %v3694, 0.5
          %v3700 = vmul.f32 %v3697, 0.5
          %v3701 = vsel %vm3116, %v3699, -inf
          %3702 = vmax.xlane.f32.xlu0 %v3701
          %v3703 = vpop.xlane.xlu0 %3702
          %v3704 = vsel %vm3116, %v3700, -inf
          %3705 = vmax.xlane.f32.xlu0 %v3704
          %v3706 = vpop.xlane.xlu0 %3705
          %v3707 = vsub.f32 %v3699, %v3703
          %v3708 = vsub.f32 %v3700, %v3706
          %v3709 = vmul.f32 %v3707, 1.442695
          %v3710 = vpow.pop %v3709
          %v3711 = vmul.f32 %v3708, 1.442695
          %v3712 = vpow.pop %v3711
          %v3713 = vsel %vm3116, %v3710, 0.0
          %3714 = vadd.xlane.f32.xlu0 %v3713
          %v3715 = vpop.xlane.xlu0 %3714
          %v3716 = vsel %vm3116, %v3712, 0.0
          %3717 = vadd.xlane.f32.xlu0 %v3716
          %v3718 = vpop.xlane.xlu0 %3717
          %v3719 = vrcp.pop %v3715
          %v3720 = vrcp.pop %v3718
          %v3721 = vmul.f32 %v3710, %v3719
          %v3722 = vmul.f32 %v3712, %v3720
          %3723 = vrot.lane.b32.xlu0 %v3073, 104
          %v3724 = vpop.permute.xlu0 %3723
          %3725 = vrot.lane.b32.xlu0 %v3076, 104
          %v3726 = vpop.permute.xlu0 %3725
          %v3730 = vsel %vm3116, %v3721, 0
          %v3733 = vsel %vm3116, %v3722, 0
          %3735 = vmatpush.msra.mxu0 0.0
          %3736 = vmatpush.msra.mxu0 0.0
          %3737 = vmatpush.msra.mxu0 0.0
          %3738 = vmatpush.msra.mxu0 0.0
          %3739 = vmatpush.msra.mxu0 0.0
          %3740 = vmatpush.msra.mxu0 0.0
          %3741 = vmatpush.msra.mxu0 0.0
          %3742 = vmatpush.msra.mxu0 0.0
          %3743 = vmatpush.msra.mxu0 0.0
          %3744 = vmatpush.msra.mxu0 0.0
          %3745 = vmatpush.msra.mxu0 0.0
          %3746 = vmatpush.msra.mxu0 0.0
          %3747 = vmatpush.msra.mxu0 0.0
          %3748 = vmatpush.msra.mxu0 0.0
          %3749 = vmatpush.msra.mxu0 %v3726
          %3750 = vmatpush.msra.mxu0 %v3724
          %3751 = vmatmul.f32.gmra.mxu0 %v3730
          %v3752 = vpop.f32.mrf.mxu0
          %v3753 = vadd.f32 0.0, %v3752
          %3754 = vmatmul.f32.gmra.mxu0 %v3733
          %v3755 = vpop.f32.mrf.mxu0
          %v3756 = vadd.f32 0.0, %v3755
          %3757 = vdwg.mxu0
          %3758 = vrot.lane.b32.xlu0 %v3021, 100
          %v3759 = vpop.permute.xlu0 %3758
          %3760 = vrot.lane.b32.xlu0 %v3024, 100
          %v3761 = vpop.permute.xlu0 %3760
          %3762 = vrot.lane.b32.xlu0 %v3047, 100
          %v3763 = vpop.permute.xlu0 %3762
          %3764 = vrot.lane.b32.xlu0 %v3050, 100
          %v3765 = vpop.permute.xlu0 %3764
          %v3766 = vsel %vm3078, %v3759, 0
          %v3768 = vsel %vm3078, %v3761, 0
          %v3770 = vsel %vm3078, %v3763, 0
          %v3772 = vsel %vm3078, %v3765, 0
          %3774 = vmatpush.xpose.msra.mxu0 0.0
          %3775 = vmatpush.xpose.msra.mxu0 0.0
          %3776 = vmatpush.xpose.msra.mxu0 0.0
          %3777 = vmatpush.xpose.msra.mxu0 0.0
          %3778 = vmatpush.xpose.msra.mxu0 0.0
          %3779 = vmatpush.xpose.msra.mxu0 0.0
          %3780 = vmatpush.xpose.msra.mxu0 0.0
          %3781 = vmatpush.xpose.msra.mxu0 0.0
          %3782 = vmatpush.xpose.msra.mxu0 0.0
          %3783 = vmatpush.xpose.msra.mxu0 0.0
          %3784 = vmatpush.xpose.msra.mxu0 0.0
          %3785 = vmatpush.xpose.msra.mxu0 0.0
          %3786 = vmatpush.xpose.msra.mxu0 0.0
          %3787 = vmatpush.xpose.msra.mxu0 0.0
          %3788 = vmatpush.xpose.msra.mxu0 %v3772
          %3789 = vmatpush.xpose.msra.mxu0 %v3770
          %3790 = vmatmul.f32.gmra.mxu0 %v3766
          %v3791 = vpop.f32.mrf.mxu0
          %v3792 = vadd.f32 0.0, %v3791
          %3793 = vmatmul.f32.gmra.mxu0 %v3768
          %v3794 = vpop.f32.mrf.mxu0
          %v3795 = vadd.f32 0.0, %v3794
          %3796 = vdwg.mxu0
          %v3797 = vmul.f32 %v3792, 0.5
          %v3798 = vmul.f32 %v3795, 0.5
          %v3799 = vsel %vm3116, %v3797, -inf
          %3800 = vmax.xlane.f32.xlu0 %v3799
          %v3801 = vpop.xlane.xlu0 %3800
          %v3802 = vsel %vm3116, %v3798, -inf
          %3803 = vmax.xlane.f32.xlu0 %v3802
          %v3804 = vpop.xlane.xlu0 %3803
          %v3805 = vsub.f32 %v3797, %v3801
          %v3806 = vsub.f32 %v3798, %v3804
          %v3807 = vmul.f32 %v3805, 1.442695
          %v3808 = vpow.pop %v3807
          %v3809 = vmul.f32 %v3806, 1.442695
          %v3810 = vpow.pop %v3809
          %v3811 = vsel %vm3116, %v3808, 0.0
          %3812 = vadd.xlane.f32.xlu0 %v3811
          %v3813 = vpop.xlane.xlu0 %3812
          %v3814 = vsel %vm3116, %v3810, 0.0
          %3815 = vadd.xlane.f32.xlu0 %v3814
          %v3816 = vpop.xlane.xlu0 %3815
          %v3817 = vrcp.pop %v3813
          %v3818 = vrcp.pop %v3816
          %v3819 = vmul.f32 %v3808, %v3817
          %v3820 = vmul.f32 %v3810, %v3818
          %3821 = vrot.lane.b32.xlu0 %v3073, 100
          %v3822 = vpop.permute.xlu0 %3821
          %3823 = vrot.lane.b32.xlu0 %v3076, 100
          %v3824 = vpop.permute.xlu0 %3823
          %v3828 = vsel %vm3116, %v3819, 0
          %v3831 = vsel %vm3116, %v3820, 0
          %3833 = vmatpush.msra.mxu0 0.0
          %3834 = vmatpush.msra.mxu0 0.0
          %3835 = vmatpush.msra.mxu0 0.0
          %3836 = vmatpush.msra.mxu0 0.0
          %3837 = vmatpush.msra.mxu0 0.0
          %3838 = vmatpush.msra.mxu0 0.0
          %3839 = vmatpush.msra.mxu0 0.0
          %3840 = vmatpush.msra.mxu0 0.0
          %3841 = vmatpush.msra.mxu0 0.0
          %3842 = vmatpush.msra.mxu0 0.0
          %3843 = vmatpush.msra.mxu0 0.0
          %3844 = vmatpush.msra.mxu0 0.0
          %3845 = vmatpush.msra.mxu0 0.0
          %3846 = vmatpush.msra.mxu0 0.0
          %3847 = vmatpush.msra.mxu0 %v3824
          %3848 = vmatpush.msra.mxu0 %v3822
          %3849 = vmatmul.f32.gmra.mxu0 %v3828
          %v3850 = vpop.f32.mrf.mxu0
          %v3851 = vadd.f32 0.0, %v3850
          %3852 = vmatmul.f32.gmra.mxu0 %v3831
          %v3853 = vpop.f32.mrf.mxu0
          %v3854 = vadd.f32 0.0, %v3853
          %3855 = vdwg.mxu0
          %3858 = vrot.lane.b32.xlu0 %v3263, 4
          %v3859 = vpop.permute.xlu0 %3858
          %3860 = vrot.lane.b32.xlu0 %v3266, 4
          %v3861 = vpop.permute.xlu0 %3860
          %3866 = vrot.lane.b32.xlu0 %v3361, 8
          %v3867 = vpop.permute.xlu0 %3866
          %3868 = vrot.lane.b32.xlu0 %v3364, 8
          %v3869 = vpop.permute.xlu0 %3868
          %3874 = vrot.lane.b32.xlu0 %v3459, 12
          %v3875 = vpop.permute.xlu0 %3874
          %3876 = vrot.lane.b32.xlu0 %v3462, 12
          %v3877 = vpop.permute.xlu0 %3876
          %3882 = vrot.lane.b32.xlu0 %v3557, 16
          %v3883 = vpop.permute.xlu0 %3882
          %3884 = vrot.lane.b32.xlu0 %v3560, 16
          %v3885 = vpop.permute.xlu0 %3884
          %3890 = vrot.lane.b32.xlu0 %v3655, 20
          %v3891 = vpop.permute.xlu0 %3890
          %3892 = vrot.lane.b32.xlu0 %v3658, 20
          %v3893 = vpop.permute.xlu0 %3892
          %3898 = vrot.lane.b32.xlu0 %v3753, 24
          %v3899 = vpop.permute.xlu0 %3898
          %3900 = vrot.lane.b32.xlu0 %v3756, 24
          %v3901 = vpop.permute.xlu0 %3900
          %3906 = vrot.lane.b32.xlu0 %v3851, 28
          %v3907 = vpop.permute.xlu0 %3906
          %3908 = vrot.lane.b32.xlu0 %v3854, 28
          %v3909 = vpop.permute.xlu0 %3908
          %v3912 = vsel %vm3078, %v3163, %v3859
          %v3913 = vsel %vm3078, %v3166, %v3861
          %v3914 = vsel %vm2258, %v3912, %v3867
          %v3915 = vsel %vm2258, %v3913, %v3869
          %vm3916 = vcmask 97280
          %v3917 = vsel %vm3916, %v3914, %v3875
          %v3918 = vsel %vm3916, %v3915, %v3877
          %v3919 = vsel %vm3116, %v3917, %v3883
          %v3920 = vsel %vm3116, %v3918, %v3885
          %vm3921 = vcmask 162816
          %v3922 = vsel %vm3921, %v3919, %v3891
          %v3923 = vsel %vm3921, %v3920, %v3893
          %vm3924 = vcmask 195584
          %v3925 = vsel %vm3924, %v3922, %v3899
          %v3926 = vsel %vm3924, %v3923, %v3901
          %vm3927 = vcmask 228352
          %v3928 = vsel %vm3927, %v3925, %v3907
          %v3929 = vsel %vm3927, %v3926, %v3909
          %v3931 = vperm.slane %v2993, 0
          %v3934 = vsel %vm2368, %v3928, 0
          %v3937 = vsel %vm2368, %v3929, 0
          %3939 = vmatpush.msra.mxu0 0.0
          %3940 = vmatpush.msra.mxu0 0.0
          %3941 = vmatpush.msra.mxu0 0.0
          %3942 = vmatpush.msra.mxu0 0.0
          %3943 = vmatpush.msra.mxu0 0.0
          %3944 = vmatpush.msra.mxu0 0.0
          %3945 = vmatpush.msra.mxu0 0.0
          %3946 = vmatpush.msra.mxu0 0.0
          %3947 = vmatpush.msra.mxu0 0.0
          %3948 = vmatpush.msra.mxu0 0.0
          %3949 = vmatpush.msra.mxu0 0.0
          %3950 = vmatpush.msra.mxu0 0.0
          %3951 = vmatpush.msra.mxu0 %v2992
          %3952 = vmatpush.msra.mxu0 %v2991
          %3953 = vmatpush.msra.mxu0 %v2990
          %3954 = vmatpush.msra.mxu0 %v2989
          %3955 = vmatmul.f32.gmra.mxu0 %v3934
          %v3956 = vpop.f32.mrf.mxu0
          %v3957 = vadd.f32 %v3931, %v3956
          %3958 = vmatmul.f32.gmra.mxu0 %v3937
          %v3959 = vpop.f32.mrf.mxu0
          %v3960 = vadd.f32 %v3931, %v3959
          %3961 = vdwg.mxu0
          %v3962 = vadd.f32 %v2914, %v3957
          %v3963 = vadd.f32 %v2915, %v3960
          %v3964 = vsel %vm2368, %v3962, 0.0
          %3965 = vadd.xlane.f32.xlu0 %v3964
          %v3966 = vpop.xlane.xlu0 %3965
          %v3967 = vsel %vm2368, %v3963, 0.0
          %3968 = vadd.xlane.f32.xlu0 %v3967
          %v3969 = vpop.xlane.xlu0 %3968
          %v3970 = vmul.f32 %v3966, %v2381
          %v3971 = vmul.f32 %v3969, %v2381
          %v3972 = vsub.f32 %v3962, %v3970
          %v3973 = vsub.f32 %v3963, %v3971
          %v3974 = vmul.f32 %v3972, %v3972
          %v3975 = vmul.f32 %v3973, %v3973
          %v3976 = vsel %vm2368, %v3974, 0.0
          %3977 = vadd.xlane.f32.xlu0 %v3976
          %v3978 = vpop.xlane.xlu0 %3977
          %v3979 = vsel %vm2368, %v3975, 0.0
          %3980 = vadd.xlane.f32.xlu0 %v3979
          %v3981 = vpop.xlane.xlu0 %3980
          %v3982 = vmul.f32 %v3978, %v2381
          %v3983 = vmul.f32 %v3981, %v2381
          %v3984 = vadd.f32 %v3982, 1e-05
          %v3985 = vadd.f32 %v3983, 1e-05
          %v3986 = vrsqrt.pop %v3984
          %v3987 = vmul.f32 %v3986, %v3984
          %v3988 = vmul.f32 %v3987, %v3986
          %v3989 = vmul.f32 0.5, %v3988
          %v3990 = vsub.f32 1.5, %v3989
          %v3991 = vmul.f32 %v3986, %v3990
          %vm3992 = vweird.f32 %v3984
          %vm3993 = vweird.f32 %v3986
          %vm3994 = vmor %vm3992, %vm3993
          %v3995 = vsel %vm3994, %v3986, %v3991
          %v3996 = vrsqrt.pop %v3985
          %v3997 = vmul.f32 %v3996, %v3985
          %v3998 = vmul.f32 %v3997, %v3996
          %v3999 = vmul.f32 0.5, %v3998
          %v4000 = vsub.f32 1.5, %v3999
          %v4001 = vmul.f32 %v3996, %v4000
          %vm4002 = vweird.f32 %v3985
          %vm4003 = vweird.f32 %v3996
          %vm4004 = vmor %vm4002, %vm4003
          %v4005 = vsel %vm4004, %v3996, %v4001
          %v4006 = vmul.f32 %v3972, %v3995
          %v4007 = vmul.f32 %v3973, %v4005
          %v4009 = vperm.slane %v2918, 0
          %v4011 = vmul.f32 %v4006, %v4009
          %v4012 = vmul.f32 %v4007, %v4009
          %v4014 = vperm.slane %v2919, 0
          %v4016 = vadd.f32 %v4011, %v4014
          %v4017 = vadd.f32 %v4012, %v4014
          %v4018 = vld [vmem:[#allocation38] sm:$0xff]
          %v4019 = vld [vmem:[#allocation38 + $0x8] sm:$0xff]
          %v4020 = vld [vmem:[#allocation38 + $0x10] sm:$0xff]
          %v4021 = vld [vmem:[#allocation38 + $0x18] sm:$0xff]
          %v4022 = vld [vmem:[#allocation40] sm:$0x1]
          %v4023 = vld [vmem:[#allocation41] sm:$0xff]
          %v4024 = vld [vmem:[#allocation41 + $0x8] sm:$0xff]
          %v4025 = vld [vmem:[#allocation41 + $0x10] sm:$0xff]
          %v4026 = vld [vmem:[#allocation41 + $0x18] sm:$0xff]
          %v4027 = vld [vmem:[#allocation43] sm:$0x1]
          %v4029 = vperm.slane %v4022, 0
          %v4032 = vsel %vm2368, %v4016, 0
          %v4035 = vsel %vm2368, %v4017, 0
          %4037 = vmatpush.msra.mxu0 0.0
          %4038 = vmatpush.msra.mxu0 0.0
          %4039 = vmatpush.msra.mxu0 0.0
          %4040 = vmatpush.msra.mxu0 0.0
          %4041 = vmatpush.msra.mxu0 0.0
          %4042 = vmatpush.msra.mxu0 0.0
          %4043 = vmatpush.msra.mxu0 0.0
          %4044 = vmatpush.msra.mxu0 0.0
          %4045 = vmatpush.msra.mxu0 0.0
          %4046 = vmatpush.msra.mxu0 0.0
          %4047 = vmatpush.msra.mxu0 0.0
          %4048 = vmatpush.msra.mxu0 0.0
          %4049 = vmatpush.msra.mxu0 %v4021
          %4050 = vmatpush.msra.mxu0 %v4020
          %4051 = vmatpush.msra.mxu0 %v4019
          %4052 = vmatpush.msra.mxu0 %v4018
          %4053 = vmatmul.f32.gmra.mxu0 %v4032
          %v4054 = vpop.f32.mrf.mxu0
          %v4055 = vadd.f32 %v4029, %v4054
          %4056 = vmatmul.f32.gmra.mxu0 %v4035
          %v4057 = vpop.f32.mrf.mxu0
          %v4058 = vadd.f32 %v4029, %v4057
          %4059 = vdwg.mxu0
          %v4060 = vmul.f32 %v4055, 0.5
          %v4061 = vmul.f32 %v4058, 0.5
          %v4062 = vmul.f32 %v4055, 0.70710677
          %v4063 = vmul.f32 %v4058, 0.70710677
          %v4064 = vmul.f32 %v4062, %v4062
          %v4065 = vmin.f32 16.0, %v4064
          %v4066 = vmul.f32 %v4065, 2.1237322e-06
          %v4067 = vadd.f32 %v4066, 0.00028619796
          %v4068 = vmul.f32 %v4065, %v4067
          %v4069 = vadd.f32 %v4068, 0.0036580483
          %v4070 = vmul.f32 %v4065, %v4069
          %v4071 = vadd.f32 %v4070, 0.05243302
          %v4072 = vmul.f32 %v4065, %v4071
          %v4073 = vadd.f32 %v4072, 0.18741608
          %v4074 = vmul.f32 %v4065, %v4073
          %v4075 = vadd.f32 %v4074, 1.1283791
          %v4076 = vmul.f32 %v4062, %v4075
          %v4077 = vmul.f32 %v4065, 3.8918573e-05
          %v4078 = vadd.f32 %v4077, 0.001143296
          %v4079 = vmul.f32 %v4065, %v4078
          %v4080 = vadd.f32 %v4079, 0.014752088
          %v4081 = vmul.f32 %v4065, %v4080
          %v4082 = vadd.f32 %v4081, 0.112945676
          %v4083 = vmul.f32 %v4065, %v4082
          %v4084 = vadd.f32 %v4083, 0.4994258
          %v4085 = vmul.f32 %v4065, %v4084
          %v4086 = vadd.f32 %v4085, 1.0
          %v4087 = vrcp.pop %v4086
          %v4088 = vmul.f32 %v4086, %v4087
          %v4089 = vsub.f32 1.0, %v4088
          %v4090 = vmul.f32 %v4087, %v4089
          %v4091 = vadd.f32 %v4087, %v4090
          %vm4092 = vweird.f32 %v4086
          %vm4093 = vweird.f32 %v4087
          %vm4094 = vmor %vm4092, %vm4093
          %v4095 = vsel %vm4094, %v4087, %v4091
          %v4096 = vand.u32 2147483647, %v4086
          %vm4097 = vcmp.eq.f32.partialorder %v4096, 8.507059e+37
          %v4098 = vand.u32 %v4086, 2147483648
          %v4099 = vor.u32 1.1754944e-38, %v4098
          %v4100 = vsel %vm4097, %v4099, %v4095
          %v4101 = vmul.f32 %v4076, %v4100
          %v4102 = vmin.f32 %v4101, 1.0
          %v4103 = vmax.f32 %v4102, -1.0
          %v4104 = vmul.f32 %v4063, %v4063
          %v4105 = vmin.f32 16.0, %v4104
          %v4106 = vmul.f32 %v4105, 2.1237322e-06
          %v4107 = vadd.f32 %v4106, 0.00028619796
          %v4108 = vmul.f32 %v4105, %v4107
          %v4109 = vadd.f32 %v4108, 0.0036580483
          %v4110 = vmul.f32 %v4105, %v4109
          %v4111 = vadd.f32 %v4110, 0.05243302
          %v4112 = vmul.f32 %v4105, %v4111
          %v4113 = vadd.f32 %v4112, 0.18741608
          %v4114 = vmul.f32 %v4105, %v4113
          %v4115 = vadd.f32 %v4114, 1.1283791
          %v4116 = vmul.f32 %v4063, %v4115
          %v4117 = vmul.f32 %v4105, 3.8918573e-05
          %v4118 = vadd.f32 %v4117, 0.001143296
          %v4119 = vmul.f32 %v4105, %v4118
          %v4120 = vadd.f32 %v4119, 0.014752088
          %v4121 = vmul.f32 %v4105, %v4120
          %v4122 = vadd.f32 %v4121, 0.112945676
          %v4123 = vmul.f32 %v4105, %v4122
          %v4124 = vadd.f32 %v4123, 0.4994258
          %v4125 = vmul.f32 %v4105, %v4124
          %v4126 = vadd.f32 %v4125, 1.0
          %v4127 = vrcp.pop %v4126
          %v4128 = vmul.f32 %v4126, %v4127
          %v4129 = vsub.f32 1.0, %v4128
          %v4130 = vmul.f32 %v4127, %v4129
          %v4131 = vadd.f32 %v4127, %v4130
          %vm4132 = vweird.f32 %v4126
          %vm4133 = vweird.f32 %v4127
          %vm4134 = vmor %vm4132, %vm4133
          %v4135 = vsel %vm4134, %v4127, %v4131
          %v4136 = vand.u32 2147483647, %v4126
          %vm4137 = vcmp.eq.f32.partialorder %v4136, 8.507059e+37
          %v4138 = vand.u32 %v4126, 2147483648
          %v4139 = vor.u32 1.1754944e-38, %v4138
          %v4140 = vsel %vm4137, %v4139, %v4135
          %v4141 = vmul.f32 %v4116, %v4140
          %v4142 = vmin.f32 %v4141, 1.0
          %v4143 = vmax.f32 %v4142, -1.0
          %v4144 = vadd.f32 %v4103, 1.0
          %v4145 = vadd.f32 %v4143, 1.0
          %v4146 = vmul.f32 %v4060, %v4144
          %v4147 = vmul.f32 %v4061, %v4145
          %v4149 = vperm.slane %v4027, 0
          %v4152 = vsel %vm2368, %v4146, 0
          %v4155 = vsel %vm2368, %v4147, 0
          %4157 = vmatpush.msra.mxu0 0.0
          %4158 = vmatpush.msra.mxu0 0.0
          %4159 = vmatpush.msra.mxu0 0.0
          %4160 = vmatpush.msra.mxu0 0.0
          %4161 = vmatpush.msra.mxu0 0.0
          %4162 = vmatpush.msra.mxu0 0.0
          %4163 = vmatpush.msra.mxu0 0.0
          %4164 = vmatpush.msra.mxu0 0.0
          %4165 = vmatpush.msra.mxu0 0.0
          %4166 = vmatpush.msra.mxu0 0.0
          %4167 = vmatpush.msra.mxu0 0.0
          %4168 = vmatpush.msra.mxu0 0.0
          %4169 = vmatpush.msra.mxu0 %v4026
          %4170 = vmatpush.msra.mxu0 %v4025
          %4171 = vmatpush.msra.mxu0 %v4024
          %4172 = vmatpush.msra.mxu0 %v4023
          %4173 = vmatmul.f32.gmra.mxu0 %v4152
          %v4174 = vpop.f32.mrf.mxu0
          %v4175 = vadd.f32 %v4149, %v4174
          %4176 = vmatmul.f32.gmra.mxu0 %v4155
          %v4177 = vpop.f32.mrf.mxu0
          %v4178 = vadd.f32 %v4149, %v4177
          %4179 = vdwg.mxu0
          %v4180 = vadd.f32 %v3962, %v4175
          %v4181 = vadd.f32 %v3963, %v4178
          %v4182 = vld [vmem:[#allocation44] sm:$0x1]
          %v4183 = vld [vmem:[#allocation46] sm:$0x1]
          %v4184 = vld [vmem:[#allocation47] sm:$0x1]
          %v4185 = vld [vmem:[#allocation49] sm:$0x1]
          %v4186 = vsel %vm2368, %v4180, 0.0
          %4187 = vadd.xlane.f32.xlu0 %v4186
          %v4188 = vpop.xlane.xlu0 %4187
          %v4189 = vsel %vm2368, %v4181, 0.0
          %4190 = vadd.xlane.f32.xlu0 %v4189
          %v4191 = vpop.xlane.xlu0 %4190
          %v4192 = vmul.f32 %v4188, %v2381
          %v4193 = vmul.f32 %v4191, %v2381
          %v4194 = vsub.f32 %v4180, %v4192
          %v4195 = vsub.f32 %v4181, %v4193
          %v4196 = vmul.f32 %v4194, %v4194
          %v4197 = vmul.f32 %v4195, %v4195
          %v4198 = vsel %vm2368, %v4196, 0.0
          %4199 = vadd.xlane.f32.xlu0 %v4198
          %v4200 = vpop.xlane.xlu0 %4199
          %v4201 = vsel %vm2368, %v4197, 0.0
          %4202 = vadd.xlane.f32.xlu0 %v4201
          %v4203 = vpop.xlane.xlu0 %4202
          %v4204 = vmul.f32 %v4200, %v2381
          %v4205 = vmul.f32 %v4203, %v2381
          %v4206 = vadd.f32 %v4204, 1e-05
          %v4207 = vadd.f32 %v4205, 1e-05
          %v4208 = vrsqrt.pop %v4206
          %v4209 = vmul.f32 %v4208, %v4206
          %v4210 = vmul.f32 %v4209, %v4208
          %v4211 = vmul.f32 0.5, %v4210
          %v4212 = vsub.f32 1.5, %v4211
          %v4213 = vmul.f32 %v4208, %v4212
          %vm4214 = vweird.f32 %v4206
          %vm4215 = vweird.f32 %v4208
          %vm4216 = vmor %vm4214, %vm4215
          %v4217 = vsel %vm4216, %v4208, %v4213
          %v4218 = vrsqrt.pop %v4207
          %v4219 = vmul.f32 %v4218, %v4207
          %v4220 = vmul.f32 %v4219, %v4218
          %v4221 = vmul.f32 0.5, %v4220
          %v4222 = vsub.f32 1.5, %v4221
          %v4223 = vmul.f32 %v4218, %v4222
          %vm4224 = vweird.f32 %v4207
          %vm4225 = vweird.f32 %v4218
          %vm4226 = vmor %vm4224, %vm4225
          %v4227 = vsel %vm4226, %v4218, %v4223
          %v4228 = vmul.f32 %v4194, %v4217
          %v4229 = vmul.f32 %v4195, %v4227
          %v4231 = vperm.slane %v4182, 0
          %v4233 = vmul.f32 %v4228, %v4231
          %v4234 = vmul.f32 %v4229, %v4231
          %v4236 = vperm.slane %v4183, 0
          %v4238 = vadd.f32 %v4233, %v4236
          %v4239 = vadd.f32 %v4234, %v4236
          %v4240 = vld [vmem:[#allocation50] sm:$0xff]
          %v4241 = vld [vmem:[#allocation50 + $0x8] sm:$0xff]
          %v4242 = vld [vmem:[#allocation50 + $0x10] sm:$0xff]
          %v4243 = vld [vmem:[#allocation50 + $0x18] sm:$0xff]
          %v4244 = vld [vmem:[#allocation52] sm:$0x1]
          %v4245 = vld [vmem:[#allocation53] sm:$0xff]
          %v4246 = vld [vmem:[#allocation53 + $0x8] sm:$0xff]
          %v4247 = vld [vmem:[#allocation53 + $0x10] sm:$0xff]
          %v4248 = vld [vmem:[#allocation53 + $0x18] sm:$0xff]
          %v4249 = vld [vmem:[#allocation55] sm:$0x1]
          %v4250 = vld [vmem:[#allocation56] sm:$0xff]
          %v4251 = vld [vmem:[#allocation56 + $0x8] sm:$0xff]
          %v4252 = vld [vmem:[#allocation56 + $0x10] sm:$0xff]
          %v4253 = vld [vmem:[#allocation56 + $0x18] sm:$0xff]
          %v4254 = vld [vmem:[#allocation58] sm:$0x1]
          %v4255 = vld [vmem:[#allocation59] sm:$0xff]
          %v4256 = vld [vmem:[#allocation59 + $0x8] sm:$0xff]
          %v4257 = vld [vmem:[#allocation59 + $0x10] sm:$0xff]
          %v4258 = vld [vmem:[#allocation59 + $0x18] sm:$0xff]
          %v4259 = vld [vmem:[#allocation61] sm:$0x1]
          %v4261 = vperm.slane %v4244, 0
          %v4264 = vsel %vm2368, %v4238, 0
          %v4267 = vsel %vm2368, %v4239, 0
          %4269 = vmatpush.msra.mxu0 0.0
          %4270 = vmatpush.msra.mxu0 0.0
          %4271 = vmatpush.msra.mxu0 0.0
          %4272 = vmatpush.msra.mxu0 0.0
          %4273 = vmatpush.msra.mxu0 0.0
          %4274 = vmatpush.msra.mxu0 0.0
          %4275 = vmatpush.msra.mxu0 0.0
          %4276 = vmatpush.msra.mxu0 0.0
          %4277 = vmatpush.msra.mxu0 0.0
          %4278 = vmatpush.msra.mxu0 0.0
          %4279 = vmatpush.msra.mxu0 0.0
          %4280 = vmatpush.msra.mxu0 0.0
          %4281 = vmatpush.msra.mxu0 %v4243
          %4282 = vmatpush.msra.mxu0 %v4242
          %4283 = vmatpush.msra.mxu0 %v4241
          %4284 = vmatpush.msra.mxu0 %v4240
          %4285 = vmatmul.f32.gmra.mxu0 %v4264
          %v4286 = vpop.f32.mrf.mxu0
          %v4287 = vadd.f32 %v4261, %v4286
          %4288 = vmatmul.f32.gmra.mxu0 %v4267
          %v4289 = vpop.f32.mrf.mxu0
          %v4290 = vadd.f32 %v4261, %v4289
          %4291 = vdwg.mxu0
          %v4293 = vperm.slane %v4249, 0
          %4295 = vmatpush.msra.mxu0 0.0
          %4296 = vmatpush.msra.mxu0 0.0
          %4297 = vmatpush.msra.mxu0 0.0
          %4298 = vmatpush.msra.mxu0 0.0
          %4299 = vmatpush.msra.mxu0 0.0
          %4300 = vmatpush.msra.mxu0 0.0
          %4301 = vmatpush.msra.mxu0 0.0
          %4302 = vmatpush.msra.mxu0 0.0
          %4303 = vmatpush.msra.mxu0 0.0
          %4304 = vmatpush.msra.mxu0 0.0
          %4305 = vmatpush.msra.mxu0 0.0
          %4306 = vmatpush.msra.mxu0 0.0
          %4307 = vmatpush.msra.mxu0 %v4248
          %4308 = vmatpush.msra.mxu0 %v4247
          %4309 = vmatpush.msra.mxu0 %v4246
          %4310 = vmatpush.msra.mxu0 %v4245
          %4311 = vmatmul.f32.gmra.mxu0 %v4264
          %v4312 = vpop.f32.mrf.mxu0
          %v4313 = vadd.f32 %v4293, %v4312
          %4314 = vmatmul.f32.gmra.mxu0 %v4267
          %v4315 = vpop.f32.mrf.mxu0
          %v4316 = vadd.f32 %v4293, %v4315
          %4317 = vdwg.mxu0
          %v4319 = vperm.slane %v4254, 0
          %4321 = vmatpush.msra.mxu0 0.0
          %4322 = vmatpush.msra.mxu0 0.0
          %4323 = vmatpush.msra.mxu0 0.0
          %4324 = vmatpush.msra.mxu0 0.0
          %4325 = vmatpush.msra.mxu0 0.0
          %4326 = vmatpush.msra.mxu0 0.0
          %4327 = vmatpush.msra.mxu0 0.0
          %4328 = vmatpush.msra.mxu0 0.0
          %4329 = vmatpush.msra.mxu0 0.0
          %4330 = vmatpush.msra.mxu0 0.0
          %4331 = vmatpush.msra.mxu0 0.0
          %4332 = vmatpush.msra.mxu0 0.0
          %4333 = vmatpush.msra.mxu0 %v4253
          %4334 = vmatpush.msra.mxu0 %v4252
          %4335 = vmatpush.msra.mxu0 %v4251
          %4336 = vmatpush.msra.mxu0 %v4250
          %4337 = vmatmul.f32.gmra.mxu0 %v4264
          %v4338 = vpop.f32.mrf.mxu0
          %v4339 = vadd.f32 %v4319, %v4338
          %4340 = vmatmul.f32.gmra.mxu0 %v4267
          %v4341 = vpop.f32.mrf.mxu0
          %v4342 = vadd.f32 %v4319, %v4341
          %4343 = vdwg.mxu0
          %v4345 = vsel %vm3078, %v4287, 0
          %v4348 = vsel %vm3078, %v4290, 0
          %v4351 = vsel %vm3078, %v4313, 0
          %v4354 = vsel %vm3078, %v4316, 0
          %4356 = vmatpush.xpose.msra.mxu0 0.0
          %4357 = vmatpush.xpose.msra.mxu0 0.0
          %4358 = vmatpush.xpose.msra.mxu0 0.0
          %4359 = vmatpush.xpose.msra.mxu0 0.0
          %4360 = vmatpush.xpose.msra.mxu0 0.0
          %4361 = vmatpush.xpose.msra.mxu0 0.0
          %4362 = vmatpush.xpose.msra.mxu0 0.0
          %4363 = vmatpush.xpose.msra.mxu0 0.0
          %4364 = vmatpush.xpose.msra.mxu0 0.0
          %4365 = vmatpush.xpose.msra.mxu0 0.0
          %4366 = vmatpush.xpose.msra.mxu0 0.0
          %4367 = vmatpush.xpose.msra.mxu0 0.0
          %4368 = vmatpush.xpose.msra.mxu0 0.0
          %4369 = vmatpush.xpose.msra.mxu0 0.0
          %4370 = vmatpush.xpose.msra.mxu0 %v4354
          %4371 = vmatpush.xpose.msra.mxu0 %v4351
          %4372 = vmatmul.f32.gmra.mxu0 %v4345
          %v4373 = vpop.f32.mrf.mxu0
          %v4374 = vadd.f32 0.0, %v4373
          %4375 = vmatmul.f32.gmra.mxu0 %v4348
          %v4376 = vpop.f32.mrf.mxu0
          %v4377 = vadd.f32 0.0, %v4376
          %4378 = vdwg.mxu0
          %v4379 = vmul.f32 %v4374, 0.5
          %v4380 = vmul.f32 %v4377, 0.5
          %v4381 = vsel %vm3116, %v4379, -inf
          %4382 = vmax.xlane.f32.xlu0 %v4381
          %v4383 = vpop.xlane.xlu0 %4382
          %v4384 = vsel %vm3116, %v4380, -inf
          %4385 = vmax.xlane.f32.xlu0 %v4384
          %v4386 = vpop.xlane.xlu0 %4385
          %v4387 = vsub.f32 %v4379, %v4383
          %v4388 = vsub.f32 %v4380, %v4386
          %v4389 = vmul.f32 %v4387, 1.442695
          %v4390 = vpow.pop %v4389
          %v4391 = vmul.f32 %v4388, 1.442695
          %v4392 = vpow.pop %v4391
          %v4393 = vsel %vm3116, %v4390, 0.0
          %4394 = vadd.xlane.f32.xlu0 %v4393
          %v4395 = vpop.xlane.xlu0 %4394
          %v4396 = vsel %vm3116, %v4392, 0.0
          %4397 = vadd.xlane.f32.xlu0 %v4396
          %v4398 = vpop.xlane.xlu0 %4397
          %v4399 = vrcp.pop %v4395
          %v4400 = vrcp.pop %v4398
          %v4401 = vmul.f32 %v4390, %v4399
          %v4402 = vmul.f32 %v4392, %v4400
          %v4404 = vsel %vm3116, %v4401, 0
          %v4407 = vsel %vm3116, %v4402, 0
          %4409 = vmatpush.msra.mxu0 0.0
          %4410 = vmatpush.msra.mxu0 0.0
          %4411 = vmatpush.msra.mxu0 0.0
          %4412 = vmatpush.msra.mxu0 0.0
          %4413 = vmatpush.msra.mxu0 0.0
          %4414 = vmatpush.msra.mxu0 0.0
          %4415 = vmatpush.msra.mxu0 0.0
          %4416 = vmatpush.msra.mxu0 0.0
          %4417 = vmatpush.msra.mxu0 0.0
          %4418 = vmatpush.msra.mxu0 0.0
          %4419 = vmatpush.msra.mxu0 0.0
          %4420 = vmatpush.msra.mxu0 0.0
          %4421 = vmatpush.msra.mxu0 0.0
          %4422 = vmatpush.msra.mxu0 0.0
          %4423 = vmatpush.msra.mxu0 %v4342
          %4424 = vmatpush.msra.mxu0 %v4339
          %4425 = vmatmul.f32.gmra.mxu0 %v4404
          %v4426 = vpop.f32.mrf.mxu0
          %v4427 = vadd.f32 0.0, %v4426
          %4428 = vmatmul.f32.gmra.mxu0 %v4407
          %v4429 = vpop.f32.mrf.mxu0
          %v4430 = vadd.f32 0.0, %v4429
          %4431 = vdwg.mxu0
          %4432 = vrot.lane.b32.xlu0 %v4287, 124
          %v4433 = vpop.permute.xlu0 %4432
          %4434 = vrot.lane.b32.xlu0 %v4290, 124
          %v4435 = vpop.permute.xlu0 %4434
          %4436 = vrot.lane.b32.xlu0 %v4313, 124
          %v4437 = vpop.permute.xlu0 %4436
          %4438 = vrot.lane.b32.xlu0 %v4316, 124
          %v4439 = vpop.permute.xlu0 %4438
          %v4440 = vsel %vm3078, %v4433, 0
          %v4442 = vsel %vm3078, %v4435, 0
          %v4444 = vsel %vm3078, %v4437, 0
          %v4446 = vsel %vm3078, %v4439, 0
          %4448 = vmatpush.xpose.msra.mxu0 0.0
          %4449 = vmatpush.xpose.msra.mxu0 0.0
          %4450 = vmatpush.xpose.msra.mxu0 0.0
          %4451 = vmatpush.xpose.msra.mxu0 0.0
          %4452 = vmatpush.xpose.msra.mxu0 0.0
          %4453 = vmatpush.xpose.msra.mxu0 0.0
          %4454 = vmatpush.xpose.msra.mxu0 0.0
          %4455 = vmatpush.xpose.msra.mxu0 0.0
          %4456 = vmatpush.xpose.msra.mxu0 0.0
          %4457 = vmatpush.xpose.msra.mxu0 0.0
          %4458 = vmatpush.xpose.msra.mxu0 0.0
          %4459 = vmatpush.xpose.msra.mxu0 0.0
          %4460 = vmatpush.xpose.msra.mxu0 0.0
          %4461 = vmatpush.xpose.msra.mxu0 0.0
          %4462 = vmatpush.xpose.msra.mxu0 %v4446
          %4463 = vmatpush.xpose.msra.mxu0 %v4444
          %4464 = vmatmul.f32.gmra.mxu0 %v4440
          %v4465 = vpop.f32.mrf.mxu0
          %v4466 = vadd.f32 0.0, %v4465
          %4467 = vmatmul.f32.gmra.mxu0 %v4442
          %v4468 = vpop.f32.mrf.mxu0
          %v4469 = vadd.f32 0.0, %v4468
          %4470 = vdwg.mxu0
          %v4471 = vmul.f32 %v4466, 0.5
          %v4472 = vmul.f32 %v4469, 0.5
          %v4473 = vsel %vm3116, %v4471, -inf
          %4474 = vmax.xlane.f32.xlu0 %v4473
          %v4475 = vpop.xlane.xlu0 %4474
          %v4476 = vsel %vm3116, %v4472, -inf
          %4477 = vmax.xlane.f32.xlu0 %v4476
          %v4478 = vpop.xlane.xlu0 %4477
          %v4479 = vsub.f32 %v4471, %v4475
          %v4480 = vsub.f32 %v4472, %v4478
          %v4481 = vmul.f32 %v4479, 1.442695
          %v4482 = vpow.pop %v4481
          %v4483 = vmul.f32 %v4480, 1.442695
          %v4484 = vpow.pop %v4483
          %v4485 = vsel %vm3116, %v4482, 0.0
          %4486 = vadd.xlane.f32.xlu0 %v4485
          %v4487 = vpop.xlane.xlu0 %4486
          %v4488 = vsel %vm3116, %v4484, 0.0
          %4489 = vadd.xlane.f32.xlu0 %v4488
          %v4490 = vpop.xlane.xlu0 %4489
          %v4491 = vrcp.pop %v4487
          %v4492 = vrcp.pop %v4490
          %v4493 = vmul.f32 %v4482, %v4491
          %v4494 = vmul.f32 %v4484, %v4492
          %4497 = vrot.lane.b32.xlu0 %v4339, 124
          %v4498 = vpop.permute.xlu0 %4497
          %4499 = vrot.lane.b32.xlu0 %v4342, 124
          %v4500 = vpop.permute.xlu0 %4499
          %v4504 = vsel %vm3116, %v4493, 0
          %v4507 = vsel %vm3116, %v4494, 0
          %4509 = vmatpush.msra.mxu0 0.0
          %4510 = vmatpush.msra.mxu0 0.0
          %4511 = vmatpush.msra.mxu0 0.0
          %4512 = vmatpush.msra.mxu0 0.0
          %4513 = vmatpush.msra.mxu0 0.0
          %4514 = vmatpush.msra.mxu0 0.0
          %4515 = vmatpush.msra.mxu0 0.0
          %4516 = vmatpush.msra.mxu0 0.0
          %4517 = vmatpush.msra.mxu0 0.0
          %4518 = vmatpush.msra.mxu0 0.0
          %4519 = vmatpush.msra.mxu0 0.0
          %4520 = vmatpush.msra.mxu0 0.0
          %4521 = vmatpush.msra.mxu0 0.0
          %4522 = vmatpush.msra.mxu0 0.0
          %4523 = vmatpush.msra.mxu0 %v4500
          %4524 = vmatpush.msra.mxu0 %v4498
          %4525 = vmatmul.f32.gmra.mxu0 %v4504
          %v4526 = vpop.f32.mrf.mxu0
          %v4527 = vadd.f32 0.0, %v4526
          %4528 = vmatmul.f32.gmra.mxu0 %v4507
          %v4529 = vpop.f32.mrf.mxu0
          %v4530 = vadd.f32 0.0, %v4529
          %4531 = vdwg.mxu0
          %4532 = vrot.lane.b32.xlu0 %v4287, 120
          %v4533 = vpop.permute.xlu0 %4532
          %4534 = vrot.lane.b32.xlu0 %v4290, 120
          %v4535 = vpop.permute.xlu0 %4534
          %4536 = vrot.lane.b32.xlu0 %v4313, 120
          %v4537 = vpop.permute.xlu0 %4536
          %4538 = vrot.lane.b32.xlu0 %v4316, 120
          %v4539 = vpop.permute.xlu0 %4538
          %v4540 = vsel %vm3078, %v4533, 0
          %v4542 = vsel %vm3078, %v4535, 0
          %v4544 = vsel %vm3078, %v4537, 0
          %v4546 = vsel %vm3078, %v4539, 0
          %4548 = vmatpush.xpose.msra.mxu0 0.0
          %4549 = vmatpush.xpose.msra.mxu0 0.0
          %4550 = vmatpush.xpose.msra.mxu0 0.0
          %4551 = vmatpush.xpose.msra.mxu0 0.0
          %4552 = vmatpush.xpose.msra.mxu0 0.0
          %4553 = vmatpush.xpose.msra.mxu0 0.0
          %4554 = vmatpush.xpose.msra.mxu0 0.0
          %4555 = vmatpush.xpose.msra.mxu0 0.0
          %4556 = vmatpush.xpose.msra.mxu0 0.0
          %4557 = vmatpush.xpose.msra.mxu0 0.0
          %4558 = vmatpush.xpose.msra.mxu0 0.0
          %4559 = vmatpush.xpose.msra.mxu0 0.0
          %4560 = vmatpush.xpose.msra.mxu0 0.0
          %4561 = vmatpush.xpose.msra.mxu0 0.0
          %4562 = vmatpush.xpose.msra.mxu0 %v4546
          %4563 = vmatpush.xpose.msra.mxu0 %v4544
          %4564 = vmatmul.f32.gmra.mxu0 %v4540
          %v4565 = vpop.f32.mrf.mxu0
          %v4566 = vadd.f32 0.0, %v4565
          %4567 = vmatmul.f32.gmra.mxu0 %v4542
          %v4568 = vpop.f32.mrf.mxu0
          %v4569 = vadd.f32 0.0, %v4568
          %4570 = vdwg.mxu0
          %v4571 = vmul.f32 %v4566, 0.5
          %v4572 = vmul.f32 %v4569, 0.5
          %v4573 = vsel %vm3116, %v4571, -inf
          %4574 = vmax.xlane.f32.xlu0 %v4573
          %v4575 = vpop.xlane.xlu0 %4574
          %v4576 = vsel %vm3116, %v4572, -inf
          %4577 = vmax.xlane.f32.xlu0 %v4576
          %v4578 = vpop.xlane.xlu0 %4577
          %v4579 = vsub.f32 %v4571, %v4575
          %v4580 = vsub.f32 %v4572, %v4578
          %v4581 = vmul.f32 %v4579, 1.442695
          %v4582 = vpow.pop %v4581
          %v4583 = vmul.f32 %v4580, 1.442695
          %v4584 = vpow.pop %v4583
          %v4585 = vsel %vm3116, %v4582, 0.0
          %4586 = vadd.xlane.f32.xlu0 %v4585
          %v4587 = vpop.xlane.xlu0 %4586
          %v4588 = vsel %vm3116, %v4584, 0.0
          %4589 = vadd.xlane.f32.xlu0 %v4588
          %v4590 = vpop.xlane.xlu0 %4589
          %v4591 = vrcp.pop %v4587
          %v4592 = vrcp.pop %v4590
          %v4593 = vmul.f32 %v4582, %v4591
          %v4594 = vmul.f32 %v4584, %v4592
          %4595 = vrot.lane.b32.xlu0 %v4339, 120
          %v4596 = vpop.permute.xlu0 %4595
          %4597 = vrot.lane.b32.xlu0 %v4342, 120
          %v4598 = vpop.permute.xlu0 %4597
          %v4602 = vsel %vm3116, %v4593, 0
          %v4605 = vsel %vm3116, %v4594, 0
          %4607 = vmatpush.msra.mxu0 0.0
          %4608 = vmatpush.msra.mxu0 0.0
          %4609 = vmatpush.msra.mxu0 0.0
          %4610 = vmatpush.msra.mxu0 0.0
          %4611 = vmatpush.msra.mxu0 0.0
          %4612 = vmatpush.msra.mxu0 0.0
          %4613 = vmatpush.msra.mxu0 0.0
          %4614 = vmatpush.msra.mxu0 0.0
          %4615 = vmatpush.msra.mxu0 0.0
          %4616 = vmatpush.msra.mxu0 0.0
          %4617 = vmatpush.msra.mxu0 0.0
          %4618 = vmatpush.msra.mxu0 0.0
          %4619 = vmatpush.msra.mxu0 0.0
          %4620 = vmatpush.msra.mxu0 0.0
          %4621 = vmatpush.msra.mxu0 %v4598
          %4622 = vmatpush.msra.mxu0 %v4596
          %4623 = vmatmul.f32.gmra.mxu0 %v4602
          %v4624 = vpop.f32.mrf.mxu0
          %v4625 = vadd.f32 0.0, %v4624
          %4626 = vmatmul.f32.gmra.mxu0 %v4605
          %v4627 = vpop.f32.mrf.mxu0
          %v4628 = vadd.f32 0.0, %v4627
          %4629 = vdwg.mxu0
          %4630 = vrot.lane.b32.xlu0 %v4287, 116
          %v4631 = vpop.permute.xlu0 %4630
          %4632 = vrot.lane.b32.xlu0 %v4290, 116
          %v4633 = vpop.permute.xlu0 %4632
          %4634 = vrot.lane.b32.xlu0 %v4313, 116
          %v4635 = vpop.permute.xlu0 %4634
          %4636 = vrot.lane.b32.xlu0 %v4316, 116
          %v4637 = vpop.permute.xlu0 %4636
          %v4638 = vsel %vm3078, %v4631, 0
          %v4640 = vsel %vm3078, %v4633, 0
          %v4642 = vsel %vm3078, %v4635, 0
          %v4644 = vsel %vm3078, %v4637, 0
          %4646 = vmatpush.xpose.msra.mxu0 0.0
          %4647 = vmatpush.xpose.msra.mxu0 0.0
          %4648 = vmatpush.xpose.msra.mxu0 0.0
          %4649 = vmatpush.xpose.msra.mxu0 0.0
          %4650 = vmatpush.xpose.msra.mxu0 0.0
          %4651 = vmatpush.xpose.msra.mxu0 0.0
          %4652 = vmatpush.xpose.msra.mxu0 0.0
          %4653 = vmatpush.xpose.msra.mxu0 0.0
          %4654 = vmatpush.xpose.msra.mxu0 0.0
          %4655 = vmatpush.xpose.msra.mxu0 0.0
          %4656 = vmatpush.xpose.msra.mxu0 0.0
          %4657 = vmatpush.xpose.msra.mxu0 0.0
          %4658 = vmatpush.xpose.msra.mxu0 0.0
          %4659 = vmatpush.xpose.msra.mxu0 0.0
          %4660 = vmatpush.xpose.msra.mxu0 %v4644
          %4661 = vmatpush.xpose.msra.mxu0 %v4642
          %4662 = vmatmul.f32.gmra.mxu0 %v4638
          %v4663 = vpop.f32.mrf.mxu0
          %v4664 = vadd.f32 0.0, %v4663
          %4665 = vmatmul.f32.gmra.mxu0 %v4640
          %v4666 = vpop.f32.mrf.mxu0
          %v4667 = vadd.f32 0.0, %v4666
          %4668 = vdwg.mxu0
          %v4669 = vmul.f32 %v4664, 0.5
          %v4670 = vmul.f32 %v4667, 0.5
          %v4671 = vsel %vm3116, %v4669, -inf
          %4672 = vmax.xlane.f32.xlu0 %v4671
          %v4673 = vpop.xlane.xlu0 %4672
          %v4674 = vsel %vm3116, %v4670, -inf
          %4675 = vmax.xlane.f32.xlu0 %v4674
          %v4676 = vpop.xlane.xlu0 %4675
          %v4677 = vsub.f32 %v4669, %v4673
          %v4678 = vsub.f32 %v4670, %v4676
          %v4679 = vmul.f32 %v4677, 1.442695
          %v4680 = vpow.pop %v4679
          %v4681 = vmul.f32 %v4678, 1.442695
          %v4682 = vpow.pop %v4681
          %v4683 = vsel %vm3116, %v4680, 0.0
          %4684 = vadd.xlane.f32.xlu0 %v4683
          %v4685 = vpop.xlane.xlu0 %4684
          %v4686 = vsel %vm3116, %v4682, 0.0
          %4687 = vadd.xlane.f32.xlu0 %v4686
          %v4688 = vpop.xlane.xlu0 %4687
          %v4689 = vrcp.pop %v4685
          %v4690 = vrcp.pop %v4688
          %v4691 = vmul.f32 %v4680, %v4689
          %v4692 = vmul.f32 %v4682, %v4690
          %4693 = vrot.lane.b32.xlu0 %v4339, 116
          %v4694 = vpop.permute.xlu0 %4693
          %4695 = vrot.lane.b32.xlu0 %v4342, 116
          %v4696 = vpop.permute.xlu0 %4695
          %v4700 = vsel %vm3116, %v4691, 0
          %v4703 = vsel %vm3116, %v4692, 0
          %4705 = vmatpush.msra.mxu0 0.0
          %4706 = vmatpush.msra.mxu0 0.0
          %4707 = vmatpush.msra.mxu0 0.0
          %4708 = vmatpush.msra.mxu0 0.0
          %4709 = vmatpush.msra.mxu0 0.0
          %4710 = vmatpush.msra.mxu0 0.0
          %4711 = vmatpush.msra.mxu0 0.0
          %4712 = vmatpush.msra.mxu0 0.0
          %4713 = vmatpush.msra.mxu0 0.0
          %4714 = vmatpush.msra.mxu0 0.0
          %4715 = vmatpush.msra.mxu0 0.0
          %4716 = vmatpush.msra.mxu0 0.0
          %4717 = vmatpush.msra.mxu0 0.0
          %4718 = vmatpush.msra.mxu0 0.0
          %4719 = vmatpush.msra.mxu0 %v4696
          %4720 = vmatpush.msra.mxu0 %v4694
          %4721 = vmatmul.f32.gmra.mxu0 %v4700
          %v4722 = vpop.f32.mrf.mxu0
          %v4723 = vadd.f32 0.0, %v4722
          %4724 = vmatmul.f32.gmra.mxu0 %v4703
          %v4725 = vpop.f32.mrf.mxu0
          %v4726 = vadd.f32 0.0, %v4725
          %4727 = vdwg.mxu0
          %4728 = vrot.lane.b32.xlu0 %v4287, 112
          %v4729 = vpop.permute.xlu0 %4728
          %4730 = vrot.lane.b32.xlu0 %v4290, 112
          %v4731 = vpop.permute.xlu0 %4730
          %4732 = vrot.lane.b32.xlu0 %v4313, 112
          %v4733 = vpop.permute.xlu0 %4732
          %4734 = vrot.lane.b32.xlu0 %v4316, 112
          %v4735 = vpop.permute.xlu0 %4734
          %v4736 = vsel %vm3078, %v4729, 0
          %v4738 = vsel %vm3078, %v4731, 0
          %v4740 = vsel %vm3078, %v4733, 0
          %v4742 = vsel %vm3078, %v4735, 0
          %4744 = vmatpush.xpose.msra.mxu0 0.0
          %4745 = vmatpush.xpose.msra.mxu0 0.0
          %4746 = vmatpush.xpose.msra.mxu0 0.0
          %4747 = vmatpush.xpose.msra.mxu0 0.0
          %4748 = vmatpush.xpose.msra.mxu0 0.0
          %4749 = vmatpush.xpose.msra.mxu0 0.0
          %4750 = vmatpush.xpose.msra.mxu0 0.0
          %4751 = vmatpush.xpose.msra.mxu0 0.0
          %4752 = vmatpush.xpose.msra.mxu0 0.0
          %4753 = vmatpush.xpose.msra.mxu0 0.0
          %4754 = vmatpush.xpose.msra.mxu0 0.0
          %4755 = vmatpush.xpose.msra.mxu0 0.0
          %4756 = vmatpush.xpose.msra.mxu0 0.0
          %4757 = vmatpush.xpose.msra.mxu0 0.0
          %4758 = vmatpush.xpose.msra.mxu0 %v4742
          %4759 = vmatpush.xpose.msra.mxu0 %v4740
          %4760 = vmatmul.f32.gmra.mxu0 %v4736
          %v4761 = vpop.f32.mrf.mxu0
          %v4762 = vadd.f32 0.0, %v4761
          %4763 = vmatmul.f32.gmra.mxu0 %v4738
          %v4764 = vpop.f32.mrf.mxu0
          %v4765 = vadd.f32 0.0, %v4764
          %4766 = vdwg.mxu0
          %v4767 = vmul.f32 %v4762, 0.5
          %v4768 = vmul.f32 %v4765, 0.5
          %v4769 = vsel %vm3116, %v4767, -inf
          %4770 = vmax.xlane.f32.xlu0 %v4769
          %v4771 = vpop.xlane.xlu0 %4770
          %v4772 = vsel %vm3116, %v4768, -inf
          %4773 = vmax.xlane.f32.xlu0 %v4772
          %v4774 = vpop.xlane.xlu0 %4773
          %v4775 = vsub.f32 %v4767, %v4771
          %v4776 = vsub.f32 %v4768, %v4774
          %v4777 = vmul.f32 %v4775, 1.442695
          %v4778 = vpow.pop %v4777
          %v4779 = vmul.f32 %v4776, 1.442695
          %v4780 = vpow.pop %v4779
          %v4781 = vsel %vm3116, %v4778, 0.0
          %4782 = vadd.xlane.f32.xlu0 %v4781
          %v4783 = vpop.xlane.xlu0 %4782
          %v4784 = vsel %vm3116, %v4780, 0.0
          %4785 = vadd.xlane.f32.xlu0 %v4784
          %v4786 = vpop.xlane.xlu0 %4785
          %v4787 = vrcp.pop %v4783
          %v4788 = vrcp.pop %v4786
          %v4789 = vmul.f32 %v4778, %v4787
          %v4790 = vmul.f32 %v4780, %v4788
          %4791 = vrot.lane.b32.xlu0 %v4339, 112
          %v4792 = vpop.permute.xlu0 %4791
          %4793 = vrot.lane.b32.xlu0 %v4342, 112
          %v4794 = vpop.permute.xlu0 %4793
          %v4798 = vsel %vm3116, %v4789, 0
          %v4801 = vsel %vm3116, %v4790, 0
          %4803 = vmatpush.msra.mxu0 0.0
          %4804 = vmatpush.msra.mxu0 0.0
          %4805 = vmatpush.msra.mxu0 0.0
          %4806 = vmatpush.msra.mxu0 0.0
          %4807 = vmatpush.msra.mxu0 0.0
          %4808 = vmatpush.msra.mxu0 0.0
          %4809 = vmatpush.msra.mxu0 0.0
          %4810 = vmatpush.msra.mxu0 0.0
          %4811 = vmatpush.msra.mxu0 0.0
          %4812 = vmatpush.msra.mxu0 0.0
          %4813 = vmatpush.msra.mxu0 0.0
          %4814 = vmatpush.msra.mxu0 0.0
          %4815 = vmatpush.msra.mxu0 0.0
          %4816 = vmatpush.msra.mxu0 0.0
          %4817 = vmatpush.msra.mxu0 %v4794
          %4818 = vmatpush.msra.mxu0 %v4792
          %4819 = vmatmul.f32.gmra.mxu0 %v4798
          %v4820 = vpop.f32.mrf.mxu0
          %v4821 = vadd.f32 0.0, %v4820
          %4822 = vmatmul.f32.gmra.mxu0 %v4801
          %v4823 = vpop.f32.mrf.mxu0
          %v4824 = vadd.f32 0.0, %v4823
          %4825 = vdwg.mxu0
          %4826 = vrot.lane.b32.xlu0 %v4287, 108
          %v4827 = vpop.permute.xlu0 %4826
          %4828 = vrot.lane.b32.xlu0 %v4290, 108
          %v4829 = vpop.permute.xlu0 %4828
          %4830 = vrot.lane.b32.xlu0 %v4313, 108
          %v4831 = vpop.permute.xlu0 %4830
          %4832 = vrot.lane.b32.xlu0 %v4316, 108
          %v4833 = vpop.permute.xlu0 %4832
          %v4834 = vsel %vm3078, %v4827, 0
          %v4836 = vsel %vm3078, %v4829, 0
          %v4838 = vsel %vm3078, %v4831, 0
          %v4840 = vsel %vm3078, %v4833, 0
          %4842 = vmatpush.xpose.msra.mxu0 0.0
          %4843 = vmatpush.xpose.msra.mxu0 0.0
          %4844 = vmatpush.xpose.msra.mxu0 0.0
          %4845 = vmatpush.xpose.msra.mxu0 0.0
          %4846 = vmatpush.xpose.msra.mxu0 0.0
          %4847 = vmatpush.xpose.msra.mxu0 0.0
          %4848 = vmatpush.xpose.msra.mxu0 0.0
          %4849 = vmatpush.xpose.msra.mxu0 0.0
          %4850 = vmatpush.xpose.msra.mxu0 0.0
          %4851 = vmatpush.xpose.msra.mxu0 0.0
          %4852 = vmatpush.xpose.msra.mxu0 0.0
          %4853 = vmatpush.xpose.msra.mxu0 0.0
          %4854 = vmatpush.xpose.msra.mxu0 0.0
          %4855 = vmatpush.xpose.msra.mxu0 0.0
          %4856 = vmatpush.xpose.msra.mxu0 %v4840
          %4857 = vmatpush.xpose.msra.mxu0 %v4838
          %4858 = vmatmul.f32.gmra.mxu0 %v4834
          %v4859 = vpop.f32.mrf.mxu0
          %v4860 = vadd.f32 0.0, %v4859
          %4861 = vmatmul.f32.gmra.mxu0 %v4836
          %v4862 = vpop.f32.mrf.mxu0
          %v4863 = vadd.f32 0.0, %v4862
          %4864 = vdwg.mxu0
          %v4865 = vmul.f32 %v4860, 0.5
          %v4866 = vmul.f32 %v4863, 0.5
          %v4867 = vsel %vm3116, %v4865, -inf
          %4868 = vmax.xlane.f32.xlu0 %v4867
          %v4869 = vpop.xlane.xlu0 %4868
          %v4870 = vsel %vm3116, %v4866, -inf
          %4871 = vmax.xlane.f32.xlu0 %v4870
          %v4872 = vpop.xlane.xlu0 %4871
          %v4873 = vsub.f32 %v4865, %v4869
          %v4874 = vsub.f32 %v4866, %v4872
          %v4875 = vmul.f32 %v4873, 1.442695
          %v4876 = vpow.pop %v4875
          %v4877 = vmul.f32 %v4874, 1.442695
          %v4878 = vpow.pop %v4877
          %v4879 = vsel %vm3116, %v4876, 0.0
          %4880 = vadd.xlane.f32.xlu0 %v4879
          %v4881 = vpop.xlane.xlu0 %4880
          %v4882 = vsel %vm3116, %v4878, 0.0
          %4883 = vadd.xlane.f32.xlu0 %v4882
          %v4884 = vpop.xlane.xlu0 %4883
          %v4885 = vrcp.pop %v4881
          %v4886 = vrcp.pop %v4884
          %v4887 = vmul.f32 %v4876, %v4885
          %v4888 = vmul.f32 %v4878, %v4886
          %4889 = vrot.lane.b32.xlu0 %v4339, 108
          %v4890 = vpop.permute.xlu0 %4889
          %4891 = vrot.lane.b32.xlu0 %v4342, 108
          %v4892 = vpop.permute.xlu0 %4891
          %v4896 = vsel %vm3116, %v4887, 0
          %v4899 = vsel %vm3116, %v4888, 0
          %4901 = vmatpush.msra.mxu0 0.0
          %4902 = vmatpush.msra.mxu0 0.0
          %4903 = vmatpush.msra.mxu0 0.0
          %4904 = vmatpush.msra.mxu0 0.0
          %4905 = vmatpush.msra.mxu0 0.0
          %4906 = vmatpush.msra.mxu0 0.0
          %4907 = vmatpush.msra.mxu0 0.0
          %4908 = vmatpush.msra.mxu0 0.0
          %4909 = vmatpush.msra.mxu0 0.0
          %4910 = vmatpush.msra.mxu0 0.0
          %4911 = vmatpush.msra.mxu0 0.0
          %4912 = vmatpush.msra.mxu0 0.0
          %4913 = vmatpush.msra.mxu0 0.0
          %4914 = vmatpush.msra.mxu0 0.0
          %4915 = vmatpush.msra.mxu0 %v4892
          %4916 = vmatpush.msra.mxu0 %v4890
          %4917 = vmatmul.f32.gmra.mxu0 %v4896
          %v4918 = vpop.f32.mrf.mxu0
          %v4919 = vadd.f32 0.0, %v4918
          %4920 = vmatmul.f32.gmra.mxu0 %v4899
          %v4921 = vpop.f32.mrf.mxu0
          %v4922 = vadd.f32 0.0, %v4921
          %4923 = vdwg.mxu0
          %4924 = vrot.lane.b32.xlu0 %v4287, 104
          %v4925 = vpop.permute.xlu0 %4924
          %4926 = vrot.lane.b32.xlu0 %v4290, 104
          %v4927 = vpop.permute.xlu0 %4926
          %4928 = vrot.lane.b32.xlu0 %v4313, 104
          %v4929 = vpop.permute.xlu0 %4928
          %4930 = vrot.lane.b32.xlu0 %v4316, 104
          %v4931 = vpop.permute.xlu0 %4930
          %v4932 = vsel %vm3078, %v4925, 0
          %v4934 = vsel %vm3078, %v4927, 0
          %v4936 = vsel %vm3078, %v4929, 0
          %v4938 = vsel %vm3078, %v4931, 0
          %4940 = vmatpush.xpose.msra.mxu0 0.0
          %4941 = vmatpush.xpose.msra.mxu0 0.0
          %4942 = vmatpush.xpose.msra.mxu0 0.0
          %4943 = vmatpush.xpose.msra.mxu0 0.0
          %4944 = vmatpush.xpose.msra.mxu0 0.0
          %4945 = vmatpush.xpose.msra.mxu0 0.0
          %4946 = vmatpush.xpose.msra.mxu0 0.0
          %4947 = vmatpush.xpose.msra.mxu0 0.0
          %4948 = vmatpush.xpose.msra.mxu0 0.0
          %4949 = vmatpush.xpose.msra.mxu0 0.0
          %4950 = vmatpush.xpose.msra.mxu0 0.0
          %4951 = vmatpush.xpose.msra.mxu0 0.0
          %4952 = vmatpush.xpose.msra.mxu0 0.0
          %4953 = vmatpush.xpose.msra.mxu0 0.0
          %4954 = vmatpush.xpose.msra.mxu0 %v4938
          %4955 = vmatpush.xpose.msra.mxu0 %v4936
          %4956 = vmatmul.f32.gmra.mxu0 %v4932
          %v4957 = vpop.f32.mrf.mxu0
          %v4958 = vadd.f32 0.0, %v4957
          %4959 = vmatmul.f32.gmra.mxu0 %v4934
          %v4960 = vpop.f32.mrf.mxu0
          %v4961 = vadd.f32 0.0, %v4960
          %4962 = vdwg.mxu0
          %v4963 = vmul.f32 %v4958, 0.5
          %v4964 = vmul.f32 %v4961, 0.5
          %v4965 = vsel %vm3116, %v4963, -inf
          %4966 = vmax.xlane.f32.xlu0 %v4965
          %v4967 = vpop.xlane.xlu0 %4966
          %v4968 = vsel %vm3116, %v4964, -inf
          %4969 = vmax.xlane.f32.xlu0 %v4968
          %v4970 = vpop.xlane.xlu0 %4969
          %v4971 = vsub.f32 %v4963, %v4967
          %v4972 = vsub.f32 %v4964, %v4970
          %v4973 = vmul.f32 %v4971, 1.442695
          %v4974 = vpow.pop %v4973
          %v4975 = vmul.f32 %v4972, 1.442695
          %v4976 = vpow.pop %v4975
          %v4977 = vsel %vm3116, %v4974, 0.0
          %4978 = vadd.xlane.f32.xlu0 %v4977
          %v4979 = vpop.xlane.xlu0 %4978
          %v4980 = vsel %vm3116, %v4976, 0.0
          %4981 = vadd.xlane.f32.xlu0 %v4980
          %v4982 = vpop.xlane.xlu0 %4981
          %v4983 = vrcp.pop %v4979
          %v4984 = vrcp.pop %v4982
          %v4985 = vmul.f32 %v4974, %v4983
          %v4986 = vmul.f32 %v4976, %v4984
          %4987 = vrot.lane.b32.xlu0 %v4339, 104
          %v4988 = vpop.permute.xlu0 %4987
          %4989 = vrot.lane.b32.xlu0 %v4342, 104
          %v4990 = vpop.permute.xlu0 %4989
          %v4994 = vsel %vm3116, %v4985, 0
          %v4997 = vsel %vm3116, %v4986, 0
          %4999 = vmatpush.msra.mxu0 0.0
          %5000 = vmatpush.msra.mxu0 0.0
          %5001 = vmatpush.msra.mxu0 0.0
          %5002 = vmatpush.msra.mxu0 0.0
          %5003 = vmatpush.msra.mxu0 0.0
          %5004 = vmatpush.msra.mxu0 0.0
          %5005 = vmatpush.msra.mxu0 0.0
          %5006 = vmatpush.msra.mxu0 0.0
          %5007 = vmatpush.msra.mxu0 0.0
          %5008 = vmatpush.msra.mxu0 0.0
          %5009 = vmatpush.msra.mxu0 0.0
          %5010 = vmatpush.msra.mxu0 0.0
          %5011 = vmatpush.msra.mxu0 0.0
          %5012 = vmatpush.msra.mxu0 0.0
          %5013 = vmatpush.msra.mxu0 %v4990
          %5014 = vmatpush.msra.mxu0 %v4988
          %5015 = vmatmul.f32.gmra.mxu0 %v4994
          %v5016 = vpop.f32.mrf.mxu0
          %v5017 = vadd.f32 0.0, %v5016
          %5018 = vmatmul.f32.gmra.mxu0 %v4997
          %v5019 = vpop.f32.mrf.mxu0
          %v5020 = vadd.f32 0.0, %v5019
          %5021 = vdwg.mxu0
          %5022 = vrot.lane.b32.xlu0 %v4287, 100
          %v5023 = vpop.permute.xlu0 %5022
          %5024 = vrot.lane.b32.xlu0 %v4290, 100
          %v5025 = vpop.permute.xlu0 %5024
          %5026 = vrot.lane.b32.xlu0 %v4313, 100
          %v5027 = vpop.permute.xlu0 %5026
          %5028 = vrot.lane.b32.xlu0 %v4316, 100
          %v5029 = vpop.permute.xlu0 %5028
          %v5030 = vsel %vm3078, %v5023, 0
          %v5032 = vsel %vm3078, %v5025, 0
          %v5034 = vsel %vm3078, %v5027, 0
          %v5036 = vsel %vm3078, %v5029, 0
          %5038 = vmatpush.xpose.msra.mxu0 0.0
          %5039 = vmatpush.xpose.msra.mxu0 0.0
          %5040 = vmatpush.xpose.msra.mxu0 0.0
          %5041 = vmatpush.xpose.msra.mxu0 0.0
          %5042 = vmatpush.xpose.msra.mxu0 0.0
          %5043 = vmatpush.xpose.msra.mxu0 0.0
          %5044 = vmatpush.xpose.msra.mxu0 0.0
          %5045 = vmatpush.xpose.msra.mxu0 0.0
          %5046 = vmatpush.xpose.msra.mxu0 0.0
          %5047 = vmatpush.xpose.msra.mxu0 0.0
          %5048 = vmatpush.xpose.msra.mxu0 0.0
          %5049 = vmatpush.xpose.msra.mxu0 0.0
          %5050 = vmatpush.xpose.msra.mxu0 0.0
          %5051 = vmatpush.xpose.msra.mxu0 0.0
          %5052 = vmatpush.xpose.msra.mxu0 %v5036
          %5053 = vmatpush.xpose.msra.mxu0 %v5034
          %5054 = vmatmul.f32.gmra.mxu0 %v5030
          %v5055 = vpop.f32.mrf.mxu0
          %v5056 = vadd.f32 0.0, %v5055
          %5057 = vmatmul.f32.gmra.mxu0 %v5032
          %v5058 = vpop.f32.mrf.mxu0
          %v5059 = vadd.f32 0.0, %v5058
          %5060 = vdwg.mxu0
          %v5061 = vmul.f32 %v5056, 0.5
          %v5062 = vmul.f32 %v5059, 0.5
          %v5063 = vsel %vm3116, %v5061, -inf
          %5064 = vmax.xlane.f32.xlu0 %v5063
          %v5065 = vpop.xlane.xlu0 %5064
          %v5066 = vsel %vm3116, %v5062, -inf
          %5067 = vmax.xlane.f32.xlu0 %v5066
          %v5068 = vpop.xlane.xlu0 %5067
          %v5069 = vsub.f32 %v5061, %v5065
          %v5070 = vsub.f32 %v5062, %v5068
          %v5071 = vmul.f32 %v5069, 1.442695
          %v5072 = vpow.pop %v5071
          %v5073 = vmul.f32 %v5070, 1.442695
          %v5074 = vpow.pop %v5073
          %v5075 = vsel %vm3116, %v5072, 0.0
          %5076 = vadd.xlane.f32.xlu0 %v5075
          %v5077 = vpop.xlane.xlu0 %5076
          %v5078 = vsel %vm3116, %v5074, 0.0
          %5079 = vadd.xlane.f32.xlu0 %v5078
          %v5080 = vpop.xlane.xlu0 %5079
          %v5081 = vrcp.pop %v5077
          %v5082 = vrcp.pop %v5080
          %v5083 = vmul.f32 %v5072, %v5081
          %v5084 = vmul.f32 %v5074, %v5082
          %5085 = vrot.lane.b32.xlu0 %v4339, 100
          %v5086 = vpop.permute.xlu0 %5085
          %5087 = vrot.lane.b32.xlu0 %v4342, 100
          %v5088 = vpop.permute.xlu0 %5087
          %v5092 = vsel %vm3116, %v5083, 0
          %v5095 = vsel %vm3116, %v5084, 0
          %5097 = vmatpush.msra.mxu0 0.0
          %5098 = vmatpush.msra.mxu0 0.0
          %5099 = vmatpush.msra.mxu0 0.0
          %5100 = vmatpush.msra.mxu0 0.0
          %5101 = vmatpush.msra.mxu0 0.0
          %5102 = vmatpush.msra.mxu0 0.0
          %5103 = vmatpush.msra.mxu0 0.0
          %5104 = vmatpush.msra.mxu0 0.0
          %5105 = vmatpush.msra.mxu0 0.0
          %5106 = vmatpush.msra.mxu0 0.0
          %5107 = vmatpush.msra.mxu0 0.0
          %5108 = vmatpush.msra.mxu0 0.0
          %5109 = vmatpush.msra.mxu0 0.0
          %5110 = vmatpush.msra.mxu0 0.0
          %5111 = vmatpush.msra.mxu0 %v5088
          %5112 = vmatpush.msra.mxu0 %v5086
          %5113 = vmatmul.f32.gmra.mxu0 %v5092
          %v5114 = vpop.f32.mrf.mxu0
          %v5115 = vadd.f32 0.0, %v5114
          %5116 = vmatmul.f32.gmra.mxu0 %v5095
          %v5117 = vpop.f32.mrf.mxu0
          %v5118 = vadd.f32 0.0, %v5117
          %5119 = vdwg.mxu0
          %5122 = vrot.lane.b32.xlu0 %v4527, 4
          %v5123 = vpop.permute.xlu0 %5122
          %5124 = vrot.lane.b32.xlu0 %v4530, 4
          %v5125 = vpop.permute.xlu0 %5124
          %5130 = vrot.lane.b32.xlu0 %v4625, 8
          %v5131 = vpop.permute.xlu0 %5130
          %5132 = vrot.lane.b32.xlu0 %v4628, 8
          %v5133 = vpop.permute.xlu0 %5132
          %5138 = vrot.lane.b32.xlu0 %v4723, 12
          %v5139 = vpop.permute.xlu0 %5138
          %5140 = vrot.lane.b32.xlu0 %v4726, 12
          %v5141 = vpop.permute.xlu0 %5140
          %5146 = vrot.lane.b32.xlu0 %v4821, 16
          %v5147 = vpop.permute.xlu0 %5146
          %5148 = vrot.lane.b32.xlu0 %v4824, 16
          %v5149 = vpop.permute.xlu0 %5148
          %5154 = vrot.lane.b32.xlu0 %v4919, 20
          %v5155 = vpop.permute.xlu0 %5154
          %5156 = vrot.lane.b32.xlu0 %v4922, 20
          %v5157 = vpop.permute.xlu0 %5156
          %5162 = vrot.lane.b32.xlu0 %v5017, 24
          %v5163 = vpop.permute.xlu0 %5162
          %5164 = vrot.lane.b32.xlu0 %v5020, 24
          %v5165 = vpop.permute.xlu0 %5164
          %5170 = vrot.lane.b32.xlu0 %v5115, 28
          %v5171 = vpop.permute.xlu0 %5170
          %5172 = vrot.lane.b32.xlu0 %v5118, 28
          %v5173 = vpop.permute.xlu0 %5172
          %v5176 = vsel %vm3078, %v4427, %v5123
          %v5177 = vsel %vm3078, %v4430, %v5125
          %v5178 = vsel %vm2258, %v5176, %v5131
          %v5179 = vsel %vm2258, %v5177, %v5133
          %v5180 = vsel %vm3916, %v5178, %v5139
          %v5181 = vsel %vm3916, %v5179, %v5141
          %v5182 = vsel %vm3116, %v5180, %v5147
          %v5183 = vsel %vm3116, %v5181, %v5149
          %v5184 = vsel %vm3921, %v5182, %v5155
          %v5185 = vsel %vm3921, %v5183, %v5157
          %v5186 = vsel %vm3924, %v5184, %v5163
          %v5187 = vsel %vm3924, %v5185, %v5165
          %v5188 = vsel %vm3927, %v5186, %v5171
          %v5189 = vsel %vm3927, %v5187, %v5173
          %v5191 = vperm.slane %v4259, 0
          %v5194 = vsel %vm2368, %v5188, 0
          %v5197 = vsel %vm2368, %v5189, 0
          %5199 = vmatpush.msra.mxu0 0.0
          %5200 = vmatpush.msra.mxu0 0.0
          %5201 = vmatpush.msra.mxu0 0.0
          %5202 = vmatpush.msra.mxu0 0.0
          %5203 = vmatpush.msra.mxu0 0.0
          %5204 = vmatpush.msra.mxu0 0.0
          %5205 = vmatpush.msra.mxu0 0.0
          %5206 = vmatpush.msra.mxu0 0.0
          %5207 = vmatpush.msra.mxu0 0.0
          %5208 = vmatpush.msra.mxu0 0.0
          %5209 = vmatpush.msra.mxu0 0.0
          %5210 = vmatpush.msra.mxu0 0.0
          %5211 = vmatpush.msra.mxu0 %v4258
          %5212 = vmatpush.msra.mxu0 %v4257
          %5213 = vmatpush.msra.mxu0 %v4256
          %5214 = vmatpush.msra.mxu0 %v4255
          %5215 = vmatmul.f32.gmra.mxu0 %v5194
          %v5216 = vpop.f32.mrf.mxu0
          %v5217 = vadd.f32 %v5191, %v5216
          %5218 = vmatmul.f32.gmra.mxu0 %v5197
          %v5219 = vpop.f32.mrf.mxu0
          %v5220 = vadd.f32 %v5191, %v5219
          %5221 = vdwg.mxu0
          %v5222 = vadd.f32 %v4180, %v5217
          %v5223 = vadd.f32 %v4181, %v5220
          %v5224 = vsel %vm2368, %v5222, 0.0
          %5225 = vadd.xlane.f32.xlu0 %v5224
          %v5226 = vpop.xlane.xlu0 %5225
          %v5227 = vsel %vm2368, %v5223, 0.0
          %5228 = vadd.xlane.f32.xlu0 %v5227
          %v5229 = vpop.xlane.xlu0 %5228
          %v5230 = vmul.f32 %v5226, %v2381
          %v5231 = vmul.f32 %v5229, %v2381
          %v5232 = vsub.f32 %v5222, %v5230
          %v5233 = vsub.f32 %v5223, %v5231
          %v5234 = vmul.f32 %v5232, %v5232
          %v5235 = vmul.f32 %v5233, %v5233
          %v5236 = vsel %vm2368, %v5234, 0.0
          %5237 = vadd.xlane.f32.xlu0 %v5236
          %v5238 = vpop.xlane.xlu0 %5237
          %v5239 = vsel %vm2368, %v5235, 0.0
          %5240 = vadd.xlane.f32.xlu0 %v5239
          %v5241 = vpop.xlane.xlu0 %5240
          %v5242 = vmul.f32 %v5238, %v2381
          %v5243 = vmul.f32 %v5241, %v2381
          %v5244 = vadd.f32 %v5242, 1e-05
          %v5245 = vadd.f32 %v5243, 1e-05
          %v5246 = vrsqrt.pop %v5244
          %v5247 = vmul.f32 %v5246, %v5244
          %v5248 = vmul.f32 %v5247, %v5246
          %v5249 = vmul.f32 0.5, %v5248
          %v5250 = vsub.f32 1.5, %v5249
          %v5251 = vmul.f32 %v5246, %v5250
          %vm5252 = vweird.f32 %v5244
          %vm5253 = vweird.f32 %v5246
          %vm5254 = vmor %vm5252, %vm5253
          %v5255 = vsel %vm5254, %v5246, %v5251
          %v5256 = vrsqrt.pop %v5245
          %v5257 = vmul.f32 %v5256, %v5245
          %v5258 = vmul.f32 %v5257, %v5256
          %v5259 = vmul.f32 0.5, %v5258
          %v5260 = vsub.f32 1.5, %v5259
          %v5261 = vmul.f32 %v5256, %v5260
          %vm5262 = vweird.f32 %v5245
          %vm5263 = vweird.f32 %v5256
          %vm5264 = vmor %vm5262, %vm5263
          %v5265 = vsel %vm5264, %v5256, %v5261
          %v5266 = vmul.f32 %v5232, %v5255
          %v5267 = vmul.f32 %v5233, %v5265
          %v5269 = vperm.slane %v4184, 0
          %v5271 = vmul.f32 %v5266, %v5269
          %v5272 = vmul.f32 %v5267, %v5269
          %v5274 = vperm.slane %v4185, 0
          %v5276 = vadd.f32 %v5271, %v5274
          %v5277 = vadd.f32 %v5272, %v5274
          %v5278 = vld [vmem:[#allocation62] sm:$0xff]
          %v5279 = vld [vmem:[#allocation62 + $0x8] sm:$0xff]
          %v5280 = vld [vmem:[#allocation62 + $0x10] sm:$0xff]
          %v5281 = vld [vmem:[#allocation62 + $0x18] sm:$0xff]
          %v5282 = vld [vmem:[#allocation64] sm:$0x1]
          %v5283 = vld [vmem:[#allocation65] sm:$0xff]
          %v5284 = vld [vmem:[#allocation65 + $0x8] sm:$0xff]
          %v5285 = vld [vmem:[#allocation65 + $0x10] sm:$0xff]
          %v5286 = vld [vmem:[#allocation65 + $0x18] sm:$0xff]
          %v5287 = vld [vmem:[#allocation67] sm:$0x1]
          %v5289 = vperm.slane %v5282, 0
          %v5292 = vsel %vm2368, %v5276, 0
          %v5295 = vsel %vm2368, %v5277, 0
          %5297 = vmatpush.msra.mxu0 0.0
          %5298 = vmatpush.msra.mxu0 0.0
          %5299 = vmatpush.msra.mxu0 0.0
          %5300 = vmatpush.msra.mxu0 0.0
          %5301 = vmatpush.msra.mxu0 0.0
          %5302 = vmatpush.msra.mxu0 0.0
          %5303 = vmatpush.msra.mxu0 0.0
          %5304 = vmatpush.msra.mxu0 0.0
          %5305 = vmatpush.msra.mxu0 0.0
          %5306 = vmatpush.msra.mxu0 0.0
          %5307 = vmatpush.msra.mxu0 0.0
          %5308 = vmatpush.msra.mxu0 0.0
          %5309 = vmatpush.msra.mxu0 %v5281
          %5310 = vmatpush.msra.mxu0 %v5280
          %5311 = vmatpush.msra.mxu0 %v5279
          %5312 = vmatpush.msra.mxu0 %v5278
          %5313 = vmatmul.f32.gmra.mxu0 %v5292
          %v5314 = vpop.f32.mrf.mxu0
          %v5315 = vadd.f32 %v5289, %v5314
          %5316 = vmatmul.f32.gmra.mxu0 %v5295
          %v5317 = vpop.f32.mrf.mxu0
          %v5318 = vadd.f32 %v5289, %v5317
          %5319 = vdwg.mxu0
          %v5320 = vmul.f32 %v5315, 0.5
          %v5321 = vmul.f32 %v5318, 0.5
          %v5322 = vmul.f32 %v5315, 0.70710677
          %v5323 = vmul.f32 %v5318, 0.70710677
          %v5324 = vmul.f32 %v5322, %v5322
          %v5325 = vmin.f32 16.0, %v5324
          %v5326 = vmul.f32 %v5325, 2.1237322e-06
          %v5327 = vadd.f32 %v5326, 0.00028619796
          %v5328 = vmul.f32 %v5325, %v5327
          %v5329 = vadd.f32 %v5328, 0.0036580483
          %v5330 = vmul.f32 %v5325, %v5329
          %v5331 = vadd.f32 %v5330, 0.05243302
          %v5332 = vmul.f32 %v5325, %v5331
          %v5333 = vadd.f32 %v5332, 0.18741608
          %v5334 = vmul.f32 %v5325, %v5333
          %v5335 = vadd.f32 %v5334, 1.1283791
          %v5336 = vmul.f32 %v5322, %v5335
          %v5337 = vmul.f32 %v5325, 3.8918573e-05
          %v5338 = vadd.f32 %v5337, 0.001143296
          %v5339 = vmul.f32 %v5325, %v5338
          %v5340 = vadd.f32 %v5339, 0.014752088
          %v5341 = vmul.f32 %v5325, %v5340
          %v5342 = vadd.f32 %v5341, 0.112945676
          %v5343 = vmul.f32 %v5325, %v5342
          %v5344 = vadd.f32 %v5343, 0.4994258
          %v5345 = vmul.f32 %v5325, %v5344
          %v5346 = vadd.f32 %v5345, 1.0
          %v5347 = vrcp.pop %v5346
          %v5348 = vmul.f32 %v5346, %v5347
          %v5349 = vsub.f32 1.0, %v5348
          %v5350 = vmul.f32 %v5347, %v5349
          %v5351 = vadd.f32 %v5347, %v5350
          %vm5352 = vweird.f32 %v5346
          %vm5353 = vweird.f32 %v5347
          %vm5354 = vmor %vm5352, %vm5353
          %v5355 = vsel %vm5354, %v5347, %v5351
          %v5356 = vand.u32 2147483647, %v5346
          %vm5357 = vcmp.eq.f32.partialorder %v5356, 8.507059e+37
          %v5358 = vand.u32 %v5346, 2147483648
          %v5359 = vor.u32 1.1754944e-38, %v5358
          %v5360 = vsel %vm5357, %v5359, %v5355
          %v5361 = vmul.f32 %v5336, %v5360
          %v5362 = vmin.f32 %v5361, 1.0
          %v5363 = vmax.f32 %v5362, -1.0
          %v5364 = vmul.f32 %v5323, %v5323
          %v5365 = vmin.f32 16.0, %v5364
          %v5366 = vmul.f32 %v5365, 2.1237322e-06
          %v5367 = vadd.f32 %v5366, 0.00028619796
          %v5368 = vmul.f32 %v5365, %v5367
          %v5369 = vadd.f32 %v5368, 0.0036580483
          %v5370 = vmul.f32 %v5365, %v5369
          %v5371 = vadd.f32 %v5370, 0.05243302
          %v5372 = vmul.f32 %v5365, %v5371
          %v5373 = vadd.f32 %v5372, 0.18741608
          %v5374 = vmul.f32 %v5365, %v5373
          %v5375 = vadd.f32 %v5374, 1.1283791
          %v5376 = vmul.f32 %v5323, %v5375
          %v5377 = vmul.f32 %v5365, 3.8918573e-05
          %v5378 = vadd.f32 %v5377, 0.001143296
          %v5379 = vmul.f32 %v5365, %v5378
          %v5380 = vadd.f32 %v5379, 0.014752088
          %v5381 = vmul.f32 %v5365, %v5380
          %v5382 = vadd.f32 %v5381, 0.112945676
          %v5383 = vmul.f32 %v5365, %v5382
          %v5384 = vadd.f32 %v5383, 0.4994258
          %v5385 = vmul.f32 %v5365, %v5384
          %v5386 = vadd.f32 %v5385, 1.0
          %v5387 = vrcp.pop %v5386
          %v5388 = vmul.f32 %v5386, %v5387
          %v5389 = vsub.f32 1.0, %v5388
          %v5390 = vmul.f32 %v5387, %v5389
          %v5391 = vadd.f32 %v5387, %v5390
          %vm5392 = vweird.f32 %v5386
          %vm5393 = vweird.f32 %v5387
          %vm5394 = vmor %vm5392, %vm5393
          %v5395 = vsel %vm5394, %v5387, %v5391
          %v5396 = vand.u32 2147483647, %v5386
          %vm5397 = vcmp.eq.f32.partialorder %v5396, 8.507059e+37
          %v5398 = vand.u32 %v5386, 2147483648
          %v5399 = vor.u32 1.1754944e-38, %v5398
          %v5400 = vsel %vm5397, %v5399, %v5395
          %v5401 = vmul.f32 %v5376, %v5400
          %v5402 = vmin.f32 %v5401, 1.0
          %v5403 = vmax.f32 %v5402, -1.0
          %v5404 = vadd.f32 %v5363, 1.0
          %v5405 = vadd.f32 %v5403, 1.0
          %v5406 = vmul.f32 %v5320, %v5404
          %v5407 = vmul.f32 %v5321, %v5405
          %v5409 = vperm.slane %v5287, 0
          %v5412 = vsel %vm2368, %v5406, 0
          %v5415 = vsel %vm2368, %v5407, 0
          %5417 = vmatpush.msra.mxu0 0.0
          %5418 = vmatpush.msra.mxu0 0.0
          %5419 = vmatpush.msra.mxu0 0.0
          %5420 = vmatpush.msra.mxu0 0.0
          %5421 = vmatpush.msra.mxu0 0.0
          %5422 = vmatpush.msra.mxu0 0.0
          %5423 = vmatpush.msra.mxu0 0.0
          %5424 = vmatpush.msra.mxu0 0.0
          %5425 = vmatpush.msra.mxu0 0.0
          %5426 = vmatpush.msra.mxu0 0.0
          %5427 = vmatpush.msra.mxu0 0.0
          %5428 = vmatpush.msra.mxu0 0.0
          %5429 = vmatpush.msra.mxu0 %v5286
          %5430 = vmatpush.msra.mxu0 %v5285
          %5431 = vmatpush.msra.mxu0 %v5284
          %5432 = vmatpush.msra.mxu0 %v5283
          %5433 = vmatmul.f32.gmra.mxu0 %v5412
          %v5434 = vpop.f32.mrf.mxu0
          %v5435 = vadd.f32 %v5409, %v5434
          %5436 = vmatmul.f32.gmra.mxu0 %v5415
          %v5437 = vpop.f32.mrf.mxu0
          %v5438 = vadd.f32 %v5409, %v5437
          %5439 = vdwg.mxu0
          %v5440 = vadd.f32 %v5222, %v5435
          %v5441 = vadd.f32 %v5223, %v5438
        $region409: #{perciever_encoder_forward.1} parent=231 // loop_footer
          %s2913 = sadd.s32 1, %s2909
        $region410: #{perciever_encoder_forward.1} parent=231 // loop_footer_branch
          %2908 = sbr.rel target = $region406
        $region411: #{perciever_encoder_forward.1} parent=231 // loop_exit
          _
        %5442 = vst.msk [vmem:[%s2234] sm:$0xff] %vm2368, %v2914
        %5443 = vst.msk [vmem:[%s2234 + $0x8] sm:$0xff] %vm2368, %v2915
        %s5444 = sand.u32 %s1274, 1
        %s5445 = scalar_lea.sflag [#allocation4], %s5444
        %s5446 = sand.u32 %s1274, 1
        %s5447 = smul.addr %s5446, 16
        %s5448 = scalar_lea.vmem [#allocation68], %s5447
        // Predicated region
        $region412: #{perciever_encoder_forward.1} parent=231 // pred_check
          %p5449 = pneg %p1284
        $region413: #{perciever_encoder_forward.1} parent=231 // pred_check_branch
          %5451 = sbr.rel (%p5449) target = $region415
        $region414: #{perciever_encoder_forward.1} parent=231 // pred_region
          %5453 = vsyncadd %s5445, 0
          %s5454 = smul.addr %s143, 2
          %s5455 = smul.addr %s5454, 8
          %s5456 = scalar_lea.hbm %s107, %s5455
          %s5457 = sshll.u32 %s5448, 4
          %s5458 = int_to_ptr.vmem [resolvable:$true] %s5457
          %s5459 = sshll.u32 %s5456, 4
          %s5460 = int_to_ptr.hbm [resolvable:$true] %s5459
          %5465 = dma.vmem_to_hbm [thread:$0]  %s5458, 256, %s5460, %s5445, 128, 128, 8
        $region415: #{perciever_encoder_forward.1} parent=231 // pred_fallthru
          _
      $region232: #{perciever_encoder_forward.1} parent=5 // pred_fallthru
        _
      %p5466 = scmp.le.s32.totalorder 2, %s138
      // Predicated region
      $region416: #{perciever_encoder_forward.1} parent=5 // pred_check
        %p5467 = pneg %p5466
      $region417: #{perciever_encoder_forward.1} parent=5 // pred_check_branch
        %5469 = sbr.rel (%p5467) target = $region419
      $region418: #{perciever_encoder_forward.1} parent=5 // pred_region
        %s5470 = ssub.s32 %s138, 2
        // Predicated region
        $region420: #{perciever_encoder_forward.1} parent=418 // pred_check
          %p5471 = pneg %p1290
        $region421: #{perciever_encoder_forward.1} parent=418 // pred_check_branch
          %5473 = sbr.rel (%p5471) target = $region423
        $region422: #{perciever_encoder_forward.1} parent=418 // pred_region
          %s5474 = sand.u32 %s1275, 1
          %s5475 = scalar_lea.sflag [#allocation4], %s5474
          %s5476 = sand.u32 %s1275, 1
          %s5477 = smul.addr %s5476, 16
          %s5478 = scalar_lea.vmem [#allocation68], %s5477
          %5480 = dma.done %s5475, 256
        $region423: #{perciever_encoder_forward.1} parent=418 // pred_fallthru
          _
      $region419: #{perciever_encoder_forward.1} parent=5 // pred_fallthru
        _
    $region6: #{perciever_encoder_forward.1} parent=1 // loop_footer
      %s142 = sadd.s32 1, %s138
    $region7: #{perciever_encoder_forward.1} parent=1 // loop_footer_branch
      %137 = sbr.rel target = $region3
    $region8: #{perciever_encoder_forward.1} parent=1 // loop_exit
      _
    %5481 = vsyncpa [#allocation3], 1
    %s5482 = scalar_lea.sflag [#allocation3], 1
    %5483 = vsyncpa %s5482, 1
    %5484 = vsyncpa [#allocation6], 1
    %5485 = vsyncpa [#allocation9], 1
    %5486 = vsyncpa [#allocation12], 1
    %5487 = vsyncpa [#allocation15], 1
    %5488 = vsyncpa [#allocation18], 1
    %5489 = vsyncpa [#allocation21], 1
    %5490 = vsyncpa [#allocation24], 1
    %5491 = vsyncpa [#allocation27], 1
    %5492 = vsyncpa [#allocation30], 1
    %5493 = vsyncpa [#allocation33], 1
    %5494 = vsyncpa [#allocation36], 1
    %5495 = vsyncpa [#allocation39], 1
    %5496 = vsyncpa [#allocation42], 1
    %5497 = vsyncpa [#allocation45], 1
    %5498 = vsyncpa [#allocation48], 1
    %5499 = vsyncpa [#allocation51], 1
    %5500 = vsyncpa [#allocation54], 1
    %5501 = vsyncpa [#allocation57], 1
    %5502 = vsyncpa [#allocation60], 1
    %5503 = vsyncpa [#allocation63], 1
    %5504 = vsyncpa [#allocation66], 1
    %5505 = vsyncpa [#allocation4], 1
    %s5506 = scalar_lea.sflag [#allocation4], 1
    %5507 = vsyncpa %s5506, 1

</llo_original>
